<compile_context>
chip_gen: v7x
topology: tpu7x:2x2x1
jax: 0.10.0
libtpu: 0.0.40
codegen_flags: <defaults>
</compile_context>

<pallas_src>
import math
import functools

import jax
import jax.numpy as jnp
from jax.experimental import pallas as pl
from jax.experimental.pallas import tpu as pltpu


def _mlp_kernel(*refs, num_layers):
    """Fused MLP: refs = (x, w_0, b_0, ..., w_{L-1}, b_{L-1}, out)."""
    x_ref = refs[0]
    o_ref = refs[-1]

    h = x_ref[...]
    for layer in range(num_layers):
        w_ref = refs[1 + 2 * layer]
        b_ref = refs[2 + 2 * layer]
        h = jnp.dot(h, w_ref[...], preferred_element_type=jnp.float32)
        h = h + b_ref[...]
        if layer < num_layers - 1:
            h = jnp.maximum(h, 0.0)  # ReLU
    o_ref[...] = h.astype(o_ref.dtype)


def init_params(key, depth=2, in_features=1280, out_features=1280):
    """Deterministic init matching nn.Linear defaults (kaiming_uniform(a=sqrt(5))
    == U(-1/sqrt(fan_in), 1/sqrt(fan_in)) for both weight and bias).

    Weights are stored pre-transposed as (in, out) so the kernel does x @ W.
    """
    params = []
    fan_in = in_features
    layer_outs = [in_features] * (depth - 1) + [out_features]
    for out_f in layer_outs:
        key, kw, kb = jax.random.split(key, 3)
        bound = 1.0 / math.sqrt(fan_in)
        w = jax.random.uniform(kw, (fan_in, out_f), jnp.float32, -bound, bound)
        b = jax.random.uniform(kb, (1, out_f), jnp.float32, -bound, bound)
        params.append((w, b))
        fan_in = out_f
    return params


# Switch to the M-tiled pipelined path once the batch is big enough that
# per-tile DMA/compute overlap (and megacore row-splitting) pays for the grid.
_TILED_THRESHOLD = 512
_TM = 256


def single_mlp_forward(x, params):
    """x: (batch, 1280) float32. Returns (batch, out_features) float32."""
    batch, in_f = x.shape
    num_layers = len(params)
    n_out = params[-1][0].shape[1]

    kernel = functools.partial(_mlp_kernel, num_layers=num_layers)

    args = []
    for w, b in params:
        args.append(w)
        args.append(b)

    x_p = x.astype(jnp.float32)

    if batch <= _TILED_THRESHOLD:
        # ---- gridless path: everything resident in VMEM, single invocation ----
        m_pad = ((batch + 7) // 8) * 8  # sublane-align M
        if m_pad != batch:
            x_p = jnp.pad(x_p, ((0, m_pad - batch), (0, 0)))

        out = pl.pallas_call(
            kernel,
            out_shape=jax.ShapeDtypeStruct((m_pad, n_out), jnp.float32),
            in_specs=[pl.BlockSpec(memory_space=pltpu.MemorySpace.VMEM)
                      for _ in range(1 + len(args))],
            out_specs=pl.BlockSpec(memory_space=pltpu.MemorySpace.VMEM),
            compiler_params=pltpu.CompilerParams(vmem_limit_bytes=48 << 20),
        )(x_p, *args)
        return out[:batch]

    # ---- tiled path: 1-D parallel grid over M tiles ----
    tm = _TM
    m_pad = ((batch + tm - 1) // tm) * tm
    if m_pad != batch:
        x_p = jnp.pad(x_p, ((0, m_pad - batch), (0, 0)))

    in_specs = [pl.BlockSpec((tm, in_f), lambda i: (i, 0))]
    for w, b in params:
        kf, nf = w.shape
        in_specs.append(pl.BlockSpec((kf, nf), lambda i: (0, 0)))   # resident weight
        in_specs.append(pl.BlockSpec((1, nf), lambda i: (0, 0)))    # resident bias

    out = pl.pallas_call(
        kernel,
        out_shape=jax.ShapeDtypeStruct((m_pad, n_out), jnp.float32),
        grid=(m_pad // tm,),
        in_specs=in_specs,
        out_specs=pl.BlockSpec((tm, n_out), lambda i: (i, 0)),
        compiler_params=pltpu.CompilerParams(
            dimension_semantics=("parallel",),
            vmem_limit_bytes=48 << 20),
    )(x_p, *args)
    return out[:batch]


def _reference(x, params):
    """Pure-JAX reference (same math, highest precision)."""
    h = x.astype(jnp.float32)
    for i, (w, b) in enumerate(params):
        h = jnp.dot(h, w, precision=jax.lax.Precision.HIGHEST) + b
        if i < len(params) - 1:
            h = jnp.maximum(h, 0.0)
    return h


if __name__ == "__main__":
    key = jax.random.PRNGKey(0)
    kx, kx2, kp = jax.random.split(key, 3)

    features = 1280  # module fixes feature width at 1280
    params = init_params(kp, depth=2, in_features=features, out_features=features)

    # Primary (small) test: batch=2 -> gridless path.
    batch = 2
    x = jax.random.normal(kx, (batch, features), jnp.float32)
    out = jax.block_until_ready(single_mlp_forward(x, params))
    assert out.shape == (batch, features), out.shape
    ref = _reference(x, params)
    max_err = float(jnp.max(jnp.abs(out - ref)))
    assert jnp.allclose(out, ref, rtol=2e-2, atol=2e-2), max_err

    # Secondary test: a larger batch exercises the M-tiled "parallel" grid path.
    batch2 = 600
    x2 = jax.random.normal(kx2, (batch2, features), jnp.float32)
    out2 = jax.block_until_ready(single_mlp_forward(x2, params))
    assert out2.shape == (batch2, features), out2.shape
    ref2 = _reference(x2, params)
    max_err2 = float(jnp.max(jnp.abs(out2 - ref2)))
    assert jnp.allclose(out2, ref2, rtol=2e-2, atol=2e-2), max_err2

    print("KERNEL_OK")
</pallas_src>

<mosaic_0001>
module attributes {stable_mosaic.version = 11 : i64} {
  func.func @_mlp_kernel(%arg0: memref<8x1280xf32, #tpu.memory_space<vmem>>, %arg1: memref<1280x1280xf32, #tpu.memory_space<vmem>>, %arg2: memref<1x1280xf32, #tpu.memory_space<vmem>>, %arg3: memref<1280x1280xf32, #tpu.memory_space<vmem>>, %arg4: memref<1x1280xf32, #tpu.memory_space<vmem>>, %arg5: memref<8x1280xf32, #tpu.memory_space<vmem>>) attributes {dimension_semantics = [], scalar_prefetch = 0 : i64, scratch_operands = 0 : i64, tpu.core_type = #tpu.core_type<tc>} {
    %c0 = arith.constant 0 : index
    %c0_0 = arith.constant 0 : index
    %0 = vector.load %arg0[%c0, %c0_0] : memref<8x1280xf32, #tpu.memory_space<vmem>>, vector<8x1280xf32>
    %c0_1 = arith.constant 0 : index
    %c0_2 = arith.constant 0 : index
    %1 = vector.load %arg1[%c0_1, %c0_2] : memref<1280x1280xf32, #tpu.memory_space<vmem>>, vector<1280x1280xf32>
    %cst = arith.constant dense<0.000000e+00> : vector<8x1280xf32>
    %2 = tpu.matmul %0, %1, %cst {dimension_numbers = #tpu.dot_dimension_numbers<[1], [0], [0], [1], [0, 0, 1, 1], [], []>} : vector<8x1280xf32>, vector<1280x1280xf32>, vector<8x1280xf32> -> vector<8x1280xf32>
    %c0_3 = arith.constant 0 : index
    %c0_4 = arith.constant 0 : index
    %3 = vector.load %arg2[%c0_3, %c0_4] : memref<1x1280xf32, #tpu.memory_space<vmem>>, vector<1x1280xf32>
    %4 = vector.broadcast %3 : vector<1x1280xf32> to vector<8x1280xf32>
    %5 = arith.addf %2, %4 : vector<8x1280xf32>
    %cst_5 = arith.constant 0.000000e+00 : f32
    %6 = vector.broadcast %cst_5 : f32 to vector<8x1280xf32>
    %7 = arith.maximumf %5, %6 : vector<8x1280xf32>
    %c0_6 = arith.constant 0 : index
    %c0_7 = arith.constant 0 : index
    %8 = vector.load %arg3[%c0_6, %c0_7] : memref<1280x1280xf32, #tpu.memory_space<vmem>>, vector<1280x1280xf32>
    %cst_8 = arith.constant dense<0.000000e+00> : vector<8x1280xf32>
    %9 = tpu.matmul %7, %8, %cst_8 {dimension_numbers = #tpu.dot_dimension_numbers<[1], [0], [0], [1], [0, 0, 1, 1], [], []>} : vector<8x1280xf32>, vector<1280x1280xf32>, vector<8x1280xf32> -> vector<8x1280xf32>
    %c0_9 = arith.constant 0 : index
    %c0_10 = arith.constant 0 : index
    %10 = vector.load %arg4[%c0_9, %c0_10] : memref<1x1280xf32, #tpu.memory_space<vmem>>, vector<1x1280xf32>
    %11 = vector.broadcast %10 : vector<1x1280xf32> to vector<8x1280xf32>
    %12 = arith.addf %9, %11 : vector<8x1280xf32>
    %c0_11 = arith.constant 0 : index
    %c0_12 = arith.constant 0 : index
    %13 = vector.load %arg5[%c0_11, %c0_12] : memref<8x1280xf32, #tpu.memory_space<vmem>>, vector<8x1280xf32>
    tpu.vector_store %arg5[%c0_11, %c0_12], %12 {strides = array<i32>} : memref<8x1280xf32, #tpu.memory_space<vmem>>, vector<8x1280xf32>,
    return
  }
}

</mosaic_0001>

<llo_original>
// kernel: tpu_custom_call.1
$region0: #{tpu_custom_call.1}
  #allocation0 [shape = 'u32[]', space=smem, size = 0x4, offset = 0x4, fixed_abs, tag = 'smem constant byte address 0x4 - core index']
  #allocation1 [shape = 'u32[144,128]{1,0:T(1,128)}', space=vmem, size = 0x12000, scoped, tag = 'internal scratch']
  %s0 = inlined_call_operand.hbm [shape: f32[8,1280], index: 0, kind: input, shape index: {}]
  %s1 = inlined_call_operand.hbm [shape: f32[1280,1280], index: 1, kind: input, shape index: {}]
  %s2 = inlined_call_operand.hbm [shape: f32[1,1280], index: 2, kind: input, shape index: {}]
  %s3 = inlined_call_operand.hbm [shape: f32[1280,1280], index: 3, kind: input, shape index: {}]
  %s4 = inlined_call_operand.hbm [shape: f32[1,1280], index: 4, kind: input, shape index: {}]
  %s5 = inlined_call_operand.hbm [shape: f32[8,1280], index: 5, kind: output, shape index: {}]
  %s6 = sld [smem:[#allocation0]]
  $region50: #{tpu_custom_call.1} parent=0
    _
  %s8 = ssub.s32 1, %s6
  %s9 = scalar_select 0, %s8, %s6
  $region1: #{tpu_custom_call.1} parent=0
    #allocation2 [shape = 'u8[40960]{0}', space=vmem, size = 0xa000, scoped, tag = 'input window, operand 0, single buffered']
    #allocation3 [shape = 's32[1]{0}', space=sflag, size = 0x4, scoped, tag = 'scoped memory for tpu_custom_call.1']
    #allocation4 [shape = 's32[1]{0}', space=sflag, size = 0x4, scoped, tag = 'scoped memory for tpu_custom_call.1']
    #allocation5 [shape = 'u8[6553600]{0}', space=vmem, size = 0x640000, scoped, tag = 'input window, operand 1, single buffered']
    #allocation6 [shape = 's32[1]{0}', space=sflag, size = 0x4, scoped, tag = 'scoped memory for tpu_custom_call.1']
    #allocation7 [shape = 'u8[5120]{0}', space=vmem, size = 0x1400, scoped, tag = 'input window, operand 2, single buffered']
    #allocation8 [shape = 'u8[6553600]{0}', space=vmem, size = 0x640000, scoped, tag = 'input window, operand 3, single buffered']
    #allocation9 [shape = 's32[1]{0}', space=sflag, size = 0x4, scoped, tag = 'scoped memory for tpu_custom_call.1']
    #allocation10 [shape = 'u8[5120]{0}', space=vmem, size = 0x1400, scoped, tag = 'input window, operand 4, single buffered']
    #allocation11 [shape = 'u8[40960]{0}', space=vmem, size = 0xa000, scoped, tag = 'output window, operand 0, single buffered']
    %10 = vsyncpa [#allocation3], 0
    %11 = vsyncpa [#allocation6], 0
    %12 = vsyncpa [#allocation9], 0
    %13 = vsyncpa [#allocation4], 0
    // Predicated region
    $region2: #{tpu_custom_call.1} parent=1 // pred_check
      _
    $region3: #{tpu_custom_call.1} parent=1 // pred_check_branch
      %15 = sbr.rel (0) target = $region5
    $region4: #{tpu_custom_call.1} parent=1 // pred_region
      %s17 = ssub.s32 1280, 1280
      %18 = vsyncadd [#allocation3], %s17
      %s20 = sshll.u32 [#allocation2], 4
      %s21 = int_to_ptr.vmem [resolvable:$true] %s20
      %23 = dma.hbm_to_vmem [thread:$0]  %s0, 1280, %s21, [#allocation3]
    $region5: #{tpu_custom_call.1} parent=1 // pred_fallthru
      _
    // Predicated region
    $region6: #{tpu_custom_call.1} parent=1 // pred_check
      _
    $region7: #{tpu_custom_call.1} parent=1 // pred_check_branch
      %25 = sbr.rel (0) target = $region9
    $region8: #{tpu_custom_call.1} parent=1 // pred_region
      %s27 = ssub.s32 204800, 204800
      %28 = vsyncadd [#allocation6], %s27
      %s29 = sshll.u32 [#allocation5], 4
      %s30 = int_to_ptr.vmem [resolvable:$true] %s29
      %35 = dma.hbm_to_vmem [thread:$0]  %s1, 204800, %s30, [#allocation6], 1280, 1280, 80
    $region9: #{tpu_custom_call.1} parent=1 // pred_fallthru
      _
    // Predicated region
    $region10: #{tpu_custom_call.1} parent=1 // pred_check
      _
    $region11: #{tpu_custom_call.1} parent=1 // pred_check_branch
      %37 = sbr.rel (0) target = $region13
    $region12: #{tpu_custom_call.1} parent=1 // pred_region
      %s39 = ssub.s32 160, 160
      %40 = vsyncadd [#allocation6], %s39
      %s42 = sshll.u32 [#allocation7], 4
      %s43 = int_to_ptr.vmem [resolvable:$true] %s42
      %45 = dma.hbm_to_vmem [thread:$0]  %s2, 160, %s43, [#allocation6]
    $region13: #{tpu_custom_call.1} parent=1 // pred_fallthru
      _
    // Predicated region
    $region14: #{tpu_custom_call.1} parent=1 // pred_check
      _
    $region15: #{tpu_custom_call.1} parent=1 // pred_check_branch
      %47 = sbr.rel (0) target = $region17
    $region16: #{tpu_custom_call.1} parent=1 // pred_region
      %s49 = ssub.s32 204800, 204800
      %50 = vsyncadd [#allocation9], %s49
      %s51 = sshll.u32 [#allocation8], 4
      %s52 = int_to_ptr.vmem [resolvable:$true] %s51
      %57 = dma.hbm_to_vmem [thread:$0]  %s3, 204800, %s52, [#allocation9], 1280, 1280, 80
    $region17: #{tpu_custom_call.1} parent=1 // pred_fallthru
      _
    // Predicated region
    $region18: #{tpu_custom_call.1} parent=1 // pred_check
      _
    $region19: #{tpu_custom_call.1} parent=1 // pred_check_branch
      %59 = sbr.rel (0) target = $region21
    $region20: #{tpu_custom_call.1} parent=1 // pred_region
      %s61 = ssub.s32 160, 160
      %62 = vsyncadd [#allocation9], %s61
      %s64 = sshll.u32 [#allocation10], 4
      %s65 = int_to_ptr.vmem [resolvable:$true] %s64
      %67 = dma.hbm_to_vmem [thread:$0]  %s4, 160, %s65, [#allocation9]
    $region21: #{tpu_custom_call.1} parent=1 // pred_fallthru
      _
    // Predicated region
    $region22: #{tpu_custom_call.1} parent=1 // pred_check
      _
    $region23: #{tpu_custom_call.1} parent=1 // pred_check_branch
      %69 = sbr.rel (0) target = $region25
    $region24: #{tpu_custom_call.1} parent=1 // pred_region
      %70 = dma.done [#allocation3], 1280
    $region25: #{tpu_custom_call.1} parent=1 // pred_fallthru
      _
    // Predicated region
    $region26: #{tpu_custom_call.1} parent=1 // pred_check
      _
    $region27: #{tpu_custom_call.1} parent=1 // pred_check_branch
      %72 = sbr.rel (0) target = $region29
    $region28: #{tpu_custom_call.1} parent=1 // pred_region
      %73 = dma.done [#allocation6], 204800
    $region29: #{tpu_custom_call.1} parent=1 // pred_fallthru
      _
    // Predicated region
    $region30: #{tpu_custom_call.1} parent=1 // pred_check
      _
    $region31: #{tpu_custom_call.1} parent=1 // pred_check_branch
      %75 = sbr.rel (0) target = $region33
    $region32: #{tpu_custom_call.1} parent=1 // pred_region
      %76 = dma.done [#allocation6], 160
    $region33: #{tpu_custom_call.1} parent=1 // pred_fallthru
      _
    // Predicated region
    $region34: #{tpu_custom_call.1} parent=1 // pred_check
      _
    $region35: #{tpu_custom_call.1} parent=1 // pred_check_branch
      %78 = sbr.rel (0) target = $region37
    $region36: #{tpu_custom_call.1} parent=1 // pred_region
      %79 = dma.done [#allocation9], 204800
    $region37: #{tpu_custom_call.1} parent=1 // pred_fallthru
      _
    // Predicated region
    $region38: #{tpu_custom_call.1} parent=1 // pred_check
      _
    $region39: #{tpu_custom_call.1} parent=1 // pred_check_branch
      %81 = sbr.rel (0) target = $region41
    $region40: #{tpu_custom_call.1} parent=1 // pred_region
      %82 = dma.done [#allocation9], 160
    $region41: #{tpu_custom_call.1} parent=1 // pred_fallthru
      _
    %v83 = vld [vmem:[#allocation2] sm:$0xff]
    %v84 = vld [vmem:[#allocation2 + $0x8] sm:$0xff]
    %v85 = vld [vmem:[#allocation2 + $0x10] sm:$0xff]
    %v86 = vld [vmem:[#allocation2 + $0x18] sm:$0xff]
    %v87 = vld [vmem:[#allocation2 + $0x20] sm:$0xff]
    %v88 = vld [vmem:[#allocation2 + $0x28] sm:$0xff]
    %v89 = vld [vmem:[#allocation2 + $0x30] sm:$0xff]
    %v90 = vld [vmem:[#allocation2 + $0x38] sm:$0xff]
    %v91 = vld [vmem:[#allocation2 + $0x40] sm:$0xff]
    %v92 = vld [vmem:[#allocation2 + $0x48] sm:$0xff]
    %v93 = vld [vmem:[#allocation5] sm:$0xff]
    %v94 = vld [vmem:[#allocation5 + $0x8] sm:$0xff]
    %v95 = vld [vmem:[#allocation5 + $0x10] sm:$0xff]
    %v96 = vld [vmem:[#allocation5 + $0x18] sm:$0xff]
    %v97 = vld [vmem:[#allocation5 + $0x20] sm:$0xff]
    %v98 = vld [vmem:[#allocation5 + $0x28] sm:$0xff]
    %v99 = vld [vmem:[#allocation5 + $0x30] sm:$0xff]
    %v100 = vld [vmem:[#allocation5 + $0x38] sm:$0xff]
    %v101 = vld [vmem:[#allocation5 + $0x40] sm:$0xff]
    %v102 = vld [vmem:[#allocation5 + $0x48] sm:$0xff]
    %v103 = vld [vmem:[#allocation5 + $0x50] sm:$0xff]
    %v104 = vld [vmem:[#allocation5 + $0x58] sm:$0xff]
    %v105 = vld [vmem:[#allocation5 + $0x60] sm:$0xff]
    %v106 = vld [vmem:[#allocation5 + $0x68] sm:$0xff]
    %v107 = vld [vmem:[#allocation5 + $0x70] sm:$0xff]
    %v108 = vld [vmem:[#allocation5 + $0x78] sm:$0xff]
    %v109 = vld [vmem:[#allocation5 + $0x80] sm:$0xff]
    %v110 = vld [vmem:[#allocation5 + $0x88] sm:$0xff]
    %v111 = vld [vmem:[#allocation5 + $0x90] sm:$0xff]
    %v112 = vld [vmem:[#allocation5 + $0x98] sm:$0xff]
    %v113 = vld [vmem:[#allocation5 + $0xa0] sm:$0xff]
    %v114 = vld [vmem:[#allocation5 + $0xa8] sm:$0xff]
    %v115 = vld [vmem:[#allocation5 + $0xb0] sm:$0xff]
    %v116 = vld [vmem:[#allocation5 + $0xb8] sm:$0xff]
    %v117 = vld [vmem:[#allocation5 + $0xc0] sm:$0xff]
    %v118 = vld [vmem:[#allocation5 + $0xc8] sm:$0xff]
    %v119 = vld [vmem:[#allocation5 + $0xd0] sm:$0xff]
    %v120 = vld [vmem:[#allocation5 + $0xd8] sm:$0xff]
    %v121 = vld [vmem:[#allocation5 + $0xe0] sm:$0xff]
    %v122 = vld [vmem:[#allocation5 + $0xe8] sm:$0xff]
    %v123 = vld [vmem:[#allocation5 + $0xf0] sm:$0xff]
    %v124 = vld [vmem:[#allocation5 + $0xf8] sm:$0xff]
    %v125 = vld [vmem:[#allocation5 + $0x100] sm:$0xff]
    %v126 = vld [vmem:[#allocation5 + $0x108] sm:$0xff]
    %v127 = vld [vmem:[#allocation5 + $0x110] sm:$0xff]
    %v128 = vld [vmem:[#allocation5 + $0x118] sm:$0xff]
    %v129 = vld [vmem:[#allocation5 + $0x120] sm:$0xff]
    %v130 = vld [vmem:[#allocation5 + $0x128] sm:$0xff]
    %v131 = vld [vmem:[#allocation5 + $0x130] sm:$0xff]
    %v132 = vld [vmem:[#allocation5 + $0x138] sm:$0xff]
    %v133 = vld [vmem:[#allocation5 + $0x140] sm:$0xff]
    %v134 = vld [vmem:[#allocation5 + $0x148] sm:$0xff]
    %v135 = vld [vmem:[#allocation5 + $0x150] sm:$0xff]
    %v136 = vld [vmem:[#allocation5 + $0x158] sm:$0xff]
    %v137 = vld [vmem:[#allocation5 + $0x160] sm:$0xff]
    %v138 = vld [vmem:[#allocation5 + $0x168] sm:$0xff]
    %v139 = vld [vmem:[#allocation5 + $0x170] sm:$0xff]
    %v140 = vld [vmem:[#allocation5 + $0x178] sm:$0xff]
    %v141 = vld [vmem:[#allocation5 + $0x180] sm:$0xff]
    %v142 = vld [vmem:[#allocation5 + $0x188] sm:$0xff]
    %v143 = vld [vmem:[#allocation5 + $0x190] sm:$0xff]
    %v144 = vld [vmem:[#allocation5 + $0x198] sm:$0xff]
    %v145 = vld [vmem:[#allocation5 + $0x1a0] sm:$0xff]
    %v146 = vld [vmem:[#allocation5 + $0x1a8] sm:$0xff]
    %v147 = vld [vmem:[#allocation5 + $0x1b0] sm:$0xff]
    %v148 = vld [vmem:[#allocation5 + $0x1b8] sm:$0xff]
    %v149 = vld [vmem:[#allocation5 + $0x1c0] sm:$0xff]
    %v150 = vld [vmem:[#allocation5 + $0x1c8] sm:$0xff]
    %v151 = vld [vmem:[#allocation5 + $0x1d0] sm:$0xff]
    %v152 = vld [vmem:[#allocation5 + $0x1d8] sm:$0xff]
    %v153 = vld [vmem:[#allocation5 + $0x1e0] sm:$0xff]
    %v154 = vld [vmem:[#allocation5 + $0x1e8] sm:$0xff]
    %v155 = vld [vmem:[#allocation5 + $0x1f0] sm:$0xff]
    %v156 = vld [vmem:[#allocation5 + $0x1f8] sm:$0xff]
    %v157 = vld [vmem:[#allocation5 + $0x200] sm:$0xff]
    %v158 = vld [vmem:[#allocation5 + $0x208] sm:$0xff]
    %v159 = vld [vmem:[#allocation5 + $0x210] sm:$0xff]
    %v160 = vld [vmem:[#allocation5 + $0x218] sm:$0xff]
    %v161 = vld [vmem:[#allocation5 + $0x220] sm:$0xff]
    %v162 = vld [vmem:[#allocation5 + $0x228] sm:$0xff]
    %v163 = vld [vmem:[#allocation5 + $0x230] sm:$0xff]
    %v164 = vld [vmem:[#allocation5 + $0x238] sm:$0xff]
    %v165 = vld [vmem:[#allocation5 + $0x240] sm:$0xff]
    %v166 = vld [vmem:[#allocation5 + $0x248] sm:$0xff]
    %v167 = vld [vmem:[#allocation5 + $0x250] sm:$0xff]
    %v168 = vld [vmem:[#allocation5 + $0x258] sm:$0xff]
    %v169 = vld [vmem:[#allocation5 + $0x260] sm:$0xff]
    %v170 = vld [vmem:[#allocation5 + $0x268] sm:$0xff]
    %v171 = vld [vmem:[#allocation5 + $0x270] sm:$0xff]
    %v172 = vld [vmem:[#allocation5 + $0x278] sm:$0xff]
    %v173 = vld [vmem:[#allocation5 + $0x280] sm:$0xff]
    %v174 = vld [vmem:[#allocation5 + $0x288] sm:$0xff]
    %v175 = vld [vmem:[#allocation5 + $0x290] sm:$0xff]
    %v176 = vld [vmem:[#allocation5 + $0x298] sm:$0xff]
    %v177 = vld [vmem:[#allocation5 + $0x2a0] sm:$0xff]
    %v178 = vld [vmem:[#allocation5 + $0x2a8] sm:$0xff]
    %v179 = vld [vmem:[#allocation5 + $0x2b0] sm:$0xff]
    %v180 = vld [vmem:[#allocation5 + $0x2b8] sm:$0xff]
    %v181 = vld [vmem:[#allocation5 + $0x2c0] sm:$0xff]
    %v182 = vld [vmem:[#allocation5 + $0x2c8] sm:$0xff]
    %v183 = vld [vmem:[#allocation5 + $0x2d0] sm:$0xff]
    %v184 = vld [vmem:[#allocation5 + $0x2d8] sm:$0xff]
    %v185 = vld [vmem:[#allocation5 + $0x2e0] sm:$0xff]
    %v186 = vld [vmem:[#allocation5 + $0x2e8] sm:$0xff]
    %v187 = vld [vmem:[#allocation5 + $0x2f0] sm:$0xff]
    %v188 = vld [vmem:[#allocation5 + $0x2f8] sm:$0xff]
    %v189 = vld [vmem:[#allocation5 + $0x300] sm:$0xff]
    %v190 = vld [vmem:[#allocation5 + $0x308] sm:$0xff]
    %v191 = vld [vmem:[#allocation5 + $0x310] sm:$0xff]
    %v192 = vld [vmem:[#allocation5 + $0x318] sm:$0xff]
    %v193 = vld [vmem:[#allocation5 + $0x320] sm:$0xff]
    %v194 = vld [vmem:[#allocation5 + $0x328] sm:$0xff]
    %v195 = vld [vmem:[#allocation5 + $0x330] sm:$0xff]
    %v196 = vld [vmem:[#allocation5 + $0x338] sm:$0xff]
    %v197 = vld [vmem:[#allocation5 + $0x340] sm:$0xff]
    %v198 = vld [vmem:[#allocation5 + $0x348] sm:$0xff]
    %v199 = vld [vmem:[#allocation5 + $0x350] sm:$0xff]
    %v200 = vld [vmem:[#allocation5 + $0x358] sm:$0xff]
    %v201 = vld [vmem:[#allocation5 + $0x360] sm:$0xff]
    %v202 = vld [vmem:[#allocation5 + $0x368] sm:$0xff]
    %v203 = vld [vmem:[#allocation5 + $0x370] sm:$0xff]
    %v204 = vld [vmem:[#allocation5 + $0x378] sm:$0xff]
    %v205 = vld [vmem:[#allocation5 + $0x380] sm:$0xff]
    %v206 = vld [vmem:[#allocation5 + $0x388] sm:$0xff]
    %v207 = vld [vmem:[#allocation5 + $0x390] sm:$0xff]
    %v208 = vld [vmem:[#allocation5 + $0x398] sm:$0xff]
    %v209 = vld [vmem:[#allocation5 + $0x3a0] sm:$0xff]
    %v210 = vld [vmem:[#allocation5 + $0x3a8] sm:$0xff]
    %v211 = vld [vmem:[#allocation5 + $0x3b0] sm:$0xff]
    %v212 = vld [vmem:[#allocation5 + $0x3b8] sm:$0xff]
    %v213 = vld [vmem:[#allocation5 + $0x3c0] sm:$0xff]
    %v214 = vld [vmem:[#allocation5 + $0x3c8] sm:$0xff]
    %v215 = vld [vmem:[#allocation5 + $0x3d0] sm:$0xff]
    %v216 = vld [vmem:[#allocation5 + $0x3d8] sm:$0xff]
    %v217 = vld [vmem:[#allocation5 + $0x3e0] sm:$0xff]
    %v218 = vld [vmem:[#allocation5 + $0x3e8] sm:$0xff]
    %v219 = vld [vmem:[#allocation5 + $0x3f0] sm:$0xff]
    %v220 = vld [vmem:[#allocation5 + $0x3f8] sm:$0xff]
    %v221 = vld [vmem:[#allocation5 + $0x400] sm:$0xff]
    %v222 = vld [vmem:[#allocation5 + $0x408] sm:$0xff]
    %v223 = vld [vmem:[#allocation5 + $0x410] sm:$0xff]
    %v224 = vld [vmem:[#allocation5 + $0x418] sm:$0xff]
    %v225 = vld [vmem:[#allocation5 + $0x420] sm:$0xff]
    %v226 = vld [vmem:[#allocation5 + $0x428] sm:$0xff]
    %v227 = vld [vmem:[#allocation5 + $0x430] sm:$0xff]
    %v228 = vld [vmem:[#allocation5 + $0x438] sm:$0xff]
    %v229 = vld [vmem:[#allocation5 + $0x440] sm:$0xff]
    %v230 = vld [vmem:[#allocation5 + $0x448] sm:$0xff]
    %v231 = vld [vmem:[#allocation5 + $0x450] sm:$0xff]
    %v232 = vld [vmem:[#allocation5 + $0x458] sm:$0xff]
    %v233 = vld [vmem:[#allocation5 + $0x460] sm:$0xff]
    %v234 = vld [vmem:[#allocation5 + $0x468] sm:$0xff]
    %v235 = vld [vmem:[#allocation5 + $0x470] sm:$0xff]
    %v236 = vld [vmem:[#allocation5 + $0x478] sm:$0xff]
    %v237 = vld [vmem:[#allocation5 + $0x480] sm:$0xff]
    %v238 = vld [vmem:[#allocation5 + $0x488] sm:$0xff]
    %v239 = vld [vmem:[#allocation5 + $0x490] sm:$0xff]
    %v240 = vld [vmem:[#allocation5 + $0x498] sm:$0xff]
    %v241 = vld [vmem:[#allocation5 + $0x4a0] sm:$0xff]
    %v242 = vld [vmem:[#allocation5 + $0x4a8] sm:$0xff]
    %v243 = vld [vmem:[#allocation5 + $0x4b0] sm:$0xff]
    %v244 = vld [vmem:[#allocation5 + $0x4b8] sm:$0xff]
    %v245 = vld [vmem:[#allocation5 + $0x4c0] sm:$0xff]
    %v246 = vld [vmem:[#allocation5 + $0x4c8] sm:$0xff]
    %v247 = vld [vmem:[#allocation5 + $0x4d0] sm:$0xff]
    %v248 = vld [vmem:[#allocation5 + $0x4d8] sm:$0xff]
    %v249 = vld [vmem:[#allocation5 + $0x4e0] sm:$0xff]
    %v250 = vld [vmem:[#allocation5 + $0x4e8] sm:$0xff]
    %v251 = vld [vmem:[#allocation5 + $0x4f0] sm:$0xff]
    %v252 = vld [vmem:[#allocation5 + $0x4f8] sm:$0xff]
    %v253 = vld [vmem:[#allocation5 + $0x500] sm:$0xff]
    %v254 = vld [vmem:[#allocation5 + $0x508] sm:$0xff]
    %v255 = vld [vmem:[#allocation5 + $0x510] sm:$0xff]
    %v256 = vld [vmem:[#allocation5 + $0x518] sm:$0xff]
    %v257 = vld [vmem:[#allocation5 + $0x520] sm:$0xff]
    %v258 = vld [vmem:[#allocation5 + $0x528] sm:$0xff]
    %v259 = vld [vmem:[#allocation5 + $0x530] sm:$0xff]
    %v260 = vld [vmem:[#allocation5 + $0x538] sm:$0xff]
    %v261 = vld [vmem:[#allocation5 + $0x540] sm:$0xff]
    %v262 = vld [vmem:[#allocation5 + $0x548] sm:$0xff]
    %v263 = vld [vmem:[#allocation5 + $0x550] sm:$0xff]
    %v264 = vld [vmem:[#allocation5 + $0x558] sm:$0xff]
    %v265 = vld [vmem:[#allocation5 + $0x560] sm:$0xff]
    %v266 = vld [vmem:[#allocation5 + $0x568] sm:$0xff]
    %v267 = vld [vmem:[#allocation5 + $0x570] sm:$0xff]
    %v268 = vld [vmem:[#allocation5 + $0x578] sm:$0xff]
    %v269 = vld [vmem:[#allocation5 + $0x580] sm:$0xff]
    %v270 = vld [vmem:[#allocation5 + $0x588] sm:$0xff]
    %v271 = vld [vmem:[#allocation5 + $0x590] sm:$0xff]
    %v272 = vld [vmem:[#allocation5 + $0x598] sm:$0xff]
    %v273 = vld [vmem:[#allocation5 + $0x5a0] sm:$0xff]
    %v274 = vld [vmem:[#allocation5 + $0x5a8] sm:$0xff]
    %v275 = vld [vmem:[#allocation5 + $0x5b0] sm:$0xff]
    %v276 = vld [vmem:[#allocation5 + $0x5b8] sm:$0xff]
    %v277 = vld [vmem:[#allocation5 + $0x5c0] sm:$0xff]
    %v278 = vld [vmem:[#allocation5 + $0x5c8] sm:$0xff]
    %v279 = vld [vmem:[#allocation5 + $0x5d0] sm:$0xff]
    %v280 = vld [vmem:[#allocation5 + $0x5d8] sm:$0xff]
    %v281 = vld [vmem:[#allocation5 + $0x5e0] sm:$0xff]
    %v282 = vld [vmem:[#allocation5 + $0x5e8] sm:$0xff]
    %v283 = vld [vmem:[#allocation5 + $0x5f0] sm:$0xff]
    %v284 = vld [vmem:[#allocation5 + $0x5f8] sm:$0xff]
    %v285 = vld [vmem:[#allocation5 + $0x600] sm:$0xff]
    %v286 = vld [vmem:[#allocation5 + $0x608] sm:$0xff]
    %v287 = vld [vmem:[#allocation5 + $0x610] sm:$0xff]
    %v288 = vld [vmem:[#allocation5 + $0x618] sm:$0xff]
    %v289 = vld [vmem:[#allocation5 + $0x620] sm:$0xff]
    %v290 = vld [vmem:[#allocation5 + $0x628] sm:$0xff]
    %v291 = vld [vmem:[#allocation5 + $0x630] sm:$0xff]
    %v292 = vld [vmem:[#allocation5 + $0x638] sm:$0xff]
    %v293 = vld [vmem:[#allocation5 + $0x640] sm:$0xff]
    %v294 = vld [vmem:[#allocation5 + $0x648] sm:$0xff]
    %v295 = vld [vmem:[#allocation5 + $0x650] sm:$0xff]
    %v296 = vld [vmem:[#allocation5 + $0x658] sm:$0xff]
    %v297 = vld [vmem:[#allocation5 + $0x660] sm:$0xff]
    %v298 = vld [vmem:[#allocation5 + $0x668] sm:$0xff]
    %v299 = vld [vmem:[#allocation5 + $0x670] sm:$0xff]
    %v300 = vld [vmem:[#allocation5 + $0x678] sm:$0xff]
    %v301 = vld [vmem:[#allocation5 + $0x680] sm:$0xff]
    %v302 = vld [vmem:[#allocation5 + $0x688] sm:$0xff]
    %v303 = vld [vmem:[#allocation5 + $0x690] sm:$0xff]
    %v304 = vld [vmem:[#allocation5 + $0x698] sm:$0xff]
    %v305 = vld [vmem:[#allocation5 + $0x6a0] sm:$0xff]
    %v306 = vld [vmem:[#allocation5 + $0x6a8] sm:$0xff]
    %v307 = vld [vmem:[#allocation5 + $0x6b0] sm:$0xff]
    %v308 = vld [vmem:[#allocation5 + $0x6b8] sm:$0xff]
    %v309 = vld [vmem:[#allocation5 + $0x6c0] sm:$0xff]
    %v310 = vld [vmem:[#allocation5 + $0x6c8] sm:$0xff]
    %v311 = vld [vmem:[#allocation5 + $0x6d0] sm:$0xff]
    %v312 = vld [vmem:[#allocation5 + $0x6d8] sm:$0xff]
    %v313 = vld [vmem:[#allocation5 + $0x6e0] sm:$0xff]
    %v314 = vld [vmem:[#allocation5 + $0x6e8] sm:$0xff]
    %v315 = vld [vmem:[#allocation5 + $0x6f0] sm:$0xff]
    %v316 = vld [vmem:[#allocation5 + $0x6f8] sm:$0xff]
    %v317 = vld [vmem:[#allocation5 + $0x700] sm:$0xff]
    %v318 = vld [vmem:[#allocation5 + $0x708] sm:$0xff]
    %v319 = vld [vmem:[#allocation5 + $0x710] sm:$0xff]
    %v320 = vld [vmem:[#allocation5 + $0x718] sm:$0xff]
    %v321 = vld [vmem:[#allocation5 + $0x720] sm:$0xff]
    %v322 = vld [vmem:[#allocation5 + $0x728] sm:$0xff]
    %v323 = vld [vmem:[#allocation5 + $0x730] sm:$0xff]
    %v324 = vld [vmem:[#allocation5 + $0x738] sm:$0xff]
    %v325 = vld [vmem:[#allocation5 + $0x740] sm:$0xff]
    %v326 = vld [vmem:[#allocation5 + $0x748] sm:$0xff]
    %v327 = vld [vmem:[#allocation5 + $0x750] sm:$0xff]
    %v328 = vld [vmem:[#allocation5 + $0x758] sm:$0xff]
    %v329 = vld [vmem:[#allocation5 + $0x760] sm:$0xff]
    %v330 = vld [vmem:[#allocation5 + $0x768] sm:$0xff]
    %v331 = vld [vmem:[#allocation5 + $0x770] sm:$0xff]
    %v332 = vld [vmem:[#allocation5 + $0x778] sm:$0xff]
    %v333 = vld [vmem:[#allocation5 + $0x780] sm:$0xff]
    %v334 = vld [vmem:[#allocation5 + $0x788] sm:$0xff]
    %v335 = vld [vmem:[#allocation5 + $0x790] sm:$0xff]
    %v336 = vld [vmem:[#allocation5 + $0x798] sm:$0xff]
    %v337 = vld [vmem:[#allocation5 + $0x7a0] sm:$0xff]
    %v338 = vld [vmem:[#allocation5 + $0x7a8] sm:$0xff]
    %v339 = vld [vmem:[#allocation5 + $0x7b0] sm:$0xff]
    %v340 = vld [vmem:[#allocation5 + $0x7b8] sm:$0xff]
    %v341 = vld [vmem:[#allocation5 + $0x7c0] sm:$0xff]
    %v342 = vld [vmem:[#allocation5 + $0x7c8] sm:$0xff]
    %v343 = vld [vmem:[#allocation5 + $0x7d0] sm:$0xff]
    %v344 = vld [vmem:[#allocation5 + $0x7d8] sm:$0xff]
    %v345 = vld [vmem:[#allocation5 + $0x7e0] sm:$0xff]
    %v346 = vld [vmem:[#allocation5 + $0x7e8] sm:$0xff]
    %v347 = vld [vmem:[#allocation5 + $0x7f0] sm:$0xff]
    %v348 = vld [vmem:[#allocation5 + $0x7f8] sm:$0xff]
    %v349 = vld [vmem:[#allocation5 + $0x800] sm:$0xff]
    %v350 = vld [vmem:[#allocation5 + $0x808] sm:$0xff]
    %v351 = vld [vmem:[#allocation5 + $0x810] sm:$0xff]
    %v352 = vld [vmem:[#allocation5 + $0x818] sm:$0xff]
    %v353 = vld [vmem:[#allocation5 + $0x820] sm:$0xff]
    %v354 = vld [vmem:[#allocation5 + $0x828] sm:$0xff]
    %v355 = vld [vmem:[#allocation5 + $0x830] sm:$0xff]
    %v356 = vld [vmem:[#allocation5 + $0x838] sm:$0xff]
    %v357 = vld [vmem:[#allocation5 + $0x840] sm:$0xff]
    %v358 = vld [vmem:[#allocation5 + $0x848] sm:$0xff]
    %v359 = vld [vmem:[#allocation5 + $0x850] sm:$0xff]
    %v360 = vld [vmem:[#allocation5 + $0x858] sm:$0xff]
    %v361 = vld [vmem:[#allocation5 + $0x860] sm:$0xff]
    %v362 = vld [vmem:[#allocation5 + $0x868] sm:$0xff]
    %v363 = vld [vmem:[#allocation5 + $0x870] sm:$0xff]
    %v364 = vld [vmem:[#allocation5 + $0x878] sm:$0xff]
    %v365 = vld [vmem:[#allocation5 + $0x880] sm:$0xff]
    %v366 = vld [vmem:[#allocation5 + $0x888] sm:$0xff]
    %v367 = vld [vmem:[#allocation5 + $0x890] sm:$0xff]
    %v368 = vld [vmem:[#allocation5 + $0x898] sm:$0xff]
    %v369 = vld [vmem:[#allocation5 + $0x8a0] sm:$0xff]
    %v370 = vld [vmem:[#allocation5 + $0x8a8] sm:$0xff]
    %v371 = vld [vmem:[#allocation5 + $0x8b0] sm:$0xff]
    %v372 = vld [vmem:[#allocation5 + $0x8b8] sm:$0xff]
    %v373 = vld [vmem:[#allocation5 + $0x8c0] sm:$0xff]
    %v374 = vld [vmem:[#allocation5 + $0x8c8] sm:$0xff]
    %v375 = vld [vmem:[#allocation5 + $0x8d0] sm:$0xff]
    %v376 = vld [vmem:[#allocation5 + $0x8d8] sm:$0xff]
    %v377 = vld [vmem:[#allocation5 + $0x8e0] sm:$0xff]
    %v378 = vld [vmem:[#allocation5 + $0x8e8] sm:$0xff]
    %v379 = vld [vmem:[#allocation5 + $0x8f0] sm:$0xff]
    %v380 = vld [vmem:[#allocation5 + $0x8f8] sm:$0xff]
    %v381 = vld [vmem:[#allocation5 + $0x900] sm:$0xff]
    %v382 = vld [vmem:[#allocation5 + $0x908] sm:$0xff]
    %v383 = vld [vmem:[#allocation5 + $0x910] sm:$0xff]
    %v384 = vld [vmem:[#allocation5 + $0x918] sm:$0xff]
    %v385 = vld [vmem:[#allocation5 + $0x920] sm:$0xff]
    %v386 = vld [vmem:[#allocation5 + $0x928] sm:$0xff]
    %v387 = vld [vmem:[#allocation5 + $0x930] sm:$0xff]
    %v388 = vld [vmem:[#allocation5 + $0x938] sm:$0xff]
    %v389 = vld [vmem:[#allocation5 + $0x940] sm:$0xff]
    %v390 = vld [vmem:[#allocation5 + $0x948] sm:$0xff]
    %v391 = vld [vmem:[#allocation5 + $0x950] sm:$0xff]
    %v392 = vld [vmem:[#allocation5 + $0x958] sm:$0xff]
    %v393 = vld [vmem:[#allocation5 + $0x960] sm:$0xff]
    %v394 = vld [vmem:[#allocation5 + $0x968] sm:$0xff]
    %v395 = vld [vmem:[#allocation5 + $0x970] sm:$0xff]
    %v396 = vld [vmem:[#allocation5 + $0x978] sm:$0xff]
    %v397 = vld [vmem:[#allocation5 + $0x980] sm:$0xff]
    %v398 = vld [vmem:[#allocation5 + $0x988] sm:$0xff]
    %v399 = vld [vmem:[#allocation5 + $0x990] sm:$0xff]
    %v400 = vld [vmem:[#allocation5 + $0x998] sm:$0xff]
    %v401 = vld [vmem:[#allocation5 + $0x9a0] sm:$0xff]
    %v402 = vld [vmem:[#allocation5 + $0x9a8] sm:$0xff]
    %v403 = vld [vmem:[#allocation5 + $0x9b0] sm:$0xff]
    %v404 = vld [vmem:[#allocation5 + $0x9b8] sm:$0xff]
    %v405 = vld [vmem:[#allocation5 + $0x9c0] sm:$0xff]
    %v406 = vld [vmem:[#allocation5 + $0x9c8] sm:$0xff]
    %v407 = vld [vmem:[#allocation5 + $0x9d0] sm:$0xff]
    %v408 = vld [vmem:[#allocation5 + $0x9d8] sm:$0xff]
    %v409 = vld [vmem:[#allocation5 + $0x9e0] sm:$0xff]
    %v410 = vld [vmem:[#allocation5 + $0x9e8] sm:$0xff]
    %v411 = vld [vmem:[#allocation5 + $0x9f0] sm:$0xff]
    %v412 = vld [vmem:[#allocation5 + $0x9f8] sm:$0xff]
    %v413 = vld [vmem:[#allocation5 + $0xa00] sm:$0xff]
    %v414 = vld [vmem:[#allocation5 + $0xa08] sm:$0xff]
    %v415 = vld [vmem:[#allocation5 + $0xa10] sm:$0xff]
    %v416 = vld [vmem:[#allocation5 + $0xa18] sm:$0xff]
    %v417 = vld [vmem:[#allocation5 + $0xa20] sm:$0xff]
    %v418 = vld [vmem:[#allocation5 + $0xa28] sm:$0xff]
    %v419 = vld [vmem:[#allocation5 + $0xa30] sm:$0xff]
    %v420 = vld [vmem:[#allocation5 + $0xa38] sm:$0xff]
    %v421 = vld [vmem:[#allocation5 + $0xa40] sm:$0xff]
    %v422 = vld [vmem:[#allocation5 + $0xa48] sm:$0xff]
    %v423 = vld [vmem:[#allocation5 + $0xa50] sm:$0xff]
    %v424 = vld [vmem:[#allocation5 + $0xa58] sm:$0xff]
    %v425 = vld [vmem:[#allocation5 + $0xa60] sm:$0xff]
    %v426 = vld [vmem:[#allocation5 + $0xa68] sm:$0xff]
    %v427 = vld [vmem:[#allocation5 + $0xa70] sm:$0xff]
    %v428 = vld [vmem:[#allocation5 + $0xa78] sm:$0xff]
    %v429 = vld [vmem:[#allocation5 + $0xa80] sm:$0xff]
    %v430 = vld [vmem:[#allocation5 + $0xa88] sm:$0xff]
    %v431 = vld [vmem:[#allocation5 + $0xa90] sm:$0xff]
    %v432 = vld [vmem:[#allocation5 + $0xa98] sm:$0xff]
    %v433 = vld [vmem:[#allocation5 + $0xaa0] sm:$0xff]
    %v434 = vld [vmem:[#allocation5 + $0xaa8] sm:$0xff]
    %v435 = vld [vmem:[#allocation5 + $0xab0] sm:$0xff]
    %v436 = vld [vmem:[#allocation5 + $0xab8] sm:$0xff]
    %v437 = vld [vmem:[#allocation5 + $0xac0] sm:$0xff]
    %v438 = vld [vmem:[#allocation5 + $0xac8] sm:$0xff]
    %v439 = vld [vmem:[#allocation5 + $0xad0] sm:$0xff]
    %v440 = vld [vmem:[#allocation5 + $0xad8] sm:$0xff]
    %v441 = vld [vmem:[#allocation5 + $0xae0] sm:$0xff]
    %v442 = vld [vmem:[#allocation5 + $0xae8] sm:$0xff]
    %v443 = vld [vmem:[#allocation5 + $0xaf0] sm:$0xff]
    %v444 = vld [vmem:[#allocation5 + $0xaf8] sm:$0xff]
    %v445 = vld [vmem:[#allocation5 + $0xb00] sm:$0xff]
    %v446 = vld [vmem:[#allocation5 + $0xb08] sm:$0xff]
    %v447 = vld [vmem:[#allocation5 + $0xb10] sm:$0xff]
    %v448 = vld [vmem:[#allocation5 + $0xb18] sm:$0xff]
    %v449 = vld [vmem:[#allocation5 + $0xb20] sm:$0xff]
    %v450 = vld [vmem:[#allocation5 + $0xb28] sm:$0xff]
    %v451 = vld [vmem:[#allocation5 + $0xb30] sm:$0xff]
    %v452 = vld [vmem:[#allocation5 + $0xb38] sm:$0xff]
    %v453 = vld [vmem:[#allocation5 + $0xb40] sm:$0xff]
    %v454 = vld [vmem:[#allocation5 + $0xb48] sm:$0xff]
    %v455 = vld [vmem:[#allocation5 + $0xb50] sm:$0xff]
    %v456 = vld [vmem:[#allocation5 + $0xb58] sm:$0xff]
    %v457 = vld [vmem:[#allocation5 + $0xb60] sm:$0xff]
    %v458 = vld [vmem:[#allocation5 + $0xb68] sm:$0xff]
    %v459 = vld [vmem:[#allocation5 + $0xb70] sm:$0xff]
    %v460 = vld [vmem:[#allocation5 + $0xb78] sm:$0xff]
    %v461 = vld [vmem:[#allocation5 + $0xb80] sm:$0xff]
    %v462 = vld [vmem:[#allocation5 + $0xb88] sm:$0xff]
    %v463 = vld [vmem:[#allocation5 + $0xb90] sm:$0xff]
    %v464 = vld [vmem:[#allocation5 + $0xb98] sm:$0xff]
    %v465 = vld [vmem:[#allocation5 + $0xba0] sm:$0xff]
    %v466 = vld [vmem:[#allocation5 + $0xba8] sm:$0xff]
    %v467 = vld [vmem:[#allocation5 + $0xbb0] sm:$0xff]
    %v468 = vld [vmem:[#allocation5 + $0xbb8] sm:$0xff]
    %v469 = vld [vmem:[#allocation5 + $0xbc0] sm:$0xff]
    %v470 = vld [vmem:[#allocation5 + $0xbc8] sm:$0xff]
    %v471 = vld [vmem:[#allocation5 + $0xbd0] sm:$0xff]
    %v472 = vld [vmem:[#allocation5 + $0xbd8] sm:$0xff]
    %v473 = vld [vmem:[#allocation5 + $0xbe0] sm:$0xff]
    %v474 = vld [vmem:[#allocation5 + $0xbe8] sm:$0xff]
    %v475 = vld [vmem:[#allocation5 + $0xbf0] sm:$0xff]
    %v476 = vld [vmem:[#allocation5 + $0xbf8] sm:$0xff]
    %v477 = vld [vmem:[#allocation5 + $0xc00] sm:$0xff]
    %v478 = vld [vmem:[#allocation5 + $0xc08] sm:$0xff]
    %v479 = vld [vmem:[#allocation5 + $0xc10] sm:$0xff]
    %v480 = vld [vmem:[#allocation5 + $0xc18] sm:$0xff]
    %v481 = vld [vmem:[#allocation5 + $0xc20] sm:$0xff]
    %v482 = vld [vmem:[#allocation5 + $0xc28] sm:$0xff]
    %v483 = vld [vmem:[#allocation5 + $0xc30] sm:$0xff]
    %v484 = vld [vmem:[#allocation5 + $0xc38] sm:$0xff]
    %v485 = vld [vmem:[#allocation5 + $0xc40] sm:$0xff]
    %v486 = vld [vmem:[#allocation5 + $0xc48] sm:$0xff]
    %v487 = vld [vmem:[#allocation5 + $0xc50] sm:$0xff]
    %v488 = vld [vmem:[#allocation5 + $0xc58] sm:$0xff]
    %v489 = vld [vmem:[#allocation5 + $0xc60] sm:$0xff]
    %v490 = vld [vmem:[#allocation5 + $0xc68] sm:$0xff]
    %v491 = vld [vmem:[#allocation5 + $0xc70] sm:$0xff]
    %v492 = vld [vmem:[#allocation5 + $0xc78] sm:$0xff]
    %v493 = vld [vmem:[#allocation5 + $0xc80] sm:$0xff]
    %v494 = vld [vmem:[#allocation5 + $0xc88] sm:$0xff]
    %v495 = vld [vmem:[#allocation5 + $0xc90] sm:$0xff]
    %v496 = vld [vmem:[#allocation5 + $0xc98] sm:$0xff]
    %v497 = vld [vmem:[#allocation5 + $0xca0] sm:$0xff]
    %v498 = vld [vmem:[#allocation5 + $0xca8] sm:$0xff]
    %v499 = vld [vmem:[#allocation5 + $0xcb0] sm:$0xff]
    %v500 = vld [vmem:[#allocation5 + $0xcb8] sm:$0xff]
    %v501 = vld [vmem:[#allocation5 + $0xcc0] sm:$0xff]
    %v502 = vld [vmem:[#allocation5 + $0xcc8] sm:$0xff]
    %v503 = vld [vmem:[#allocation5 + $0xcd0] sm:$0xff]
    %v504 = vld [vmem:[#allocation5 + $0xcd8] sm:$0xff]
    %v505 = vld [vmem:[#allocation5 + $0xce0] sm:$0xff]
    %v506 = vld [vmem:[#allocation5 + $0xce8] sm:$0xff]
    %v507 = vld [vmem:[#allocation5 + $0xcf0] sm:$0xff]
    %v508 = vld [vmem:[#allocation5 + $0xcf8] sm:$0xff]
    %v509 = vld [vmem:[#allocation5 + $0xd00] sm:$0xff]
    %v510 = vld [vmem:[#allocation5 + $0xd08] sm:$0xff]
    %v511 = vld [vmem:[#allocation5 + $0xd10] sm:$0xff]
    %v512 = vld [vmem:[#allocation5 + $0xd18] sm:$0xff]
    %v513 = vld [vmem:[#allocation5 + $0xd20] sm:$0xff]
    %v514 = vld [vmem:[#allocation5 + $0xd28] sm:$0xff]
    %v515 = vld [vmem:[#allocation5 + $0xd30] sm:$0xff]
    %v516 = vld [vmem:[#allocation5 + $0xd38] sm:$0xff]
    %v517 = vld [vmem:[#allocation5 + $0xd40] sm:$0xff]
    %v518 = vld [vmem:[#allocation5 + $0xd48] sm:$0xff]
    %v519 = vld [vmem:[#allocation5 + $0xd50] sm:$0xff]
    %v520 = vld [vmem:[#allocation5 + $0xd58] sm:$0xff]
    %v521 = vld [vmem:[#allocation5 + $0xd60] sm:$0xff]
    %v522 = vld [vmem:[#allocation5 + $0xd68] sm:$0xff]
    %v523 = vld [vmem:[#allocation5 + $0xd70] sm:$0xff]
    %v524 = vld [vmem:[#allocation5 + $0xd78] sm:$0xff]
    %v525 = vld [vmem:[#allocation5 + $0xd80] sm:$0xff]
    %v526 = vld [vmem:[#allocation5 + $0xd88] sm:$0xff]
    %v527 = vld [vmem:[#allocation5 + $0xd90] sm:$0xff]
    %v528 = vld [vmem:[#allocation5 + $0xd98] sm:$0xff]
    %v529 = vld [vmem:[#allocation5 + $0xda0] sm:$0xff]
    %v530 = vld [vmem:[#allocation5 + $0xda8] sm:$0xff]
    %v531 = vld [vmem:[#allocation5 + $0xdb0] sm:$0xff]
    %v532 = vld [vmem:[#allocation5 + $0xdb8] sm:$0xff]
    %v533 = vld [vmem:[#allocation5 + $0xdc0] sm:$0xff]
    %v534 = vld [vmem:[#allocation5 + $0xdc8] sm:$0xff]
    %v535 = vld [vmem:[#allocation5 + $0xdd0] sm:$0xff]
    %v536 = vld [vmem:[#allocation5 + $0xdd8] sm:$0xff]
    %v537 = vld [vmem:[#allocation5 + $0xde0] sm:$0xff]
    %v538 = vld [vmem:[#allocation5 + $0xde8] sm:$0xff]
    %v539 = vld [vmem:[#allocation5 + $0xdf0] sm:$0xff]
    %v540 = vld [vmem:[#allocation5 + $0xdf8] sm:$0xff]
    %v541 = vld [vmem:[#allocation5 + $0xe00] sm:$0xff]
    %v542 = vld [vmem:[#allocation5 + $0xe08] sm:$0xff]
    %v543 = vld [vmem:[#allocation5 + $0xe10] sm:$0xff]
    %v544 = vld [vmem:[#allocation5 + $0xe18] sm:$0xff]
    %v545 = vld [vmem:[#allocation5 + $0xe20] sm:$0xff]
    %v546 = vld [vmem:[#allocation5 + $0xe28] sm:$0xff]
    %v547 = vld [vmem:[#allocation5 + $0xe30] sm:$0xff]
    %v548 = vld [vmem:[#allocation5 + $0xe38] sm:$0xff]
    %v549 = vld [vmem:[#allocation5 + $0xe40] sm:$0xff]
    %v550 = vld [vmem:[#allocation5 + $0xe48] sm:$0xff]
    %v551 = vld [vmem:[#allocation5 + $0xe50] sm:$0xff]
    %v552 = vld [vmem:[#allocation5 + $0xe58] sm:$0xff]
    %v553 = vld [vmem:[#allocation5 + $0xe60] sm:$0xff]
    %v554 = vld [vmem:[#allocation5 + $0xe68] sm:$0xff]
    %v555 = vld [vmem:[#allocation5 + $0xe70] sm:$0xff]
    %v556 = vld [vmem:[#allocation5 + $0xe78] sm:$0xff]
    %v557 = vld [vmem:[#allocation5 + $0xe80] sm:$0xff]
    %v558 = vld [vmem:[#allocation5 + $0xe88] sm:$0xff]
    %v559 = vld [vmem:[#allocation5 + $0xe90] sm:$0xff]
    %v560 = vld [vmem:[#allocation5 + $0xe98] sm:$0xff]
    %v561 = vld [vmem:[#allocation5 + $0xea0] sm:$0xff]
    %v562 = vld [vmem:[#allocation5 + $0xea8] sm:$0xff]
    %v563 = vld [vmem:[#allocation5 + $0xeb0] sm:$0xff]
    %v564 = vld [vmem:[#allocation5 + $0xeb8] sm:$0xff]
    %v565 = vld [vmem:[#allocation5 + $0xec0] sm:$0xff]
    %v566 = vld [vmem:[#allocation5 + $0xec8] sm:$0xff]
    %v567 = vld [vmem:[#allocation5 + $0xed0] sm:$0xff]
    %v568 = vld [vmem:[#allocation5 + $0xed8] sm:$0xff]
    %v569 = vld [vmem:[#allocation5 + $0xee0] sm:$0xff]
    %v570 = vld [vmem:[#allocation5 + $0xee8] sm:$0xff]
    %v571 = vld [vmem:[#allocation5 + $0xef0] sm:$0xff]
    %v572 = vld [vmem:[#allocation5 + $0xef8] sm:$0xff]
    %v573 = vld [vmem:[#allocation5 + $0xf00] sm:$0xff]
    %v574 = vld [vmem:[#allocation5 + $0xf08] sm:$0xff]
    %v575 = vld [vmem:[#allocation5 + $0xf10] sm:$0xff]
    %v576 = vld [vmem:[#allocation5 + $0xf18] sm:$0xff]
    %v577 = vld [vmem:[#allocation5 + $0xf20] sm:$0xff]
    %v578 = vld [vmem:[#allocation5 + $0xf28] sm:$0xff]
    %v579 = vld [vmem:[#allocation5 + $0xf30] sm:$0xff]
    %v580 = vld [vmem:[#allocation5 + $0xf38] sm:$0xff]
    %v581 = vld [vmem:[#allocation5 + $0xf40] sm:$0xff]
    %v582 = vld [vmem:[#allocation5 + $0xf48] sm:$0xff]
    %v583 = vld [vmem:[#allocation5 + $0xf50] sm:$0xff]
    %v584 = vld [vmem:[#allocation5 + $0xf58] sm:$0xff]
    %v585 = vld [vmem:[#allocation5 + $0xf60] sm:$0xff]
    %v586 = vld [vmem:[#allocation5 + $0xf68] sm:$0xff]
    %v587 = vld [vmem:[#allocation5 + $0xf70] sm:$0xff]
    %v588 = vld [vmem:[#allocation5 + $0xf78] sm:$0xff]
    %v589 = vld [vmem:[#allocation5 + $0xf80] sm:$0xff]
    %v590 = vld [vmem:[#allocation5 + $0xf88] sm:$0xff]
    %v591 = vld [vmem:[#allocation5 + $0xf90] sm:$0xff]
    %v592 = vld [vmem:[#allocation5 + $0xf98] sm:$0xff]
    %v593 = vld [vmem:[#allocation5 + $0xfa0] sm:$0xff]
    %v594 = vld [vmem:[#allocation5 + $0xfa8] sm:$0xff]
    %v595 = vld [vmem:[#allocation5 + $0xfb0] sm:$0xff]
    %v596 = vld [vmem:[#allocation5 + $0xfb8] sm:$0xff]
    %v597 = vld [vmem:[#allocation5 + $0xfc0] sm:$0xff]
    %v598 = vld [vmem:[#allocation5 + $0xfc8] sm:$0xff]
    %v599 = vld [vmem:[#allocation5 + $0xfd0] sm:$0xff]
    %v600 = vld [vmem:[#allocation5 + $0xfd8] sm:$0xff]
    %v601 = vld [vmem:[#allocation5 + $0xfe0] sm:$0xff]
    %v602 = vld [vmem:[#allocation5 + $0xfe8] sm:$0xff]
    %v603 = vld [vmem:[#allocation5 + $0xff0] sm:$0xff]
    %v604 = vld [vmem:[#allocation5 + $0xff8] sm:$0xff]
    %v605 = vld [vmem:[#allocation5 + $0x1000] sm:$0xff]
    %v606 = vld [vmem:[#allocation5 + $0x1008] sm:$0xff]
    %v607 = vld [vmem:[#allocation5 + $0x1010] sm:$0xff]
    %v608 = vld [vmem:[#allocation5 + $0x1018] sm:$0xff]
    %v609 = vld [vmem:[#allocation5 + $0x1020] sm:$0xff]
    %v610 = vld [vmem:[#allocation5 + $0x1028] sm:$0xff]
    %v611 = vld [vmem:[#allocation5 + $0x1030] sm:$0xff]
    %v612 = vld [vmem:[#allocation5 + $0x1038] sm:$0xff]
    %v613 = vld [vmem:[#allocation5 + $0x1040] sm:$0xff]
    %v614 = vld [vmem:[#allocation5 + $0x1048] sm:$0xff]
    %v615 = vld [vmem:[#allocation5 + $0x1050] sm:$0xff]
    %v616 = vld [vmem:[#allocation5 + $0x1058] sm:$0xff]
    %v617 = vld [vmem:[#allocation5 + $0x1060] sm:$0xff]
    %v618 = vld [vmem:[#allocation5 + $0x1068] sm:$0xff]
    %v619 = vld [vmem:[#allocation5 + $0x1070] sm:$0xff]
    %v620 = vld [vmem:[#allocation5 + $0x1078] sm:$0xff]
    %v621 = vld [vmem:[#allocation5 + $0x1080] sm:$0xff]
    %v622 = vld [vmem:[#allocation5 + $0x1088] sm:$0xff]
    %v623 = vld [vmem:[#allocation5 + $0x1090] sm:$0xff]
    %v624 = vld [vmem:[#allocation5 + $0x1098] sm:$0xff]
    %v625 = vld [vmem:[#allocation5 + $0x10a0] sm:$0xff]
    %v626 = vld [vmem:[#allocation5 + $0x10a8] sm:$0xff]
    %v627 = vld [vmem:[#allocation5 + $0x10b0] sm:$0xff]
    %v628 = vld [vmem:[#allocation5 + $0x10b8] sm:$0xff]
    %v629 = vld [vmem:[#allocation5 + $0x10c0] sm:$0xff]
    %v630 = vld [vmem:[#allocation5 + $0x10c8] sm:$0xff]
    %v631 = vld [vmem:[#allocation5 + $0x10d0] sm:$0xff]
    %v632 = vld [vmem:[#allocation5 + $0x10d8] sm:$0xff]
    %v633 = vld [vmem:[#allocation5 + $0x10e0] sm:$0xff]
    %v634 = vld [vmem:[#allocation5 + $0x10e8] sm:$0xff]
    %v635 = vld [vmem:[#allocation5 + $0x10f0] sm:$0xff]
    %v636 = vld [vmem:[#allocation5 + $0x10f8] sm:$0xff]
    %v637 = vld [vmem:[#allocation5 + $0x1100] sm:$0xff]
    %v638 = vld [vmem:[#allocation5 + $0x1108] sm:$0xff]
    %v639 = vld [vmem:[#allocation5 + $0x1110] sm:$0xff]
    %v640 = vld [vmem:[#allocation5 + $0x1118] sm:$0xff]
    %v641 = vld [vmem:[#allocation5 + $0x1120] sm:$0xff]
    %v642 = vld [vmem:[#allocation5 + $0x1128] sm:$0xff]
    %v643 = vld [vmem:[#allocation5 + $0x1130] sm:$0xff]
    %v644 = vld [vmem:[#allocation5 + $0x1138] sm:$0xff]
    %v645 = vld [vmem:[#allocation5 + $0x1140] sm:$0xff]
    %v646 = vld [vmem:[#allocation5 + $0x1148] sm:$0xff]
    %v647 = vld [vmem:[#allocation5 + $0x1150] sm:$0xff]
    %v648 = vld [vmem:[#allocation5 + $0x1158] sm:$0xff]
    %v649 = vld [vmem:[#allocation5 + $0x1160] sm:$0xff]
    %v650 = vld [vmem:[#allocation5 + $0x1168] sm:$0xff]
    %v651 = vld [vmem:[#allocation5 + $0x1170] sm:$0xff]
    %v652 = vld [vmem:[#allocation5 + $0x1178] sm:$0xff]
    %v653 = vld [vmem:[#allocation5 + $0x1180] sm:$0xff]
    %v654 = vld [vmem:[#allocation5 + $0x1188] sm:$0xff]
    %v655 = vld [vmem:[#allocation5 + $0x1190] sm:$0xff]
    %v656 = vld [vmem:[#allocation5 + $0x1198] sm:$0xff]
    %v657 = vld [vmem:[#allocation5 + $0x11a0] sm:$0xff]
    %v658 = vld [vmem:[#allocation5 + $0x11a8] sm:$0xff]
    %v659 = vld [vmem:[#allocation5 + $0x11b0] sm:$0xff]
    %v660 = vld [vmem:[#allocation5 + $0x11b8] sm:$0xff]
    %v661 = vld [vmem:[#allocation5 + $0x11c0] sm:$0xff]
    %v662 = vld [vmem:[#allocation5 + $0x11c8] sm:$0xff]
    %v663 = vld [vmem:[#allocation5 + $0x11d0] sm:$0xff]
    %v664 = vld [vmem:[#allocation5 + $0x11d8] sm:$0xff]
    %v665 = vld [vmem:[#allocation5 + $0x11e0] sm:$0xff]
    %v666 = vld [vmem:[#allocation5 + $0x11e8] sm:$0xff]
    %v667 = vld [vmem:[#allocation5 + $0x11f0] sm:$0xff]
    %v668 = vld [vmem:[#allocation5 + $0x11f8] sm:$0xff]
    %v669 = vld [vmem:[#allocation5 + $0x1200] sm:$0xff]
    %v670 = vld [vmem:[#allocation5 + $0x1208] sm:$0xff]
    %v671 = vld [vmem:[#allocation5 + $0x1210] sm:$0xff]
    %v672 = vld [vmem:[#allocation5 + $0x1218] sm:$0xff]
    %v673 = vld [vmem:[#allocation5 + $0x1220] sm:$0xff]
    %v674 = vld [vmem:[#allocation5 + $0x1228] sm:$0xff]
    %v675 = vld [vmem:[#allocation5 + $0x1230] sm:$0xff]
    %v676 = vld [vmem:[#allocation5 + $0x1238] sm:$0xff]
    %v677 = vld [vmem:[#allocation5 + $0x1240] sm:$0xff]
    %v678 = vld [vmem:[#allocation5 + $0x1248] sm:$0xff]
    %v679 = vld [vmem:[#allocation5 + $0x1250] sm:$0xff]
    %v680 = vld [vmem:[#allocation5 + $0x1258] sm:$0xff]
    %v681 = vld [vmem:[#allocation5 + $0x1260] sm:$0xff]
    %v682 = vld [vmem:[#allocation5 + $0x1268] sm:$0xff]
    %v683 = vld [vmem:[#allocation5 + $0x1270] sm:$0xff]
    %v684 = vld [vmem:[#allocation5 + $0x1278] sm:$0xff]
    %v685 = vld [vmem:[#allocation5 + $0x1280] sm:$0xff]
    %v686 = vld [vmem:[#allocation5 + $0x1288] sm:$0xff]
    %v687 = vld [vmem:[#allocation5 + $0x1290] sm:$0xff]
    %v688 = vld [vmem:[#allocation5 + $0x1298] sm:$0xff]
    %v689 = vld [vmem:[#allocation5 + $0x12a0] sm:$0xff]
    %v690 = vld [vmem:[#allocation5 + $0x12a8] sm:$0xff]
    %v691 = vld [vmem:[#allocation5 + $0x12b0] sm:$0xff]
    %v692 = vld [vmem:[#allocation5 + $0x12b8] sm:$0xff]
    %v693 = vld [vmem:[#allocation5 + $0x12c0] sm:$0xff]
    %v694 = vld [vmem:[#allocation5 + $0x12c8] sm:$0xff]
    %v695 = vld [vmem:[#allocation5 + $0x12d0] sm:$0xff]
    %v696 = vld [vmem:[#allocation5 + $0x12d8] sm:$0xff]
    %v697 = vld [vmem:[#allocation5 + $0x12e0] sm:$0xff]
    %v698 = vld [vmem:[#allocation5 + $0x12e8] sm:$0xff]
    %v699 = vld [vmem:[#allocation5 + $0x12f0] sm:$0xff]
    %v700 = vld [vmem:[#allocation5 + $0x12f8] sm:$0xff]
    %v701 = vld [vmem:[#allocation5 + $0x1300] sm:$0xff]
    %v702 = vld [vmem:[#allocation5 + $0x1308] sm:$0xff]
    %v703 = vld [vmem:[#allocation5 + $0x1310] sm:$0xff]
    %v704 = vld [vmem:[#allocation5 + $0x1318] sm:$0xff]
    %v705 = vld [vmem:[#allocation5 + $0x1320] sm:$0xff]
    %v706 = vld [vmem:[#allocation5 + $0x1328] sm:$0xff]
    %v707 = vld [vmem:[#allocation5 + $0x1330] sm:$0xff]
    %v708 = vld [vmem:[#allocation5 + $0x1338] sm:$0xff]
    %v709 = vld [vmem:[#allocation5 + $0x1340] sm:$0xff]
    %v710 = vld [vmem:[#allocation5 + $0x1348] sm:$0xff]
    %v711 = vld [vmem:[#allocation5 + $0x1350] sm:$0xff]
    %v712 = vld [vmem:[#allocation5 + $0x1358] sm:$0xff]
    %v713 = vld [vmem:[#allocation5 + $0x1360] sm:$0xff]
    %v714 = vld [vmem:[#allocation5 + $0x1368] sm:$0xff]
    %v715 = vld [vmem:[#allocation5 + $0x1370] sm:$0xff]
    %v716 = vld [vmem:[#allocation5 + $0x1378] sm:$0xff]
    %v717 = vld [vmem:[#allocation5 + $0x1380] sm:$0xff]
    %v718 = vld [vmem:[#allocation5 + $0x1388] sm:$0xff]
    %v719 = vld [vmem:[#allocation5 + $0x1390] sm:$0xff]
    %v720 = vld [vmem:[#allocation5 + $0x1398] sm:$0xff]
    %v721 = vld [vmem:[#allocation5 + $0x13a0] sm:$0xff]
    %v722 = vld [vmem:[#allocation5 + $0x13a8] sm:$0xff]
    %v723 = vld [vmem:[#allocation5 + $0x13b0] sm:$0xff]
    %v724 = vld [vmem:[#allocation5 + $0x13b8] sm:$0xff]
    %v725 = vld [vmem:[#allocation5 + $0x13c0] sm:$0xff]
    %v726 = vld [vmem:[#allocation5 + $0x13c8] sm:$0xff]
    %v727 = vld [vmem:[#allocation5 + $0x13d0] sm:$0xff]
    %v728 = vld [vmem:[#allocation5 + $0x13d8] sm:$0xff]
    %v729 = vld [vmem:[#allocation5 + $0x13e0] sm:$0xff]
    %v730 = vld [vmem:[#allocation5 + $0x13e8] sm:$0xff]
    %v731 = vld [vmem:[#allocation5 + $0x13f0] sm:$0xff]
    %v732 = vld [vmem:[#allocation5 + $0x13f8] sm:$0xff]
    %v733 = vld [vmem:[#allocation5 + $0x1400] sm:$0xff]
    %v734 = vld [vmem:[#allocation5 + $0x1408] sm:$0xff]
    %v735 = vld [vmem:[#allocation5 + $0x1410] sm:$0xff]
    %v736 = vld [vmem:[#allocation5 + $0x1418] sm:$0xff]
    %v737 = vld [vmem:[#allocation5 + $0x1420] sm:$0xff]
    %v738 = vld [vmem:[#allocation5 + $0x1428] sm:$0xff]
    %v739 = vld [vmem:[#allocation5 + $0x1430] sm:$0xff]
    %v740 = vld [vmem:[#allocation5 + $0x1438] sm:$0xff]
    %v741 = vld [vmem:[#allocation5 + $0x1440] sm:$0xff]
    %v742 = vld [vmem:[#allocation5 + $0x1448] sm:$0xff]
    %v743 = vld [vmem:[#allocation5 + $0x1450] sm:$0xff]
    %v744 = vld [vmem:[#allocation5 + $0x1458] sm:$0xff]
    %v745 = vld [vmem:[#allocation5 + $0x1460] sm:$0xff]
    %v746 = vld [vmem:[#allocation5 + $0x1468] sm:$0xff]
    %v747 = vld [vmem:[#allocation5 + $0x1470] sm:$0xff]
    %v748 = vld [vmem:[#allocation5 + $0x1478] sm:$0xff]
    %v749 = vld [vmem:[#allocation5 + $0x1480] sm:$0xff]
    %v750 = vld [vmem:[#allocation5 + $0x1488] sm:$0xff]
    %v751 = vld [vmem:[#allocation5 + $0x1490] sm:$0xff]
    %v752 = vld [vmem:[#allocation5 + $0x1498] sm:$0xff]
    %v753 = vld [vmem:[#allocation5 + $0x14a0] sm:$0xff]
    %v754 = vld [vmem:[#allocation5 + $0x14a8] sm:$0xff]
    %v755 = vld [vmem:[#allocation5 + $0x14b0] sm:$0xff]
    %v756 = vld [vmem:[#allocation5 + $0x14b8] sm:$0xff]
    %v757 = vld [vmem:[#allocation5 + $0x14c0] sm:$0xff]
    %v758 = vld [vmem:[#allocation5 + $0x14c8] sm:$0xff]
    %v759 = vld [vmem:[#allocation5 + $0x14d0] sm:$0xff]
    %v760 = vld [vmem:[#allocation5 + $0x14d8] sm:$0xff]
    %v761 = vld [vmem:[#allocation5 + $0x14e0] sm:$0xff]
    %v762 = vld [vmem:[#allocation5 + $0x14e8] sm:$0xff]
    %v763 = vld [vmem:[#allocation5 + $0x14f0] sm:$0xff]
    %v764 = vld [vmem:[#allocation5 + $0x14f8] sm:$0xff]
    %v765 = vld [vmem:[#allocation5 + $0x1500] sm:$0xff]
    %v766 = vld [vmem:[#allocation5 + $0x1508] sm:$0xff]
    %v767 = vld [vmem:[#allocation5 + $0x1510] sm:$0xff]
    %v768 = vld [vmem:[#allocation5 + $0x1518] sm:$0xff]
    %v769 = vld [vmem:[#allocation5 + $0x1520] sm:$0xff]
    %v770 = vld [vmem:[#allocation5 + $0x1528] sm:$0xff]
    %v771 = vld [vmem:[#allocation5 + $0x1530] sm:$0xff]
    %v772 = vld [vmem:[#allocation5 + $0x1538] sm:$0xff]
    %v773 = vld [vmem:[#allocation5 + $0x1540] sm:$0xff]
    %v774 = vld [vmem:[#allocation5 + $0x1548] sm:$0xff]
    %v775 = vld [vmem:[#allocation5 + $0x1550] sm:$0xff]
    %v776 = vld [vmem:[#allocation5 + $0x1558] sm:$0xff]
    %v777 = vld [vmem:[#allocation5 + $0x1560] sm:$0xff]
    %v778 = vld [vmem:[#allocation5 + $0x1568] sm:$0xff]
    %v779 = vld [vmem:[#allocation5 + $0x1570] sm:$0xff]
    %v780 = vld [vmem:[#allocation5 + $0x1578] sm:$0xff]
    %v781 = vld [vmem:[#allocation5 + $0x1580] sm:$0xff]
    %v782 = vld [vmem:[#allocation5 + $0x1588] sm:$0xff]
    %v783 = vld [vmem:[#allocation5 + $0x1590] sm:$0xff]
    %v784 = vld [vmem:[#allocation5 + $0x1598] sm:$0xff]
    %v785 = vld [vmem:[#allocation5 + $0x15a0] sm:$0xff]
    %v786 = vld [vmem:[#allocation5 + $0x15a8] sm:$0xff]
    %v787 = vld [vmem:[#allocation5 + $0x15b0] sm:$0xff]
    %v788 = vld [vmem:[#allocation5 + $0x15b8] sm:$0xff]
    %v789 = vld [vmem:[#allocation5 + $0x15c0] sm:$0xff]
    %v790 = vld [vmem:[#allocation5 + $0x15c8] sm:$0xff]
    %v791 = vld [vmem:[#allocation5 + $0x15d0] sm:$0xff]
    %v792 = vld [vmem:[#allocation5 + $0x15d8] sm:$0xff]
    %v793 = vld [vmem:[#allocation5 + $0x15e0] sm:$0xff]
    %v794 = vld [vmem:[#allocation5 + $0x15e8] sm:$0xff]
    %v795 = vld [vmem:[#allocation5 + $0x15f0] sm:$0xff]
    %v796 = vld [vmem:[#allocation5 + $0x15f8] sm:$0xff]
    %v797 = vld [vmem:[#allocation5 + $0x1600] sm:$0xff]
    %v798 = vld [vmem:[#allocation5 + $0x1608] sm:$0xff]
    %v799 = vld [vmem:[#allocation5 + $0x1610] sm:$0xff]
    %v800 = vld [vmem:[#allocation5 + $0x1618] sm:$0xff]
    %v801 = vld [vmem:[#allocation5 + $0x1620] sm:$0xff]
    %v802 = vld [vmem:[#allocation5 + $0x1628] sm:$0xff]
    %v803 = vld [vmem:[#allocation5 + $0x1630] sm:$0xff]
    %v804 = vld [vmem:[#allocation5 + $0x1638] sm:$0xff]
    %v805 = vld [vmem:[#allocation5 + $0x1640] sm:$0xff]
    %v806 = vld [vmem:[#allocation5 + $0x1648] sm:$0xff]
    %v807 = vld [vmem:[#allocation5 + $0x1650] sm:$0xff]
    %v808 = vld [vmem:[#allocation5 + $0x1658] sm:$0xff]
    %v809 = vld [vmem:[#allocation5 + $0x1660] sm:$0xff]
    %v810 = vld [vmem:[#allocation5 + $0x1668] sm:$0xff]
    %v811 = vld [vmem:[#allocation5 + $0x1670] sm:$0xff]
    %v812 = vld [vmem:[#allocation5 + $0x1678] sm:$0xff]
    %v813 = vld [vmem:[#allocation5 + $0x1680] sm:$0xff]
    %v814 = vld [vmem:[#allocation5 + $0x1688] sm:$0xff]
    %v815 = vld [vmem:[#allocation5 + $0x1690] sm:$0xff]
    %v816 = vld [vmem:[#allocation5 + $0x1698] sm:$0xff]
    %v817 = vld [vmem:[#allocation5 + $0x16a0] sm:$0xff]
    %v818 = vld [vmem:[#allocation5 + $0x16a8] sm:$0xff]
    %v819 = vld [vmem:[#allocation5 + $0x16b0] sm:$0xff]
    %v820 = vld [vmem:[#allocation5 + $0x16b8] sm:$0xff]
    %v821 = vld [vmem:[#allocation5 + $0x16c0] sm:$0xff]
    %v822 = vld [vmem:[#allocation5 + $0x16c8] sm:$0xff]
    %v823 = vld [vmem:[#allocation5 + $0x16d0] sm:$0xff]
    %v824 = vld [vmem:[#allocation5 + $0x16d8] sm:$0xff]
    %v825 = vld [vmem:[#allocation5 + $0x16e0] sm:$0xff]
    %v826 = vld [vmem:[#allocation5 + $0x16e8] sm:$0xff]
    %v827 = vld [vmem:[#allocation5 + $0x16f0] sm:$0xff]
    %v828 = vld [vmem:[#allocation5 + $0x16f8] sm:$0xff]
    %v829 = vld [vmem:[#allocation5 + $0x1700] sm:$0xff]
    %v830 = vld [vmem:[#allocation5 + $0x1708] sm:$0xff]
    %v831 = vld [vmem:[#allocation5 + $0x1710] sm:$0xff]
    %v832 = vld [vmem:[#allocation5 + $0x1718] sm:$0xff]
    %v833 = vld [vmem:[#allocation5 + $0x1720] sm:$0xff]
    %v834 = vld [vmem:[#allocation5 + $0x1728] sm:$0xff]
    %v835 = vld [vmem:[#allocation5 + $0x1730] sm:$0xff]
    %v836 = vld [vmem:[#allocation5 + $0x1738] sm:$0xff]
    %v837 = vld [vmem:[#allocation5 + $0x1740] sm:$0xff]
    %v838 = vld [vmem:[#allocation5 + $0x1748] sm:$0xff]
    %v839 = vld [vmem:[#allocation5 + $0x1750] sm:$0xff]
    %v840 = vld [vmem:[#allocation5 + $0x1758] sm:$0xff]
    %v841 = vld [vmem:[#allocation5 + $0x1760] sm:$0xff]
    %v842 = vld [vmem:[#allocation5 + $0x1768] sm:$0xff]
    %v843 = vld [vmem:[#allocation5 + $0x1770] sm:$0xff]
    %v844 = vld [vmem:[#allocation5 + $0x1778] sm:$0xff]
    %v845 = vld [vmem:[#allocation5 + $0x1780] sm:$0xff]
    %v846 = vld [vmem:[#allocation5 + $0x1788] sm:$0xff]
    %v847 = vld [vmem:[#allocation5 + $0x1790] sm:$0xff]
    %v848 = vld [vmem:[#allocation5 + $0x1798] sm:$0xff]
    %v849 = vld [vmem:[#allocation5 + $0x17a0] sm:$0xff]
    %v850 = vld [vmem:[#allocation5 + $0x17a8] sm:$0xff]
    %v851 = vld [vmem:[#allocation5 + $0x17b0] sm:$0xff]
    %v852 = vld [vmem:[#allocation5 + $0x17b8] sm:$0xff]
    %v853 = vld [vmem:[#allocation5 + $0x17c0] sm:$0xff]
    %v854 = vld [vmem:[#allocation5 + $0x17c8] sm:$0xff]
    %v855 = vld [vmem:[#allocation5 + $0x17d0] sm:$0xff]
    %v856 = vld [vmem:[#allocation5 + $0x17d8] sm:$0xff]
    %v857 = vld [vmem:[#allocation5 + $0x17e0] sm:$0xff]
    %v858 = vld [vmem:[#allocation5 + $0x17e8] sm:$0xff]
    %v859 = vld [vmem:[#allocation5 + $0x17f0] sm:$0xff]
    %v860 = vld [vmem:[#allocation5 + $0x17f8] sm:$0xff]
    %v861 = vld [vmem:[#allocation5 + $0x1800] sm:$0xff]
    %v862 = vld [vmem:[#allocation5 + $0x1808] sm:$0xff]
    %v863 = vld [vmem:[#allocation5 + $0x1810] sm:$0xff]
    %v864 = vld [vmem:[#allocation5 + $0x1818] sm:$0xff]
    %v865 = vld [vmem:[#allocation5 + $0x1820] sm:$0xff]
    %v866 = vld [vmem:[#allocation5 + $0x1828] sm:$0xff]
    %v867 = vld [vmem:[#allocation5 + $0x1830] sm:$0xff]
    %v868 = vld [vmem:[#allocation5 + $0x1838] sm:$0xff]
    %v869 = vld [vmem:[#allocation5 + $0x1840] sm:$0xff]
    %v870 = vld [vmem:[#allocation5 + $0x1848] sm:$0xff]
    %v871 = vld [vmem:[#allocation5 + $0x1850] sm:$0xff]
    %v872 = vld [vmem:[#allocation5 + $0x1858] sm:$0xff]
    %v873 = vld [vmem:[#allocation5 + $0x1860] sm:$0xff]
    %v874 = vld [vmem:[#allocation5 + $0x1868] sm:$0xff]
    %v875 = vld [vmem:[#allocation5 + $0x1870] sm:$0xff]
    %v876 = vld [vmem:[#allocation5 + $0x1878] sm:$0xff]
    %v877 = vld [vmem:[#allocation5 + $0x1880] sm:$0xff]
    %v878 = vld [vmem:[#allocation5 + $0x1888] sm:$0xff]
    %v879 = vld [vmem:[#allocation5 + $0x1890] sm:$0xff]
    %v880 = vld [vmem:[#allocation5 + $0x1898] sm:$0xff]
    %v881 = vld [vmem:[#allocation5 + $0x18a0] sm:$0xff]
    %v882 = vld [vmem:[#allocation5 + $0x18a8] sm:$0xff]
    %v883 = vld [vmem:[#allocation5 + $0x18b0] sm:$0xff]
    %v884 = vld [vmem:[#allocation5 + $0x18b8] sm:$0xff]
    %v885 = vld [vmem:[#allocation5 + $0x18c0] sm:$0xff]
    %v886 = vld [vmem:[#allocation5 + $0x18c8] sm:$0xff]
    %v887 = vld [vmem:[#allocation5 + $0x18d0] sm:$0xff]
    %v888 = vld [vmem:[#allocation5 + $0x18d8] sm:$0xff]
    %v889 = vld [vmem:[#allocation5 + $0x18e0] sm:$0xff]
    %v890 = vld [vmem:[#allocation5 + $0x18e8] sm:$0xff]
    %v891 = vld [vmem:[#allocation5 + $0x18f0] sm:$0xff]
    %v892 = vld [vmem:[#allocation5 + $0x18f8] sm:$0xff]
    %v893 = vld [vmem:[#allocation5 + $0x1900] sm:$0xff]
    %v894 = vld [vmem:[#allocation5 + $0x1908] sm:$0xff]
    %v895 = vld [vmem:[#allocation5 + $0x1910] sm:$0xff]
    %v896 = vld [vmem:[#allocation5 + $0x1918] sm:$0xff]
    %v897 = vld [vmem:[#allocation5 + $0x1920] sm:$0xff]
    %v898 = vld [vmem:[#allocation5 + $0x1928] sm:$0xff]
    %v899 = vld [vmem:[#allocation5 + $0x1930] sm:$0xff]
    %v900 = vld [vmem:[#allocation5 + $0x1938] sm:$0xff]
    %v901 = vld [vmem:[#allocation5 + $0x1940] sm:$0xff]
    %v902 = vld [vmem:[#allocation5 + $0x1948] sm:$0xff]
    %v903 = vld [vmem:[#allocation5 + $0x1950] sm:$0xff]
    %v904 = vld [vmem:[#allocation5 + $0x1958] sm:$0xff]
    %v905 = vld [vmem:[#allocation5 + $0x1960] sm:$0xff]
    %v906 = vld [vmem:[#allocation5 + $0x1968] sm:$0xff]
    %v907 = vld [vmem:[#allocation5 + $0x1970] sm:$0xff]
    %v908 = vld [vmem:[#allocation5 + $0x1978] sm:$0xff]
    %v909 = vld [vmem:[#allocation5 + $0x1980] sm:$0xff]
    %v910 = vld [vmem:[#allocation5 + $0x1988] sm:$0xff]
    %v911 = vld [vmem:[#allocation5 + $0x1990] sm:$0xff]
    %v912 = vld [vmem:[#allocation5 + $0x1998] sm:$0xff]
    %v913 = vld [vmem:[#allocation5 + $0x19a0] sm:$0xff]
    %v914 = vld [vmem:[#allocation5 + $0x19a8] sm:$0xff]
    %v915 = vld [vmem:[#allocation5 + $0x19b0] sm:$0xff]
    %v916 = vld [vmem:[#allocation5 + $0x19b8] sm:$0xff]
    %v917 = vld [vmem:[#allocation5 + $0x19c0] sm:$0xff]
    %v918 = vld [vmem:[#allocation5 + $0x19c8] sm:$0xff]
    %v919 = vld [vmem:[#allocation5 + $0x19d0] sm:$0xff]
    %v920 = vld [vmem:[#allocation5 + $0x19d8] sm:$0xff]
    %v921 = vld [vmem:[#allocation5 + $0x19e0] sm:$0xff]
    %v922 = vld [vmem:[#allocation5 + $0x19e8] sm:$0xff]
    %v923 = vld [vmem:[#allocation5 + $0x19f0] sm:$0xff]
    %v924 = vld [vmem:[#allocation5 + $0x19f8] sm:$0xff]
    %v925 = vld [vmem:[#allocation5 + $0x1a00] sm:$0xff]
    %v926 = vld [vmem:[#allocation5 + $0x1a08] sm:$0xff]
    %v927 = vld [vmem:[#allocation5 + $0x1a10] sm:$0xff]
    %v928 = vld [vmem:[#allocation5 + $0x1a18] sm:$0xff]
    %v929 = vld [vmem:[#allocation5 + $0x1a20] sm:$0xff]
    %v930 = vld [vmem:[#allocation5 + $0x1a28] sm:$0xff]
    %v931 = vld [vmem:[#allocation5 + $0x1a30] sm:$0xff]
    %v932 = vld [vmem:[#allocation5 + $0x1a38] sm:$0xff]
    %v933 = vld [vmem:[#allocation5 + $0x1a40] sm:$0xff]
    %v934 = vld [vmem:[#allocation5 + $0x1a48] sm:$0xff]
    %v935 = vld [vmem:[#allocation5 + $0x1a50] sm:$0xff]
    %v936 = vld [vmem:[#allocation5 + $0x1a58] sm:$0xff]
    %v937 = vld [vmem:[#allocation5 + $0x1a60] sm:$0xff]
    %v938 = vld [vmem:[#allocation5 + $0x1a68] sm:$0xff]
    %v939 = vld [vmem:[#allocation5 + $0x1a70] sm:$0xff]
    %v940 = vld [vmem:[#allocation5 + $0x1a78] sm:$0xff]
    %v941 = vld [vmem:[#allocation5 + $0x1a80] sm:$0xff]
    %v942 = vld [vmem:[#allocation5 + $0x1a88] sm:$0xff]
    %v943 = vld [vmem:[#allocation5 + $0x1a90] sm:$0xff]
    %v944 = vld [vmem:[#allocation5 + $0x1a98] sm:$0xff]
    %v945 = vld [vmem:[#allocation5 + $0x1aa0] sm:$0xff]
    %v946 = vld [vmem:[#allocation5 + $0x1aa8] sm:$0xff]
    %v947 = vld [vmem:[#allocation5 + $0x1ab0] sm:$0xff]
    %v948 = vld [vmem:[#allocation5 + $0x1ab8] sm:$0xff]
    %v949 = vld [vmem:[#allocation5 + $0x1ac0] sm:$0xff]
    %v950 = vld [vmem:[#allocation5 + $0x1ac8] sm:$0xff]
    %v951 = vld [vmem:[#allocation5 + $0x1ad0] sm:$0xff]
    %v952 = vld [vmem:[#allocation5 + $0x1ad8] sm:$0xff]
    %v953 = vld [vmem:[#allocation5 + $0x1ae0] sm:$0xff]
    %v954 = vld [vmem:[#allocation5 + $0x1ae8] sm:$0xff]
    %v955 = vld [vmem:[#allocation5 + $0x1af0] sm:$0xff]
    %v956 = vld [vmem:[#allocation5 + $0x1af8] sm:$0xff]
    %v957 = vld [vmem:[#allocation5 + $0x1b00] sm:$0xff]
    %v958 = vld [vmem:[#allocation5 + $0x1b08] sm:$0xff]
    %v959 = vld [vmem:[#allocation5 + $0x1b10] sm:$0xff]
    %v960 = vld [vmem:[#allocation5 + $0x1b18] sm:$0xff]
    %v961 = vld [vmem:[#allocation5 + $0x1b20] sm:$0xff]
    %v962 = vld [vmem:[#allocation5 + $0x1b28] sm:$0xff]
    %v963 = vld [vmem:[#allocation5 + $0x1b30] sm:$0xff]
    %v964 = vld [vmem:[#allocation5 + $0x1b38] sm:$0xff]
    %v965 = vld [vmem:[#allocation5 + $0x1b40] sm:$0xff]
    %v966 = vld [vmem:[#allocation5 + $0x1b48] sm:$0xff]
    %v967 = vld [vmem:[#allocation5 + $0x1b50] sm:$0xff]
    %v968 = vld [vmem:[#allocation5 + $0x1b58] sm:$0xff]
    %v969 = vld [vmem:[#allocation5 + $0x1b60] sm:$0xff]
    %v970 = vld [vmem:[#allocation5 + $0x1b68] sm:$0xff]
    %v971 = vld [vmem:[#allocation5 + $0x1b70] sm:$0xff]
    %v972 = vld [vmem:[#allocation5 + $0x1b78] sm:$0xff]
    %v973 = vld [vmem:[#allocation5 + $0x1b80] sm:$0xff]
    %v974 = vld [vmem:[#allocation5 + $0x1b88] sm:$0xff]
    %v975 = vld [vmem:[#allocation5 + $0x1b90] sm:$0xff]
    %v976 = vld [vmem:[#allocation5 + $0x1b98] sm:$0xff]
    %v977 = vld [vmem:[#allocation5 + $0x1ba0] sm:$0xff]
    %v978 = vld [vmem:[#allocation5 + $0x1ba8] sm:$0xff]
    %v979 = vld [vmem:[#allocation5 + $0x1bb0] sm:$0xff]
    %v980 = vld [vmem:[#allocation5 + $0x1bb8] sm:$0xff]
    %v981 = vld [vmem:[#allocation5 + $0x1bc0] sm:$0xff]
    %v982 = vld [vmem:[#allocation5 + $0x1bc8] sm:$0xff]
    %v983 = vld [vmem:[#allocation5 + $0x1bd0] sm:$0xff]
    %v984 = vld [vmem:[#allocation5 + $0x1bd8] sm:$0xff]
    %v985 = vld [vmem:[#allocation5 + $0x1be0] sm:$0xff]
    %v986 = vld [vmem:[#allocation5 + $0x1be8] sm:$0xff]
    %v987 = vld [vmem:[#allocation5 + $0x1bf0] sm:$0xff]
    %v988 = vld [vmem:[#allocation5 + $0x1bf8] sm:$0xff]
    %v989 = vld [vmem:[#allocation5 + $0x1c00] sm:$0xff]
    %v990 = vld [vmem:[#allocation5 + $0x1c08] sm:$0xff]
    %v991 = vld [vmem:[#allocation5 + $0x1c10] sm:$0xff]
    %v992 = vld [vmem:[#allocation5 + $0x1c18] sm:$0xff]
    %v993 = vld [vmem:[#allocation5 + $0x1c20] sm:$0xff]
    %v994 = vld [vmem:[#allocation5 + $0x1c28] sm:$0xff]
    %v995 = vld [vmem:[#allocation5 + $0x1c30] sm:$0xff]
    %v996 = vld [vmem:[#allocation5 + $0x1c38] sm:$0xff]
    %v997 = vld [vmem:[#allocation5 + $0x1c40] sm:$0xff]
    %v998 = vld [vmem:[#allocation5 + $0x1c48] sm:$0xff]
    %v999 = vld [vmem:[#allocation5 + $0x1c50] sm:$0xff]
    %v1000 = vld [vmem:[#allocation5 + $0x1c58] sm:$0xff]
    %v1001 = vld [vmem:[#allocation5 + $0x1c60] sm:$0xff]
    %v1002 = vld [vmem:[#allocation5 + $0x1c68] sm:$0xff]
    %v1003 = vld [vmem:[#allocation5 + $0x1c70] sm:$0xff]
    %v1004 = vld [vmem:[#allocation5 + $0x1c78] sm:$0xff]
    %v1005 = vld [vmem:[#allocation5 + $0x1c80] sm:$0xff]
    %v1006 = vld [vmem:[#allocation5 + $0x1c88] sm:$0xff]
    %v1007 = vld [vmem:[#allocation5 + $0x1c90] sm:$0xff]
    %v1008 = vld [vmem:[#allocation5 + $0x1c98] sm:$0xff]
    %v1009 = vld [vmem:[#allocation5 + $0x1ca0] sm:$0xff]
    %v1010 = vld [vmem:[#allocation5 + $0x1ca8] sm:$0xff]
    %v1011 = vld [vmem:[#allocation5 + $0x1cb0] sm:$0xff]
    %v1012 = vld [vmem:[#allocation5 + $0x1cb8] sm:$0xff]
    %v1013 = vld [vmem:[#allocation5 + $0x1cc0] sm:$0xff]
    %v1014 = vld [vmem:[#allocation5 + $0x1cc8] sm:$0xff]
    %v1015 = vld [vmem:[#allocation5 + $0x1cd0] sm:$0xff]
    %v1016 = vld [vmem:[#allocation5 + $0x1cd8] sm:$0xff]
    %v1017 = vld [vmem:[#allocation5 + $0x1ce0] sm:$0xff]
    %v1018 = vld [vmem:[#allocation5 + $0x1ce8] sm:$0xff]
    %v1019 = vld [vmem:[#allocation5 + $0x1cf0] sm:$0xff]
    %v1020 = vld [vmem:[#allocation5 + $0x1cf8] sm:$0xff]
    %v1021 = vld [vmem:[#allocation5 + $0x1d00] sm:$0xff]
    %v1022 = vld [vmem:[#allocation5 + $0x1d08] sm:$0xff]
    %v1023 = vld [vmem:[#allocation5 + $0x1d10] sm:$0xff]
    %v1024 = vld [vmem:[#allocation5 + $0x1d18] sm:$0xff]
    %v1025 = vld [vmem:[#allocation5 + $0x1d20] sm:$0xff]
    %v1026 = vld [vmem:[#allocation5 + $0x1d28] sm:$0xff]
    %v1027 = vld [vmem:[#allocation5 + $0x1d30] sm:$0xff]
    %v1028 = vld [vmem:[#allocation5 + $0x1d38] sm:$0xff]
    %v1029 = vld [vmem:[#allocation5 + $0x1d40] sm:$0xff]
    %v1030 = vld [vmem:[#allocation5 + $0x1d48] sm:$0xff]
    %v1031 = vld [vmem:[#allocation5 + $0x1d50] sm:$0xff]
    %v1032 = vld [vmem:[#allocation5 + $0x1d58] sm:$0xff]
    %v1033 = vld [vmem:[#allocation5 + $0x1d60] sm:$0xff]
    %v1034 = vld [vmem:[#allocation5 + $0x1d68] sm:$0xff]
    %v1035 = vld [vmem:[#allocation5 + $0x1d70] sm:$0xff]
    %v1036 = vld [vmem:[#allocation5 + $0x1d78] sm:$0xff]
    %v1037 = vld [vmem:[#allocation5 + $0x1d80] sm:$0xff]
    %v1038 = vld [vmem:[#allocation5 + $0x1d88] sm:$0xff]
    %v1039 = vld [vmem:[#allocation5 + $0x1d90] sm:$0xff]
    %v1040 = vld [vmem:[#allocation5 + $0x1d98] sm:$0xff]
    %v1041 = vld [vmem:[#allocation5 + $0x1da0] sm:$0xff]
    %v1042 = vld [vmem:[#allocation5 + $0x1da8] sm:$0xff]
    %v1043 = vld [vmem:[#allocation5 + $0x1db0] sm:$0xff]
    %v1044 = vld [vmem:[#allocation5 + $0x1db8] sm:$0xff]
    %v1045 = vld [vmem:[#allocation5 + $0x1dc0] sm:$0xff]
    %v1046 = vld [vmem:[#allocation5 + $0x1dc8] sm:$0xff]
    %v1047 = vld [vmem:[#allocation5 + $0x1dd0] sm:$0xff]
    %v1048 = vld [vmem:[#allocation5 + $0x1dd8] sm:$0xff]
    %v1049 = vld [vmem:[#allocation5 + $0x1de0] sm:$0xff]
    %v1050 = vld [vmem:[#allocation5 + $0x1de8] sm:$0xff]
    %v1051 = vld [vmem:[#allocation5 + $0x1df0] sm:$0xff]
    %v1052 = vld [vmem:[#allocation5 + $0x1df8] sm:$0xff]
    %v1053 = vld [vmem:[#allocation5 + $0x1e00] sm:$0xff]
    %v1054 = vld [vmem:[#allocation5 + $0x1e08] sm:$0xff]
    %v1055 = vld [vmem:[#allocation5 + $0x1e10] sm:$0xff]
    %v1056 = vld [vmem:[#allocation5 + $0x1e18] sm:$0xff]
    %v1057 = vld [vmem:[#allocation5 + $0x1e20] sm:$0xff]
    %v1058 = vld [vmem:[#allocation5 + $0x1e28] sm:$0xff]
    %v1059 = vld [vmem:[#allocation5 + $0x1e30] sm:$0xff]
    %v1060 = vld [vmem:[#allocation5 + $0x1e38] sm:$0xff]
    %v1061 = vld [vmem:[#allocation5 + $0x1e40] sm:$0xff]
    %v1062 = vld [vmem:[#allocation5 + $0x1e48] sm:$0xff]
    %v1063 = vld [vmem:[#allocation5 + $0x1e50] sm:$0xff]
    %v1064 = vld [vmem:[#allocation5 + $0x1e58] sm:$0xff]
    %v1065 = vld [vmem:[#allocation5 + $0x1e60] sm:$0xff]
    %v1066 = vld [vmem:[#allocation5 + $0x1e68] sm:$0xff]
    %v1067 = vld [vmem:[#allocation5 + $0x1e70] sm:$0xff]
    %v1068 = vld [vmem:[#allocation5 + $0x1e78] sm:$0xff]
    %v1069 = vld [vmem:[#allocation5 + $0x1e80] sm:$0xff]
    %v1070 = vld [vmem:[#allocation5 + $0x1e88] sm:$0xff]
    %v1071 = vld [vmem:[#allocation5 + $0x1e90] sm:$0xff]
    %v1072 = vld [vmem:[#allocation5 + $0x1e98] sm:$0xff]
    %v1073 = vld [vmem:[#allocation5 + $0x1ea0] sm:$0xff]
    %v1074 = vld [vmem:[#allocation5 + $0x1ea8] sm:$0xff]
    %v1075 = vld [vmem:[#allocation5 + $0x1eb0] sm:$0xff]
    %v1076 = vld [vmem:[#allocation5 + $0x1eb8] sm:$0xff]
    %v1077 = vld [vmem:[#allocation5 + $0x1ec0] sm:$0xff]
    %v1078 = vld [vmem:[#allocation5 + $0x1ec8] sm:$0xff]
    %v1079 = vld [vmem:[#allocation5 + $0x1ed0] sm:$0xff]
    %v1080 = vld [vmem:[#allocation5 + $0x1ed8] sm:$0xff]
    %v1081 = vld [vmem:[#allocation5 + $0x1ee0] sm:$0xff]
    %v1082 = vld [vmem:[#allocation5 + $0x1ee8] sm:$0xff]
    %v1083 = vld [vmem:[#allocation5 + $0x1ef0] sm:$0xff]
    %v1084 = vld [vmem:[#allocation5 + $0x1ef8] sm:$0xff]
    %v1085 = vld [vmem:[#allocation5 + $0x1f00] sm:$0xff]
    %v1086 = vld [vmem:[#allocation5 + $0x1f08] sm:$0xff]
    %v1087 = vld [vmem:[#allocation5 + $0x1f10] sm:$0xff]
    %v1088 = vld [vmem:[#allocation5 + $0x1f18] sm:$0xff]
    %v1089 = vld [vmem:[#allocation5 + $0x1f20] sm:$0xff]
    %v1090 = vld [vmem:[#allocation5 + $0x1f28] sm:$0xff]
    %v1091 = vld [vmem:[#allocation5 + $0x1f30] sm:$0xff]
    %v1092 = vld [vmem:[#allocation5 + $0x1f38] sm:$0xff]
    %v1093 = vld [vmem:[#allocation5 + $0x1f40] sm:$0xff]
    %v1094 = vld [vmem:[#allocation5 + $0x1f48] sm:$0xff]
    %v1095 = vld [vmem:[#allocation5 + $0x1f50] sm:$0xff]
    %v1096 = vld [vmem:[#allocation5 + $0x1f58] sm:$0xff]
    %v1097 = vld [vmem:[#allocation5 + $0x1f60] sm:$0xff]
    %v1098 = vld [vmem:[#allocation5 + $0x1f68] sm:$0xff]
    %v1099 = vld [vmem:[#allocation5 + $0x1f70] sm:$0xff]
    %v1100 = vld [vmem:[#allocation5 + $0x1f78] sm:$0xff]
    %v1101 = vld [vmem:[#allocation5 + $0x1f80] sm:$0xff]
    %v1102 = vld [vmem:[#allocation5 + $0x1f88] sm:$0xff]
    %v1103 = vld [vmem:[#allocation5 + $0x1f90] sm:$0xff]
    %v1104 = vld [vmem:[#allocation5 + $0x1f98] sm:$0xff]
    %v1105 = vld [vmem:[#allocation5 + $0x1fa0] sm:$0xff]
    %v1106 = vld [vmem:[#allocation5 + $0x1fa8] sm:$0xff]
    %v1107 = vld [vmem:[#allocation5 + $0x1fb0] sm:$0xff]
    %v1108 = vld [vmem:[#allocation5 + $0x1fb8] sm:$0xff]
    %v1109 = vld [vmem:[#allocation5 + $0x1fc0] sm:$0xff]
    %v1110 = vld [vmem:[#allocation5 + $0x1fc8] sm:$0xff]
    %v1111 = vld [vmem:[#allocation5 + $0x1fd0] sm:$0xff]
    %v1112 = vld [vmem:[#allocation5 + $0x1fd8] sm:$0xff]
    %v1113 = vld [vmem:[#allocation5 + $0x1fe0] sm:$0xff]
    %v1114 = vld [vmem:[#allocation5 + $0x1fe8] sm:$0xff]
    %v1115 = vld [vmem:[#allocation5 + $0x1ff0] sm:$0xff]
    %v1116 = vld [vmem:[#allocation5 + $0x1ff8] sm:$0xff]
    %v1117 = vld [vmem:[#allocation5 + $0x2000] sm:$0xff]
    %v1118 = vld [vmem:[#allocation5 + $0x2008] sm:$0xff]
    %v1119 = vld [vmem:[#allocation5 + $0x2010] sm:$0xff]
    %v1120 = vld [vmem:[#allocation5 + $0x2018] sm:$0xff]
    %v1121 = vld [vmem:[#allocation5 + $0x2020] sm:$0xff]
    %v1122 = vld [vmem:[#allocation5 + $0x2028] sm:$0xff]
    %v1123 = vld [vmem:[#allocation5 + $0x2030] sm:$0xff]
    %v1124 = vld [vmem:[#allocation5 + $0x2038] sm:$0xff]
    %v1125 = vld [vmem:[#allocation5 + $0x2040] sm:$0xff]
    %v1126 = vld [vmem:[#allocation5 + $0x2048] sm:$0xff]
    %v1127 = vld [vmem:[#allocation5 + $0x2050] sm:$0xff]
    %v1128 = vld [vmem:[#allocation5 + $0x2058] sm:$0xff]
    %v1129 = vld [vmem:[#allocation5 + $0x2060] sm:$0xff]
    %v1130 = vld [vmem:[#allocation5 + $0x2068] sm:$0xff]
    %v1131 = vld [vmem:[#allocation5 + $0x2070] sm:$0xff]
    %v1132 = vld [vmem:[#allocation5 + $0x2078] sm:$0xff]
    %v1133 = vld [vmem:[#allocation5 + $0x2080] sm:$0xff]
    %v1134 = vld [vmem:[#allocation5 + $0x2088] sm:$0xff]
    %v1135 = vld [vmem:[#allocation5 + $0x2090] sm:$0xff]
    %v1136 = vld [vmem:[#allocation5 + $0x2098] sm:$0xff]
    %v1137 = vld [vmem:[#allocation5 + $0x20a0] sm:$0xff]
    %v1138 = vld [vmem:[#allocation5 + $0x20a8] sm:$0xff]
    %v1139 = vld [vmem:[#allocation5 + $0x20b0] sm:$0xff]
    %v1140 = vld [vmem:[#allocation5 + $0x20b8] sm:$0xff]
    %v1141 = vld [vmem:[#allocation5 + $0x20c0] sm:$0xff]
    %v1142 = vld [vmem:[#allocation5 + $0x20c8] sm:$0xff]
    %v1143 = vld [vmem:[#allocation5 + $0x20d0] sm:$0xff]
    %v1144 = vld [vmem:[#allocation5 + $0x20d8] sm:$0xff]
    %v1145 = vld [vmem:[#allocation5 + $0x20e0] sm:$0xff]
    %v1146 = vld [vmem:[#allocation5 + $0x20e8] sm:$0xff]
    %v1147 = vld [vmem:[#allocation5 + $0x20f0] sm:$0xff]
    %v1148 = vld [vmem:[#allocation5 + $0x20f8] sm:$0xff]
    %v1149 = vld [vmem:[#allocation5 + $0x2100] sm:$0xff]
    %v1150 = vld [vmem:[#allocation5 + $0x2108] sm:$0xff]
    %v1151 = vld [vmem:[#allocation5 + $0x2110] sm:$0xff]
    %v1152 = vld [vmem:[#allocation5 + $0x2118] sm:$0xff]
    %v1153 = vld [vmem:[#allocation5 + $0x2120] sm:$0xff]
    %v1154 = vld [vmem:[#allocation5 + $0x2128] sm:$0xff]
    %v1155 = vld [vmem:[#allocation5 + $0x2130] sm:$0xff]
    %v1156 = vld [vmem:[#allocation5 + $0x2138] sm:$0xff]
    %v1157 = vld [vmem:[#allocation5 + $0x2140] sm:$0xff]
    %v1158 = vld [vmem:[#allocation5 + $0x2148] sm:$0xff]
    %v1159 = vld [vmem:[#allocation5 + $0x2150] sm:$0xff]
    %v1160 = vld [vmem:[#allocation5 + $0x2158] sm:$0xff]
    %v1161 = vld [vmem:[#allocation5 + $0x2160] sm:$0xff]
    %v1162 = vld [vmem:[#allocation5 + $0x2168] sm:$0xff]
    %v1163 = vld [vmem:[#allocation5 + $0x2170] sm:$0xff]
    %v1164 = vld [vmem:[#allocation5 + $0x2178] sm:$0xff]
    %v1165 = vld [vmem:[#allocation5 + $0x2180] sm:$0xff]
    %v1166 = vld [vmem:[#allocation5 + $0x2188] sm:$0xff]
    %v1167 = vld [vmem:[#allocation5 + $0x2190] sm:$0xff]
    %v1168 = vld [vmem:[#allocation5 + $0x2198] sm:$0xff]
    %v1169 = vld [vmem:[#allocation5 + $0x21a0] sm:$0xff]
    %v1170 = vld [vmem:[#allocation5 + $0x21a8] sm:$0xff]
    %v1171 = vld [vmem:[#allocation5 + $0x21b0] sm:$0xff]
    %v1172 = vld [vmem:[#allocation5 + $0x21b8] sm:$0xff]
    %v1173 = vld [vmem:[#allocation5 + $0x21c0] sm:$0xff]
    %v1174 = vld [vmem:[#allocation5 + $0x21c8] sm:$0xff]
    %v1175 = vld [vmem:[#allocation5 + $0x21d0] sm:$0xff]
    %v1176 = vld [vmem:[#allocation5 + $0x21d8] sm:$0xff]
    %v1177 = vld [vmem:[#allocation5 + $0x21e0] sm:$0xff]
    %v1178 = vld [vmem:[#allocation5 + $0x21e8] sm:$0xff]
    %v1179 = vld [vmem:[#allocation5 + $0x21f0] sm:$0xff]
    %v1180 = vld [vmem:[#allocation5 + $0x21f8] sm:$0xff]
    %v1181 = vld [vmem:[#allocation5 + $0x2200] sm:$0xff]
    %v1182 = vld [vmem:[#allocation5 + $0x2208] sm:$0xff]
    %v1183 = vld [vmem:[#allocation5 + $0x2210] sm:$0xff]
    %v1184 = vld [vmem:[#allocation5 + $0x2218] sm:$0xff]
    %v1185 = vld [vmem:[#allocation5 + $0x2220] sm:$0xff]
    %v1186 = vld [vmem:[#allocation5 + $0x2228] sm:$0xff]
    %v1187 = vld [vmem:[#allocation5 + $0x2230] sm:$0xff]
    %v1188 = vld [vmem:[#allocation5 + $0x2238] sm:$0xff]
    %v1189 = vld [vmem:[#allocation5 + $0x2240] sm:$0xff]
    %v1190 = vld [vmem:[#allocation5 + $0x2248] sm:$0xff]
    %v1191 = vld [vmem:[#allocation5 + $0x2250] sm:$0xff]
    %v1192 = vld [vmem:[#allocation5 + $0x2258] sm:$0xff]
    %v1193 = vld [vmem:[#allocation5 + $0x2260] sm:$0xff]
    %v1194 = vld [vmem:[#allocation5 + $0x2268] sm:$0xff]
    %v1195 = vld [vmem:[#allocation5 + $0x2270] sm:$0xff]
    %v1196 = vld [vmem:[#allocation5 + $0x2278] sm:$0xff]
    %v1197 = vld [vmem:[#allocation5 + $0x2280] sm:$0xff]
    %v1198 = vld [vmem:[#allocation5 + $0x2288] sm:$0xff]
    %v1199 = vld [vmem:[#allocation5 + $0x2290] sm:$0xff]
    %v1200 = vld [vmem:[#allocation5 + $0x2298] sm:$0xff]
    %v1201 = vld [vmem:[#allocation5 + $0x22a0] sm:$0xff]
    %v1202 = vld [vmem:[#allocation5 + $0x22a8] sm:$0xff]
    %v1203 = vld [vmem:[#allocation5 + $0x22b0] sm:$0xff]
    %v1204 = vld [vmem:[#allocation5 + $0x22b8] sm:$0xff]
    %v1205 = vld [vmem:[#allocation5 + $0x22c0] sm:$0xff]
    %v1206 = vld [vmem:[#allocation5 + $0x22c8] sm:$0xff]
    %v1207 = vld [vmem:[#allocation5 + $0x22d0] sm:$0xff]
    %v1208 = vld [vmem:[#allocation5 + $0x22d8] sm:$0xff]
    %v1209 = vld [vmem:[#allocation5 + $0x22e0] sm:$0xff]
    %v1210 = vld [vmem:[#allocation5 + $0x22e8] sm:$0xff]
    %v1211 = vld [vmem:[#allocation5 + $0x22f0] sm:$0xff]
    %v1212 = vld [vmem:[#allocation5 + $0x22f8] sm:$0xff]
    %v1213 = vld [vmem:[#allocation5 + $0x2300] sm:$0xff]
    %v1214 = vld [vmem:[#allocation5 + $0x2308] sm:$0xff]
    %v1215 = vld [vmem:[#allocation5 + $0x2310] sm:$0xff]
    %v1216 = vld [vmem:[#allocation5 + $0x2318] sm:$0xff]
    %v1217 = vld [vmem:[#allocation5 + $0x2320] sm:$0xff]
    %v1218 = vld [vmem:[#allocation5 + $0x2328] sm:$0xff]
    %v1219 = vld [vmem:[#allocation5 + $0x2330] sm:$0xff]
    %v1220 = vld [vmem:[#allocation5 + $0x2338] sm:$0xff]
    %v1221 = vld [vmem:[#allocation5 + $0x2340] sm:$0xff]
    %v1222 = vld [vmem:[#allocation5 + $0x2348] sm:$0xff]
    %v1223 = vld [vmem:[#allocation5 + $0x2350] sm:$0xff]
    %v1224 = vld [vmem:[#allocation5 + $0x2358] sm:$0xff]
    %v1225 = vld [vmem:[#allocation5 + $0x2360] sm:$0xff]
    %v1226 = vld [vmem:[#allocation5 + $0x2368] sm:$0xff]
    %v1227 = vld [vmem:[#allocation5 + $0x2370] sm:$0xff]
    %v1228 = vld [vmem:[#allocation5 + $0x2378] sm:$0xff]
    %v1229 = vld [vmem:[#allocation5 + $0x2380] sm:$0xff]
    %v1230 = vld [vmem:[#allocation5 + $0x2388] sm:$0xff]
    %v1231 = vld [vmem:[#allocation5 + $0x2390] sm:$0xff]
    %v1232 = vld [vmem:[#allocation5 + $0x2398] sm:$0xff]
    %v1233 = vld [vmem:[#allocation5 + $0x23a0] sm:$0xff]
    %v1234 = vld [vmem:[#allocation5 + $0x23a8] sm:$0xff]
    %v1235 = vld [vmem:[#allocation5 + $0x23b0] sm:$0xff]
    %v1236 = vld [vmem:[#allocation5 + $0x23b8] sm:$0xff]
    %v1237 = vld [vmem:[#allocation5 + $0x23c0] sm:$0xff]
    %v1238 = vld [vmem:[#allocation5 + $0x23c8] sm:$0xff]
    %v1239 = vld [vmem:[#allocation5 + $0x23d0] sm:$0xff]
    %v1240 = vld [vmem:[#allocation5 + $0x23d8] sm:$0xff]
    %v1241 = vld [vmem:[#allocation5 + $0x23e0] sm:$0xff]
    %v1242 = vld [vmem:[#allocation5 + $0x23e8] sm:$0xff]
    %v1243 = vld [vmem:[#allocation5 + $0x23f0] sm:$0xff]
    %v1244 = vld [vmem:[#allocation5 + $0x23f8] sm:$0xff]
    %v1245 = vld [vmem:[#allocation5 + $0x2400] sm:$0xff]
    %v1246 = vld [vmem:[#allocation5 + $0x2408] sm:$0xff]
    %v1247 = vld [vmem:[#allocation5 + $0x2410] sm:$0xff]
    %v1248 = vld [vmem:[#allocation5 + $0x2418] sm:$0xff]
    %v1249 = vld [vmem:[#allocation5 + $0x2420] sm:$0xff]
    %v1250 = vld [vmem:[#allocation5 + $0x2428] sm:$0xff]
    %v1251 = vld [vmem:[#allocation5 + $0x2430] sm:$0xff]
    %v1252 = vld [vmem:[#allocation5 + $0x2438] sm:$0xff]
    %v1253 = vld [vmem:[#allocation5 + $0x2440] sm:$0xff]
    %v1254 = vld [vmem:[#allocation5 + $0x2448] sm:$0xff]
    %v1255 = vld [vmem:[#allocation5 + $0x2450] sm:$0xff]
    %v1256 = vld [vmem:[#allocation5 + $0x2458] sm:$0xff]
    %v1257 = vld [vmem:[#allocation5 + $0x2460] sm:$0xff]
    %v1258 = vld [vmem:[#allocation5 + $0x2468] sm:$0xff]
    %v1259 = vld [vmem:[#allocation5 + $0x2470] sm:$0xff]
    %v1260 = vld [vmem:[#allocation5 + $0x2478] sm:$0xff]
    %v1261 = vld [vmem:[#allocation5 + $0x2480] sm:$0xff]
    %v1262 = vld [vmem:[#allocation5 + $0x2488] sm:$0xff]
    %v1263 = vld [vmem:[#allocation5 + $0x2490] sm:$0xff]
    %v1264 = vld [vmem:[#allocation5 + $0x2498] sm:$0xff]
    %v1265 = vld [vmem:[#allocation5 + $0x24a0] sm:$0xff]
    %v1266 = vld [vmem:[#allocation5 + $0x24a8] sm:$0xff]
    %v1267 = vld [vmem:[#allocation5 + $0x24b0] sm:$0xff]
    %v1268 = vld [vmem:[#allocation5 + $0x24b8] sm:$0xff]
    %v1269 = vld [vmem:[#allocation5 + $0x24c0] sm:$0xff]
    %v1270 = vld [vmem:[#allocation5 + $0x24c8] sm:$0xff]
    %v1271 = vld [vmem:[#allocation5 + $0x24d0] sm:$0xff]
    %v1272 = vld [vmem:[#allocation5 + $0x24d8] sm:$0xff]
    %v1273 = vld [vmem:[#allocation5 + $0x24e0] sm:$0xff]
    %v1274 = vld [vmem:[#allocation5 + $0x24e8] sm:$0xff]
    %v1275 = vld [vmem:[#allocation5 + $0x24f0] sm:$0xff]
    %v1276 = vld [vmem:[#allocation5 + $0x24f8] sm:$0xff]
    %v1277 = vld [vmem:[#allocation5 + $0x2500] sm:$0xff]
    %v1278 = vld [vmem:[#allocation5 + $0x2508] sm:$0xff]
    %v1279 = vld [vmem:[#allocation5 + $0x2510] sm:$0xff]
    %v1280 = vld [vmem:[#allocation5 + $0x2518] sm:$0xff]
    %v1281 = vld [vmem:[#allocation5 + $0x2520] sm:$0xff]
    %v1282 = vld [vmem:[#allocation5 + $0x2528] sm:$0xff]
    %v1283 = vld [vmem:[#allocation5 + $0x2530] sm:$0xff]
    %v1284 = vld [vmem:[#allocation5 + $0x2538] sm:$0xff]
    %v1285 = vld [vmem:[#allocation5 + $0x2540] sm:$0xff]
    %v1286 = vld [vmem:[#allocation5 + $0x2548] sm:$0xff]
    %v1287 = vld [vmem:[#allocation5 + $0x2550] sm:$0xff]
    %v1288 = vld [vmem:[#allocation5 + $0x2558] sm:$0xff]
    %v1289 = vld [vmem:[#allocation5 + $0x2560] sm:$0xff]
    %v1290 = vld [vmem:[#allocation5 + $0x2568] sm:$0xff]
    %v1291 = vld [vmem:[#allocation5 + $0x2570] sm:$0xff]
    %v1292 = vld [vmem:[#allocation5 + $0x2578] sm:$0xff]
    %v1293 = vld [vmem:[#allocation5 + $0x2580] sm:$0xff]
    %v1294 = vld [vmem:[#allocation5 + $0x2588] sm:$0xff]
    %v1295 = vld [vmem:[#allocation5 + $0x2590] sm:$0xff]
    %v1296 = vld [vmem:[#allocation5 + $0x2598] sm:$0xff]
    %v1297 = vld [vmem:[#allocation5 + $0x25a0] sm:$0xff]
    %v1298 = vld [vmem:[#allocation5 + $0x25a8] sm:$0xff]
    %v1299 = vld [vmem:[#allocation5 + $0x25b0] sm:$0xff]
    %v1300 = vld [vmem:[#allocation5 + $0x25b8] sm:$0xff]
    %v1301 = vld [vmem:[#allocation5 + $0x25c0] sm:$0xff]
    %v1302 = vld [vmem:[#allocation5 + $0x25c8] sm:$0xff]
    %v1303 = vld [vmem:[#allocation5 + $0x25d0] sm:$0xff]
    %v1304 = vld [vmem:[#allocation5 + $0x25d8] sm:$0xff]
    %v1305 = vld [vmem:[#allocation5 + $0x25e0] sm:$0xff]
    %v1306 = vld [vmem:[#allocation5 + $0x25e8] sm:$0xff]
    %v1307 = vld [vmem:[#allocation5 + $0x25f0] sm:$0xff]
    %v1308 = vld [vmem:[#allocation5 + $0x25f8] sm:$0xff]
    %v1309 = vld [vmem:[#allocation5 + $0x2600] sm:$0xff]
    %v1310 = vld [vmem:[#allocation5 + $0x2608] sm:$0xff]
    %v1311 = vld [vmem:[#allocation5 + $0x2610] sm:$0xff]
    %v1312 = vld [vmem:[#allocation5 + $0x2618] sm:$0xff]
    %v1313 = vld [vmem:[#allocation5 + $0x2620] sm:$0xff]
    %v1314 = vld [vmem:[#allocation5 + $0x2628] sm:$0xff]
    %v1315 = vld [vmem:[#allocation5 + $0x2630] sm:$0xff]
    %v1316 = vld [vmem:[#allocation5 + $0x2638] sm:$0xff]
    %v1317 = vld [vmem:[#allocation5 + $0x2640] sm:$0xff]
    %v1318 = vld [vmem:[#allocation5 + $0x2648] sm:$0xff]
    %v1319 = vld [vmem:[#allocation5 + $0x2650] sm:$0xff]
    %v1320 = vld [vmem:[#allocation5 + $0x2658] sm:$0xff]
    %v1321 = vld [vmem:[#allocation5 + $0x2660] sm:$0xff]
    %v1322 = vld [vmem:[#allocation5 + $0x2668] sm:$0xff]
    %v1323 = vld [vmem:[#allocation5 + $0x2670] sm:$0xff]
    %v1324 = vld [vmem:[#allocation5 + $0x2678] sm:$0xff]
    %v1325 = vld [vmem:[#allocation5 + $0x2680] sm:$0xff]
    %v1326 = vld [vmem:[#allocation5 + $0x2688] sm:$0xff]
    %v1327 = vld [vmem:[#allocation5 + $0x2690] sm:$0xff]
    %v1328 = vld [vmem:[#allocation5 + $0x2698] sm:$0xff]
    %v1329 = vld [vmem:[#allocation5 + $0x26a0] sm:$0xff]
    %v1330 = vld [vmem:[#allocation5 + $0x26a8] sm:$0xff]
    %v1331 = vld [vmem:[#allocation5 + $0x26b0] sm:$0xff]
    %v1332 = vld [vmem:[#allocation5 + $0x26b8] sm:$0xff]
    %v1333 = vld [vmem:[#allocation5 + $0x26c0] sm:$0xff]
    %v1334 = vld [vmem:[#allocation5 + $0x26c8] sm:$0xff]
    %v1335 = vld [vmem:[#allocation5 + $0x26d0] sm:$0xff]
    %v1336 = vld [vmem:[#allocation5 + $0x26d8] sm:$0xff]
    %v1337 = vld [vmem:[#allocation5 + $0x26e0] sm:$0xff]
    %v1338 = vld [vmem:[#allocation5 + $0x26e8] sm:$0xff]
    %v1339 = vld [vmem:[#allocation5 + $0x26f0] sm:$0xff]
    %v1340 = vld [vmem:[#allocation5 + $0x26f8] sm:$0xff]
    %v1341 = vld [vmem:[#allocation5 + $0x2700] sm:$0xff]
    %v1342 = vld [vmem:[#allocation5 + $0x2708] sm:$0xff]
    %v1343 = vld [vmem:[#allocation5 + $0x2710] sm:$0xff]
    %v1344 = vld [vmem:[#allocation5 + $0x2718] sm:$0xff]
    %v1345 = vld [vmem:[#allocation5 + $0x2720] sm:$0xff]
    %v1346 = vld [vmem:[#allocation5 + $0x2728] sm:$0xff]
    %v1347 = vld [vmem:[#allocation5 + $0x2730] sm:$0xff]
    %v1348 = vld [vmem:[#allocation5 + $0x2738] sm:$0xff]
    %v1349 = vld [vmem:[#allocation5 + $0x2740] sm:$0xff]
    %v1350 = vld [vmem:[#allocation5 + $0x2748] sm:$0xff]
    %v1351 = vld [vmem:[#allocation5 + $0x2750] sm:$0xff]
    %v1352 = vld [vmem:[#allocation5 + $0x2758] sm:$0xff]
    %v1353 = vld [vmem:[#allocation5 + $0x2760] sm:$0xff]
    %v1354 = vld [vmem:[#allocation5 + $0x2768] sm:$0xff]
    %v1355 = vld [vmem:[#allocation5 + $0x2770] sm:$0xff]
    %v1356 = vld [vmem:[#allocation5 + $0x2778] sm:$0xff]
    %v1357 = vld [vmem:[#allocation5 + $0x2780] sm:$0xff]
    %v1358 = vld [vmem:[#allocation5 + $0x2788] sm:$0xff]
    %v1359 = vld [vmem:[#allocation5 + $0x2790] sm:$0xff]
    %v1360 = vld [vmem:[#allocation5 + $0x2798] sm:$0xff]
    %v1361 = vld [vmem:[#allocation5 + $0x27a0] sm:$0xff]
    %v1362 = vld [vmem:[#allocation5 + $0x27a8] sm:$0xff]
    %v1363 = vld [vmem:[#allocation5 + $0x27b0] sm:$0xff]
    %v1364 = vld [vmem:[#allocation5 + $0x27b8] sm:$0xff]
    %v1365 = vld [vmem:[#allocation5 + $0x27c0] sm:$0xff]
    %v1366 = vld [vmem:[#allocation5 + $0x27c8] sm:$0xff]
    %v1367 = vld [vmem:[#allocation5 + $0x27d0] sm:$0xff]
    %v1368 = vld [vmem:[#allocation5 + $0x27d8] sm:$0xff]
    %v1369 = vld [vmem:[#allocation5 + $0x27e0] sm:$0xff]
    %v1370 = vld [vmem:[#allocation5 + $0x27e8] sm:$0xff]
    %v1371 = vld [vmem:[#allocation5 + $0x27f0] sm:$0xff]
    %v1372 = vld [vmem:[#allocation5 + $0x27f8] sm:$0xff]
    %v1373 = vld [vmem:[#allocation5 + $0x2800] sm:$0xff]
    %v1374 = vld [vmem:[#allocation5 + $0x2808] sm:$0xff]
    %v1375 = vld [vmem:[#allocation5 + $0x2810] sm:$0xff]
    %v1376 = vld [vmem:[#allocation5 + $0x2818] sm:$0xff]
    %v1377 = vld [vmem:[#allocation5 + $0x2820] sm:$0xff]
    %v1378 = vld [vmem:[#allocation5 + $0x2828] sm:$0xff]
    %v1379 = vld [vmem:[#allocation5 + $0x2830] sm:$0xff]
    %v1380 = vld [vmem:[#allocation5 + $0x2838] sm:$0xff]
    %v1381 = vld [vmem:[#allocation5 + $0x2840] sm:$0xff]
    %v1382 = vld [vmem:[#allocation5 + $0x2848] sm:$0xff]
    %v1383 = vld [vmem:[#allocation5 + $0x2850] sm:$0xff]
    %v1384 = vld [vmem:[#allocation5 + $0x2858] sm:$0xff]
    %v1385 = vld [vmem:[#allocation5 + $0x2860] sm:$0xff]
    %v1386 = vld [vmem:[#allocation5 + $0x2868] sm:$0xff]
    %v1387 = vld [vmem:[#allocation5 + $0x2870] sm:$0xff]
    %v1388 = vld [vmem:[#allocation5 + $0x2878] sm:$0xff]
    %v1389 = vld [vmem:[#allocation5 + $0x2880] sm:$0xff]
    %v1390 = vld [vmem:[#allocation5 + $0x2888] sm:$0xff]
    %v1391 = vld [vmem:[#allocation5 + $0x2890] sm:$0xff]
    %v1392 = vld [vmem:[#allocation5 + $0x2898] sm:$0xff]
    %v1393 = vld [vmem:[#allocation5 + $0x28a0] sm:$0xff]
    %v1394 = vld [vmem:[#allocation5 + $0x28a8] sm:$0xff]
    %v1395 = vld [vmem:[#allocation5 + $0x28b0] sm:$0xff]
    %v1396 = vld [vmem:[#allocation5 + $0x28b8] sm:$0xff]
    %v1397 = vld [vmem:[#allocation5 + $0x28c0] sm:$0xff]
    %v1398 = vld [vmem:[#allocation5 + $0x28c8] sm:$0xff]
    %v1399 = vld [vmem:[#allocation5 + $0x28d0] sm:$0xff]
    %v1400 = vld [vmem:[#allocation5 + $0x28d8] sm:$0xff]
    %v1401 = vld [vmem:[#allocation5 + $0x28e0] sm:$0xff]
    %v1402 = vld [vmem:[#allocation5 + $0x28e8] sm:$0xff]
    %v1403 = vld [vmem:[#allocation5 + $0x28f0] sm:$0xff]
    %v1404 = vld [vmem:[#allocation5 + $0x28f8] sm:$0xff]
    %v1405 = vld [vmem:[#allocation5 + $0x2900] sm:$0xff]
    %v1406 = vld [vmem:[#allocation5 + $0x2908] sm:$0xff]
    %v1407 = vld [vmem:[#allocation5 + $0x2910] sm:$0xff]
    %v1408 = vld [vmem:[#allocation5 + $0x2918] sm:$0xff]
    %v1409 = vld [vmem:[#allocation5 + $0x2920] sm:$0xff]
    %v1410 = vld [vmem:[#allocation5 + $0x2928] sm:$0xff]
    %v1411 = vld [vmem:[#allocation5 + $0x2930] sm:$0xff]
    %v1412 = vld [vmem:[#allocation5 + $0x2938] sm:$0xff]
    %v1413 = vld [vmem:[#allocation5 + $0x2940] sm:$0xff]
    %v1414 = vld [vmem:[#allocation5 + $0x2948] sm:$0xff]
    %v1415 = vld [vmem:[#allocation5 + $0x2950] sm:$0xff]
    %v1416 = vld [vmem:[#allocation5 + $0x2958] sm:$0xff]
    %v1417 = vld [vmem:[#allocation5 + $0x2960] sm:$0xff]
    %v1418 = vld [vmem:[#allocation5 + $0x2968] sm:$0xff]
    %v1419 = vld [vmem:[#allocation5 + $0x2970] sm:$0xff]
    %v1420 = vld [vmem:[#allocation5 + $0x2978] sm:$0xff]
    %v1421 = vld [vmem:[#allocation5 + $0x2980] sm:$0xff]
    %v1422 = vld [vmem:[#allocation5 + $0x2988] sm:$0xff]
    %v1423 = vld [vmem:[#allocation5 + $0x2990] sm:$0xff]
    %v1424 = vld [vmem:[#allocation5 + $0x2998] sm:$0xff]
    %v1425 = vld [vmem:[#allocation5 + $0x29a0] sm:$0xff]
    %v1426 = vld [vmem:[#allocation5 + $0x29a8] sm:$0xff]
    %v1427 = vld [vmem:[#allocation5 + $0x29b0] sm:$0xff]
    %v1428 = vld [vmem:[#allocation5 + $0x29b8] sm:$0xff]
    %v1429 = vld [vmem:[#allocation5 + $0x29c0] sm:$0xff]
    %v1430 = vld [vmem:[#allocation5 + $0x29c8] sm:$0xff]
    %v1431 = vld [vmem:[#allocation5 + $0x29d0] sm:$0xff]
    %v1432 = vld [vmem:[#allocation5 + $0x29d8] sm:$0xff]
    %v1433 = vld [vmem:[#allocation5 + $0x29e0] sm:$0xff]
    %v1434 = vld [vmem:[#allocation5 + $0x29e8] sm:$0xff]
    %v1435 = vld [vmem:[#allocation5 + $0x29f0] sm:$0xff]
    %v1436 = vld [vmem:[#allocation5 + $0x29f8] sm:$0xff]
    %v1437 = vld [vmem:[#allocation5 + $0x2a00] sm:$0xff]
    %v1438 = vld [vmem:[#allocation5 + $0x2a08] sm:$0xff]
    %v1439 = vld [vmem:[#allocation5 + $0x2a10] sm:$0xff]
    %v1440 = vld [vmem:[#allocation5 + $0x2a18] sm:$0xff]
    %v1441 = vld [vmem:[#allocation5 + $0x2a20] sm:$0xff]
    %v1442 = vld [vmem:[#allocation5 + $0x2a28] sm:$0xff]
    %v1443 = vld [vmem:[#allocation5 + $0x2a30] sm:$0xff]
    %v1444 = vld [vmem:[#allocation5 + $0x2a38] sm:$0xff]
    %v1445 = vld [vmem:[#allocation5 + $0x2a40] sm:$0xff]
    %v1446 = vld [vmem:[#allocation5 + $0x2a48] sm:$0xff]
    %v1447 = vld [vmem:[#allocation5 + $0x2a50] sm:$0xff]
    %v1448 = vld [vmem:[#allocation5 + $0x2a58] sm:$0xff]
    %v1449 = vld [vmem:[#allocation5 + $0x2a60] sm:$0xff]
    %v1450 = vld [vmem:[#allocation5 + $0x2a68] sm:$0xff]
    %v1451 = vld [vmem:[#allocation5 + $0x2a70] sm:$0xff]
    %v1452 = vld [vmem:[#allocation5 + $0x2a78] sm:$0xff]
    %v1453 = vld [vmem:[#allocation5 + $0x2a80] sm:$0xff]
    %v1454 = vld [vmem:[#allocation5 + $0x2a88] sm:$0xff]
    %v1455 = vld [vmem:[#allocation5 + $0x2a90] sm:$0xff]
    %v1456 = vld [vmem:[#allocation5 + $0x2a98] sm:$0xff]
    %v1457 = vld [vmem:[#allocation5 + $0x2aa0] sm:$0xff]
    %v1458 = vld [vmem:[#allocation5 + $0x2aa8] sm:$0xff]
    %v1459 = vld [vmem:[#allocation5 + $0x2ab0] sm:$0xff]
    %v1460 = vld [vmem:[#allocation5 + $0x2ab8] sm:$0xff]
    %v1461 = vld [vmem:[#allocation5 + $0x2ac0] sm:$0xff]
    %v1462 = vld [vmem:[#allocation5 + $0x2ac8] sm:$0xff]
    %v1463 = vld [vmem:[#allocation5 + $0x2ad0] sm:$0xff]
    %v1464 = vld [vmem:[#allocation5 + $0x2ad8] sm:$0xff]
    %v1465 = vld [vmem:[#allocation5 + $0x2ae0] sm:$0xff]
    %v1466 = vld [vmem:[#allocation5 + $0x2ae8] sm:$0xff]
    %v1467 = vld [vmem:[#allocation5 + $0x2af0] sm:$0xff]
    %v1468 = vld [vmem:[#allocation5 + $0x2af8] sm:$0xff]
    %v1469 = vld [vmem:[#allocation5 + $0x2b00] sm:$0xff]
    %v1470 = vld [vmem:[#allocation5 + $0x2b08] sm:$0xff]
    %v1471 = vld [vmem:[#allocation5 + $0x2b10] sm:$0xff]
    %v1472 = vld [vmem:[#allocation5 + $0x2b18] sm:$0xff]
    %v1473 = vld [vmem:[#allocation5 + $0x2b20] sm:$0xff]
    %v1474 = vld [vmem:[#allocation5 + $0x2b28] sm:$0xff]
    %v1475 = vld [vmem:[#allocation5 + $0x2b30] sm:$0xff]
    %v1476 = vld [vmem:[#allocation5 + $0x2b38] sm:$0xff]
    %v1477 = vld [vmem:[#allocation5 + $0x2b40] sm:$0xff]
    %v1478 = vld [vmem:[#allocation5 + $0x2b48] sm:$0xff]
    %v1479 = vld [vmem:[#allocation5 + $0x2b50] sm:$0xff]
    %v1480 = vld [vmem:[#allocation5 + $0x2b58] sm:$0xff]
    %v1481 = vld [vmem:[#allocation5 + $0x2b60] sm:$0xff]
    %v1482 = vld [vmem:[#allocation5 + $0x2b68] sm:$0xff]
    %v1483 = vld [vmem:[#allocation5 + $0x2b70] sm:$0xff]
    %v1484 = vld [vmem:[#allocation5 + $0x2b78] sm:$0xff]
    %v1485 = vld [vmem:[#allocation5 + $0x2b80] sm:$0xff]
    %v1486 = vld [vmem:[#allocation5 + $0x2b88] sm:$0xff]
    %v1487 = vld [vmem:[#allocation5 + $0x2b90] sm:$0xff]
    %v1488 = vld [vmem:[#allocation5 + $0x2b98] sm:$0xff]
    %v1489 = vld [vmem:[#allocation5 + $0x2ba0] sm:$0xff]
    %v1490 = vld [vmem:[#allocation5 + $0x2ba8] sm:$0xff]
    %v1491 = vld [vmem:[#allocation5 + $0x2bb0] sm:$0xff]
    %v1492 = vld [vmem:[#allocation5 + $0x2bb8] sm:$0xff]
    %v1493 = vld [vmem:[#allocation5 + $0x2bc0] sm:$0xff]
    %v1494 = vld [vmem:[#allocation5 + $0x2bc8] sm:$0xff]
    %v1495 = vld [vmem:[#allocation5 + $0x2bd0] sm:$0xff]
    %v1496 = vld [vmem:[#allocation5 + $0x2bd8] sm:$0xff]
    %v1497 = vld [vmem:[#allocation5 + $0x2be0] sm:$0xff]
    %v1498 = vld [vmem:[#allocation5 + $0x2be8] sm:$0xff]
    %v1499 = vld [vmem:[#allocation5 + $0x2bf0] sm:$0xff]
    %v1500 = vld [vmem:[#allocation5 + $0x2bf8] sm:$0xff]
    %v1501 = vld [vmem:[#allocation5 + $0x2c00] sm:$0xff]
    %v1502 = vld [vmem:[#allocation5 + $0x2c08] sm:$0xff]
    %v1503 = vld [vmem:[#allocation5 + $0x2c10] sm:$0xff]
    %v1504 = vld [vmem:[#allocation5 + $0x2c18] sm:$0xff]
    %v1505 = vld [vmem:[#allocation5 + $0x2c20] sm:$0xff]
    %v1506 = vld [vmem:[#allocation5 + $0x2c28] sm:$0xff]
    %v1507 = vld [vmem:[#allocation5 + $0x2c30] sm:$0xff]
    %v1508 = vld [vmem:[#allocation5 + $0x2c38] sm:$0xff]
    %v1509 = vld [vmem:[#allocation5 + $0x2c40] sm:$0xff]
    %v1510 = vld [vmem:[#allocation5 + $0x2c48] sm:$0xff]
    %v1511 = vld [vmem:[#allocation5 + $0x2c50] sm:$0xff]
    %v1512 = vld [vmem:[#allocation5 + $0x2c58] sm:$0xff]
    %v1513 = vld [vmem:[#allocation5 + $0x2c60] sm:$0xff]
    %v1514 = vld [vmem:[#allocation5 + $0x2c68] sm:$0xff]
    %v1515 = vld [vmem:[#allocation5 + $0x2c70] sm:$0xff]
    %v1516 = vld [vmem:[#allocation5 + $0x2c78] sm:$0xff]
    %v1517 = vld [vmem:[#allocation5 + $0x2c80] sm:$0xff]
    %v1518 = vld [vmem:[#allocation5 + $0x2c88] sm:$0xff]
    %v1519 = vld [vmem:[#allocation5 + $0x2c90] sm:$0xff]
    %v1520 = vld [vmem:[#allocation5 + $0x2c98] sm:$0xff]
    %v1521 = vld [vmem:[#allocation5 + $0x2ca0] sm:$0xff]
    %v1522 = vld [vmem:[#allocation5 + $0x2ca8] sm:$0xff]
    %v1523 = vld [vmem:[#allocation5 + $0x2cb0] sm:$0xff]
    %v1524 = vld [vmem:[#allocation5 + $0x2cb8] sm:$0xff]
    %v1525 = vld [vmem:[#allocation5 + $0x2cc0] sm:$0xff]
    %v1526 = vld [vmem:[#allocation5 + $0x2cc8] sm:$0xff]
    %v1527 = vld [vmem:[#allocation5 + $0x2cd0] sm:$0xff]
    %v1528 = vld [vmem:[#allocation5 + $0x2cd8] sm:$0xff]
    %v1529 = vld [vmem:[#allocation5 + $0x2ce0] sm:$0xff]
    %v1530 = vld [vmem:[#allocation5 + $0x2ce8] sm:$0xff]
    %v1531 = vld [vmem:[#allocation5 + $0x2cf0] sm:$0xff]
    %v1532 = vld [vmem:[#allocation5 + $0x2cf8] sm:$0xff]
    %v1533 = vld [vmem:[#allocation5 + $0x2d00] sm:$0xff]
    %v1534 = vld [vmem:[#allocation5 + $0x2d08] sm:$0xff]
    %v1535 = vld [vmem:[#allocation5 + $0x2d10] sm:$0xff]
    %v1536 = vld [vmem:[#allocation5 + $0x2d18] sm:$0xff]
    %v1537 = vld [vmem:[#allocation5 + $0x2d20] sm:$0xff]
    %v1538 = vld [vmem:[#allocation5 + $0x2d28] sm:$0xff]
    %v1539 = vld [vmem:[#allocation5 + $0x2d30] sm:$0xff]
    %v1540 = vld [vmem:[#allocation5 + $0x2d38] sm:$0xff]
    %v1541 = vld [vmem:[#allocation5 + $0x2d40] sm:$0xff]
    %v1542 = vld [vmem:[#allocation5 + $0x2d48] sm:$0xff]
    %v1543 = vld [vmem:[#allocation5 + $0x2d50] sm:$0xff]
    %v1544 = vld [vmem:[#allocation5 + $0x2d58] sm:$0xff]
    %v1545 = vld [vmem:[#allocation5 + $0x2d60] sm:$0xff]
    %v1546 = vld [vmem:[#allocation5 + $0x2d68] sm:$0xff]
    %v1547 = vld [vmem:[#allocation5 + $0x2d70] sm:$0xff]
    %v1548 = vld [vmem:[#allocation5 + $0x2d78] sm:$0xff]
    %v1549 = vld [vmem:[#allocation5 + $0x2d80] sm:$0xff]
    %v1550 = vld [vmem:[#allocation5 + $0x2d88] sm:$0xff]
    %v1551 = vld [vmem:[#allocation5 + $0x2d90] sm:$0xff]
    %v1552 = vld [vmem:[#allocation5 + $0x2d98] sm:$0xff]
    %v1553 = vld [vmem:[#allocation5 + $0x2da0] sm:$0xff]
    %v1554 = vld [vmem:[#allocation5 + $0x2da8] sm:$0xff]
    %v1555 = vld [vmem:[#allocation5 + $0x2db0] sm:$0xff]
    %v1556 = vld [vmem:[#allocation5 + $0x2db8] sm:$0xff]
    %v1557 = vld [vmem:[#allocation5 + $0x2dc0] sm:$0xff]
    %v1558 = vld [vmem:[#allocation5 + $0x2dc8] sm:$0xff]
    %v1559 = vld [vmem:[#allocation5 + $0x2dd0] sm:$0xff]
    %v1560 = vld [vmem:[#allocation5 + $0x2dd8] sm:$0xff]
    %v1561 = vld [vmem:[#allocation5 + $0x2de0] sm:$0xff]
    %v1562 = vld [vmem:[#allocation5 + $0x2de8] sm:$0xff]
    %v1563 = vld [vmem:[#allocation5 + $0x2df0] sm:$0xff]
    %v1564 = vld [vmem:[#allocation5 + $0x2df8] sm:$0xff]
    %v1565 = vld [vmem:[#allocation5 + $0x2e00] sm:$0xff]
    %v1566 = vld [vmem:[#allocation5 + $0x2e08] sm:$0xff]
    %v1567 = vld [vmem:[#allocation5 + $0x2e10] sm:$0xff]
    %v1568 = vld [vmem:[#allocation5 + $0x2e18] sm:$0xff]
    %v1569 = vld [vmem:[#allocation5 + $0x2e20] sm:$0xff]
    %v1570 = vld [vmem:[#allocation5 + $0x2e28] sm:$0xff]
    %v1571 = vld [vmem:[#allocation5 + $0x2e30] sm:$0xff]
    %v1572 = vld [vmem:[#allocation5 + $0x2e38] sm:$0xff]
    %v1573 = vld [vmem:[#allocation5 + $0x2e40] sm:$0xff]
    %v1574 = vld [vmem:[#allocation5 + $0x2e48] sm:$0xff]
    %v1575 = vld [vmem:[#allocation5 + $0x2e50] sm:$0xff]
    %v1576 = vld [vmem:[#allocation5 + $0x2e58] sm:$0xff]
    %v1577 = vld [vmem:[#allocation5 + $0x2e60] sm:$0xff]
    %v1578 = vld [vmem:[#allocation5 + $0x2e68] sm:$0xff]
    %v1579 = vld [vmem:[#allocation5 + $0x2e70] sm:$0xff]
    %v1580 = vld [vmem:[#allocation5 + $0x2e78] sm:$0xff]
    %v1581 = vld [vmem:[#allocation5 + $0x2e80] sm:$0xff]
    %v1582 = vld [vmem:[#allocation5 + $0x2e88] sm:$0xff]
    %v1583 = vld [vmem:[#allocation5 + $0x2e90] sm:$0xff]
    %v1584 = vld [vmem:[#allocation5 + $0x2e98] sm:$0xff]
    %v1585 = vld [vmem:[#allocation5 + $0x2ea0] sm:$0xff]
    %v1586 = vld [vmem:[#allocation5 + $0x2ea8] sm:$0xff]
    %v1587 = vld [vmem:[#allocation5 + $0x2eb0] sm:$0xff]
    %v1588 = vld [vmem:[#allocation5 + $0x2eb8] sm:$0xff]
    %v1589 = vld [vmem:[#allocation5 + $0x2ec0] sm:$0xff]
    %v1590 = vld [vmem:[#allocation5 + $0x2ec8] sm:$0xff]
    %v1591 = vld [vmem:[#allocation5 + $0x2ed0] sm:$0xff]
    %v1592 = vld [vmem:[#allocation5 + $0x2ed8] sm:$0xff]
    %v1593 = vld [vmem:[#allocation5 + $0x2ee0] sm:$0xff]
    %v1594 = vld [vmem:[#allocation5 + $0x2ee8] sm:$0xff]
    %v1595 = vld [vmem:[#allocation5 + $0x2ef0] sm:$0xff]
    %v1596 = vld [vmem:[#allocation5 + $0x2ef8] sm:$0xff]
    %v1597 = vld [vmem:[#allocation5 + $0x2f00] sm:$0xff]
    %v1598 = vld [vmem:[#allocation5 + $0x2f08] sm:$0xff]
    %v1599 = vld [vmem:[#allocation5 + $0x2f10] sm:$0xff]
    %v1600 = vld [vmem:[#allocation5 + $0x2f18] sm:$0xff]
    %v1601 = vld [vmem:[#allocation5 + $0x2f20] sm:$0xff]
    %v1602 = vld [vmem:[#allocation5 + $0x2f28] sm:$0xff]
    %v1603 = vld [vmem:[#allocation5 + $0x2f30] sm:$0xff]
    %v1604 = vld [vmem:[#allocation5 + $0x2f38] sm:$0xff]
    %v1605 = vld [vmem:[#allocation5 + $0x2f40] sm:$0xff]
    %v1606 = vld [vmem:[#allocation5 + $0x2f48] sm:$0xff]
    %v1607 = vld [vmem:[#allocation5 + $0x2f50] sm:$0xff]
    %v1608 = vld [vmem:[#allocation5 + $0x2f58] sm:$0xff]
    %v1609 = vld [vmem:[#allocation5 + $0x2f60] sm:$0xff]
    %v1610 = vld [vmem:[#allocation5 + $0x2f68] sm:$0xff]
    %v1611 = vld [vmem:[#allocation5 + $0x2f70] sm:$0xff]
    %v1612 = vld [vmem:[#allocation5 + $0x2f78] sm:$0xff]
    %v1613 = vld [vmem:[#allocation5 + $0x2f80] sm:$0xff]
    %v1614 = vld [vmem:[#allocation5 + $0x2f88] sm:$0xff]
    %v1615 = vld [vmem:[#allocation5 + $0x2f90] sm:$0xff]
    %v1616 = vld [vmem:[#allocation5 + $0x2f98] sm:$0xff]
    %v1617 = vld [vmem:[#allocation5 + $0x2fa0] sm:$0xff]
    %v1618 = vld [vmem:[#allocation5 + $0x2fa8] sm:$0xff]
    %v1619 = vld [vmem:[#allocation5 + $0x2fb0] sm:$0xff]
    %v1620 = vld [vmem:[#allocation5 + $0x2fb8] sm:$0xff]
    %v1621 = vld [vmem:[#allocation5 + $0x2fc0] sm:$0xff]
    %v1622 = vld [vmem:[#allocation5 + $0x2fc8] sm:$0xff]
    %v1623 = vld [vmem:[#allocation5 + $0x2fd0] sm:$0xff]
    %v1624 = vld [vmem:[#allocation5 + $0x2fd8] sm:$0xff]
    %v1625 = vld [vmem:[#allocation5 + $0x2fe0] sm:$0xff]
    %v1626 = vld [vmem:[#allocation5 + $0x2fe8] sm:$0xff]
    %v1627 = vld [vmem:[#allocation5 + $0x2ff0] sm:$0xff]
    %v1628 = vld [vmem:[#allocation5 + $0x2ff8] sm:$0xff]
    %v1629 = vld [vmem:[#allocation5 + $0x3000] sm:$0xff]
    %v1630 = vld [vmem:[#allocation5 + $0x3008] sm:$0xff]
    %v1631 = vld [vmem:[#allocation5 + $0x3010] sm:$0xff]
    %v1632 = vld [vmem:[#allocation5 + $0x3018] sm:$0xff]
    %v1633 = vld [vmem:[#allocation5 + $0x3020] sm:$0xff]
    %v1634 = vld [vmem:[#allocation5 + $0x3028] sm:$0xff]
    %v1635 = vld [vmem:[#allocation5 + $0x3030] sm:$0xff]
    %v1636 = vld [vmem:[#allocation5 + $0x3038] sm:$0xff]
    %v1637 = vld [vmem:[#allocation5 + $0x3040] sm:$0xff]
    %v1638 = vld [vmem:[#allocation5 + $0x3048] sm:$0xff]
    %v1639 = vld [vmem:[#allocation5 + $0x3050] sm:$0xff]
    %v1640 = vld [vmem:[#allocation5 + $0x3058] sm:$0xff]
    %v1641 = vld [vmem:[#allocation5 + $0x3060] sm:$0xff]
    %v1642 = vld [vmem:[#allocation5 + $0x3068] sm:$0xff]
    %v1643 = vld [vmem:[#allocation5 + $0x3070] sm:$0xff]
    %v1644 = vld [vmem:[#allocation5 + $0x3078] sm:$0xff]
    %v1645 = vld [vmem:[#allocation5 + $0x3080] sm:$0xff]
    %v1646 = vld [vmem:[#allocation5 + $0x3088] sm:$0xff]
    %v1647 = vld [vmem:[#allocation5 + $0x3090] sm:$0xff]
    %v1648 = vld [vmem:[#allocation5 + $0x3098] sm:$0xff]
    %v1649 = vld [vmem:[#allocation5 + $0x30a0] sm:$0xff]
    %v1650 = vld [vmem:[#allocation5 + $0x30a8] sm:$0xff]
    %v1651 = vld [vmem:[#allocation5 + $0x30b0] sm:$0xff]
    %v1652 = vld [vmem:[#allocation5 + $0x30b8] sm:$0xff]
    %v1653 = vld [vmem:[#allocation5 + $0x30c0] sm:$0xff]
    %v1654 = vld [vmem:[#allocation5 + $0x30c8] sm:$0xff]
    %v1655 = vld [vmem:[#allocation5 + $0x30d0] sm:$0xff]
    %v1656 = vld [vmem:[#allocation5 + $0x30d8] sm:$0xff]
    %v1657 = vld [vmem:[#allocation5 + $0x30e0] sm:$0xff]
    %v1658 = vld [vmem:[#allocation5 + $0x30e8] sm:$0xff]
    %v1659 = vld [vmem:[#allocation5 + $0x30f0] sm:$0xff]
    %v1660 = vld [vmem:[#allocation5 + $0x30f8] sm:$0xff]
    %v1661 = vld [vmem:[#allocation5 + $0x3100] sm:$0xff]
    %v1662 = vld [vmem:[#allocation5 + $0x3108] sm:$0xff]
    %v1663 = vld [vmem:[#allocation5 + $0x3110] sm:$0xff]
    %v1664 = vld [vmem:[#allocation5 + $0x3118] sm:$0xff]
    %v1665 = vld [vmem:[#allocation5 + $0x3120] sm:$0xff]
    %v1666 = vld [vmem:[#allocation5 + $0x3128] sm:$0xff]
    %v1667 = vld [vmem:[#allocation5 + $0x3130] sm:$0xff]
    %v1668 = vld [vmem:[#allocation5 + $0x3138] sm:$0xff]
    %v1669 = vld [vmem:[#allocation5 + $0x3140] sm:$0xff]
    %v1670 = vld [vmem:[#allocation5 + $0x3148] sm:$0xff]
    %v1671 = vld [vmem:[#allocation5 + $0x3150] sm:$0xff]
    %v1672 = vld [vmem:[#allocation5 + $0x3158] sm:$0xff]
    %v1673 = vld [vmem:[#allocation5 + $0x3160] sm:$0xff]
    %v1674 = vld [vmem:[#allocation5 + $0x3168] sm:$0xff]
    %v1675 = vld [vmem:[#allocation5 + $0x3170] sm:$0xff]
    %v1676 = vld [vmem:[#allocation5 + $0x3178] sm:$0xff]
    %v1677 = vld [vmem:[#allocation5 + $0x3180] sm:$0xff]
    %v1678 = vld [vmem:[#allocation5 + $0x3188] sm:$0xff]
    %v1679 = vld [vmem:[#allocation5 + $0x3190] sm:$0xff]
    %v1680 = vld [vmem:[#allocation5 + $0x3198] sm:$0xff]
    %v1681 = vld [vmem:[#allocation5 + $0x31a0] sm:$0xff]
    %v1682 = vld [vmem:[#allocation5 + $0x31a8] sm:$0xff]
    %v1683 = vld [vmem:[#allocation5 + $0x31b0] sm:$0xff]
    %v1684 = vld [vmem:[#allocation5 + $0x31b8] sm:$0xff]
    %v1685 = vld [vmem:[#allocation5 + $0x31c0] sm:$0xff]
    %v1686 = vld [vmem:[#allocation5 + $0x31c8] sm:$0xff]
    %v1687 = vld [vmem:[#allocation5 + $0x31d0] sm:$0xff]
    %v1688 = vld [vmem:[#allocation5 + $0x31d8] sm:$0xff]
    %v1689 = vld [vmem:[#allocation5 + $0x31e0] sm:$0xff]
    %v1690 = vld [vmem:[#allocation5 + $0x31e8] sm:$0xff]
    %v1691 = vld [vmem:[#allocation5 + $0x31f0] sm:$0xff]
    %v1692 = vld [vmem:[#allocation5 + $0x31f8] sm:$0xff]
    %v1693 = vld [vmem:[#allocation7] sm:$0xff]
    %v1694 = vld [vmem:[#allocation7 + $0x8] sm:$0x3]
    %v1697 = vlaneseq
    %v1698 = vshrl.u32 %v1697, 7
    %v1699 = vsub.s32 0, %v1698
    %v1700 = vrot.slane %v1693, %v1699
    %v1701 = vlaneseq
    %v1702 = vshrl.u32 %v1701, 7
    %v1703 = vsub.s32 1, %v1702
    %v1704 = vrot.slane %v1693, %v1703
    %v1705 = vlaneseq
    %v1706 = vshrl.u32 %v1705, 7
    %v1707 = vsub.s32 2, %v1706
    %v1708 = vrot.slane %v1693, %v1707
    %v1709 = vlaneseq
    %v1710 = vshrl.u32 %v1709, 7
    %v1711 = vsub.s32 3, %v1710
    %v1712 = vrot.slane %v1693, %v1711
    %v1713 = vlaneseq
    %v1714 = vshrl.u32 %v1713, 7
    %v1715 = vsub.s32 4, %v1714
    %v1716 = vrot.slane %v1693, %v1715
    %v1717 = vlaneseq
    %v1718 = vshrl.u32 %v1717, 7
    %v1719 = vsub.s32 5, %v1718
    %v1720 = vrot.slane %v1693, %v1719
    %v1721 = vlaneseq
    %v1722 = vshrl.u32 %v1721, 7
    %v1723 = vsub.s32 6, %v1722
    %v1724 = vrot.slane %v1693, %v1723
    %v1725 = vlaneseq
    %v1726 = vshrl.u32 %v1725, 7
    %v1727 = vsub.s32 7, %v1726
    %v1728 = vrot.slane %v1693, %v1727
    %v1729 = vlaneseq
    %v1730 = vshrl.u32 %v1729, 7
    %v1731 = vsub.s32 0, %v1730
    %v1732 = vrot.slane %v1694, %v1731
    %v1733 = vlaneseq
    %v1734 = vshrl.u32 %v1733, 7
    %v1735 = vsub.s32 1, %v1734
    %v1736 = vrot.slane %v1694, %v1735
    %1747 = vmatprep.subr.mxu0 %v94
    %1748 = vmatpush1.msra.mxu0 %v93
    %1749 = vmatprep.subr.mxu0 %v104
    %1750 = vmatpush1.msra.mxu0 %v103
    %1751 = vmatprep.subr.mxu0 %v114
    %1752 = vmatpush1.msra.mxu0 %v113
    %1753 = vmatprep.subr.mxu0 %v124
    %1754 = vmatpush1.msra.mxu0 %v123
    %1755 = vmatprep.subr.mxu0 %v134
    %1756 = vmatpush1.msra.mxu0 %v133
    %1757 = vmatprep.subr.mxu0 %v144
    %1758 = vmatpush1.msra.mxu0 %v143
    %1759 = vmatprep.subr.mxu0 %v154
    %1760 = vmatpush1.msra.mxu0 %v153
    %1761 = vmatprep.subr.mxu0 %v164
    %1762 = vmatpush1.msra.mxu0 %v163
    %1763 = vmatprep.subr.mxu0 %v174
    %1764 = vmatpush1.msra.mxu0 %v173
    %1765 = vmatprep.subr.mxu0 %v184
    %1766 = vmatpush1.msra.mxu0 %v183
    %1767 = vmatprep.subr.mxu0 %v194
    %1768 = vmatpush1.msra.mxu0 %v193
    %1769 = vmatprep.subr.mxu0 %v204
    %1770 = vmatpush1.msra.mxu0 %v203
    %1771 = vmatprep.subr.mxu0 %v214
    %1772 = vmatpush1.msra.mxu0 %v213
    %1773 = vmatprep.subr.mxu0 %v224
    %1774 = vmatpush1.msra.mxu0 %v223
    %1775 = vmatprep.subr.mxu0 %v234
    %1776 = vmatpush1.msra.mxu0 %v233
    %1777 = vmatprep.subr.mxu0 %v244
    %1778 = vmatpush1.msra.mxu0 %v243
    %1779 = vmatprep.subr.mxu0 %v254
    %1780 = vmatpush1.msra.mxu0 %v253
    %1781 = vmatprep.subr.mxu0 %v264
    %1782 = vmatpush1.msra.mxu0 %v263
    %1783 = vmatprep.subr.mxu0 %v274
    %1784 = vmatpush1.msra.mxu0 %v273
    %1785 = vmatprep.subr.mxu0 %v284
    %1786 = vmatpush1.msra.mxu0 %v283
    %1787 = vmatprep.subr.mxu0 %v294
    %1788 = vmatpush1.msra.mxu0 %v293
    %1789 = vmatprep.subr.mxu0 %v304
    %1790 = vmatpush1.msra.mxu0 %v303
    %1791 = vmatprep.subr.mxu0 %v314
    %1792 = vmatpush1.msra.mxu0 %v313
    %1793 = vmatprep.subr.mxu0 %v324
    %1794 = vmatpush1.msra.mxu0 %v323
    %1795 = vmatprep.subr.mxu0 %v334
    %1796 = vmatpush1.msra.mxu0 %v333
    %1797 = vmatprep.subr.mxu0 %v344
    %1798 = vmatpush1.msra.mxu0 %v343
    %1799 = vmatprep.subr.mxu0 %v354
    %1800 = vmatpush1.msra.mxu0 %v353
    %1801 = vmatprep.subr.mxu0 %v364
    %1802 = vmatpush1.msra.mxu0 %v363
    %1803 = vmatprep.subr.mxu0 %v374
    %1804 = vmatpush1.msra.mxu0 %v373
    %1805 = vmatprep.subr.mxu0 %v384
    %1806 = vmatpush1.msra.mxu0 %v383
    %1807 = vmatprep.subr.mxu0 %v394
    %1808 = vmatpush1.msra.mxu0 %v393
    %1809 = vmatprep.subr.mxu0 %v404
    %1810 = vmatpush1.msra.mxu0 %v403
    %1811 = vmatprep.mubr.f32.mxu0 %v84
    %1812 = vmatmul.mubr.f32.gmra.mrb[0].mxu0 %v83
    %v1813 = vpop.f32.mrb[0].mxu0
    %v1814 = vadd.f32 %v1700, %v1813
    %v1815 = vpop.f32.mrb[0].mxu0
    %v1816 = vadd.f32 %v1704, %v1815
    %1817 = vdwg.mxu0
    %1818 = vmatprep.subr.mxu0 %v414
    %1819 = vmatpush1.msra.mxu0 %v413
    %1820 = vmatprep.subr.mxu0 %v424
    %1821 = vmatpush1.msra.mxu0 %v423
    %1822 = vmatprep.subr.mxu0 %v434
    %1823 = vmatpush1.msra.mxu0 %v433
    %1824 = vmatprep.subr.mxu0 %v444
    %1825 = vmatpush1.msra.mxu0 %v443
    %1826 = vmatprep.subr.mxu0 %v454
    %1827 = vmatpush1.msra.mxu0 %v453
    %1828 = vmatprep.subr.mxu0 %v464
    %1829 = vmatpush1.msra.mxu0 %v463
    %1830 = vmatprep.subr.mxu0 %v474
    %1831 = vmatpush1.msra.mxu0 %v473
    %1832 = vmatprep.subr.mxu0 %v484
    %1833 = vmatpush1.msra.mxu0 %v483
    %1834 = vmatprep.subr.mxu0 %v494
    %1835 = vmatpush1.msra.mxu0 %v493
    %1836 = vmatprep.subr.mxu0 %v504
    %1837 = vmatpush1.msra.mxu0 %v503
    %1838 = vmatprep.subr.mxu0 %v514
    %1839 = vmatpush1.msra.mxu0 %v513
    %1840 = vmatprep.subr.mxu0 %v524
    %1841 = vmatpush1.msra.mxu0 %v523
    %1842 = vmatprep.subr.mxu0 %v534
    %1843 = vmatpush1.msra.mxu0 %v533
    %1844 = vmatprep.subr.mxu0 %v544
    %1845 = vmatpush1.msra.mxu0 %v543
    %1846 = vmatprep.subr.mxu0 %v554
    %1847 = vmatpush1.msra.mxu0 %v553
    %1848 = vmatprep.subr.mxu0 %v564
    %1849 = vmatpush1.msra.mxu0 %v563
    %1850 = vmatprep.subr.mxu0 %v574
    %1851 = vmatpush1.msra.mxu0 %v573
    %1852 = vmatprep.subr.mxu0 %v584
    %1853 = vmatpush1.msra.mxu0 %v583
    %1854 = vmatprep.subr.mxu0 %v594
    %1855 = vmatpush1.msra.mxu0 %v593
    %1856 = vmatprep.subr.mxu0 %v604
    %1857 = vmatpush1.msra.mxu0 %v603
    %1858 = vmatprep.subr.mxu0 %v614
    %1859 = vmatpush1.msra.mxu0 %v613
    %1860 = vmatprep.subr.mxu0 %v624
    %1861 = vmatpush1.msra.mxu0 %v623
    %1862 = vmatprep.subr.mxu0 %v634
    %1863 = vmatpush1.msra.mxu0 %v633
    %1864 = vmatprep.subr.mxu0 %v644
    %1865 = vmatpush1.msra.mxu0 %v643
    %1866 = vmatprep.subr.mxu0 %v654
    %1867 = vmatpush1.msra.mxu0 %v653
    %1868 = vmatprep.subr.mxu0 %v664
    %1869 = vmatpush1.msra.mxu0 %v663
    %1870 = vmatprep.subr.mxu0 %v674
    %1871 = vmatpush1.msra.mxu0 %v673
    %1872 = vmatprep.subr.mxu0 %v684
    %1873 = vmatpush1.msra.mxu0 %v683
    %1874 = vmatprep.subr.mxu0 %v694
    %1875 = vmatpush1.msra.mxu0 %v693
    %1876 = vmatprep.subr.mxu0 %v704
    %1877 = vmatpush1.msra.mxu0 %v703
    %1878 = vmatprep.subr.mxu0 %v714
    %1879 = vmatpush1.msra.mxu0 %v713
    %1880 = vmatprep.subr.mxu0 %v724
    %1881 = vmatpush1.msra.mxu0 %v723
    %1882 = vmatprep.mubr.f32.mxu0 %v86
    %1883 = vmatmul.mubr.f32.gmra.mrb[0].mxu0 %v85
    %v1884 = vpop.f32.mrb[0].mxu0
    %v1885 = vadd.f32 %v1814, %v1884
    %v1886 = vpop.f32.mrb[0].mxu0
    %v1887 = vadd.f32 %v1816, %v1886
    %1888 = vdwg.mxu0
    %1889 = vmatprep.subr.mxu0 %v734
    %1890 = vmatpush1.msra.mxu0 %v733
    %1891 = vmatprep.subr.mxu0 %v744
    %1892 = vmatpush1.msra.mxu0 %v743
    %1893 = vmatprep.subr.mxu0 %v754
    %1894 = vmatpush1.msra.mxu0 %v753
    %1895 = vmatprep.subr.mxu0 %v764
    %1896 = vmatpush1.msra.mxu0 %v763
    %1897 = vmatprep.subr.mxu0 %v774
    %1898 = vmatpush1.msra.mxu0 %v773
    %1899 = vmatprep.subr.mxu0 %v784
    %1900 = vmatpush1.msra.mxu0 %v783
    %1901 = vmatprep.subr.mxu0 %v794
    %1902 = vmatpush1.msra.mxu0 %v793
    %1903 = vmatprep.subr.mxu0 %v804
    %1904 = vmatpush1.msra.mxu0 %v803
    %1905 = vmatprep.subr.mxu0 %v814
    %1906 = vmatpush1.msra.mxu0 %v813
    %1907 = vmatprep.subr.mxu0 %v824
    %1908 = vmatpush1.msra.mxu0 %v823
    %1909 = vmatprep.subr.mxu0 %v834
    %1910 = vmatpush1.msra.mxu0 %v833
    %1911 = vmatprep.subr.mxu0 %v844
    %1912 = vmatpush1.msra.mxu0 %v843
    %1913 = vmatprep.subr.mxu0 %v854
    %1914 = vmatpush1.msra.mxu0 %v853
    %1915 = vmatprep.subr.mxu0 %v864
    %1916 = vmatpush1.msra.mxu0 %v863
    %1917 = vmatprep.subr.mxu0 %v874
    %1918 = vmatpush1.msra.mxu0 %v873
    %1919 = vmatprep.subr.mxu0 %v884
    %1920 = vmatpush1.msra.mxu0 %v883
    %1921 = vmatprep.subr.mxu0 %v894
    %1922 = vmatpush1.msra.mxu0 %v893
    %1923 = vmatprep.subr.mxu0 %v904
    %1924 = vmatpush1.msra.mxu0 %v903
    %1925 = vmatprep.subr.mxu0 %v914
    %1926 = vmatpush1.msra.mxu0 %v913
    %1927 = vmatprep.subr.mxu0 %v924
    %1928 = vmatpush1.msra.mxu0 %v923
    %1929 = vmatprep.subr.mxu0 %v934
    %1930 = vmatpush1.msra.mxu0 %v933
    %1931 = vmatprep.subr.mxu0 %v944
    %1932 = vmatpush1.msra.mxu0 %v943
    %1933 = vmatprep.subr.mxu0 %v954
    %1934 = vmatpush1.msra.mxu0 %v953
    %1935 = vmatprep.subr.mxu0 %v964
    %1936 = vmatpush1.msra.mxu0 %v963
    %1937 = vmatprep.subr.mxu0 %v974
    %1938 = vmatpush1.msra.mxu0 %v973
    %1939 = vmatprep.subr.mxu0 %v984
    %1940 = vmatpush1.msra.mxu0 %v983
    %1941 = vmatprep.subr.mxu0 %v994
    %1942 = vmatpush1.msra.mxu0 %v993
    %1943 = vmatprep.subr.mxu0 %v1004
    %1944 = vmatpush1.msra.mxu0 %v1003
    %1945 = vmatprep.subr.mxu0 %v1014
    %1946 = vmatpush1.msra.mxu0 %v1013
    %1947 = vmatprep.subr.mxu0 %v1024
    %1948 = vmatpush1.msra.mxu0 %v1023
    %1949 = vmatprep.subr.mxu0 %v1034
    %1950 = vmatpush1.msra.mxu0 %v1033
    %1951 = vmatprep.subr.mxu0 %v1044
    %1952 = vmatpush1.msra.mxu0 %v1043
    %1953 = vmatprep.mubr.f32.mxu0 %v88
    %1954 = vmatmul.mubr.f32.gmra.mrb[0].mxu0 %v87
    %v1955 = vpop.f32.mrb[0].mxu0
    %v1956 = vadd.f32 %v1885, %v1955
    %v1957 = vpop.f32.mrb[0].mxu0
    %v1958 = vadd.f32 %v1887, %v1957
    %1959 = vdwg.mxu0
    %1960 = vmatprep.subr.mxu0 %v1054
    %1961 = vmatpush1.msra.mxu0 %v1053
    %1962 = vmatprep.subr.mxu0 %v1064
    %1963 = vmatpush1.msra.mxu0 %v1063
    %1964 = vmatprep.subr.mxu0 %v1074
    %1965 = vmatpush1.msra.mxu0 %v1073
    %1966 = vmatprep.subr.mxu0 %v1084
    %1967 = vmatpush1.msra.mxu0 %v1083
    %1968 = vmatprep.subr.mxu0 %v1094
    %1969 = vmatpush1.msra.mxu0 %v1093
    %1970 = vmatprep.subr.mxu0 %v1104
    %1971 = vmatpush1.msra.mxu0 %v1103
    %1972 = vmatprep.subr.mxu0 %v1114
    %1973 = vmatpush1.msra.mxu0 %v1113
    %1974 = vmatprep.subr.mxu0 %v1124
    %1975 = vmatpush1.msra.mxu0 %v1123
    %1976 = vmatprep.subr.mxu0 %v1134
    %1977 = vmatpush1.msra.mxu0 %v1133
    %1978 = vmatprep.subr.mxu0 %v1144
    %1979 = vmatpush1.msra.mxu0 %v1143
    %1980 = vmatprep.subr.mxu0 %v1154
    %1981 = vmatpush1.msra.mxu0 %v1153
    %1982 = vmatprep.subr.mxu0 %v1164
    %1983 = vmatpush1.msra.mxu0 %v1163
    %1984 = vmatprep.subr.mxu0 %v1174
    %1985 = vmatpush1.msra.mxu0 %v1173
    %1986 = vmatprep.subr.mxu0 %v1184
    %1987 = vmatpush1.msra.mxu0 %v1183
    %1988 = vmatprep.subr.mxu0 %v1194
    %1989 = vmatpush1.msra.mxu0 %v1193
    %1990 = vmatprep.subr.mxu0 %v1204
    %1991 = vmatpush1.msra.mxu0 %v1203
    %1992 = vmatprep.subr.mxu0 %v1214
    %1993 = vmatpush1.msra.mxu0 %v1213
    %1994 = vmatprep.subr.mxu0 %v1224
    %1995 = vmatpush1.msra.mxu0 %v1223
    %1996 = vmatprep.subr.mxu0 %v1234
    %1997 = vmatpush1.msra.mxu0 %v1233
    %1998 = vmatprep.subr.mxu0 %v1244
    %1999 = vmatpush1.msra.mxu0 %v1243
    %2000 = vmatprep.subr.mxu0 %v1254
    %2001 = vmatpush1.msra.mxu0 %v1253
    %2002 = vmatprep.subr.mxu0 %v1264
    %2003 = vmatpush1.msra.mxu0 %v1263
    %2004 = vmatprep.subr.mxu0 %v1274
    %2005 = vmatpush1.msra.mxu0 %v1273
    %2006 = vmatprep.subr.mxu0 %v1284
    %2007 = vmatpush1.msra.mxu0 %v1283
    %2008 = vmatprep.subr.mxu0 %v1294
    %2009 = vmatpush1.msra.mxu0 %v1293
    %2010 = vmatprep.subr.mxu0 %v1304
    %2011 = vmatpush1.msra.mxu0 %v1303
    %2012 = vmatprep.subr.mxu0 %v1314
    %2013 = vmatpush1.msra.mxu0 %v1313
    %2014 = vmatprep.subr.mxu0 %v1324
    %2015 = vmatpush1.msra.mxu0 %v1323
    %2016 = vmatprep.subr.mxu0 %v1334
    %2017 = vmatpush1.msra.mxu0 %v1333
    %2018 = vmatprep.subr.mxu0 %v1344
    %2019 = vmatpush1.msra.mxu0 %v1343
    %2020 = vmatprep.subr.mxu0 %v1354
    %2021 = vmatpush1.msra.mxu0 %v1353
    %2022 = vmatprep.subr.mxu0 %v1364
    %2023 = vmatpush1.msra.mxu0 %v1363
    %2024 = vmatprep.mubr.f32.mxu0 %v90
    %2025 = vmatmul.mubr.f32.gmra.mrb[0].mxu0 %v89
    %v2026 = vpop.f32.mrb[0].mxu0
    %v2027 = vadd.f32 %v1956, %v2026
    %v2028 = vpop.f32.mrb[0].mxu0
    %v2029 = vadd.f32 %v1958, %v2028
    %2030 = vdwg.mxu0
    %2031 = vmatprep.subr.mxu0 %v1374
    %2032 = vmatpush1.msra.mxu0 %v1373
    %2033 = vmatprep.subr.mxu0 %v1384
    %2034 = vmatpush1.msra.mxu0 %v1383
    %2035 = vmatprep.subr.mxu0 %v1394
    %2036 = vmatpush1.msra.mxu0 %v1393
    %2037 = vmatprep.subr.mxu0 %v1404
    %2038 = vmatpush1.msra.mxu0 %v1403
    %2039 = vmatprep.subr.mxu0 %v1414
    %2040 = vmatpush1.msra.mxu0 %v1413
    %2041 = vmatprep.subr.mxu0 %v1424
    %2042 = vmatpush1.msra.mxu0 %v1423
    %2043 = vmatprep.subr.mxu0 %v1434
    %2044 = vmatpush1.msra.mxu0 %v1433
    %2045 = vmatprep.subr.mxu0 %v1444
    %2046 = vmatpush1.msra.mxu0 %v1443
    %2047 = vmatprep.subr.mxu0 %v1454
    %2048 = vmatpush1.msra.mxu0 %v1453
    %2049 = vmatprep.subr.mxu0 %v1464
    %2050 = vmatpush1.msra.mxu0 %v1463
    %2051 = vmatprep.subr.mxu0 %v1474
    %2052 = vmatpush1.msra.mxu0 %v1473
    %2053 = vmatprep.subr.mxu0 %v1484
    %2054 = vmatpush1.msra.mxu0 %v1483
    %2055 = vmatprep.subr.mxu0 %v1494
    %2056 = vmatpush1.msra.mxu0 %v1493
    %2057 = vmatprep.subr.mxu0 %v1504
    %2058 = vmatpush1.msra.mxu0 %v1503
    %2059 = vmatprep.subr.mxu0 %v1514
    %2060 = vmatpush1.msra.mxu0 %v1513
    %2061 = vmatprep.subr.mxu0 %v1524
    %2062 = vmatpush1.msra.mxu0 %v1523
    %2063 = vmatprep.subr.mxu0 %v1534
    %2064 = vmatpush1.msra.mxu0 %v1533
    %2065 = vmatprep.subr.mxu0 %v1544
    %2066 = vmatpush1.msra.mxu0 %v1543
    %2067 = vmatprep.subr.mxu0 %v1554
    %2068 = vmatpush1.msra.mxu0 %v1553
    %2069 = vmatprep.subr.mxu0 %v1564
    %2070 = vmatpush1.msra.mxu0 %v1563
    %2071 = vmatprep.subr.mxu0 %v1574
    %2072 = vmatpush1.msra.mxu0 %v1573
    %2073 = vmatprep.subr.mxu0 %v1584
    %2074 = vmatpush1.msra.mxu0 %v1583
    %2075 = vmatprep.subr.mxu0 %v1594
    %2076 = vmatpush1.msra.mxu0 %v1593
    %2077 = vmatprep.subr.mxu0 %v1604
    %2078 = vmatpush1.msra.mxu0 %v1603
    %2079 = vmatprep.subr.mxu0 %v1614
    %2080 = vmatpush1.msra.mxu0 %v1613
    %2081 = vmatprep.subr.mxu0 %v1624
    %2082 = vmatpush1.msra.mxu0 %v1623
    %2083 = vmatprep.subr.mxu0 %v1634
    %2084 = vmatpush1.msra.mxu0 %v1633
    %2085 = vmatprep.subr.mxu0 %v1644
    %2086 = vmatpush1.msra.mxu0 %v1643
    %2087 = vmatprep.subr.mxu0 %v1654
    %2088 = vmatpush1.msra.mxu0 %v1653
    %2089 = vmatprep.subr.mxu0 %v1664
    %2090 = vmatpush1.msra.mxu0 %v1663
    %2091 = vmatprep.subr.mxu0 %v1674
    %2092 = vmatpush1.msra.mxu0 %v1673
    %2093 = vmatprep.subr.mxu0 %v1684
    %2094 = vmatpush1.msra.mxu0 %v1683
    %2095 = vmatprep.mubr.f32.mxu0 %v92
    %2096 = vmatmul.mubr.f32.gmra.mrb[0].mxu0 %v91
    %v2097 = vpop.f32.mrb[0].mxu0
    %v2098 = vadd.f32 %v2027, %v2097
    %v2099 = vpop.f32.mrb[0].mxu0
    %v2100 = vadd.f32 %v2029, %v2099
    %2101 = vdwg.mxu0
    %2102 = vmatprep.subr.mxu0 %v96
    %2103 = vmatpush1.msra.mxu0 %v95
    %2104 = vmatprep.subr.mxu0 %v106
    %2105 = vmatpush1.msra.mxu0 %v105
    %2106 = vmatprep.subr.mxu0 %v116
    %2107 = vmatpush1.msra.mxu0 %v115
    %2108 = vmatprep.subr.mxu0 %v126
    %2109 = vmatpush1.msra.mxu0 %v125
    %2110 = vmatprep.subr.mxu0 %v136
    %2111 = vmatpush1.msra.mxu0 %v135
    %2112 = vmatprep.subr.mxu0 %v146
    %2113 = vmatpush1.msra.mxu0 %v145
    %2114 = vmatprep.subr.mxu0 %v156
    %2115 = vmatpush1.msra.mxu0 %v155
    %2116 = vmatprep.subr.mxu0 %v166
    %2117 = vmatpush1.msra.mxu0 %v165
    %2118 = vmatprep.subr.mxu0 %v176
    %2119 = vmatpush1.msra.mxu0 %v175
    %2120 = vmatprep.subr.mxu0 %v186
    %2121 = vmatpush1.msra.mxu0 %v185
    %2122 = vmatprep.subr.mxu0 %v196
    %2123 = vmatpush1.msra.mxu0 %v195
    %2124 = vmatprep.subr.mxu0 %v206
    %2125 = vmatpush1.msra.mxu0 %v205
    %2126 = vmatprep.subr.mxu0 %v216
    %2127 = vmatpush1.msra.mxu0 %v215
    %2128 = vmatprep.subr.mxu0 %v226
    %2129 = vmatpush1.msra.mxu0 %v225
    %2130 = vmatprep.subr.mxu0 %v236
    %2131 = vmatpush1.msra.mxu0 %v235
    %2132 = vmatprep.subr.mxu0 %v246
    %2133 = vmatpush1.msra.mxu0 %v245
    %2134 = vmatprep.subr.mxu0 %v256
    %2135 = vmatpush1.msra.mxu0 %v255
    %2136 = vmatprep.subr.mxu0 %v266
    %2137 = vmatpush1.msra.mxu0 %v265
    %2138 = vmatprep.subr.mxu0 %v276
    %2139 = vmatpush1.msra.mxu0 %v275
    %2140 = vmatprep.subr.mxu0 %v286
    %2141 = vmatpush1.msra.mxu0 %v285
    %2142 = vmatprep.subr.mxu0 %v296
    %2143 = vmatpush1.msra.mxu0 %v295
    %2144 = vmatprep.subr.mxu0 %v306
    %2145 = vmatpush1.msra.mxu0 %v305
    %2146 = vmatprep.subr.mxu0 %v316
    %2147 = vmatpush1.msra.mxu0 %v315
    %2148 = vmatprep.subr.mxu0 %v326
    %2149 = vmatpush1.msra.mxu0 %v325
    %2150 = vmatprep.subr.mxu0 %v336
    %2151 = vmatpush1.msra.mxu0 %v335
    %2152 = vmatprep.subr.mxu0 %v346
    %2153 = vmatpush1.msra.mxu0 %v345
    %2154 = vmatprep.subr.mxu0 %v356
    %2155 = vmatpush1.msra.mxu0 %v355
    %2156 = vmatprep.subr.mxu0 %v366
    %2157 = vmatpush1.msra.mxu0 %v365
    %2158 = vmatprep.subr.mxu0 %v376
    %2159 = vmatpush1.msra.mxu0 %v375
    %2160 = vmatprep.subr.mxu0 %v386
    %2161 = vmatpush1.msra.mxu0 %v385
    %2162 = vmatprep.subr.mxu0 %v396
    %2163 = vmatpush1.msra.mxu0 %v395
    %2164 = vmatprep.subr.mxu0 %v406
    %2165 = vmatpush1.msra.mxu0 %v405
    %2166 = vmatprep.mubr.f32.mxu0 %v84
    %2167 = vmatmul.mubr.f32.gmra.mrb[0].mxu0 %v83
    %v2168 = vpop.f32.mrb[0].mxu0
    %v2169 = vadd.f32 %v1708, %v2168
    %v2170 = vpop.f32.mrb[0].mxu0
    %v2171 = vadd.f32 %v1712, %v2170
    %2172 = vdwg.mxu0
    %2173 = vmatprep.subr.mxu0 %v416
    %2174 = vmatpush1.msra.mxu0 %v415
    %2175 = vmatprep.subr.mxu0 %v426
    %2176 = vmatpush1.msra.mxu0 %v425
    %2177 = vmatprep.subr.mxu0 %v436
    %2178 = vmatpush1.msra.mxu0 %v435
    %2179 = vmatprep.subr.mxu0 %v446
    %2180 = vmatpush1.msra.mxu0 %v445
    %2181 = vmatprep.subr.mxu0 %v456
    %2182 = vmatpush1.msra.mxu0 %v455
    %2183 = vmatprep.subr.mxu0 %v466
    %2184 = vmatpush1.msra.mxu0 %v465
    %2185 = vmatprep.subr.mxu0 %v476
    %2186 = vmatpush1.msra.mxu0 %v475
    %2187 = vmatprep.subr.mxu0 %v486
    %2188 = vmatpush1.msra.mxu0 %v485
    %2189 = vmatprep.subr.mxu0 %v496
    %2190 = vmatpush1.msra.mxu0 %v495
    %2191 = vmatprep.subr.mxu0 %v506
    %2192 = vmatpush1.msra.mxu0 %v505
    %2193 = vmatprep.subr.mxu0 %v516
    %2194 = vmatpush1.msra.mxu0 %v515
    %2195 = vmatprep.subr.mxu0 %v526
    %2196 = vmatpush1.msra.mxu0 %v525
    %2197 = vmatprep.subr.mxu0 %v536
    %2198 = vmatpush1.msra.mxu0 %v535
    %2199 = vmatprep.subr.mxu0 %v546
    %2200 = vmatpush1.msra.mxu0 %v545
    %2201 = vmatprep.subr.mxu0 %v556
    %2202 = vmatpush1.msra.mxu0 %v555
    %2203 = vmatprep.subr.mxu0 %v566
    %2204 = vmatpush1.msra.mxu0 %v565
    %2205 = vmatprep.subr.mxu0 %v576
    %2206 = vmatpush1.msra.mxu0 %v575
    %2207 = vmatprep.subr.mxu0 %v586
    %2208 = vmatpush1.msra.mxu0 %v585
    %2209 = vmatprep.subr.mxu0 %v596
    %2210 = vmatpush1.msra.mxu0 %v595
    %2211 = vmatprep.subr.mxu0 %v606
    %2212 = vmatpush1.msra.mxu0 %v605
    %2213 = vmatprep.subr.mxu0 %v616
    %2214 = vmatpush1.msra.mxu0 %v615
    %2215 = vmatprep.subr.mxu0 %v626
    %2216 = vmatpush1.msra.mxu0 %v625
    %2217 = vmatprep.subr.mxu0 %v636
    %2218 = vmatpush1.msra.mxu0 %v635
    %2219 = vmatprep.subr.mxu0 %v646
    %2220 = vmatpush1.msra.mxu0 %v645
    %2221 = vmatprep.subr.mxu0 %v656
    %2222 = vmatpush1.msra.mxu0 %v655
    %2223 = vmatprep.subr.mxu0 %v666
    %2224 = vmatpush1.msra.mxu0 %v665
    %2225 = vmatprep.subr.mxu0 %v676
    %2226 = vmatpush1.msra.mxu0 %v675
    %2227 = vmatprep.subr.mxu0 %v686
    %2228 = vmatpush1.msra.mxu0 %v685
    %2229 = vmatprep.subr.mxu0 %v696
    %2230 = vmatpush1.msra.mxu0 %v695
    %2231 = vmatprep.subr.mxu0 %v706
    %2232 = vmatpush1.msra.mxu0 %v705
    %2233 = vmatprep.subr.mxu0 %v716
    %2234 = vmatpush1.msra.mxu0 %v715
    %2235 = vmatprep.subr.mxu0 %v726
    %2236 = vmatpush1.msra.mxu0 %v725
    %2237 = vmatprep.mubr.f32.mxu0 %v86
    %2238 = vmatmul.mubr.f32.gmra.mrb[0].mxu0 %v85
    %v2239 = vpop.f32.mrb[0].mxu0
    %v2240 = vadd.f32 %v2169, %v2239
    %v2241 = vpop.f32.mrb[0].mxu0
    %v2242 = vadd.f32 %v2171, %v2241
    %2243 = vdwg.mxu0
    %2244 = vmatprep.subr.mxu0 %v736
    %2245 = vmatpush1.msra.mxu0 %v735
    %2246 = vmatprep.subr.mxu0 %v746
    %2247 = vmatpush1.msra.mxu0 %v745
    %2248 = vmatprep.subr.mxu0 %v756
    %2249 = vmatpush1.msra.mxu0 %v755
    %2250 = vmatprep.subr.mxu0 %v766
    %2251 = vmatpush1.msra.mxu0 %v765
    %2252 = vmatprep.subr.mxu0 %v776
    %2253 = vmatpush1.msra.mxu0 %v775
    %2254 = vmatprep.subr.mxu0 %v786
    %2255 = vmatpush1.msra.mxu0 %v785
    %2256 = vmatprep.subr.mxu0 %v796
    %2257 = vmatpush1.msra.mxu0 %v795
    %2258 = vmatprep.subr.mxu0 %v806
    %2259 = vmatpush1.msra.mxu0 %v805
    %2260 = vmatprep.subr.mxu0 %v816
    %2261 = vmatpush1.msra.mxu0 %v815
    %2262 = vmatprep.subr.mxu0 %v826
    %2263 = vmatpush1.msra.mxu0 %v825
    %2264 = vmatprep.subr.mxu0 %v836
    %2265 = vmatpush1.msra.mxu0 %v835
    %2266 = vmatprep.subr.mxu0 %v846
    %2267 = vmatpush1.msra.mxu0 %v845
    %2268 = vmatprep.subr.mxu0 %v856
    %2269 = vmatpush1.msra.mxu0 %v855
    %2270 = vmatprep.subr.mxu0 %v866
    %2271 = vmatpush1.msra.mxu0 %v865
    %2272 = vmatprep.subr.mxu0 %v876
    %2273 = vmatpush1.msra.mxu0 %v875
    %2274 = vmatprep.subr.mxu0 %v886
    %2275 = vmatpush1.msra.mxu0 %v885
    %2276 = vmatprep.subr.mxu0 %v896
    %2277 = vmatpush1.msra.mxu0 %v895
    %2278 = vmatprep.subr.mxu0 %v906
    %2279 = vmatpush1.msra.mxu0 %v905
    %2280 = vmatprep.subr.mxu0 %v916
    %2281 = vmatpush1.msra.mxu0 %v915
    %2282 = vmatprep.subr.mxu0 %v926
    %2283 = vmatpush1.msra.mxu0 %v925
    %2284 = vmatprep.subr.mxu0 %v936
    %2285 = vmatpush1.msra.mxu0 %v935
    %2286 = vmatprep.subr.mxu0 %v946
    %2287 = vmatpush1.msra.mxu0 %v945
    %2288 = vmatprep.subr.mxu0 %v956
    %2289 = vmatpush1.msra.mxu0 %v955
    %2290 = vmatprep.subr.mxu0 %v966
    %2291 = vmatpush1.msra.mxu0 %v965
    %2292 = vmatprep.subr.mxu0 %v976
    %2293 = vmatpush1.msra.mxu0 %v975
    %2294 = vmatprep.subr.mxu0 %v986
    %2295 = vmatpush1.msra.mxu0 %v985
    %2296 = vmatprep.subr.mxu0 %v996
    %2297 = vmatpush1.msra.mxu0 %v995
    %2298 = vmatprep.subr.mxu0 %v1006
    %2299 = vmatpush1.msra.mxu0 %v1005
    %2300 = vmatprep.subr.mxu0 %v1016
    %2301 = vmatpush1.msra.mxu0 %v1015
    %2302 = vmatprep.subr.mxu0 %v1026
    %2303 = vmatpush1.msra.mxu0 %v1025
    %2304 = vmatprep.subr.mxu0 %v1036
    %2305 = vmatpush1.msra.mxu0 %v1035
    %2306 = vmatprep.subr.mxu0 %v1046
    %2307 = vmatpush1.msra.mxu0 %v1045
    %2308 = vmatprep.mubr.f32.mxu0 %v88
    %2309 = vmatmul.mubr.f32.gmra.mrb[0].mxu0 %v87
    %v2310 = vpop.f32.mrb[0].mxu0
    %v2311 = vadd.f32 %v2240, %v2310
    %v2312 = vpop.f32.mrb[0].mxu0
    %v2313 = vadd.f32 %v2242, %v2312
    %2314 = vdwg.mxu0
    %2315 = vmatprep.subr.mxu0 %v1056
    %2316 = vmatpush1.msra.mxu0 %v1055
    %2317 = vmatprep.subr.mxu0 %v1066
    %2318 = vmatpush1.msra.mxu0 %v1065
    %2319 = vmatprep.subr.mxu0 %v1076
    %2320 = vmatpush1.msra.mxu0 %v1075
    %2321 = vmatprep.subr.mxu0 %v1086
    %2322 = vmatpush1.msra.mxu0 %v1085
    %2323 = vmatprep.subr.mxu0 %v1096
    %2324 = vmatpush1.msra.mxu0 %v1095
    %2325 = vmatprep.subr.mxu0 %v1106
    %2326 = vmatpush1.msra.mxu0 %v1105
    %2327 = vmatprep.subr.mxu0 %v1116
    %2328 = vmatpush1.msra.mxu0 %v1115
    %2329 = vmatprep.subr.mxu0 %v1126
    %2330 = vmatpush1.msra.mxu0 %v1125
    %2331 = vmatprep.subr.mxu0 %v1136
    %2332 = vmatpush1.msra.mxu0 %v1135
    %2333 = vmatprep.subr.mxu0 %v1146
    %2334 = vmatpush1.msra.mxu0 %v1145
    %2335 = vmatprep.subr.mxu0 %v1156
    %2336 = vmatpush1.msra.mxu0 %v1155
    %2337 = vmatprep.subr.mxu0 %v1166
    %2338 = vmatpush1.msra.mxu0 %v1165
    %2339 = vmatprep.subr.mxu0 %v1176
    %2340 = vmatpush1.msra.mxu0 %v1175
    %2341 = vmatprep.subr.mxu0 %v1186
    %2342 = vmatpush1.msra.mxu0 %v1185
    %2343 = vmatprep.subr.mxu0 %v1196
    %2344 = vmatpush1.msra.mxu0 %v1195
    %2345 = vmatprep.subr.mxu0 %v1206
    %2346 = vmatpush1.msra.mxu0 %v1205
    %2347 = vmatprep.subr.mxu0 %v1216
    %2348 = vmatpush1.msra.mxu0 %v1215
    %2349 = vmatprep.subr.mxu0 %v1226
    %2350 = vmatpush1.msra.mxu0 %v1225
    %2351 = vmatprep.subr.mxu0 %v1236
    %2352 = vmatpush1.msra.mxu0 %v1235
    %2353 = vmatprep.subr.mxu0 %v1246
    %2354 = vmatpush1.msra.mxu0 %v1245
    %2355 = vmatprep.subr.mxu0 %v1256
    %2356 = vmatpush1.msra.mxu0 %v1255
    %2357 = vmatprep.subr.mxu0 %v1266
    %2358 = vmatpush1.msra.mxu0 %v1265
    %2359 = vmatprep.subr.mxu0 %v1276
    %2360 = vmatpush1.msra.mxu0 %v1275
    %2361 = vmatprep.subr.mxu0 %v1286
    %2362 = vmatpush1.msra.mxu0 %v1285
    %2363 = vmatprep.subr.mxu0 %v1296
    %2364 = vmatpush1.msra.mxu0 %v1295
    %2365 = vmatprep.subr.mxu0 %v1306
    %2366 = vmatpush1.msra.mxu0 %v1305
    %2367 = vmatprep.subr.mxu0 %v1316
    %2368 = vmatpush1.msra.mxu0 %v1315
    %2369 = vmatprep.subr.mxu0 %v1326
    %2370 = vmatpush1.msra.mxu0 %v1325
    %2371 = vmatprep.subr.mxu0 %v1336
    %2372 = vmatpush1.msra.mxu0 %v1335
    %2373 = vmatprep.subr.mxu0 %v1346
    %2374 = vmatpush1.msra.mxu0 %v1345
    %2375 = vmatprep.subr.mxu0 %v1356
    %2376 = vmatpush1.msra.mxu0 %v1355
    %2377 = vmatprep.subr.mxu0 %v1366
    %2378 = vmatpush1.msra.mxu0 %v1365
    %2379 = vmatprep.mubr.f32.mxu0 %v90
    %2380 = vmatmul.mubr.f32.gmra.mrb[0].mxu0 %v89
    %v2381 = vpop.f32.mrb[0].mxu0
    %v2382 = vadd.f32 %v2311, %v2381
    %v2383 = vpop.f32.mrb[0].mxu0
    %v2384 = vadd.f32 %v2313, %v2383
    %2385 = vdwg.mxu0
    %2386 = vmatprep.subr.mxu0 %v1376
    %2387 = vmatpush1.msra.mxu0 %v1375
    %2388 = vmatprep.subr.mxu0 %v1386
    %2389 = vmatpush1.msra.mxu0 %v1385
    %2390 = vmatprep.subr.mxu0 %v1396
    %2391 = vmatpush1.msra.mxu0 %v1395
    %2392 = vmatprep.subr.mxu0 %v1406
    %2393 = vmatpush1.msra.mxu0 %v1405
    %2394 = vmatprep.subr.mxu0 %v1416
    %2395 = vmatpush1.msra.mxu0 %v1415
    %2396 = vmatprep.subr.mxu0 %v1426
    %2397 = vmatpush1.msra.mxu0 %v1425
    %2398 = vmatprep.subr.mxu0 %v1436
    %2399 = vmatpush1.msra.mxu0 %v1435
    %2400 = vmatprep.subr.mxu0 %v1446
    %2401 = vmatpush1.msra.mxu0 %v1445
    %2402 = vmatprep.subr.mxu0 %v1456
    %2403 = vmatpush1.msra.mxu0 %v1455
    %2404 = vmatprep.subr.mxu0 %v1466
    %2405 = vmatpush1.msra.mxu0 %v1465
    %2406 = vmatprep.subr.mxu0 %v1476
    %2407 = vmatpush1.msra.mxu0 %v1475
    %2408 = vmatprep.subr.mxu0 %v1486
    %2409 = vmatpush1.msra.mxu0 %v1485
    %2410 = vmatprep.subr.mxu0 %v1496
    %2411 = vmatpush1.msra.mxu0 %v1495
    %2412 = vmatprep.subr.mxu0 %v1506
    %2413 = vmatpush1.msra.mxu0 %v1505
    %2414 = vmatprep.subr.mxu0 %v1516
    %2415 = vmatpush1.msra.mxu0 %v1515
    %2416 = vmatprep.subr.mxu0 %v1526
    %2417 = vmatpush1.msra.mxu0 %v1525
    %2418 = vmatprep.subr.mxu0 %v1536
    %2419 = vmatpush1.msra.mxu0 %v1535
    %2420 = vmatprep.subr.mxu0 %v1546
    %2421 = vmatpush1.msra.mxu0 %v1545
    %2422 = vmatprep.subr.mxu0 %v1556
    %2423 = vmatpush1.msra.mxu0 %v1555
    %2424 = vmatprep.subr.mxu0 %v1566
    %2425 = vmatpush1.msra.mxu0 %v1565
    %2426 = vmatprep.subr.mxu0 %v1576
    %2427 = vmatpush1.msra.mxu0 %v1575
    %2428 = vmatprep.subr.mxu0 %v1586
    %2429 = vmatpush1.msra.mxu0 %v1585
    %2430 = vmatprep.subr.mxu0 %v1596
    %2431 = vmatpush1.msra.mxu0 %v1595
    %2432 = vmatprep.subr.mxu0 %v1606
    %2433 = vmatpush1.msra.mxu0 %v1605
    %2434 = vmatprep.subr.mxu0 %v1616
    %2435 = vmatpush1.msra.mxu0 %v1615
    %2436 = vmatprep.subr.mxu0 %v1626
    %2437 = vmatpush1.msra.mxu0 %v1625
    %2438 = vmatprep.subr.mxu0 %v1636
    %2439 = vmatpush1.msra.mxu0 %v1635
    %2440 = vmatprep.subr.mxu0 %v1646
    %2441 = vmatpush1.msra.mxu0 %v1645
    %2442 = vmatprep.subr.mxu0 %v1656
    %2443 = vmatpush1.msra.mxu0 %v1655
    %2444 = vmatprep.subr.mxu0 %v1666
    %2445 = vmatpush1.msra.mxu0 %v1665
    %2446 = vmatprep.subr.mxu0 %v1676
    %2447 = vmatpush1.msra.mxu0 %v1675
    %2448 = vmatprep.subr.mxu0 %v1686
    %2449 = vmatpush1.msra.mxu0 %v1685
    %2450 = vmatprep.mubr.f32.mxu0 %v92
    %2451 = vmatmul.mubr.f32.gmra.mrb[0].mxu0 %v91
    %v2452 = vpop.f32.mrb[0].mxu0
    %v2453 = vadd.f32 %v2382, %v2452
    %v2454 = vpop.f32.mrb[0].mxu0
    %v2455 = vadd.f32 %v2384, %v2454
    %2456 = vdwg.mxu0
    %2457 = vmatprep.subr.mxu0 %v98
    %2458 = vmatpush1.msra.mxu0 %v97
    %2459 = vmatprep.subr.mxu0 %v108
    %2460 = vmatpush1.msra.mxu0 %v107
    %2461 = vmatprep.subr.mxu0 %v118
    %2462 = vmatpush1.msra.mxu0 %v117
    %2463 = vmatprep.subr.mxu0 %v128
    %2464 = vmatpush1.msra.mxu0 %v127
    %2465 = vmatprep.subr.mxu0 %v138
    %2466 = vmatpush1.msra.mxu0 %v137
    %2467 = vmatprep.subr.mxu0 %v148
    %2468 = vmatpush1.msra.mxu0 %v147
    %2469 = vmatprep.subr.mxu0 %v158
    %2470 = vmatpush1.msra.mxu0 %v157
    %2471 = vmatprep.subr.mxu0 %v168
    %2472 = vmatpush1.msra.mxu0 %v167
    %2473 = vmatprep.subr.mxu0 %v178
    %2474 = vmatpush1.msra.mxu0 %v177
    %2475 = vmatprep.subr.mxu0 %v188
    %2476 = vmatpush1.msra.mxu0 %v187
    %2477 = vmatprep.subr.mxu0 %v198
    %2478 = vmatpush1.msra.mxu0 %v197
    %2479 = vmatprep.subr.mxu0 %v208
    %2480 = vmatpush1.msra.mxu0 %v207
    %2481 = vmatprep.subr.mxu0 %v218
    %2482 = vmatpush1.msra.mxu0 %v217
    %2483 = vmatprep.subr.mxu0 %v228
    %2484 = vmatpush1.msra.mxu0 %v227
    %2485 = vmatprep.subr.mxu0 %v238
    %2486 = vmatpush1.msra.mxu0 %v237
    %2487 = vmatprep.subr.mxu0 %v248
    %2488 = vmatpush1.msra.mxu0 %v247
    %2489 = vmatprep.subr.mxu0 %v258
    %2490 = vmatpush1.msra.mxu0 %v257
    %2491 = vmatprep.subr.mxu0 %v268
    %2492 = vmatpush1.msra.mxu0 %v267
    %2493 = vmatprep.subr.mxu0 %v278
    %2494 = vmatpush1.msra.mxu0 %v277
    %2495 = vmatprep.subr.mxu0 %v288
    %2496 = vmatpush1.msra.mxu0 %v287
    %2497 = vmatprep.subr.mxu0 %v298
    %2498 = vmatpush1.msra.mxu0 %v297
    %2499 = vmatprep.subr.mxu0 %v308
    %2500 = vmatpush1.msra.mxu0 %v307
    %2501 = vmatprep.subr.mxu0 %v318
    %2502 = vmatpush1.msra.mxu0 %v317
    %2503 = vmatprep.subr.mxu0 %v328
    %2504 = vmatpush1.msra.mxu0 %v327
    %2505 = vmatprep.subr.mxu0 %v338
    %2506 = vmatpush1.msra.mxu0 %v337
    %2507 = vmatprep.subr.mxu0 %v348
    %2508 = vmatpush1.msra.mxu0 %v347
    %2509 = vmatprep.subr.mxu0 %v358
    %2510 = vmatpush1.msra.mxu0 %v357
    %2511 = vmatprep.subr.mxu0 %v368
    %2512 = vmatpush1.msra.mxu0 %v367
    %2513 = vmatprep.subr.mxu0 %v378
    %2514 = vmatpush1.msra.mxu0 %v377
    %2515 = vmatprep.subr.mxu0 %v388
    %2516 = vmatpush1.msra.mxu0 %v387
    %2517 = vmatprep.subr.mxu0 %v398
    %2518 = vmatpush1.msra.mxu0 %v397
    %2519 = vmatprep.subr.mxu0 %v408
    %2520 = vmatpush1.msra.mxu0 %v407
    %2521 = vmatprep.mubr.f32.mxu0 %v84
    %2522 = vmatmul.mubr.f32.gmra.mrb[0].mxu0 %v83
    %v2523 = vpop.f32.mrb[0].mxu0
    %v2524 = vadd.f32 %v1716, %v2523
    %v2525 = vpop.f32.mrb[0].mxu0
    %v2526 = vadd.f32 %v1720, %v2525
    %2527 = vdwg.mxu0
    %2528 = vmatprep.subr.mxu0 %v418
    %2529 = vmatpush1.msra.mxu0 %v417
    %2530 = vmatprep.subr.mxu0 %v428
    %2531 = vmatpush1.msra.mxu0 %v427
    %2532 = vmatprep.subr.mxu0 %v438
    %2533 = vmatpush1.msra.mxu0 %v437
    %2534 = vmatprep.subr.mxu0 %v448
    %2535 = vmatpush1.msra.mxu0 %v447
    %2536 = vmatprep.subr.mxu0 %v458
    %2537 = vmatpush1.msra.mxu0 %v457
    %2538 = vmatprep.subr.mxu0 %v468
    %2539 = vmatpush1.msra.mxu0 %v467
    %2540 = vmatprep.subr.mxu0 %v478
    %2541 = vmatpush1.msra.mxu0 %v477
    %2542 = vmatprep.subr.mxu0 %v488
    %2543 = vmatpush1.msra.mxu0 %v487
    %2544 = vmatprep.subr.mxu0 %v498
    %2545 = vmatpush1.msra.mxu0 %v497
    %2546 = vmatprep.subr.mxu0 %v508
    %2547 = vmatpush1.msra.mxu0 %v507
    %2548 = vmatprep.subr.mxu0 %v518
    %2549 = vmatpush1.msra.mxu0 %v517
    %2550 = vmatprep.subr.mxu0 %v528
    %2551 = vmatpush1.msra.mxu0 %v527
    %2552 = vmatprep.subr.mxu0 %v538
    %2553 = vmatpush1.msra.mxu0 %v537
    %2554 = vmatprep.subr.mxu0 %v548
    %2555 = vmatpush1.msra.mxu0 %v547
    %2556 = vmatprep.subr.mxu0 %v558
    %2557 = vmatpush1.msra.mxu0 %v557
    %2558 = vmatprep.subr.mxu0 %v568
    %2559 = vmatpush1.msra.mxu0 %v567
    %2560 = vmatprep.subr.mxu0 %v578
    %2561 = vmatpush1.msra.mxu0 %v577
    %2562 = vmatprep.subr.mxu0 %v588
    %2563 = vmatpush1.msra.mxu0 %v587
    %2564 = vmatprep.subr.mxu0 %v598
    %2565 = vmatpush1.msra.mxu0 %v597
    %2566 = vmatprep.subr.mxu0 %v608
    %2567 = vmatpush1.msra.mxu0 %v607
    %2568 = vmatprep.subr.mxu0 %v618
    %2569 = vmatpush1.msra.mxu0 %v617
    %2570 = vmatprep.subr.mxu0 %v628
    %2571 = vmatpush1.msra.mxu0 %v627
    %2572 = vmatprep.subr.mxu0 %v638
    %2573 = vmatpush1.msra.mxu0 %v637
    %2574 = vmatprep.subr.mxu0 %v648
    %2575 = vmatpush1.msra.mxu0 %v647
    %2576 = vmatprep.subr.mxu0 %v658
    %2577 = vmatpush1.msra.mxu0 %v657
    %2578 = vmatprep.subr.mxu0 %v668
    %2579 = vmatpush1.msra.mxu0 %v667
    %2580 = vmatprep.subr.mxu0 %v678
    %2581 = vmatpush1.msra.mxu0 %v677
    %2582 = vmatprep.subr.mxu0 %v688
    %2583 = vmatpush1.msra.mxu0 %v687
    %2584 = vmatprep.subr.mxu0 %v698
    %2585 = vmatpush1.msra.mxu0 %v697
    %2586 = vmatprep.subr.mxu0 %v708
    %2587 = vmatpush1.msra.mxu0 %v707
    %2588 = vmatprep.subr.mxu0 %v718
    %2589 = vmatpush1.msra.mxu0 %v717
    %2590 = vmatprep.subr.mxu0 %v728
    %2591 = vmatpush1.msra.mxu0 %v727
    %2592 = vmatprep.mubr.f32.mxu0 %v86
    %2593 = vmatmul.mubr.f32.gmra.mrb[0].mxu0 %v85
    %v2594 = vpop.f32.mrb[0].mxu0
    %v2595 = vadd.f32 %v2524, %v2594
    %v2596 = vpop.f32.mrb[0].mxu0
    %v2597 = vadd.f32 %v2526, %v2596
    %2598 = vdwg.mxu0
    %2599 = vmatprep.subr.mxu0 %v738
    %2600 = vmatpush1.msra.mxu0 %v737
    %2601 = vmatprep.subr.mxu0 %v748
    %2602 = vmatpush1.msra.mxu0 %v747
    %2603 = vmatprep.subr.mxu0 %v758
    %2604 = vmatpush1.msra.mxu0 %v757
    %2605 = vmatprep.subr.mxu0 %v768
    %2606 = vmatpush1.msra.mxu0 %v767
    %2607 = vmatprep.subr.mxu0 %v778
    %2608 = vmatpush1.msra.mxu0 %v777
    %2609 = vmatprep.subr.mxu0 %v788
    %2610 = vmatpush1.msra.mxu0 %v787
    %2611 = vmatprep.subr.mxu0 %v798
    %2612 = vmatpush1.msra.mxu0 %v797
    %2613 = vmatprep.subr.mxu0 %v808
    %2614 = vmatpush1.msra.mxu0 %v807
    %2615 = vmatprep.subr.mxu0 %v818
    %2616 = vmatpush1.msra.mxu0 %v817
    %2617 = vmatprep.subr.mxu0 %v828
    %2618 = vmatpush1.msra.mxu0 %v827
    %2619 = vmatprep.subr.mxu0 %v838
    %2620 = vmatpush1.msra.mxu0 %v837
    %2621 = vmatprep.subr.mxu0 %v848
    %2622 = vmatpush1.msra.mxu0 %v847
    %2623 = vmatprep.subr.mxu0 %v858
    %2624 = vmatpush1.msra.mxu0 %v857
    %2625 = vmatprep.subr.mxu0 %v868
    %2626 = vmatpush1.msra.mxu0 %v867
    %2627 = vmatprep.subr.mxu0 %v878
    %2628 = vmatpush1.msra.mxu0 %v877
    %2629 = vmatprep.subr.mxu0 %v888
    %2630 = vmatpush1.msra.mxu0 %v887
    %2631 = vmatprep.subr.mxu0 %v898
    %2632 = vmatpush1.msra.mxu0 %v897
    %2633 = vmatprep.subr.mxu0 %v908
    %2634 = vmatpush1.msra.mxu0 %v907
    %2635 = vmatprep.subr.mxu0 %v918
    %2636 = vmatpush1.msra.mxu0 %v917
    %2637 = vmatprep.subr.mxu0 %v928
    %2638 = vmatpush1.msra.mxu0 %v927
    %2639 = vmatprep.subr.mxu0 %v938
    %2640 = vmatpush1.msra.mxu0 %v937
    %2641 = vmatprep.subr.mxu0 %v948
    %2642 = vmatpush1.msra.mxu0 %v947
    %2643 = vmatprep.subr.mxu0 %v958
    %2644 = vmatpush1.msra.mxu0 %v957
    %2645 = vmatprep.subr.mxu0 %v968
    %2646 = vmatpush1.msra.mxu0 %v967
    %2647 = vmatprep.subr.mxu0 %v978
    %2648 = vmatpush1.msra.mxu0 %v977
    %2649 = vmatprep.subr.mxu0 %v988
    %2650 = vmatpush1.msra.mxu0 %v987
    %2651 = vmatprep.subr.mxu0 %v998
    %2652 = vmatpush1.msra.mxu0 %v997
    %2653 = vmatprep.subr.mxu0 %v1008
    %2654 = vmatpush1.msra.mxu0 %v1007
    %2655 = vmatprep.subr.mxu0 %v1018
    %2656 = vmatpush1.msra.mxu0 %v1017
    %2657 = vmatprep.subr.mxu0 %v1028
    %2658 = vmatpush1.msra.mxu0 %v1027
    %2659 = vmatprep.subr.mxu0 %v1038
    %2660 = vmatpush1.msra.mxu0 %v1037
    %2661 = vmatprep.subr.mxu0 %v1048
    %2662 = vmatpush1.msra.mxu0 %v1047
    %2663 = vmatprep.mubr.f32.mxu0 %v88
    %2664 = vmatmul.mubr.f32.gmra.mrb[0].mxu0 %v87
    %v2665 = vpop.f32.mrb[0].mxu0
    %v2666 = vadd.f32 %v2595, %v2665
    %v2667 = vpop.f32.mrb[0].mxu0
    %v2668 = vadd.f32 %v2597, %v2667
    %2669 = vdwg.mxu0
    %2670 = vmatprep.subr.mxu0 %v1058
    %2671 = vmatpush1.msra.mxu0 %v1057
    %2672 = vmatprep.subr.mxu0 %v1068
    %2673 = vmatpush1.msra.mxu0 %v1067
    %2674 = vmatprep.subr.mxu0 %v1078
    %2675 = vmatpush1.msra.mxu0 %v1077
    %2676 = vmatprep.subr.mxu0 %v1088
    %2677 = vmatpush1.msra.mxu0 %v1087
    %2678 = vmatprep.subr.mxu0 %v1098
    %2679 = vmatpush1.msra.mxu0 %v1097
    %2680 = vmatprep.subr.mxu0 %v1108
    %2681 = vmatpush1.msra.mxu0 %v1107
    %2682 = vmatprep.subr.mxu0 %v1118
    %2683 = vmatpush1.msra.mxu0 %v1117
    %2684 = vmatprep.subr.mxu0 %v1128
    %2685 = vmatpush1.msra.mxu0 %v1127
    %2686 = vmatprep.subr.mxu0 %v1138
    %2687 = vmatpush1.msra.mxu0 %v1137
    %2688 = vmatprep.subr.mxu0 %v1148
    %2689 = vmatpush1.msra.mxu0 %v1147
    %2690 = vmatprep.subr.mxu0 %v1158
    %2691 = vmatpush1.msra.mxu0 %v1157
    %2692 = vmatprep.subr.mxu0 %v1168
    %2693 = vmatpush1.msra.mxu0 %v1167
    %2694 = vmatprep.subr.mxu0 %v1178
    %2695 = vmatpush1.msra.mxu0 %v1177
    %2696 = vmatprep.subr.mxu0 %v1188
    %2697 = vmatpush1.msra.mxu0 %v1187
    %2698 = vmatprep.subr.mxu0 %v1198
    %2699 = vmatpush1.msra.mxu0 %v1197
    %2700 = vmatprep.subr.mxu0 %v1208
    %2701 = vmatpush1.msra.mxu0 %v1207
    %2702 = vmatprep.subr.mxu0 %v1218
    %2703 = vmatpush1.msra.mxu0 %v1217
    %2704 = vmatprep.subr.mxu0 %v1228
    %2705 = vmatpush1.msra.mxu0 %v1227
    %2706 = vmatprep.subr.mxu0 %v1238
    %2707 = vmatpush1.msra.mxu0 %v1237
    %2708 = vmatprep.subr.mxu0 %v1248
    %2709 = vmatpush1.msra.mxu0 %v1247
    %2710 = vmatprep.subr.mxu0 %v1258
    %2711 = vmatpush1.msra.mxu0 %v1257
    %2712 = vmatprep.subr.mxu0 %v1268
    %2713 = vmatpush1.msra.mxu0 %v1267
    %2714 = vmatprep.subr.mxu0 %v1278
    %2715 = vmatpush1.msra.mxu0 %v1277
    %2716 = vmatprep.subr.mxu0 %v1288
    %2717 = vmatpush1.msra.mxu0 %v1287
    %2718 = vmatprep.subr.mxu0 %v1298
    %2719 = vmatpush1.msra.mxu0 %v1297
    %2720 = vmatprep.subr.mxu0 %v1308
    %2721 = vmatpush1.msra.mxu0 %v1307
    %2722 = vmatprep.subr.mxu0 %v1318
    %2723 = vmatpush1.msra.mxu0 %v1317
    %2724 = vmatprep.subr.mxu0 %v1328
    %2725 = vmatpush1.msra.mxu0 %v1327
    %2726 = vmatprep.subr.mxu0 %v1338
    %2727 = vmatpush1.msra.mxu0 %v1337
    %2728 = vmatprep.subr.mxu0 %v1348
    %2729 = vmatpush1.msra.mxu0 %v1347
    %2730 = vmatprep.subr.mxu0 %v1358
    %2731 = vmatpush1.msra.mxu0 %v1357
    %2732 = vmatprep.subr.mxu0 %v1368
    %2733 = vmatpush1.msra.mxu0 %v1367
    %2734 = vmatprep.mubr.f32.mxu0 %v90
    %2735 = vmatmul.mubr.f32.gmra.mrb[0].mxu0 %v89
    %v2736 = vpop.f32.mrb[0].mxu0
    %v2737 = vadd.f32 %v2666, %v2736
    %v2738 = vpop.f32.mrb[0].mxu0
    %v2739 = vadd.f32 %v2668, %v2738
    %2740 = vdwg.mxu0
    %2741 = vmatprep.subr.mxu0 %v1378
    %2742 = vmatpush1.msra.mxu0 %v1377
    %2743 = vmatprep.subr.mxu0 %v1388
    %2744 = vmatpush1.msra.mxu0 %v1387
    %2745 = vmatprep.subr.mxu0 %v1398
    %2746 = vmatpush1.msra.mxu0 %v1397
    %2747 = vmatprep.subr.mxu0 %v1408
    %2748 = vmatpush1.msra.mxu0 %v1407
    %2749 = vmatprep.subr.mxu0 %v1418
    %2750 = vmatpush1.msra.mxu0 %v1417
    %2751 = vmatprep.subr.mxu0 %v1428
    %2752 = vmatpush1.msra.mxu0 %v1427
    %2753 = vmatprep.subr.mxu0 %v1438
    %2754 = vmatpush1.msra.mxu0 %v1437
    %2755 = vmatprep.subr.mxu0 %v1448
    %2756 = vmatpush1.msra.mxu0 %v1447
    %2757 = vmatprep.subr.mxu0 %v1458
    %2758 = vmatpush1.msra.mxu0 %v1457
    %2759 = vmatprep.subr.mxu0 %v1468
    %2760 = vmatpush1.msra.mxu0 %v1467
    %2761 = vmatprep.subr.mxu0 %v1478
    %2762 = vmatpush1.msra.mxu0 %v1477
    %2763 = vmatprep.subr.mxu0 %v1488
    %2764 = vmatpush1.msra.mxu0 %v1487
    %2765 = vmatprep.subr.mxu0 %v1498
    %2766 = vmatpush1.msra.mxu0 %v1497
    %2767 = vmatprep.subr.mxu0 %v1508
    %2768 = vmatpush1.msra.mxu0 %v1507
    %2769 = vmatprep.subr.mxu0 %v1518
    %2770 = vmatpush1.msra.mxu0 %v1517
    %2771 = vmatprep.subr.mxu0 %v1528
    %2772 = vmatpush1.msra.mxu0 %v1527
    %2773 = vmatprep.subr.mxu0 %v1538
    %2774 = vmatpush1.msra.mxu0 %v1537
    %2775 = vmatprep.subr.mxu0 %v1548
    %2776 = vmatpush1.msra.mxu0 %v1547
    %2777 = vmatprep.subr.mxu0 %v1558
    %2778 = vmatpush1.msra.mxu0 %v1557
    %2779 = vmatprep.subr.mxu0 %v1568
    %2780 = vmatpush1.msra.mxu0 %v1567
    %2781 = vmatprep.subr.mxu0 %v1578
    %2782 = vmatpush1.msra.mxu0 %v1577
    %2783 = vmatprep.subr.mxu0 %v1588
    %2784 = vmatpush1.msra.mxu0 %v1587
    %2785 = vmatprep.subr.mxu0 %v1598
    %2786 = vmatpush1.msra.mxu0 %v1597
    %2787 = vmatprep.subr.mxu0 %v1608
    %2788 = vmatpush1.msra.mxu0 %v1607
    %2789 = vmatprep.subr.mxu0 %v1618
    %2790 = vmatpush1.msra.mxu0 %v1617
    %2791 = vmatprep.subr.mxu0 %v1628
    %2792 = vmatpush1.msra.mxu0 %v1627
    %2793 = vmatprep.subr.mxu0 %v1638
    %2794 = vmatpush1.msra.mxu0 %v1637
    %2795 = vmatprep.subr.mxu0 %v1648
    %2796 = vmatpush1.msra.mxu0 %v1647
    %2797 = vmatprep.subr.mxu0 %v1658
    %2798 = vmatpush1.msra.mxu0 %v1657
    %2799 = vmatprep.subr.mxu0 %v1668
    %2800 = vmatpush1.msra.mxu0 %v1667
    %2801 = vmatprep.subr.mxu0 %v1678
    %2802 = vmatpush1.msra.mxu0 %v1677
    %2803 = vmatprep.subr.mxu0 %v1688
    %2804 = vmatpush1.msra.mxu0 %v1687
    %2805 = vmatprep.mubr.f32.mxu0 %v92
    %2806 = vmatmul.mubr.f32.gmra.mrb[0].mxu0 %v91
    %v2807 = vpop.f32.mrb[0].mxu0
    %v2808 = vadd.f32 %v2737, %v2807
    %v2809 = vpop.f32.mrb[0].mxu0
    %v2810 = vadd.f32 %v2739, %v2809
    %2811 = vdwg.mxu0
    %2812 = vmatprep.subr.mxu0 %v100
    %2813 = vmatpush1.msra.mxu0 %v99
    %2814 = vmatprep.subr.mxu0 %v110
    %2815 = vmatpush1.msra.mxu0 %v109
    %2816 = vmatprep.subr.mxu0 %v120
    %2817 = vmatpush1.msra.mxu0 %v119
    %2818 = vmatprep.subr.mxu0 %v130
    %2819 = vmatpush1.msra.mxu0 %v129
    %2820 = vmatprep.subr.mxu0 %v140
    %2821 = vmatpush1.msra.mxu0 %v139
    %2822 = vmatprep.subr.mxu0 %v150
    %2823 = vmatpush1.msra.mxu0 %v149
    %2824 = vmatprep.subr.mxu0 %v160
    %2825 = vmatpush1.msra.mxu0 %v159
    %2826 = vmatprep.subr.mxu0 %v170
    %2827 = vmatpush1.msra.mxu0 %v169
    %2828 = vmatprep.subr.mxu0 %v180
    %2829 = vmatpush1.msra.mxu0 %v179
    %2830 = vmatprep.subr.mxu0 %v190
    %2831 = vmatpush1.msra.mxu0 %v189
    %2832 = vmatprep.subr.mxu0 %v200
    %2833 = vmatpush1.msra.mxu0 %v199
    %2834 = vmatprep.subr.mxu0 %v210
    %2835 = vmatpush1.msra.mxu0 %v209
    %2836 = vmatprep.subr.mxu0 %v220
    %2837 = vmatpush1.msra.mxu0 %v219
    %2838 = vmatprep.subr.mxu0 %v230
    %2839 = vmatpush1.msra.mxu0 %v229
    %2840 = vmatprep.subr.mxu0 %v240
    %2841 = vmatpush1.msra.mxu0 %v239
    %2842 = vmatprep.subr.mxu0 %v250
    %2843 = vmatpush1.msra.mxu0 %v249
    %2844 = vmatprep.subr.mxu0 %v260
    %2845 = vmatpush1.msra.mxu0 %v259
    %2846 = vmatprep.subr.mxu0 %v270
    %2847 = vmatpush1.msra.mxu0 %v269
    %2848 = vmatprep.subr.mxu0 %v280
    %2849 = vmatpush1.msra.mxu0 %v279
    %2850 = vmatprep.subr.mxu0 %v290
    %2851 = vmatpush1.msra.mxu0 %v289
    %2852 = vmatprep.subr.mxu0 %v300
    %2853 = vmatpush1.msra.mxu0 %v299
    %2854 = vmatprep.subr.mxu0 %v310
    %2855 = vmatpush1.msra.mxu0 %v309
    %2856 = vmatprep.subr.mxu0 %v320
    %2857 = vmatpush1.msra.mxu0 %v319
    %2858 = vmatprep.subr.mxu0 %v330
    %2859 = vmatpush1.msra.mxu0 %v329
    %2860 = vmatprep.subr.mxu0 %v340
    %2861 = vmatpush1.msra.mxu0 %v339
    %2862 = vmatprep.subr.mxu0 %v350
    %2863 = vmatpush1.msra.mxu0 %v349
    %2864 = vmatprep.subr.mxu0 %v360
    %2865 = vmatpush1.msra.mxu0 %v359
    %2866 = vmatprep.subr.mxu0 %v370
    %2867 = vmatpush1.msra.mxu0 %v369
    %2868 = vmatprep.subr.mxu0 %v380
    %2869 = vmatpush1.msra.mxu0 %v379
    %2870 = vmatprep.subr.mxu0 %v390
    %2871 = vmatpush1.msra.mxu0 %v389
    %2872 = vmatprep.subr.mxu0 %v400
    %2873 = vmatpush1.msra.mxu0 %v399
    %2874 = vmatprep.subr.mxu0 %v410
    %2875 = vmatpush1.msra.mxu0 %v409
    %2876 = vmatprep.mubr.f32.mxu0 %v84
    %2877 = vmatmul.mubr.f32.gmra.mrb[0].mxu0 %v83
    %v2878 = vpop.f32.mrb[0].mxu0
    %v2879 = vadd.f32 %v1724, %v2878
    %v2880 = vpop.f32.mrb[0].mxu0
    %v2881 = vadd.f32 %v1728, %v2880
    %2882 = vdwg.mxu0
    %2883 = vmatprep.subr.mxu0 %v420
    %2884 = vmatpush1.msra.mxu0 %v419
    %2885 = vmatprep.subr.mxu0 %v430
    %2886 = vmatpush1.msra.mxu0 %v429
    %2887 = vmatprep.subr.mxu0 %v440
    %2888 = vmatpush1.msra.mxu0 %v439
    %2889 = vmatprep.subr.mxu0 %v450
    %2890 = vmatpush1.msra.mxu0 %v449
    %2891 = vmatprep.subr.mxu0 %v460
    %2892 = vmatpush1.msra.mxu0 %v459
    %2893 = vmatprep.subr.mxu0 %v470
    %2894 = vmatpush1.msra.mxu0 %v469
    %2895 = vmatprep.subr.mxu0 %v480
    %2896 = vmatpush1.msra.mxu0 %v479
    %2897 = vmatprep.subr.mxu0 %v490
    %2898 = vmatpush1.msra.mxu0 %v489
    %2899 = vmatprep.subr.mxu0 %v500
    %2900 = vmatpush1.msra.mxu0 %v499
    %2901 = vmatprep.subr.mxu0 %v510
    %2902 = vmatpush1.msra.mxu0 %v509
    %2903 = vmatprep.subr.mxu0 %v520
    %2904 = vmatpush1.msra.mxu0 %v519
    %2905 = vmatprep.subr.mxu0 %v530
    %2906 = vmatpush1.msra.mxu0 %v529
    %2907 = vmatprep.subr.mxu0 %v540
    %2908 = vmatpush1.msra.mxu0 %v539
    %2909 = vmatprep.subr.mxu0 %v550
    %2910 = vmatpush1.msra.mxu0 %v549
    %2911 = vmatprep.subr.mxu0 %v560
    %2912 = vmatpush1.msra.mxu0 %v559
    %2913 = vmatprep.subr.mxu0 %v570
    %2914 = vmatpush1.msra.mxu0 %v569
    %2915 = vmatprep.subr.mxu0 %v580
    %2916 = vmatpush1.msra.mxu0 %v579
    %2917 = vmatprep.subr.mxu0 %v590
    %2918 = vmatpush1.msra.mxu0 %v589
    %2919 = vmatprep.subr.mxu0 %v600
    %2920 = vmatpush1.msra.mxu0 %v599
    %2921 = vmatprep.subr.mxu0 %v610
    %2922 = vmatpush1.msra.mxu0 %v609
    %2923 = vmatprep.subr.mxu0 %v620
    %2924 = vmatpush1.msra.mxu0 %v619
    %2925 = vmatprep.subr.mxu0 %v630
    %2926 = vmatpush1.msra.mxu0 %v629
    %2927 = vmatprep.subr.mxu0 %v640
    %2928 = vmatpush1.msra.mxu0 %v639
    %2929 = vmatprep.subr.mxu0 %v650
    %2930 = vmatpush1.msra.mxu0 %v649
    %2931 = vmatprep.subr.mxu0 %v660
    %2932 = vmatpush1.msra.mxu0 %v659
    %2933 = vmatprep.subr.mxu0 %v670
    %2934 = vmatpush1.msra.mxu0 %v669
    %2935 = vmatprep.subr.mxu0 %v680
    %2936 = vmatpush1.msra.mxu0 %v679
    %2937 = vmatprep.subr.mxu0 %v690
    %2938 = vmatpush1.msra.mxu0 %v689
    %2939 = vmatprep.subr.mxu0 %v700
    %2940 = vmatpush1.msra.mxu0 %v699
    %2941 = vmatprep.subr.mxu0 %v710
    %2942 = vmatpush1.msra.mxu0 %v709
    %2943 = vmatprep.subr.mxu0 %v720
    %2944 = vmatpush1.msra.mxu0 %v719
    %2945 = vmatprep.subr.mxu0 %v730
    %2946 = vmatpush1.msra.mxu0 %v729
    %2947 = vmatprep.mubr.f32.mxu0 %v86
    %2948 = vmatmul.mubr.f32.gmra.mrb[0].mxu0 %v85
    %v2949 = vpop.f32.mrb[0].mxu0
    %v2950 = vadd.f32 %v2879, %v2949
    %v2951 = vpop.f32.mrb[0].mxu0
    %v2952 = vadd.f32 %v2881, %v2951
    %2953 = vdwg.mxu0
    %2954 = vmatprep.subr.mxu0 %v740
    %2955 = vmatpush1.msra.mxu0 %v739
    %2956 = vmatprep.subr.mxu0 %v750
    %2957 = vmatpush1.msra.mxu0 %v749
    %2958 = vmatprep.subr.mxu0 %v760
    %2959 = vmatpush1.msra.mxu0 %v759
    %2960 = vmatprep.subr.mxu0 %v770
    %2961 = vmatpush1.msra.mxu0 %v769
    %2962 = vmatprep.subr.mxu0 %v780
    %2963 = vmatpush1.msra.mxu0 %v779
    %2964 = vmatprep.subr.mxu0 %v790
    %2965 = vmatpush1.msra.mxu0 %v789
    %2966 = vmatprep.subr.mxu0 %v800
    %2967 = vmatpush1.msra.mxu0 %v799
    %2968 = vmatprep.subr.mxu0 %v810
    %2969 = vmatpush1.msra.mxu0 %v809
    %2970 = vmatprep.subr.mxu0 %v820
    %2971 = vmatpush1.msra.mxu0 %v819
    %2972 = vmatprep.subr.mxu0 %v830
    %2973 = vmatpush1.msra.mxu0 %v829
    %2974 = vmatprep.subr.mxu0 %v840
    %2975 = vmatpush1.msra.mxu0 %v839
    %2976 = vmatprep.subr.mxu0 %v850
    %2977 = vmatpush1.msra.mxu0 %v849
    %2978 = vmatprep.subr.mxu0 %v860
    %2979 = vmatpush1.msra.mxu0 %v859
    %2980 = vmatprep.subr.mxu0 %v870
    %2981 = vmatpush1.msra.mxu0 %v869
    %2982 = vmatprep.subr.mxu0 %v880
    %2983 = vmatpush1.msra.mxu0 %v879
    %2984 = vmatprep.subr.mxu0 %v890
    %2985 = vmatpush1.msra.mxu0 %v889
    %2986 = vmatprep.subr.mxu0 %v900
    %2987 = vmatpush1.msra.mxu0 %v899
    %2988 = vmatprep.subr.mxu0 %v910
    %2989 = vmatpush1.msra.mxu0 %v909
    %2990 = vmatprep.subr.mxu0 %v920
    %2991 = vmatpush1.msra.mxu0 %v919
    %2992 = vmatprep.subr.mxu0 %v930
    %2993 = vmatpush1.msra.mxu0 %v929
    %2994 = vmatprep.subr.mxu0 %v940
    %2995 = vmatpush1.msra.mxu0 %v939
    %2996 = vmatprep.subr.mxu0 %v950
    %2997 = vmatpush1.msra.mxu0 %v949
    %2998 = vmatprep.subr.mxu0 %v960
    %2999 = vmatpush1.msra.mxu0 %v959
    %3000 = vmatprep.subr.mxu0 %v970
    %3001 = vmatpush1.msra.mxu0 %v969
    %3002 = vmatprep.subr.mxu0 %v980
    %3003 = vmatpush1.msra.mxu0 %v979
    %3004 = vmatprep.subr.mxu0 %v990
    %3005 = vmatpush1.msra.mxu0 %v989
    %3006 = vmatprep.subr.mxu0 %v1000
    %3007 = vmatpush1.msra.mxu0 %v999
    %3008 = vmatprep.subr.mxu0 %v1010
    %3009 = vmatpush1.msra.mxu0 %v1009
    %3010 = vmatprep.subr.mxu0 %v1020
    %3011 = vmatpush1.msra.mxu0 %v1019
    %3012 = vmatprep.subr.mxu0 %v1030
    %3013 = vmatpush1.msra.mxu0 %v1029
    %3014 = vmatprep.subr.mxu0 %v1040
    %3015 = vmatpush1.msra.mxu0 %v1039
    %3016 = vmatprep.subr.mxu0 %v1050
    %3017 = vmatpush1.msra.mxu0 %v1049
    %3018 = vmatprep.mubr.f32.mxu0 %v88
    %3019 = vmatmul.mubr.f32.gmra.mrb[0].mxu0 %v87
    %v3020 = vpop.f32.mrb[0].mxu0
    %v3021 = vadd.f32 %v2950, %v3020
    %v3022 = vpop.f32.mrb[0].mxu0
    %v3023 = vadd.f32 %v2952, %v3022
    %3024 = vdwg.mxu0
    %3025 = vmatprep.subr.mxu0 %v1060
    %3026 = vmatpush1.msra.mxu0 %v1059
    %3027 = vmatprep.subr.mxu0 %v1070
    %3028 = vmatpush1.msra.mxu0 %v1069
    %3029 = vmatprep.subr.mxu0 %v1080
    %3030 = vmatpush1.msra.mxu0 %v1079
    %3031 = vmatprep.subr.mxu0 %v1090
    %3032 = vmatpush1.msra.mxu0 %v1089
    %3033 = vmatprep.subr.mxu0 %v1100
    %3034 = vmatpush1.msra.mxu0 %v1099
    %3035 = vmatprep.subr.mxu0 %v1110
    %3036 = vmatpush1.msra.mxu0 %v1109
    %3037 = vmatprep.subr.mxu0 %v1120
    %3038 = vmatpush1.msra.mxu0 %v1119
    %3039 = vmatprep.subr.mxu0 %v1130
    %3040 = vmatpush1.msra.mxu0 %v1129
    %3041 = vmatprep.subr.mxu0 %v1140
    %3042 = vmatpush1.msra.mxu0 %v1139
    %3043 = vmatprep.subr.mxu0 %v1150
    %3044 = vmatpush1.msra.mxu0 %v1149
    %3045 = vmatprep.subr.mxu0 %v1160
    %3046 = vmatpush1.msra.mxu0 %v1159
    %3047 = vmatprep.subr.mxu0 %v1170
    %3048 = vmatpush1.msra.mxu0 %v1169
    %3049 = vmatprep.subr.mxu0 %v1180
    %3050 = vmatpush1.msra.mxu0 %v1179
    %3051 = vmatprep.subr.mxu0 %v1190
    %3052 = vmatpush1.msra.mxu0 %v1189
    %3053 = vmatprep.subr.mxu0 %v1200
    %3054 = vmatpush1.msra.mxu0 %v1199
    %3055 = vmatprep.subr.mxu0 %v1210
    %3056 = vmatpush1.msra.mxu0 %v1209
    %3057 = vmatprep.subr.mxu0 %v1220
    %3058 = vmatpush1.msra.mxu0 %v1219
    %3059 = vmatprep.subr.mxu0 %v1230
    %3060 = vmatpush1.msra.mxu0 %v1229
    %3061 = vmatprep.subr.mxu0 %v1240
    %3062 = vmatpush1.msra.mxu0 %v1239
    %3063 = vmatprep.subr.mxu0 %v1250
    %3064 = vmatpush1.msra.mxu0 %v1249
    %3065 = vmatprep.subr.mxu0 %v1260
    %3066 = vmatpush1.msra.mxu0 %v1259
    %3067 = vmatprep.subr.mxu0 %v1270
    %3068 = vmatpush1.msra.mxu0 %v1269
    %3069 = vmatprep.subr.mxu0 %v1280
    %3070 = vmatpush1.msra.mxu0 %v1279
    %3071 = vmatprep.subr.mxu0 %v1290
    %3072 = vmatpush1.msra.mxu0 %v1289
    %3073 = vmatprep.subr.mxu0 %v1300
    %3074 = vmatpush1.msra.mxu0 %v1299
    %3075 = vmatprep.subr.mxu0 %v1310
    %3076 = vmatpush1.msra.mxu0 %v1309
    %3077 = vmatprep.subr.mxu0 %v1320
    %3078 = vmatpush1.msra.mxu0 %v1319
    %3079 = vmatprep.subr.mxu0 %v1330
    %3080 = vmatpush1.msra.mxu0 %v1329
    %3081 = vmatprep.subr.mxu0 %v1340
    %3082 = vmatpush1.msra.mxu0 %v1339
    %3083 = vmatprep.subr.mxu0 %v1350
    %3084 = vmatpush1.msra.mxu0 %v1349
    %3085 = vmatprep.subr.mxu0 %v1360
    %3086 = vmatpush1.msra.mxu0 %v1359
    %3087 = vmatprep.subr.mxu0 %v1370
    %3088 = vmatpush1.msra.mxu0 %v1369
    %3089 = vmatprep.mubr.f32.mxu0 %v90
    %3090 = vmatmul.mubr.f32.gmra.mrb[0].mxu0 %v89
    %v3091 = vpop.f32.mrb[0].mxu0
    %v3092 = vadd.f32 %v3021, %v3091
    %v3093 = vpop.f32.mrb[0].mxu0
    %v3094 = vadd.f32 %v3023, %v3093
    %3095 = vdwg.mxu0
    %3096 = vmatprep.subr.mxu0 %v1380
    %3097 = vmatpush1.msra.mxu0 %v1379
    %3098 = vmatprep.subr.mxu0 %v1390
    %3099 = vmatpush1.msra.mxu0 %v1389
    %3100 = vmatprep.subr.mxu0 %v1400
    %3101 = vmatpush1.msra.mxu0 %v1399
    %3102 = vmatprep.subr.mxu0 %v1410
    %3103 = vmatpush1.msra.mxu0 %v1409
    %3104 = vmatprep.subr.mxu0 %v1420
    %3105 = vmatpush1.msra.mxu0 %v1419
    %3106 = vmatprep.subr.mxu0 %v1430
    %3107 = vmatpush1.msra.mxu0 %v1429
    %3108 = vmatprep.subr.mxu0 %v1440
    %3109 = vmatpush1.msra.mxu0 %v1439
    %3110 = vmatprep.subr.mxu0 %v1450
    %3111 = vmatpush1.msra.mxu0 %v1449
    %3112 = vmatprep.subr.mxu0 %v1460
    %3113 = vmatpush1.msra.mxu0 %v1459
    %3114 = vmatprep.subr.mxu0 %v1470
    %3115 = vmatpush1.msra.mxu0 %v1469
    %3116 = vmatprep.subr.mxu0 %v1480
    %3117 = vmatpush1.msra.mxu0 %v1479
    %3118 = vmatprep.subr.mxu0 %v1490
    %3119 = vmatpush1.msra.mxu0 %v1489
    %3120 = vmatprep.subr.mxu0 %v1500
    %3121 = vmatpush1.msra.mxu0 %v1499
    %3122 = vmatprep.subr.mxu0 %v1510
    %3123 = vmatpush1.msra.mxu0 %v1509
    %3124 = vmatprep.subr.mxu0 %v1520
    %3125 = vmatpush1.msra.mxu0 %v1519
    %3126 = vmatprep.subr.mxu0 %v1530
    %3127 = vmatpush1.msra.mxu0 %v1529
    %3128 = vmatprep.subr.mxu0 %v1540
    %3129 = vmatpush1.msra.mxu0 %v1539
    %3130 = vmatprep.subr.mxu0 %v1550
    %3131 = vmatpush1.msra.mxu0 %v1549
    %3132 = vmatprep.subr.mxu0 %v1560
    %3133 = vmatpush1.msra.mxu0 %v1559
    %3134 = vmatprep.subr.mxu0 %v1570
    %3135 = vmatpush1.msra.mxu0 %v1569
    %3136 = vmatprep.subr.mxu0 %v1580
    %3137 = vmatpush1.msra.mxu0 %v1579
    %3138 = vmatprep.subr.mxu0 %v1590
    %3139 = vmatpush1.msra.mxu0 %v1589
    %3140 = vmatprep.subr.mxu0 %v1600
    %3141 = vmatpush1.msra.mxu0 %v1599
    %3142 = vmatprep.subr.mxu0 %v1610
    %3143 = vmatpush1.msra.mxu0 %v1609
    %3144 = vmatprep.subr.mxu0 %v1620
    %3145 = vmatpush1.msra.mxu0 %v1619
    %3146 = vmatprep.subr.mxu0 %v1630
    %3147 = vmatpush1.msra.mxu0 %v1629
    %3148 = vmatprep.subr.mxu0 %v1640
    %3149 = vmatpush1.msra.mxu0 %v1639
    %3150 = vmatprep.subr.mxu0 %v1650
    %3151 = vmatpush1.msra.mxu0 %v1649
    %3152 = vmatprep.subr.mxu0 %v1660
    %3153 = vmatpush1.msra.mxu0 %v1659
    %3154 = vmatprep.subr.mxu0 %v1670
    %3155 = vmatpush1.msra.mxu0 %v1669
    %3156 = vmatprep.subr.mxu0 %v1680
    %3157 = vmatpush1.msra.mxu0 %v1679
    %3158 = vmatprep.subr.mxu0 %v1690
    %3159 = vmatpush1.msra.mxu0 %v1689
    %3160 = vmatprep.mubr.f32.mxu0 %v92
    %3161 = vmatmul.mubr.f32.gmra.mrb[0].mxu0 %v91
    %v3162 = vpop.f32.mrb[0].mxu0
    %v3163 = vadd.f32 %v3092, %v3162
    %v3164 = vpop.f32.mrb[0].mxu0
    %v3165 = vadd.f32 %v3094, %v3164
    %3166 = vdwg.mxu0
    %3167 = vmatprep.subr.mxu0 %v102
    %3168 = vmatpush1.msra.mxu0 %v101
    %3169 = vmatprep.subr.mxu0 %v112
    %3170 = vmatpush1.msra.mxu0 %v111
    %3171 = vmatprep.subr.mxu0 %v122
    %3172 = vmatpush1.msra.mxu0 %v121
    %3173 = vmatprep.subr.mxu0 %v132
    %3174 = vmatpush1.msra.mxu0 %v131
    %3175 = vmatprep.subr.mxu0 %v142
    %3176 = vmatpush1.msra.mxu0 %v141
    %3177 = vmatprep.subr.mxu0 %v152
    %3178 = vmatpush1.msra.mxu0 %v151
    %3179 = vmatprep.subr.mxu0 %v162
    %3180 = vmatpush1.msra.mxu0 %v161
    %3181 = vmatprep.subr.mxu0 %v172
    %3182 = vmatpush1.msra.mxu0 %v171
    %3183 = vmatprep.subr.mxu0 %v182
    %3184 = vmatpush1.msra.mxu0 %v181
    %3185 = vmatprep.subr.mxu0 %v192
    %3186 = vmatpush1.msra.mxu0 %v191
    %3187 = vmatprep.subr.mxu0 %v202
    %3188 = vmatpush1.msra.mxu0 %v201
    %3189 = vmatprep.subr.mxu0 %v212
    %3190 = vmatpush1.msra.mxu0 %v211
    %3191 = vmatprep.subr.mxu0 %v222
    %3192 = vmatpush1.msra.mxu0 %v221
    %3193 = vmatprep.subr.mxu0 %v232
    %3194 = vmatpush1.msra.mxu0 %v231
    %3195 = vmatprep.subr.mxu0 %v242
    %3196 = vmatpush1.msra.mxu0 %v241
    %3197 = vmatprep.subr.mxu0 %v252
    %3198 = vmatpush1.msra.mxu0 %v251
    %3199 = vmatprep.subr.mxu0 %v262
    %3200 = vmatpush1.msra.mxu0 %v261
    %3201 = vmatprep.subr.mxu0 %v272
    %3202 = vmatpush1.msra.mxu0 %v271
    %3203 = vmatprep.subr.mxu0 %v282
    %3204 = vmatpush1.msra.mxu0 %v281
    %3205 = vmatprep.subr.mxu0 %v292
    %3206 = vmatpush1.msra.mxu0 %v291
    %3207 = vmatprep.subr.mxu0 %v302
    %3208 = vmatpush1.msra.mxu0 %v301
    %3209 = vmatprep.subr.mxu0 %v312
    %3210 = vmatpush1.msra.mxu0 %v311
    %3211 = vmatprep.subr.mxu0 %v322
    %3212 = vmatpush1.msra.mxu0 %v321
    %3213 = vmatprep.subr.mxu0 %v332
    %3214 = vmatpush1.msra.mxu0 %v331
    %3215 = vmatprep.subr.mxu0 %v342
    %3216 = vmatpush1.msra.mxu0 %v341
    %3217 = vmatprep.subr.mxu0 %v352
    %3218 = vmatpush1.msra.mxu0 %v351
    %3219 = vmatprep.subr.mxu0 %v362
    %3220 = vmatpush1.msra.mxu0 %v361
    %3221 = vmatprep.subr.mxu0 %v372
    %3222 = vmatpush1.msra.mxu0 %v371
    %3223 = vmatprep.subr.mxu0 %v382
    %3224 = vmatpush1.msra.mxu0 %v381
    %3225 = vmatprep.subr.mxu0 %v392
    %3226 = vmatpush1.msra.mxu0 %v391
    %3227 = vmatprep.subr.mxu0 %v402
    %3228 = vmatpush1.msra.mxu0 %v401
    %3229 = vmatprep.subr.mxu0 %v412
    %3230 = vmatpush1.msra.mxu0 %v411
    %3231 = vmatprep.mubr.f32.mxu0 %v84
    %3232 = vmatmul.mubr.f32.gmra.mrb[0].mxu0 %v83
    %v3233 = vpop.f32.mrb[0].mxu0
    %v3234 = vadd.f32 %v1732, %v3233
    %v3235 = vpop.f32.mrb[0].mxu0
    %v3236 = vadd.f32 %v1736, %v3235
    %3237 = vdwg.mxu0
    %3238 = vmatprep.subr.mxu0 %v422
    %3239 = vmatpush1.msra.mxu0 %v421
    %3240 = vmatprep.subr.mxu0 %v432
    %3241 = vmatpush1.msra.mxu0 %v431
    %3242 = vmatprep.subr.mxu0 %v442
    %3243 = vmatpush1.msra.mxu0 %v441
    %3244 = vmatprep.subr.mxu0 %v452
    %3245 = vmatpush1.msra.mxu0 %v451
    %3246 = vmatprep.subr.mxu0 %v462
    %3247 = vmatpush1.msra.mxu0 %v461
    %3248 = vmatprep.subr.mxu0 %v472
    %3249 = vmatpush1.msra.mxu0 %v471
    %3250 = vmatprep.subr.mxu0 %v482
    %3251 = vmatpush1.msra.mxu0 %v481
    %3252 = vmatprep.subr.mxu0 %v492
    %3253 = vmatpush1.msra.mxu0 %v491
    %3254 = vmatprep.subr.mxu0 %v502
    %3255 = vmatpush1.msra.mxu0 %v501
    %3256 = vmatprep.subr.mxu0 %v512
    %3257 = vmatpush1.msra.mxu0 %v511
    %3258 = vmatprep.subr.mxu0 %v522
    %3259 = vmatpush1.msra.mxu0 %v521
    %3260 = vmatprep.subr.mxu0 %v532
    %3261 = vmatpush1.msra.mxu0 %v531
    %3262 = vmatprep.subr.mxu0 %v542
    %3263 = vmatpush1.msra.mxu0 %v541
    %3264 = vmatprep.subr.mxu0 %v552
    %3265 = vmatpush1.msra.mxu0 %v551
    %3266 = vmatprep.subr.mxu0 %v562
    %3267 = vmatpush1.msra.mxu0 %v561
    %3268 = vmatprep.subr.mxu0 %v572
    %3269 = vmatpush1.msra.mxu0 %v571
    %3270 = vmatprep.subr.mxu0 %v582
    %3271 = vmatpush1.msra.mxu0 %v581
    %3272 = vmatprep.subr.mxu0 %v592
    %3273 = vmatpush1.msra.mxu0 %v591
    %3274 = vmatprep.subr.mxu0 %v602
    %3275 = vmatpush1.msra.mxu0 %v601
    %3276 = vmatprep.subr.mxu0 %v612
    %3277 = vmatpush1.msra.mxu0 %v611
    %3278 = vmatprep.subr.mxu0 %v622
    %3279 = vmatpush1.msra.mxu0 %v621
    %3280 = vmatprep.subr.mxu0 %v632
    %3281 = vmatpush1.msra.mxu0 %v631
    %3282 = vmatprep.subr.mxu0 %v642
    %3283 = vmatpush1.msra.mxu0 %v641
    %3284 = vmatprep.subr.mxu0 %v652
    %3285 = vmatpush1.msra.mxu0 %v651
    %3286 = vmatprep.subr.mxu0 %v662
    %3287 = vmatpush1.msra.mxu0 %v661
    %3288 = vmatprep.subr.mxu0 %v672
    %3289 = vmatpush1.msra.mxu0 %v671
    %3290 = vmatprep.subr.mxu0 %v682
    %3291 = vmatpush1.msra.mxu0 %v681
    %3292 = vmatprep.subr.mxu0 %v692
    %3293 = vmatpush1.msra.mxu0 %v691
    %3294 = vmatprep.subr.mxu0 %v702
    %3295 = vmatpush1.msra.mxu0 %v701
    %3296 = vmatprep.subr.mxu0 %v712
    %3297 = vmatpush1.msra.mxu0 %v711
    %3298 = vmatprep.subr.mxu0 %v722
    %3299 = vmatpush1.msra.mxu0 %v721
    %3300 = vmatprep.subr.mxu0 %v732
    %3301 = vmatpush1.msra.mxu0 %v731
    %3302 = vmatprep.mubr.f32.mxu0 %v86
    %3303 = vmatmul.mubr.f32.gmra.mrb[0].mxu0 %v85
    %v3304 = vpop.f32.mrb[0].mxu0
    %v3305 = vadd.f32 %v3234, %v3304
    %v3306 = vpop.f32.mrb[0].mxu0
    %v3307 = vadd.f32 %v3236, %v3306
    %3308 = vdwg.mxu0
    %3309 = vmatprep.subr.mxu0 %v742
    %3310 = vmatpush1.msra.mxu0 %v741
    %3311 = vmatprep.subr.mxu0 %v752
    %3312 = vmatpush1.msra.mxu0 %v751
    %3313 = vmatprep.subr.mxu0 %v762
    %3314 = vmatpush1.msra.mxu0 %v761
    %3315 = vmatprep.subr.mxu0 %v772
    %3316 = vmatpush1.msra.mxu0 %v771
    %3317 = vmatprep.subr.mxu0 %v782
    %3318 = vmatpush1.msra.mxu0 %v781
    %3319 = vmatprep.subr.mxu0 %v792
    %3320 = vmatpush1.msra.mxu0 %v791
    %3321 = vmatprep.subr.mxu0 %v802
    %3322 = vmatpush1.msra.mxu0 %v801
    %3323 = vmatprep.subr.mxu0 %v812
    %3324 = vmatpush1.msra.mxu0 %v811
    %3325 = vmatprep.subr.mxu0 %v822
    %3326 = vmatpush1.msra.mxu0 %v821
    %3327 = vmatprep.subr.mxu0 %v832
    %3328 = vmatpush1.msra.mxu0 %v831
    %3329 = vmatprep.subr.mxu0 %v842
    %3330 = vmatpush1.msra.mxu0 %v841
    %3331 = vmatprep.subr.mxu0 %v852
    %3332 = vmatpush1.msra.mxu0 %v851
    %3333 = vmatprep.subr.mxu0 %v862
    %3334 = vmatpush1.msra.mxu0 %v861
    %3335 = vmatprep.subr.mxu0 %v872
    %3336 = vmatpush1.msra.mxu0 %v871
    %3337 = vmatprep.subr.mxu0 %v882
    %3338 = vmatpush1.msra.mxu0 %v881
    %3339 = vmatprep.subr.mxu0 %v892
    %3340 = vmatpush1.msra.mxu0 %v891
    %3341 = vmatprep.subr.mxu0 %v902
    %3342 = vmatpush1.msra.mxu0 %v901
    %3343 = vmatprep.subr.mxu0 %v912
    %3344 = vmatpush1.msra.mxu0 %v911
    %3345 = vmatprep.subr.mxu0 %v922
    %3346 = vmatpush1.msra.mxu0 %v921
    %3347 = vmatprep.subr.mxu0 %v932
    %3348 = vmatpush1.msra.mxu0 %v931
    %3349 = vmatprep.subr.mxu0 %v942
    %3350 = vmatpush1.msra.mxu0 %v941
    %3351 = vmatprep.subr.mxu0 %v952
    %3352 = vmatpush1.msra.mxu0 %v951
    %3353 = vmatprep.subr.mxu0 %v962
    %3354 = vmatpush1.msra.mxu0 %v961
    %3355 = vmatprep.subr.mxu0 %v972
    %3356 = vmatpush1.msra.mxu0 %v971
    %3357 = vmatprep.subr.mxu0 %v982
    %3358 = vmatpush1.msra.mxu0 %v981
    %3359 = vmatprep.subr.mxu0 %v992
    %3360 = vmatpush1.msra.mxu0 %v991
    %3361 = vmatprep.subr.mxu0 %v1002
    %3362 = vmatpush1.msra.mxu0 %v1001
    %3363 = vmatprep.subr.mxu0 %v1012
    %3364 = vmatpush1.msra.mxu0 %v1011
    %3365 = vmatprep.subr.mxu0 %v1022
    %3366 = vmatpush1.msra.mxu0 %v1021
    %3367 = vmatprep.subr.mxu0 %v1032
    %3368 = vmatpush1.msra.mxu0 %v1031
    %3369 = vmatprep.subr.mxu0 %v1042
    %3370 = vmatpush1.msra.mxu0 %v1041
    %3371 = vmatprep.subr.mxu0 %v1052
    %3372 = vmatpush1.msra.mxu0 %v1051
    %3373 = vmatprep.mubr.f32.mxu0 %v88
    %3374 = vmatmul.mubr.f32.gmra.mrb[0].mxu0 %v87
    %v3375 = vpop.f32.mrb[0].mxu0
    %v3376 = vadd.f32 %v3305, %v3375
    %v3377 = vpop.f32.mrb[0].mxu0
    %v3378 = vadd.f32 %v3307, %v3377
    %3379 = vdwg.mxu0
    %3380 = vmatprep.subr.mxu0 %v1062
    %3381 = vmatpush1.msra.mxu0 %v1061
    %3382 = vmatprep.subr.mxu0 %v1072
    %3383 = vmatpush1.msra.mxu0 %v1071
    %3384 = vmatprep.subr.mxu0 %v1082
    %3385 = vmatpush1.msra.mxu0 %v1081
    %3386 = vmatprep.subr.mxu0 %v1092
    %3387 = vmatpush1.msra.mxu0 %v1091
    %3388 = vmatprep.subr.mxu0 %v1102
    %3389 = vmatpush1.msra.mxu0 %v1101
    %3390 = vmatprep.subr.mxu0 %v1112
    %3391 = vmatpush1.msra.mxu0 %v1111
    %3392 = vmatprep.subr.mxu0 %v1122
    %3393 = vmatpush1.msra.mxu0 %v1121
    %3394 = vmatprep.subr.mxu0 %v1132
    %3395 = vmatpush1.msra.mxu0 %v1131
    %3396 = vmatprep.subr.mxu0 %v1142
    %3397 = vmatpush1.msra.mxu0 %v1141
    %3398 = vmatprep.subr.mxu0 %v1152
    %3399 = vmatpush1.msra.mxu0 %v1151
    %3400 = vmatprep.subr.mxu0 %v1162
    %3401 = vmatpush1.msra.mxu0 %v1161
    %3402 = vmatprep.subr.mxu0 %v1172
    %3403 = vmatpush1.msra.mxu0 %v1171
    %3404 = vmatprep.subr.mxu0 %v1182
    %3405 = vmatpush1.msra.mxu0 %v1181
    %3406 = vmatprep.subr.mxu0 %v1192
    %3407 = vmatpush1.msra.mxu0 %v1191
    %3408 = vmatprep.subr.mxu0 %v1202
    %3409 = vmatpush1.msra.mxu0 %v1201
    %3410 = vmatprep.subr.mxu0 %v1212
    %3411 = vmatpush1.msra.mxu0 %v1211
    %3412 = vmatprep.subr.mxu0 %v1222
    %3413 = vmatpush1.msra.mxu0 %v1221
    %3414 = vmatprep.subr.mxu0 %v1232
    %3415 = vmatpush1.msra.mxu0 %v1231
    %3416 = vmatprep.subr.mxu0 %v1242
    %3417 = vmatpush1.msra.mxu0 %v1241
    %3418 = vmatprep.subr.mxu0 %v1252
    %3419 = vmatpush1.msra.mxu0 %v1251
    %3420 = vmatprep.subr.mxu0 %v1262
    %3421 = vmatpush1.msra.mxu0 %v1261
    %3422 = vmatprep.subr.mxu0 %v1272
    %3423 = vmatpush1.msra.mxu0 %v1271
    %3424 = vmatprep.subr.mxu0 %v1282
    %3425 = vmatpush1.msra.mxu0 %v1281
    %3426 = vmatprep.subr.mxu0 %v1292
    %3427 = vmatpush1.msra.mxu0 %v1291
    %3428 = vmatprep.subr.mxu0 %v1302
    %3429 = vmatpush1.msra.mxu0 %v1301
    %3430 = vmatprep.subr.mxu0 %v1312
    %3431 = vmatpush1.msra.mxu0 %v1311
    %3432 = vmatprep.subr.mxu0 %v1322
    %3433 = vmatpush1.msra.mxu0 %v1321
    %3434 = vmatprep.subr.mxu0 %v1332
    %3435 = vmatpush1.msra.mxu0 %v1331
    %3436 = vmatprep.subr.mxu0 %v1342
    %3437 = vmatpush1.msra.mxu0 %v1341
    %3438 = vmatprep.subr.mxu0 %v1352
    %3439 = vmatpush1.msra.mxu0 %v1351
    %3440 = vmatprep.subr.mxu0 %v1362
    %3441 = vmatpush1.msra.mxu0 %v1361
    %3442 = vmatprep.subr.mxu0 %v1372
    %3443 = vmatpush1.msra.mxu0 %v1371
    %3444 = vmatprep.mubr.f32.mxu0 %v90
    %3445 = vmatmul.mubr.f32.gmra.mrb[0].mxu0 %v89
    %v3446 = vpop.f32.mrb[0].mxu0
    %v3447 = vadd.f32 %v3376, %v3446
    %v3448 = vpop.f32.mrb[0].mxu0
    %v3449 = vadd.f32 %v3378, %v3448
    %3450 = vdwg.mxu0
    %3451 = vmatprep.subr.mxu0 %v1382
    %3452 = vmatpush1.msra.mxu0 %v1381
    %3453 = vmatprep.subr.mxu0 %v1392
    %3454 = vmatpush1.msra.mxu0 %v1391
    %3455 = vmatprep.subr.mxu0 %v1402
    %3456 = vmatpush1.msra.mxu0 %v1401
    %3457 = vmatprep.subr.mxu0 %v1412
    %3458 = vmatpush1.msra.mxu0 %v1411
    %3459 = vmatprep.subr.mxu0 %v1422
    %3460 = vmatpush1.msra.mxu0 %v1421
    %3461 = vmatprep.subr.mxu0 %v1432
    %3462 = vmatpush1.msra.mxu0 %v1431
    %3463 = vmatprep.subr.mxu0 %v1442
    %3464 = vmatpush1.msra.mxu0 %v1441
    %3465 = vmatprep.subr.mxu0 %v1452
    %3466 = vmatpush1.msra.mxu0 %v1451
    %3467 = vmatprep.subr.mxu0 %v1462
    %3468 = vmatpush1.msra.mxu0 %v1461
    %3469 = vmatprep.subr.mxu0 %v1472
    %3470 = vmatpush1.msra.mxu0 %v1471
    %3471 = vmatprep.subr.mxu0 %v1482
    %3472 = vmatpush1.msra.mxu0 %v1481
    %3473 = vmatprep.subr.mxu0 %v1492
    %3474 = vmatpush1.msra.mxu0 %v1491
    %3475 = vmatprep.subr.mxu0 %v1502
    %3476 = vmatpush1.msra.mxu0 %v1501
    %3477 = vmatprep.subr.mxu0 %v1512
    %3478 = vmatpush1.msra.mxu0 %v1511
    %3479 = vmatprep.subr.mxu0 %v1522
    %3480 = vmatpush1.msra.mxu0 %v1521
    %3481 = vmatprep.subr.mxu0 %v1532
    %3482 = vmatpush1.msra.mxu0 %v1531
    %3483 = vmatprep.subr.mxu0 %v1542
    %3484 = vmatpush1.msra.mxu0 %v1541
    %3485 = vmatprep.subr.mxu0 %v1552
    %3486 = vmatpush1.msra.mxu0 %v1551
    %3487 = vmatprep.subr.mxu0 %v1562
    %3488 = vmatpush1.msra.mxu0 %v1561
    %3489 = vmatprep.subr.mxu0 %v1572
    %3490 = vmatpush1.msra.mxu0 %v1571
    %3491 = vmatprep.subr.mxu0 %v1582
    %3492 = vmatpush1.msra.mxu0 %v1581
    %3493 = vmatprep.subr.mxu0 %v1592
    %3494 = vmatpush1.msra.mxu0 %v1591
    %3495 = vmatprep.subr.mxu0 %v1602
    %3496 = vmatpush1.msra.mxu0 %v1601
    %3497 = vmatprep.subr.mxu0 %v1612
    %3498 = vmatpush1.msra.mxu0 %v1611
    %3499 = vmatprep.subr.mxu0 %v1622
    %3500 = vmatpush1.msra.mxu0 %v1621
    %3501 = vmatprep.subr.mxu0 %v1632
    %3502 = vmatpush1.msra.mxu0 %v1631
    %3503 = vmatprep.subr.mxu0 %v1642
    %3504 = vmatpush1.msra.mxu0 %v1641
    %3505 = vmatprep.subr.mxu0 %v1652
    %3506 = vmatpush1.msra.mxu0 %v1651
    %3507 = vmatprep.subr.mxu0 %v1662
    %3508 = vmatpush1.msra.mxu0 %v1661
    %3509 = vmatprep.subr.mxu0 %v1672
    %3510 = vmatpush1.msra.mxu0 %v1671
    %3511 = vmatprep.subr.mxu0 %v1682
    %3512 = vmatpush1.msra.mxu0 %v1681
    %3513 = vmatprep.subr.mxu0 %v1692
    %3514 = vmatpush1.msra.mxu0 %v1691
    %3515 = vmatprep.mubr.f32.mxu0 %v92
    %3516 = vmatmul.mubr.f32.gmra.mrb[0].mxu0 %v91
    %v3517 = vpop.f32.mrb[0].mxu0
    %v3518 = vadd.f32 %v3447, %v3517
    %v3519 = vpop.f32.mrb[0].mxu0
    %v3520 = vadd.f32 %v3449, %v3519
    %3521 = vdwg.mxu0
    %v3522 = vmax.f32 %v2098, 0.0
    %v3523 = vmax.f32 %v2100, 0.0
    %v3524 = vmax.f32 %v2453, 0.0
    %v3525 = vmax.f32 %v2455, 0.0
    %v3526 = vmax.f32 %v2808, 0.0
    %v3527 = vmax.f32 %v2810, 0.0
    %v3528 = vmax.f32 %v3163, 0.0
    %v3529 = vmax.f32 %v3165, 0.0
    %v3530 = vmax.f32 %v3518, 0.0
    %v3531 = vmax.f32 %v3520, 0.0
    %v3532 = vld [vmem:[#allocation8] sm:$0xff]
    %v3533 = vld [vmem:[#allocation8 + $0x8] sm:$0xff]
    %v3534 = vld [vmem:[#allocation8 + $0x10] sm:$0xff]
    %v3535 = vld [vmem:[#allocation8 + $0x18] sm:$0xff]
    %v3536 = vld [vmem:[#allocation8 + $0x20] sm:$0xff]
    %v3537 = vld [vmem:[#allocation8 + $0x28] sm:$0xff]
    %v3538 = vld [vmem:[#allocation8 + $0x30] sm:$0xff]
    %v3539 = vld [vmem:[#allocation8 + $0x38] sm:$0xff]
    %v3540 = vld [vmem:[#allocation8 + $0x40] sm:$0xff]
    %v3541 = vld [vmem:[#allocation8 + $0x48] sm:$0xff]
    %v3542 = vld [vmem:[#allocation8 + $0x50] sm:$0xff]
    %v3543 = vld [vmem:[#allocation8 + $0x58] sm:$0xff]
    %v3544 = vld [vmem:[#allocation8 + $0x60] sm:$0xff]
    %v3545 = vld [vmem:[#allocation8 + $0x68] sm:$0xff]
    %v3546 = vld [vmem:[#allocation8 + $0x70] sm:$0xff]
    %v3547 = vld [vmem:[#allocation8 + $0x78] sm:$0xff]
    %v3548 = vld [vmem:[#allocation8 + $0x80] sm:$0xff]
    %v3549 = vld [vmem:[#allocation8 + $0x88] sm:$0xff]
    %v3550 = vld [vmem:[#allocation8 + $0x90] sm:$0xff]
    %v3551 = vld [vmem:[#allocation8 + $0x98] sm:$0xff]
    %v3552 = vld [vmem:[#allocation8 + $0xa0] sm:$0xff]
    %v3553 = vld [vmem:[#allocation8 + $0xa8] sm:$0xff]
    %v3554 = vld [vmem:[#allocation8 + $0xb0] sm:$0xff]
    %v3555 = vld [vmem:[#allocation8 + $0xb8] sm:$0xff]
    %v3556 = vld [vmem:[#allocation8 + $0xc0] sm:$0xff]
    %v3557 = vld [vmem:[#allocation8 + $0xc8] sm:$0xff]
    %v3558 = vld [vmem:[#allocation8 + $0xd0] sm:$0xff]
    %v3559 = vld [vmem:[#allocation8 + $0xd8] sm:$0xff]
    %v3560 = vld [vmem:[#allocation8 + $0xe0] sm:$0xff]
    %v3561 = vld [vmem:[#allocation8 + $0xe8] sm:$0xff]
    %v3562 = vld [vmem:[#allocation8 + $0xf0] sm:$0xff]
    %v3563 = vld [vmem:[#allocation8 + $0xf8] sm:$0xff]
    %v3564 = vld [vmem:[#allocation8 + $0x100] sm:$0xff]
    %v3565 = vld [vmem:[#allocation8 + $0x108] sm:$0xff]
    %v3566 = vld [vmem:[#allocation8 + $0x110] sm:$0xff]
    %v3567 = vld [vmem:[#allocation8 + $0x118] sm:$0xff]
    %v3568 = vld [vmem:[#allocation8 + $0x120] sm:$0xff]
    %v3569 = vld [vmem:[#allocation8 + $0x128] sm:$0xff]
    %v3570 = vld [vmem:[#allocation8 + $0x130] sm:$0xff]
    %v3571 = vld [vmem:[#allocation8 + $0x138] sm:$0xff]
    %v3572 = vld [vmem:[#allocation8 + $0x140] sm:$0xff]
    %v3573 = vld [vmem:[#allocation8 + $0x148] sm:$0xff]
    %v3574 = vld [vmem:[#allocation8 + $0x150] sm:$0xff]
    %v3575 = vld [vmem:[#allocation8 + $0x158] sm:$0xff]
    %v3576 = vld [vmem:[#allocation8 + $0x160] sm:$0xff]
    %v3577 = vld [vmem:[#allocation8 + $0x168] sm:$0xff]
    %v3578 = vld [vmem:[#allocation8 + $0x170] sm:$0xff]
    %v3579 = vld [vmem:[#allocation8 + $0x178] sm:$0xff]
    %v3580 = vld [vmem:[#allocation8 + $0x180] sm:$0xff]
    %v3581 = vld [vmem:[#allocation8 + $0x188] sm:$0xff]
    %v3582 = vld [vmem:[#allocation8 + $0x190] sm:$0xff]
    %v3583 = vld [vmem:[#allocation8 + $0x198] sm:$0xff]
    %v3584 = vld [vmem:[#allocation8 + $0x1a0] sm:$0xff]
    %v3585 = vld [vmem:[#allocation8 + $0x1a8] sm:$0xff]
    %v3586 = vld [vmem:[#allocation8 + $0x1b0] sm:$0xff]
    %v3587 = vld [vmem:[#allocation8 + $0x1b8] sm:$0xff]
    %v3588 = vld [vmem:[#allocation8 + $0x1c0] sm:$0xff]
    %v3589 = vld [vmem:[#allocation8 + $0x1c8] sm:$0xff]
    %v3590 = vld [vmem:[#allocation8 + $0x1d0] sm:$0xff]
    %v3591 = vld [vmem:[#allocation8 + $0x1d8] sm:$0xff]
    %v3592 = vld [vmem:[#allocation8 + $0x1e0] sm:$0xff]
    %v3593 = vld [vmem:[#allocation8 + $0x1e8] sm:$0xff]
    %v3594 = vld [vmem:[#allocation8 + $0x1f0] sm:$0xff]
    %v3595 = vld [vmem:[#allocation8 + $0x1f8] sm:$0xff]
    %v3596 = vld [vmem:[#allocation8 + $0x200] sm:$0xff]
    %v3597 = vld [vmem:[#allocation8 + $0x208] sm:$0xff]
    %v3598 = vld [vmem:[#allocation8 + $0x210] sm:$0xff]
    %v3599 = vld [vmem:[#allocation8 + $0x218] sm:$0xff]
    %v3600 = vld [vmem:[#allocation8 + $0x220] sm:$0xff]
    %v3601 = vld [vmem:[#allocation8 + $0x228] sm:$0xff]
    %v3602 = vld [vmem:[#allocation8 + $0x230] sm:$0xff]
    %v3603 = vld [vmem:[#allocation8 + $0x238] sm:$0xff]
    %v3604 = vld [vmem:[#allocation8 + $0x240] sm:$0xff]
    %v3605 = vld [vmem:[#allocation8 + $0x248] sm:$0xff]
    %v3606 = vld [vmem:[#allocation8 + $0x250] sm:$0xff]
    %v3607 = vld [vmem:[#allocation8 + $0x258] sm:$0xff]
    %v3608 = vld [vmem:[#allocation8 + $0x260] sm:$0xff]
    %v3609 = vld [vmem:[#allocation8 + $0x268] sm:$0xff]
    %v3610 = vld [vmem:[#allocation8 + $0x270] sm:$0xff]
    %v3611 = vld [vmem:[#allocation8 + $0x278] sm:$0xff]
    %v3612 = vld [vmem:[#allocation8 + $0x280] sm:$0xff]
    %v3613 = vld [vmem:[#allocation8 + $0x288] sm:$0xff]
    %v3614 = vld [vmem:[#allocation8 + $0x290] sm:$0xff]
    %v3615 = vld [vmem:[#allocation8 + $0x298] sm:$0xff]
    %v3616 = vld [vmem:[#allocation8 + $0x2a0] sm:$0xff]
    %v3617 = vld [vmem:[#allocation8 + $0x2a8] sm:$0xff]
    %v3618 = vld [vmem:[#allocation8 + $0x2b0] sm:$0xff]
    %v3619 = vld [vmem:[#allocation8 + $0x2b8] sm:$0xff]
    %v3620 = vld [vmem:[#allocation8 + $0x2c0] sm:$0xff]
    %v3621 = vld [vmem:[#allocation8 + $0x2c8] sm:$0xff]
    %v3622 = vld [vmem:[#allocation8 + $0x2d0] sm:$0xff]
    %v3623 = vld [vmem:[#allocation8 + $0x2d8] sm:$0xff]
    %v3624 = vld [vmem:[#allocation8 + $0x2e0] sm:$0xff]
    %v3625 = vld [vmem:[#allocation8 + $0x2e8] sm:$0xff]
    %v3626 = vld [vmem:[#allocation8 + $0x2f0] sm:$0xff]
    %v3627 = vld [vmem:[#allocation8 + $0x2f8] sm:$0xff]
    %v3628 = vld [vmem:[#allocation8 + $0x300] sm:$0xff]
    %v3629 = vld [vmem:[#allocation8 + $0x308] sm:$0xff]
    %v3630 = vld [vmem:[#allocation8 + $0x310] sm:$0xff]
    %v3631 = vld [vmem:[#allocation8 + $0x318] sm:$0xff]
    %v3632 = vld [vmem:[#allocation8 + $0x320] sm:$0xff]
    %v3633 = vld [vmem:[#allocation8 + $0x328] sm:$0xff]
    %v3634 = vld [vmem:[#allocation8 + $0x330] sm:$0xff]
    %v3635 = vld [vmem:[#allocation8 + $0x338] sm:$0xff]
    %v3636 = vld [vmem:[#allocation8 + $0x340] sm:$0xff]
    %v3637 = vld [vmem:[#allocation8 + $0x348] sm:$0xff]
    %v3638 = vld [vmem:[#allocation8 + $0x350] sm:$0xff]
    %v3639 = vld [vmem:[#allocation8 + $0x358] sm:$0xff]
    %v3640 = vld [vmem:[#allocation8 + $0x360] sm:$0xff]
    %v3641 = vld [vmem:[#allocation8 + $0x368] sm:$0xff]
    %v3642 = vld [vmem:[#allocation8 + $0x370] sm:$0xff]
    %v3643 = vld [vmem:[#allocation8 + $0x378] sm:$0xff]
    %v3644 = vld [vmem:[#allocation8 + $0x380] sm:$0xff]
    %v3645 = vld [vmem:[#allocation8 + $0x388] sm:$0xff]
    %v3646 = vld [vmem:[#allocation8 + $0x390] sm:$0xff]
    %v3647 = vld [vmem:[#allocation8 + $0x398] sm:$0xff]
    %v3648 = vld [vmem:[#allocation8 + $0x3a0] sm:$0xff]
    %v3649 = vld [vmem:[#allocation8 + $0x3a8] sm:$0xff]
    %v3650 = vld [vmem:[#allocation8 + $0x3b0] sm:$0xff]
    %v3651 = vld [vmem:[#allocation8 + $0x3b8] sm:$0xff]
    %v3652 = vld [vmem:[#allocation8 + $0x3c0] sm:$0xff]
    %v3653 = vld [vmem:[#allocation8 + $0x3c8] sm:$0xff]
    %v3654 = vld [vmem:[#allocation8 + $0x3d0] sm:$0xff]
    %v3655 = vld [vmem:[#allocation8 + $0x3d8] sm:$0xff]
    %v3656 = vld [vmem:[#allocation8 + $0x3e0] sm:$0xff]
    %v3657 = vld [vmem:[#allocation8 + $0x3e8] sm:$0xff]
    %v3658 = vld [vmem:[#allocation8 + $0x3f0] sm:$0xff]
    %v3659 = vld [vmem:[#allocation8 + $0x3f8] sm:$0xff]
    %v3660 = vld [vmem:[#allocation8 + $0x400] sm:$0xff]
    %v3661 = vld [vmem:[#allocation8 + $0x408] sm:$0xff]
    %v3662 = vld [vmem:[#allocation8 + $0x410] sm:$0xff]
    %v3663 = vld [vmem:[#allocation8 + $0x418] sm:$0xff]
    %v3664 = vld [vmem:[#allocation8 + $0x420] sm:$0xff]
    %v3665 = vld [vmem:[#allocation8 + $0x428] sm:$0xff]
    %v3666 = vld [vmem:[#allocation8 + $0x430] sm:$0xff]
    %v3667 = vld [vmem:[#allocation8 + $0x438] sm:$0xff]
    %v3668 = vld [vmem:[#allocation8 + $0x440] sm:$0xff]
    %v3669 = vld [vmem:[#allocation8 + $0x448] sm:$0xff]
    %v3670 = vld [vmem:[#allocation8 + $0x450] sm:$0xff]
    %v3671 = vld [vmem:[#allocation8 + $0x458] sm:$0xff]
    %v3672 = vld [vmem:[#allocation8 + $0x460] sm:$0xff]
    %v3673 = vld [vmem:[#allocation8 + $0x468] sm:$0xff]
    %v3674 = vld [vmem:[#allocation8 + $0x470] sm:$0xff]
    %v3675 = vld [vmem:[#allocation8 + $0x478] sm:$0xff]
    %v3676 = vld [vmem:[#allocation8 + $0x480] sm:$0xff]
    %v3677 = vld [vmem:[#allocation8 + $0x488] sm:$0xff]
    %v3678 = vld [vmem:[#allocation8 + $0x490] sm:$0xff]
    %v3679 = vld [vmem:[#allocation8 + $0x498] sm:$0xff]
    %v3680 = vld [vmem:[#allocation8 + $0x4a0] sm:$0xff]
    %v3681 = vld [vmem:[#allocation8 + $0x4a8] sm:$0xff]
    %v3682 = vld [vmem:[#allocation8 + $0x4b0] sm:$0xff]
    %v3683 = vld [vmem:[#allocation8 + $0x4b8] sm:$0xff]
    %v3684 = vld [vmem:[#allocation8 + $0x4c0] sm:$0xff]
    %v3685 = vld [vmem:[#allocation8 + $0x4c8] sm:$0xff]
    %v3686 = vld [vmem:[#allocation8 + $0x4d0] sm:$0xff]
    %v3687 = vld [vmem:[#allocation8 + $0x4d8] sm:$0xff]
    %v3688 = vld [vmem:[#allocation8 + $0x4e0] sm:$0xff]
    %v3689 = vld [vmem:[#allocation8 + $0x4e8] sm:$0xff]
    %v3690 = vld [vmem:[#allocation8 + $0x4f0] sm:$0xff]
    %v3691 = vld [vmem:[#allocation8 + $0x4f8] sm:$0xff]
    %v3692 = vld [vmem:[#allocation8 + $0x500] sm:$0xff]
    %v3693 = vld [vmem:[#allocation8 + $0x508] sm:$0xff]
    %v3694 = vld [vmem:[#allocation8 + $0x510] sm:$0xff]
    %v3695 = vld [vmem:[#allocation8 + $0x518] sm:$0xff]
    %v3696 = vld [vmem:[#allocation8 + $0x520] sm:$0xff]
    %v3697 = vld [vmem:[#allocation8 + $0x528] sm:$0xff]
    %v3698 = vld [vmem:[#allocation8 + $0x530] sm:$0xff]
    %v3699 = vld [vmem:[#allocation8 + $0x538] sm:$0xff]
    %v3700 = vld [vmem:[#allocation8 + $0x540] sm:$0xff]
    %v3701 = vld [vmem:[#allocation8 + $0x548] sm:$0xff]
    %v3702 = vld [vmem:[#allocation8 + $0x550] sm:$0xff]
    %v3703 = vld [vmem:[#allocation8 + $0x558] sm:$0xff]
    %v3704 = vld [vmem:[#allocation8 + $0x560] sm:$0xff]
    %v3705 = vld [vmem:[#allocation8 + $0x568] sm:$0xff]
    %v3706 = vld [vmem:[#allocation8 + $0x570] sm:$0xff]
    %v3707 = vld [vmem:[#allocation8 + $0x578] sm:$0xff]
    %v3708 = vld [vmem:[#allocation8 + $0x580] sm:$0xff]
    %v3709 = vld [vmem:[#allocation8 + $0x588] sm:$0xff]
    %v3710 = vld [vmem:[#allocation8 + $0x590] sm:$0xff]
    %v3711 = vld [vmem:[#allocation8 + $0x598] sm:$0xff]
    %v3712 = vld [vmem:[#allocation8 + $0x5a0] sm:$0xff]
    %v3713 = vld [vmem:[#allocation8 + $0x5a8] sm:$0xff]
    %v3714 = vld [vmem:[#allocation8 + $0x5b0] sm:$0xff]
    %v3715 = vld [vmem:[#allocation8 + $0x5b8] sm:$0xff]
    %v3716 = vld [vmem:[#allocation8 + $0x5c0] sm:$0xff]
    %v3717 = vld [vmem:[#allocation8 + $0x5c8] sm:$0xff]
    %v3718 = vld [vmem:[#allocation8 + $0x5d0] sm:$0xff]
    %v3719 = vld [vmem:[#allocation8 + $0x5d8] sm:$0xff]
    %v3720 = vld [vmem:[#allocation8 + $0x5e0] sm:$0xff]
    %v3721 = vld [vmem:[#allocation8 + $0x5e8] sm:$0xff]
    %v3722 = vld [vmem:[#allocation8 + $0x5f0] sm:$0xff]
    %v3723 = vld [vmem:[#allocation8 + $0x5f8] sm:$0xff]
    %v3724 = vld [vmem:[#allocation8 + $0x600] sm:$0xff]
    %v3725 = vld [vmem:[#allocation8 + $0x608] sm:$0xff]
    %v3726 = vld [vmem:[#allocation8 + $0x610] sm:$0xff]
    %v3727 = vld [vmem:[#allocation8 + $0x618] sm:$0xff]
    %v3728 = vld [vmem:[#allocation8 + $0x620] sm:$0xff]
    %v3729 = vld [vmem:[#allocation8 + $0x628] sm:$0xff]
    %v3730 = vld [vmem:[#allocation8 + $0x630] sm:$0xff]
    %v3731 = vld [vmem:[#allocation8 + $0x638] sm:$0xff]
    %v3732 = vld [vmem:[#allocation8 + $0x640] sm:$0xff]
    %v3733 = vld [vmem:[#allocation8 + $0x648] sm:$0xff]
    %v3734 = vld [vmem:[#allocation8 + $0x650] sm:$0xff]
    %v3735 = vld [vmem:[#allocation8 + $0x658] sm:$0xff]
    %v3736 = vld [vmem:[#allocation8 + $0x660] sm:$0xff]
    %v3737 = vld [vmem:[#allocation8 + $0x668] sm:$0xff]
    %v3738 = vld [vmem:[#allocation8 + $0x670] sm:$0xff]
    %v3739 = vld [vmem:[#allocation8 + $0x678] sm:$0xff]
    %v3740 = vld [vmem:[#allocation8 + $0x680] sm:$0xff]
    %v3741 = vld [vmem:[#allocation8 + $0x688] sm:$0xff]
    %v3742 = vld [vmem:[#allocation8 + $0x690] sm:$0xff]
    %v3743 = vld [vmem:[#allocation8 + $0x698] sm:$0xff]
    %v3744 = vld [vmem:[#allocation8 + $0x6a0] sm:$0xff]
    %v3745 = vld [vmem:[#allocation8 + $0x6a8] sm:$0xff]
    %v3746 = vld [vmem:[#allocation8 + $0x6b0] sm:$0xff]
    %v3747 = vld [vmem:[#allocation8 + $0x6b8] sm:$0xff]
    %v3748 = vld [vmem:[#allocation8 + $0x6c0] sm:$0xff]
    %v3749 = vld [vmem:[#allocation8 + $0x6c8] sm:$0xff]
    %v3750 = vld [vmem:[#allocation8 + $0x6d0] sm:$0xff]
    %v3751 = vld [vmem:[#allocation8 + $0x6d8] sm:$0xff]
    %v3752 = vld [vmem:[#allocation8 + $0x6e0] sm:$0xff]
    %v3753 = vld [vmem:[#allocation8 + $0x6e8] sm:$0xff]
    %v3754 = vld [vmem:[#allocation8 + $0x6f0] sm:$0xff]
    %v3755 = vld [vmem:[#allocation8 + $0x6f8] sm:$0xff]
    %v3756 = vld [vmem:[#allocation8 + $0x700] sm:$0xff]
    %v3757 = vld [vmem:[#allocation8 + $0x708] sm:$0xff]
    %v3758 = vld [vmem:[#allocation8 + $0x710] sm:$0xff]
    %v3759 = vld [vmem:[#allocation8 + $0x718] sm:$0xff]
    %v3760 = vld [vmem:[#allocation8 + $0x720] sm:$0xff]
    %v3761 = vld [vmem:[#allocation8 + $0x728] sm:$0xff]
    %v3762 = vld [vmem:[#allocation8 + $0x730] sm:$0xff]
    %v3763 = vld [vmem:[#allocation8 + $0x738] sm:$0xff]
    %v3764 = vld [vmem:[#allocation8 + $0x740] sm:$0xff]
    %v3765 = vld [vmem:[#allocation8 + $0x748] sm:$0xff]
    %v3766 = vld [vmem:[#allocation8 + $0x750] sm:$0xff]
    %v3767 = vld [vmem:[#allocation8 + $0x758] sm:$0xff]
    %v3768 = vld [vmem:[#allocation8 + $0x760] sm:$0xff]
    %v3769 = vld [vmem:[#allocation8 + $0x768] sm:$0xff]
    %v3770 = vld [vmem:[#allocation8 + $0x770] sm:$0xff]
    %v3771 = vld [vmem:[#allocation8 + $0x778] sm:$0xff]
    %v3772 = vld [vmem:[#allocation8 + $0x780] sm:$0xff]
    %v3773 = vld [vmem:[#allocation8 + $0x788] sm:$0xff]
    %v3774 = vld [vmem:[#allocation8 + $0x790] sm:$0xff]
    %v3775 = vld [vmem:[#allocation8 + $0x798] sm:$0xff]
    %v3776 = vld [vmem:[#allocation8 + $0x7a0] sm:$0xff]
    %v3777 = vld [vmem:[#allocation8 + $0x7a8] sm:$0xff]
    %v3778 = vld [vmem:[#allocation8 + $0x7b0] sm:$0xff]
    %v3779 = vld [vmem:[#allocation8 + $0x7b8] sm:$0xff]
    %v3780 = vld [vmem:[#allocation8 + $0x7c0] sm:$0xff]
    %v3781 = vld [vmem:[#allocation8 + $0x7c8] sm:$0xff]
    %v3782 = vld [vmem:[#allocation8 + $0x7d0] sm:$0xff]
    %v3783 = vld [vmem:[#allocation8 + $0x7d8] sm:$0xff]
    %v3784 = vld [vmem:[#allocation8 + $0x7e0] sm:$0xff]
    %v3785 = vld [vmem:[#allocation8 + $0x7e8] sm:$0xff]
    %v3786 = vld [vmem:[#allocation8 + $0x7f0] sm:$0xff]
    %v3787 = vld [vmem:[#allocation8 + $0x7f8] sm:$0xff]
    %v3788 = vld [vmem:[#allocation8 + $0x800] sm:$0xff]
    %v3789 = vld [vmem:[#allocation8 + $0x808] sm:$0xff]
    %v3790 = vld [vmem:[#allocation8 + $0x810] sm:$0xff]
    %v3791 = vld [vmem:[#allocation8 + $0x818] sm:$0xff]
    %v3792 = vld [vmem:[#allocation8 + $0x820] sm:$0xff]
    %v3793 = vld [vmem:[#allocation8 + $0x828] sm:$0xff]
    %v3794 = vld [vmem:[#allocation8 + $0x830] sm:$0xff]
    %v3795 = vld [vmem:[#allocation8 + $0x838] sm:$0xff]
    %v3796 = vld [vmem:[#allocation8 + $0x840] sm:$0xff]
    %v3797 = vld [vmem:[#allocation8 + $0x848] sm:$0xff]
    %v3798 = vld [vmem:[#allocation8 + $0x850] sm:$0xff]
    %v3799 = vld [vmem:[#allocation8 + $0x858] sm:$0xff]
    %v3800 = vld [vmem:[#allocation8 + $0x860] sm:$0xff]
    %v3801 = vld [vmem:[#allocation8 + $0x868] sm:$0xff]
    %v3802 = vld [vmem:[#allocation8 + $0x870] sm:$0xff]
    %v3803 = vld [vmem:[#allocation8 + $0x878] sm:$0xff]
    %v3804 = vld [vmem:[#allocation8 + $0x880] sm:$0xff]
    %v3805 = vld [vmem:[#allocation8 + $0x888] sm:$0xff]
    %v3806 = vld [vmem:[#allocation8 + $0x890] sm:$0xff]
    %v3807 = vld [vmem:[#allocation8 + $0x898] sm:$0xff]
    %v3808 = vld [vmem:[#allocation8 + $0x8a0] sm:$0xff]
    %v3809 = vld [vmem:[#allocation8 + $0x8a8] sm:$0xff]
    %v3810 = vld [vmem:[#allocation8 + $0x8b0] sm:$0xff]
    %v3811 = vld [vmem:[#allocation8 + $0x8b8] sm:$0xff]
    %v3812 = vld [vmem:[#allocation8 + $0x8c0] sm:$0xff]
    %v3813 = vld [vmem:[#allocation8 + $0x8c8] sm:$0xff]
    %v3814 = vld [vmem:[#allocation8 + $0x8d0] sm:$0xff]
    %v3815 = vld [vmem:[#allocation8 + $0x8d8] sm:$0xff]
    %v3816 = vld [vmem:[#allocation8 + $0x8e0] sm:$0xff]
    %v3817 = vld [vmem:[#allocation8 + $0x8e8] sm:$0xff]
    %v3818 = vld [vmem:[#allocation8 + $0x8f0] sm:$0xff]
    %v3819 = vld [vmem:[#allocation8 + $0x8f8] sm:$0xff]
    %v3820 = vld [vmem:[#allocation8 + $0x900] sm:$0xff]
    %v3821 = vld [vmem:[#allocation8 + $0x908] sm:$0xff]
    %v3822 = vld [vmem:[#allocation8 + $0x910] sm:$0xff]
    %v3823 = vld [vmem:[#allocation8 + $0x918] sm:$0xff]
    %v3824 = vld [vmem:[#allocation8 + $0x920] sm:$0xff]
    %v3825 = vld [vmem:[#allocation8 + $0x928] sm:$0xff]
    %v3826 = vld [vmem:[#allocation8 + $0x930] sm:$0xff]
    %v3827 = vld [vmem:[#allocation8 + $0x938] sm:$0xff]
    %v3828 = vld [vmem:[#allocation8 + $0x940] sm:$0xff]
    %v3829 = vld [vmem:[#allocation8 + $0x948] sm:$0xff]
    %v3830 = vld [vmem:[#allocation8 + $0x950] sm:$0xff]
    %v3831 = vld [vmem:[#allocation8 + $0x958] sm:$0xff]
    %v3832 = vld [vmem:[#allocation8 + $0x960] sm:$0xff]
    %v3833 = vld [vmem:[#allocation8 + $0x968] sm:$0xff]
    %v3834 = vld [vmem:[#allocation8 + $0x970] sm:$0xff]
    %v3835 = vld [vmem:[#allocation8 + $0x978] sm:$0xff]
    %v3836 = vld [vmem:[#allocation8 + $0x980] sm:$0xff]
    %v3837 = vld [vmem:[#allocation8 + $0x988] sm:$0xff]
    %v3838 = vld [vmem:[#allocation8 + $0x990] sm:$0xff]
    %v3839 = vld [vmem:[#allocation8 + $0x998] sm:$0xff]
    %v3840 = vld [vmem:[#allocation8 + $0x9a0] sm:$0xff]
    %v3841 = vld [vmem:[#allocation8 + $0x9a8] sm:$0xff]
    %v3842 = vld [vmem:[#allocation8 + $0x9b0] sm:$0xff]
    %v3843 = vld [vmem:[#allocation8 + $0x9b8] sm:$0xff]
    %v3844 = vld [vmem:[#allocation8 + $0x9c0] sm:$0xff]
    %v3845 = vld [vmem:[#allocation8 + $0x9c8] sm:$0xff]
    %v3846 = vld [vmem:[#allocation8 + $0x9d0] sm:$0xff]
    %v3847 = vld [vmem:[#allocation8 + $0x9d8] sm:$0xff]
    %v3848 = vld [vmem:[#allocation8 + $0x9e0] sm:$0xff]
    %v3849 = vld [vmem:[#allocation8 + $0x9e8] sm:$0xff]
    %v3850 = vld [vmem:[#allocation8 + $0x9f0] sm:$0xff]
    %v3851 = vld [vmem:[#allocation8 + $0x9f8] sm:$0xff]
    %v3852 = vld [vmem:[#allocation8 + $0xa00] sm:$0xff]
    %v3853 = vld [vmem:[#allocation8 + $0xa08] sm:$0xff]
    %v3854 = vld [vmem:[#allocation8 + $0xa10] sm:$0xff]
    %v3855 = vld [vmem:[#allocation8 + $0xa18] sm:$0xff]
    %v3856 = vld [vmem:[#allocation8 + $0xa20] sm:$0xff]
    %v3857 = vld [vmem:[#allocation8 + $0xa28] sm:$0xff]
    %v3858 = vld [vmem:[#allocation8 + $0xa30] sm:$0xff]
    %v3859 = vld [vmem:[#allocation8 + $0xa38] sm:$0xff]
    %v3860 = vld [vmem:[#allocation8 + $0xa40] sm:$0xff]
    %v3861 = vld [vmem:[#allocation8 + $0xa48] sm:$0xff]
    %v3862 = vld [vmem:[#allocation8 + $0xa50] sm:$0xff]
    %v3863 = vld [vmem:[#allocation8 + $0xa58] sm:$0xff]
    %v3864 = vld [vmem:[#allocation8 + $0xa60] sm:$0xff]
    %v3865 = vld [vmem:[#allocation8 + $0xa68] sm:$0xff]
    %v3866 = vld [vmem:[#allocation8 + $0xa70] sm:$0xff]
    %v3867 = vld [vmem:[#allocation8 + $0xa78] sm:$0xff]
    %v3868 = vld [vmem:[#allocation8 + $0xa80] sm:$0xff]
    %v3869 = vld [vmem:[#allocation8 + $0xa88] sm:$0xff]
    %v3870 = vld [vmem:[#allocation8 + $0xa90] sm:$0xff]
    %v3871 = vld [vmem:[#allocation8 + $0xa98] sm:$0xff]
    %v3872 = vld [vmem:[#allocation8 + $0xaa0] sm:$0xff]
    %v3873 = vld [vmem:[#allocation8 + $0xaa8] sm:$0xff]
    %v3874 = vld [vmem:[#allocation8 + $0xab0] sm:$0xff]
    %v3875 = vld [vmem:[#allocation8 + $0xab8] sm:$0xff]
    %v3876 = vld [vmem:[#allocation8 + $0xac0] sm:$0xff]
    %v3877 = vld [vmem:[#allocation8 + $0xac8] sm:$0xff]
    %v3878 = vld [vmem:[#allocation8 + $0xad0] sm:$0xff]
    %v3879 = vld [vmem:[#allocation8 + $0xad8] sm:$0xff]
    %v3880 = vld [vmem:[#allocation8 + $0xae0] sm:$0xff]
    %v3881 = vld [vmem:[#allocation8 + $0xae8] sm:$0xff]
    %v3882 = vld [vmem:[#allocation8 + $0xaf0] sm:$0xff]
    %v3883 = vld [vmem:[#allocation8 + $0xaf8] sm:$0xff]
    %v3884 = vld [vmem:[#allocation8 + $0xb00] sm:$0xff]
    %v3885 = vld [vmem:[#allocation8 + $0xb08] sm:$0xff]
    %v3886 = vld [vmem:[#allocation8 + $0xb10] sm:$0xff]
    %v3887 = vld [vmem:[#allocation8 + $0xb18] sm:$0xff]
    %v3888 = vld [vmem:[#allocation8 + $0xb20] sm:$0xff]
    %v3889 = vld [vmem:[#allocation8 + $0xb28] sm:$0xff]
    %v3890 = vld [vmem:[#allocation8 + $0xb30] sm:$0xff]
    %v3891 = vld [vmem:[#allocation8 + $0xb38] sm:$0xff]
    %v3892 = vld [vmem:[#allocation8 + $0xb40] sm:$0xff]
    %v3893 = vld [vmem:[#allocation8 + $0xb48] sm:$0xff]
    %v3894 = vld [vmem:[#allocation8 + $0xb50] sm:$0xff]
    %v3895 = vld [vmem:[#allocation8 + $0xb58] sm:$0xff]
    %v3896 = vld [vmem:[#allocation8 + $0xb60] sm:$0xff]
    %v3897 = vld [vmem:[#allocation8 + $0xb68] sm:$0xff]
    %v3898 = vld [vmem:[#allocation8 + $0xb70] sm:$0xff]
    %v3899 = vld [vmem:[#allocation8 + $0xb78] sm:$0xff]
    %v3900 = vld [vmem:[#allocation8 + $0xb80] sm:$0xff]
    %v3901 = vld [vmem:[#allocation8 + $0xb88] sm:$0xff]
    %v3902 = vld [vmem:[#allocation8 + $0xb90] sm:$0xff]
    %v3903 = vld [vmem:[#allocation8 + $0xb98] sm:$0xff]
    %v3904 = vld [vmem:[#allocation8 + $0xba0] sm:$0xff]
    %v3905 = vld [vmem:[#allocation8 + $0xba8] sm:$0xff]
    %v3906 = vld [vmem:[#allocation8 + $0xbb0] sm:$0xff]
    %v3907 = vld [vmem:[#allocation8 + $0xbb8] sm:$0xff]
    %v3908 = vld [vmem:[#allocation8 + $0xbc0] sm:$0xff]
    %v3909 = vld [vmem:[#allocation8 + $0xbc8] sm:$0xff]
    %v3910 = vld [vmem:[#allocation8 + $0xbd0] sm:$0xff]
    %v3911 = vld [vmem:[#allocation8 + $0xbd8] sm:$0xff]
    %v3912 = vld [vmem:[#allocation8 + $0xbe0] sm:$0xff]
    %v3913 = vld [vmem:[#allocation8 + $0xbe8] sm:$0xff]
    %v3914 = vld [vmem:[#allocation8 + $0xbf0] sm:$0xff]
    %v3915 = vld [vmem:[#allocation8 + $0xbf8] sm:$0xff]
    %v3916 = vld [vmem:[#allocation8 + $0xc00] sm:$0xff]
    %v3917 = vld [vmem:[#allocation8 + $0xc08] sm:$0xff]
    %v3918 = vld [vmem:[#allocation8 + $0xc10] sm:$0xff]
    %v3919 = vld [vmem:[#allocation8 + $0xc18] sm:$0xff]
    %v3920 = vld [vmem:[#allocation8 + $0xc20] sm:$0xff]
    %v3921 = vld [vmem:[#allocation8 + $0xc28] sm:$0xff]
    %v3922 = vld [vmem:[#allocation8 + $0xc30] sm:$0xff]
    %v3923 = vld [vmem:[#allocation8 + $0xc38] sm:$0xff]
    %v3924 = vld [vmem:[#allocation8 + $0xc40] sm:$0xff]
    %v3925 = vld [vmem:[#allocation8 + $0xc48] sm:$0xff]
    %v3926 = vld [vmem:[#allocation8 + $0xc50] sm:$0xff]
    %v3927 = vld [vmem:[#allocation8 + $0xc58] sm:$0xff]
    %v3928 = vld [vmem:[#allocation8 + $0xc60] sm:$0xff]
    %v3929 = vld [vmem:[#allocation8 + $0xc68] sm:$0xff]
    %v3930 = vld [vmem:[#allocation8 + $0xc70] sm:$0xff]
    %v3931 = vld [vmem:[#allocation8 + $0xc78] sm:$0xff]
    %v3932 = vld [vmem:[#allocation8 + $0xc80] sm:$0xff]
    %v3933 = vld [vmem:[#allocation8 + $0xc88] sm:$0xff]
    %v3934 = vld [vmem:[#allocation8 + $0xc90] sm:$0xff]
    %v3935 = vld [vmem:[#allocation8 + $0xc98] sm:$0xff]
    %v3936 = vld [vmem:[#allocation8 + $0xca0] sm:$0xff]
    %v3937 = vld [vmem:[#allocation8 + $0xca8] sm:$0xff]
    %v3938 = vld [vmem:[#allocation8 + $0xcb0] sm:$0xff]
    %v3939 = vld [vmem:[#allocation8 + $0xcb8] sm:$0xff]
    %v3940 = vld [vmem:[#allocation8 + $0xcc0] sm:$0xff]
    %v3941 = vld [vmem:[#allocation8 + $0xcc8] sm:$0xff]
    %v3942 = vld [vmem:[#allocation8 + $0xcd0] sm:$0xff]
    %v3943 = vld [vmem:[#allocation8 + $0xcd8] sm:$0xff]
    %v3944 = vld [vmem:[#allocation8 + $0xce0] sm:$0xff]
    %v3945 = vld [vmem:[#allocation8 + $0xce8] sm:$0xff]
    %v3946 = vld [vmem:[#allocation8 + $0xcf0] sm:$0xff]
    %v3947 = vld [vmem:[#allocation8 + $0xcf8] sm:$0xff]
    %v3948 = vld [vmem:[#allocation8 + $0xd00] sm:$0xff]
    %v3949 = vld [vmem:[#allocation8 + $0xd08] sm:$0xff]
    %v3950 = vld [vmem:[#allocation8 + $0xd10] sm:$0xff]
    %v3951 = vld [vmem:[#allocation8 + $0xd18] sm:$0xff]
    %v3952 = vld [vmem:[#allocation8 + $0xd20] sm:$0xff]
    %v3953 = vld [vmem:[#allocation8 + $0xd28] sm:$0xff]
    %v3954 = vld [vmem:[#allocation8 + $0xd30] sm:$0xff]
    %v3955 = vld [vmem:[#allocation8 + $0xd38] sm:$0xff]
    %v3956 = vld [vmem:[#allocation8 + $0xd40] sm:$0xff]
    %v3957 = vld [vmem:[#allocation8 + $0xd48] sm:$0xff]
    %v3958 = vld [vmem:[#allocation8 + $0xd50] sm:$0xff]
    %v3959 = vld [vmem:[#allocation8 + $0xd58] sm:$0xff]
    %v3960 = vld [vmem:[#allocation8 + $0xd60] sm:$0xff]
    %v3961 = vld [vmem:[#allocation8 + $0xd68] sm:$0xff]
    %v3962 = vld [vmem:[#allocation8 + $0xd70] sm:$0xff]
    %v3963 = vld [vmem:[#allocation8 + $0xd78] sm:$0xff]
    %v3964 = vld [vmem:[#allocation8 + $0xd80] sm:$0xff]
    %v3965 = vld [vmem:[#allocation8 + $0xd88] sm:$0xff]
    %v3966 = vld [vmem:[#allocation8 + $0xd90] sm:$0xff]
    %v3967 = vld [vmem:[#allocation8 + $0xd98] sm:$0xff]
    %v3968 = vld [vmem:[#allocation8 + $0xda0] sm:$0xff]
    %v3969 = vld [vmem:[#allocation8 + $0xda8] sm:$0xff]
    %v3970 = vld [vmem:[#allocation8 + $0xdb0] sm:$0xff]
    %v3971 = vld [vmem:[#allocation8 + $0xdb8] sm:$0xff]
    %v3972 = vld [vmem:[#allocation8 + $0xdc0] sm:$0xff]
    %v3973 = vld [vmem:[#allocation8 + $0xdc8] sm:$0xff]
    %v3974 = vld [vmem:[#allocation8 + $0xdd0] sm:$0xff]
    %v3975 = vld [vmem:[#allocation8 + $0xdd8] sm:$0xff]
    %v3976 = vld [vmem:[#allocation8 + $0xde0] sm:$0xff]
    %v3977 = vld [vmem:[#allocation8 + $0xde8] sm:$0xff]
    %v3978 = vld [vmem:[#allocation8 + $0xdf0] sm:$0xff]
    %v3979 = vld [vmem:[#allocation8 + $0xdf8] sm:$0xff]
    %v3980 = vld [vmem:[#allocation8 + $0xe00] sm:$0xff]
    %v3981 = vld [vmem:[#allocation8 + $0xe08] sm:$0xff]
    %v3982 = vld [vmem:[#allocation8 + $0xe10] sm:$0xff]
    %v3983 = vld [vmem:[#allocation8 + $0xe18] sm:$0xff]
    %v3984 = vld [vmem:[#allocation8 + $0xe20] sm:$0xff]
    %v3985 = vld [vmem:[#allocation8 + $0xe28] sm:$0xff]
    %v3986 = vld [vmem:[#allocation8 + $0xe30] sm:$0xff]
    %v3987 = vld [vmem:[#allocation8 + $0xe38] sm:$0xff]
    %v3988 = vld [vmem:[#allocation8 + $0xe40] sm:$0xff]
    %v3989 = vld [vmem:[#allocation8 + $0xe48] sm:$0xff]
    %v3990 = vld [vmem:[#allocation8 + $0xe50] sm:$0xff]
    %v3991 = vld [vmem:[#allocation8 + $0xe58] sm:$0xff]
    %v3992 = vld [vmem:[#allocation8 + $0xe60] sm:$0xff]
    %v3993 = vld [vmem:[#allocation8 + $0xe68] sm:$0xff]
    %v3994 = vld [vmem:[#allocation8 + $0xe70] sm:$0xff]
    %v3995 = vld [vmem:[#allocation8 + $0xe78] sm:$0xff]
    %v3996 = vld [vmem:[#allocation8 + $0xe80] sm:$0xff]
    %v3997 = vld [vmem:[#allocation8 + $0xe88] sm:$0xff]
    %v3998 = vld [vmem:[#allocation8 + $0xe90] sm:$0xff]
    %v3999 = vld [vmem:[#allocation8 + $0xe98] sm:$0xff]
    %v4000 = vld [vmem:[#allocation8 + $0xea0] sm:$0xff]
    %v4001 = vld [vmem:[#allocation8 + $0xea8] sm:$0xff]
    %v4002 = vld [vmem:[#allocation8 + $0xeb0] sm:$0xff]
    %v4003 = vld [vmem:[#allocation8 + $0xeb8] sm:$0xff]
    %v4004 = vld [vmem:[#allocation8 + $0xec0] sm:$0xff]
    %v4005 = vld [vmem:[#allocation8 + $0xec8] sm:$0xff]
    %v4006 = vld [vmem:[#allocation8 + $0xed0] sm:$0xff]
    %v4007 = vld [vmem:[#allocation8 + $0xed8] sm:$0xff]
    %v4008 = vld [vmem:[#allocation8 + $0xee0] sm:$0xff]
    %v4009 = vld [vmem:[#allocation8 + $0xee8] sm:$0xff]
    %v4010 = vld [vmem:[#allocation8 + $0xef0] sm:$0xff]
    %v4011 = vld [vmem:[#allocation8 + $0xef8] sm:$0xff]
    %v4012 = vld [vmem:[#allocation8 + $0xf00] sm:$0xff]
    %v4013 = vld [vmem:[#allocation8 + $0xf08] sm:$0xff]
    %v4014 = vld [vmem:[#allocation8 + $0xf10] sm:$0xff]
    %v4015 = vld [vmem:[#allocation8 + $0xf18] sm:$0xff]
    %v4016 = vld [vmem:[#allocation8 + $0xf20] sm:$0xff]
    %v4017 = vld [vmem:[#allocation8 + $0xf28] sm:$0xff]
    %v4018 = vld [vmem:[#allocation8 + $0xf30] sm:$0xff]
    %v4019 = vld [vmem:[#allocation8 + $0xf38] sm:$0xff]
    %v4020 = vld [vmem:[#allocation8 + $0xf40] sm:$0xff]
    %v4021 = vld [vmem:[#allocation8 + $0xf48] sm:$0xff]
    %v4022 = vld [vmem:[#allocation8 + $0xf50] sm:$0xff]
    %v4023 = vld [vmem:[#allocation8 + $0xf58] sm:$0xff]
    %v4024 = vld [vmem:[#allocation8 + $0xf60] sm:$0xff]
    %v4025 = vld [vmem:[#allocation8 + $0xf68] sm:$0xff]
    %v4026 = vld [vmem:[#allocation8 + $0xf70] sm:$0xff]
    %v4027 = vld [vmem:[#allocation8 + $0xf78] sm:$0xff]
    %v4028 = vld [vmem:[#allocation8 + $0xf80] sm:$0xff]
    %v4029 = vld [vmem:[#allocation8 + $0xf88] sm:$0xff]
    %v4030 = vld [vmem:[#allocation8 + $0xf90] sm:$0xff]
    %v4031 = vld [vmem:[#allocation8 + $0xf98] sm:$0xff]
    %v4032 = vld [vmem:[#allocation8 + $0xfa0] sm:$0xff]
    %v4033 = vld [vmem:[#allocation8 + $0xfa8] sm:$0xff]
    %v4034 = vld [vmem:[#allocation8 + $0xfb0] sm:$0xff]
    %v4035 = vld [vmem:[#allocation8 + $0xfb8] sm:$0xff]
    %v4036 = vld [vmem:[#allocation8 + $0xfc0] sm:$0xff]
    %v4037 = vld [vmem:[#allocation8 + $0xfc8] sm:$0xff]
    %v4038 = vld [vmem:[#allocation8 + $0xfd0] sm:$0xff]
    %v4039 = vld [vmem:[#allocation8 + $0xfd8] sm:$0xff]
    %v4040 = vld [vmem:[#allocation8 + $0xfe0] sm:$0xff]
    %v4041 = vld [vmem:[#allocation8 + $0xfe8] sm:$0xff]
    %v4042 = vld [vmem:[#allocation8 + $0xff0] sm:$0xff]
    %v4043 = vld [vmem:[#allocation8 + $0xff8] sm:$0xff]
    %v4044 = vld [vmem:[#allocation8 + $0x1000] sm:$0xff]
    %v4045 = vld [vmem:[#allocation8 + $0x1008] sm:$0xff]
    %v4046 = vld [vmem:[#allocation8 + $0x1010] sm:$0xff]
    %v4047 = vld [vmem:[#allocation8 + $0x1018] sm:$0xff]
    %v4048 = vld [vmem:[#allocation8 + $0x1020] sm:$0xff]
    %v4049 = vld [vmem:[#allocation8 + $0x1028] sm:$0xff]
    %v4050 = vld [vmem:[#allocation8 + $0x1030] sm:$0xff]
    %v4051 = vld [vmem:[#allocation8 + $0x1038] sm:$0xff]
    %v4052 = vld [vmem:[#allocation8 + $0x1040] sm:$0xff]
    %v4053 = vld [vmem:[#allocation8 + $0x1048] sm:$0xff]
    %v4054 = vld [vmem:[#allocation8 + $0x1050] sm:$0xff]
    %v4055 = vld [vmem:[#allocation8 + $0x1058] sm:$0xff]
    %v4056 = vld [vmem:[#allocation8 + $0x1060] sm:$0xff]
    %v4057 = vld [vmem:[#allocation8 + $0x1068] sm:$0xff]
    %v4058 = vld [vmem:[#allocation8 + $0x1070] sm:$0xff]
    %v4059 = vld [vmem:[#allocation8 + $0x1078] sm:$0xff]
    %v4060 = vld [vmem:[#allocation8 + $0x1080] sm:$0xff]
    %v4061 = vld [vmem:[#allocation8 + $0x1088] sm:$0xff]
    %v4062 = vld [vmem:[#allocation8 + $0x1090] sm:$0xff]
    %v4063 = vld [vmem:[#allocation8 + $0x1098] sm:$0xff]
    %v4064 = vld [vmem:[#allocation8 + $0x10a0] sm:$0xff]
    %v4065 = vld [vmem:[#allocation8 + $0x10a8] sm:$0xff]
    %v4066 = vld [vmem:[#allocation8 + $0x10b0] sm:$0xff]
    %v4067 = vld [vmem:[#allocation8 + $0x10b8] sm:$0xff]
    %v4068 = vld [vmem:[#allocation8 + $0x10c0] sm:$0xff]
    %v4069 = vld [vmem:[#allocation8 + $0x10c8] sm:$0xff]
    %v4070 = vld [vmem:[#allocation8 + $0x10d0] sm:$0xff]
    %v4071 = vld [vmem:[#allocation8 + $0x10d8] sm:$0xff]
    %v4072 = vld [vmem:[#allocation8 + $0x10e0] sm:$0xff]
    %v4073 = vld [vmem:[#allocation8 + $0x10e8] sm:$0xff]
    %v4074 = vld [vmem:[#allocation8 + $0x10f0] sm:$0xff]
    %v4075 = vld [vmem:[#allocation8 + $0x10f8] sm:$0xff]
    %v4076 = vld [vmem:[#allocation8 + $0x1100] sm:$0xff]
    %v4077 = vld [vmem:[#allocation8 + $0x1108] sm:$0xff]
    %v4078 = vld [vmem:[#allocation8 + $0x1110] sm:$0xff]
    %v4079 = vld [vmem:[#allocation8 + $0x1118] sm:$0xff]
    %v4080 = vld [vmem:[#allocation8 + $0x1120] sm:$0xff]
    %v4081 = vld [vmem:[#allocation8 + $0x1128] sm:$0xff]
    %v4082 = vld [vmem:[#allocation8 + $0x1130] sm:$0xff]
    %v4083 = vld [vmem:[#allocation8 + $0x1138] sm:$0xff]
    %v4084 = vld [vmem:[#allocation8 + $0x1140] sm:$0xff]
    %v4085 = vld [vmem:[#allocation8 + $0x1148] sm:$0xff]
    %v4086 = vld [vmem:[#allocation8 + $0x1150] sm:$0xff]
    %v4087 = vld [vmem:[#allocation8 + $0x1158] sm:$0xff]
    %v4088 = vld [vmem:[#allocation8 + $0x1160] sm:$0xff]
    %v4089 = vld [vmem:[#allocation8 + $0x1168] sm:$0xff]
    %v4090 = vld [vmem:[#allocation8 + $0x1170] sm:$0xff]
    %v4091 = vld [vmem:[#allocation8 + $0x1178] sm:$0xff]
    %v4092 = vld [vmem:[#allocation8 + $0x1180] sm:$0xff]
    %v4093 = vld [vmem:[#allocation8 + $0x1188] sm:$0xff]
    %v4094 = vld [vmem:[#allocation8 + $0x1190] sm:$0xff]
    %v4095 = vld [vmem:[#allocation8 + $0x1198] sm:$0xff]
    %v4096 = vld [vmem:[#allocation8 + $0x11a0] sm:$0xff]
    %v4097 = vld [vmem:[#allocation8 + $0x11a8] sm:$0xff]
    %v4098 = vld [vmem:[#allocation8 + $0x11b0] sm:$0xff]
    %v4099 = vld [vmem:[#allocation8 + $0x11b8] sm:$0xff]
    %v4100 = vld [vmem:[#allocation8 + $0x11c0] sm:$0xff]
    %v4101 = vld [vmem:[#allocation8 + $0x11c8] sm:$0xff]
    %v4102 = vld [vmem:[#allocation8 + $0x11d0] sm:$0xff]
    %v4103 = vld [vmem:[#allocation8 + $0x11d8] sm:$0xff]
    %v4104 = vld [vmem:[#allocation8 + $0x11e0] sm:$0xff]
    %v4105 = vld [vmem:[#allocation8 + $0x11e8] sm:$0xff]
    %v4106 = vld [vmem:[#allocation8 + $0x11f0] sm:$0xff]
    %v4107 = vld [vmem:[#allocation8 + $0x11f8] sm:$0xff]
    %v4108 = vld [vmem:[#allocation8 + $0x1200] sm:$0xff]
    %v4109 = vld [vmem:[#allocation8 + $0x1208] sm:$0xff]
    %v4110 = vld [vmem:[#allocation8 + $0x1210] sm:$0xff]
    %v4111 = vld [vmem:[#allocation8 + $0x1218] sm:$0xff]
    %v4112 = vld [vmem:[#allocation8 + $0x1220] sm:$0xff]
    %v4113 = vld [vmem:[#allocation8 + $0x1228] sm:$0xff]
    %v4114 = vld [vmem:[#allocation8 + $0x1230] sm:$0xff]
    %v4115 = vld [vmem:[#allocation8 + $0x1238] sm:$0xff]
    %v4116 = vld [vmem:[#allocation8 + $0x1240] sm:$0xff]
    %v4117 = vld [vmem:[#allocation8 + $0x1248] sm:$0xff]
    %v4118 = vld [vmem:[#allocation8 + $0x1250] sm:$0xff]
    %v4119 = vld [vmem:[#allocation8 + $0x1258] sm:$0xff]
    %v4120 = vld [vmem:[#allocation8 + $0x1260] sm:$0xff]
    %v4121 = vld [vmem:[#allocation8 + $0x1268] sm:$0xff]
    %v4122 = vld [vmem:[#allocation8 + $0x1270] sm:$0xff]
    %v4123 = vld [vmem:[#allocation8 + $0x1278] sm:$0xff]
    %v4124 = vld [vmem:[#allocation8 + $0x1280] sm:$0xff]
    %v4125 = vld [vmem:[#allocation8 + $0x1288] sm:$0xff]
    %v4126 = vld [vmem:[#allocation8 + $0x1290] sm:$0xff]
    %v4127 = vld [vmem:[#allocation8 + $0x1298] sm:$0xff]
    %v4128 = vld [vmem:[#allocation8 + $0x12a0] sm:$0xff]
    %v4129 = vld [vmem:[#allocation8 + $0x12a8] sm:$0xff]
    %v4130 = vld [vmem:[#allocation8 + $0x12b0] sm:$0xff]
    %v4131 = vld [vmem:[#allocation8 + $0x12b8] sm:$0xff]
    %v4132 = vld [vmem:[#allocation8 + $0x12c0] sm:$0xff]
    %v4133 = vld [vmem:[#allocation8 + $0x12c8] sm:$0xff]
    %v4134 = vld [vmem:[#allocation8 + $0x12d0] sm:$0xff]
    %v4135 = vld [vmem:[#allocation8 + $0x12d8] sm:$0xff]
    %v4136 = vld [vmem:[#allocation8 + $0x12e0] sm:$0xff]
    %v4137 = vld [vmem:[#allocation8 + $0x12e8] sm:$0xff]
    %v4138 = vld [vmem:[#allocation8 + $0x12f0] sm:$0xff]
    %v4139 = vld [vmem:[#allocation8 + $0x12f8] sm:$0xff]
    %v4140 = vld [vmem:[#allocation8 + $0x1300] sm:$0xff]
    %v4141 = vld [vmem:[#allocation8 + $0x1308] sm:$0xff]
    %v4142 = vld [vmem:[#allocation8 + $0x1310] sm:$0xff]
    %v4143 = vld [vmem:[#allocation8 + $0x1318] sm:$0xff]
    %v4144 = vld [vmem:[#allocation8 + $0x1320] sm:$0xff]
    %v4145 = vld [vmem:[#allocation8 + $0x1328] sm:$0xff]
    %v4146 = vld [vmem:[#allocation8 + $0x1330] sm:$0xff]
    %v4147 = vld [vmem:[#allocation8 + $0x1338] sm:$0xff]
    %v4148 = vld [vmem:[#allocation8 + $0x1340] sm:$0xff]
    %v4149 = vld [vmem:[#allocation8 + $0x1348] sm:$0xff]
    %v4150 = vld [vmem:[#allocation8 + $0x1350] sm:$0xff]
    %v4151 = vld [vmem:[#allocation8 + $0x1358] sm:$0xff]
    %v4152 = vld [vmem:[#allocation8 + $0x1360] sm:$0xff]
    %v4153 = vld [vmem:[#allocation8 + $0x1368] sm:$0xff]
    %v4154 = vld [vmem:[#allocation8 + $0x1370] sm:$0xff]
    %v4155 = vld [vmem:[#allocation8 + $0x1378] sm:$0xff]
    %v4156 = vld [vmem:[#allocation8 + $0x1380] sm:$0xff]
    %v4157 = vld [vmem:[#allocation8 + $0x1388] sm:$0xff]
    %v4158 = vld [vmem:[#allocation8 + $0x1390] sm:$0xff]
    %v4159 = vld [vmem:[#allocation8 + $0x1398] sm:$0xff]
    %v4160 = vld [vmem:[#allocation8 + $0x13a0] sm:$0xff]
    %v4161 = vld [vmem:[#allocation8 + $0x13a8] sm:$0xff]
    %v4162 = vld [vmem:[#allocation8 + $0x13b0] sm:$0xff]
    %v4163 = vld [vmem:[#allocation8 + $0x13b8] sm:$0xff]
    %v4164 = vld [vmem:[#allocation8 + $0x13c0] sm:$0xff]
    %v4165 = vld [vmem:[#allocation8 + $0x13c8] sm:$0xff]
    %v4166 = vld [vmem:[#allocation8 + $0x13d0] sm:$0xff]
    %v4167 = vld [vmem:[#allocation8 + $0x13d8] sm:$0xff]
    %v4168 = vld [vmem:[#allocation8 + $0x13e0] sm:$0xff]
    %v4169 = vld [vmem:[#allocation8 + $0x13e8] sm:$0xff]
    %v4170 = vld [vmem:[#allocation8 + $0x13f0] sm:$0xff]
    %v4171 = vld [vmem:[#allocation8 + $0x13f8] sm:$0xff]
    %v4172 = vld [vmem:[#allocation8 + $0x1400] sm:$0xff]
    %v4173 = vld [vmem:[#allocation8 + $0x1408] sm:$0xff]
    %v4174 = vld [vmem:[#allocation8 + $0x1410] sm:$0xff]
    %v4175 = vld [vmem:[#allocation8 + $0x1418] sm:$0xff]
    %v4176 = vld [vmem:[#allocation8 + $0x1420] sm:$0xff]
    %v4177 = vld [vmem:[#allocation8 + $0x1428] sm:$0xff]
    %v4178 = vld [vmem:[#allocation8 + $0x1430] sm:$0xff]
    %v4179 = vld [vmem:[#allocation8 + $0x1438] sm:$0xff]
    %v4180 = vld [vmem:[#allocation8 + $0x1440] sm:$0xff]
    %v4181 = vld [vmem:[#allocation8 + $0x1448] sm:$0xff]
    %v4182 = vld [vmem:[#allocation8 + $0x1450] sm:$0xff]
    %v4183 = vld [vmem:[#allocation8 + $0x1458] sm:$0xff]
    %v4184 = vld [vmem:[#allocation8 + $0x1460] sm:$0xff]
    %v4185 = vld [vmem:[#allocation8 + $0x1468] sm:$0xff]
    %v4186 = vld [vmem:[#allocation8 + $0x1470] sm:$0xff]
    %v4187 = vld [vmem:[#allocation8 + $0x1478] sm:$0xff]
    %v4188 = vld [vmem:[#allocation8 + $0x1480] sm:$0xff]
    %v4189 = vld [vmem:[#allocation8 + $0x1488] sm:$0xff]
    %v4190 = vld [vmem:[#allocation8 + $0x1490] sm:$0xff]
    %v4191 = vld [vmem:[#allocation8 + $0x1498] sm:$0xff]
    %v4192 = vld [vmem:[#allocation8 + $0x14a0] sm:$0xff]
    %v4193 = vld [vmem:[#allocation8 + $0x14a8] sm:$0xff]
    %v4194 = vld [vmem:[#allocation8 + $0x14b0] sm:$0xff]
    %v4195 = vld [vmem:[#allocation8 + $0x14b8] sm:$0xff]
    %v4196 = vld [vmem:[#allocation8 + $0x14c0] sm:$0xff]
    %v4197 = vld [vmem:[#allocation8 + $0x14c8] sm:$0xff]
    %v4198 = vld [vmem:[#allocation8 + $0x14d0] sm:$0xff]
    %v4199 = vld [vmem:[#allocation8 + $0x14d8] sm:$0xff]
    %v4200 = vld [vmem:[#allocation8 + $0x14e0] sm:$0xff]
    %v4201 = vld [vmem:[#allocation8 + $0x14e8] sm:$0xff]
    %v4202 = vld [vmem:[#allocation8 + $0x14f0] sm:$0xff]
    %v4203 = vld [vmem:[#allocation8 + $0x14f8] sm:$0xff]
    %v4204 = vld [vmem:[#allocation8 + $0x1500] sm:$0xff]
    %v4205 = vld [vmem:[#allocation8 + $0x1508] sm:$0xff]
    %v4206 = vld [vmem:[#allocation8 + $0x1510] sm:$0xff]
    %v4207 = vld [vmem:[#allocation8 + $0x1518] sm:$0xff]
    %v4208 = vld [vmem:[#allocation8 + $0x1520] sm:$0xff]
    %v4209 = vld [vmem:[#allocation8 + $0x1528] sm:$0xff]
    %v4210 = vld [vmem:[#allocation8 + $0x1530] sm:$0xff]
    %v4211 = vld [vmem:[#allocation8 + $0x1538] sm:$0xff]
    %v4212 = vld [vmem:[#allocation8 + $0x1540] sm:$0xff]
    %v4213 = vld [vmem:[#allocation8 + $0x1548] sm:$0xff]
    %v4214 = vld [vmem:[#allocation8 + $0x1550] sm:$0xff]
    %v4215 = vld [vmem:[#allocation8 + $0x1558] sm:$0xff]
    %v4216 = vld [vmem:[#allocation8 + $0x1560] sm:$0xff]
    %v4217 = vld [vmem:[#allocation8 + $0x1568] sm:$0xff]
    %v4218 = vld [vmem:[#allocation8 + $0x1570] sm:$0xff]
    %v4219 = vld [vmem:[#allocation8 + $0x1578] sm:$0xff]
    %v4220 = vld [vmem:[#allocation8 + $0x1580] sm:$0xff]
    %v4221 = vld [vmem:[#allocation8 + $0x1588] sm:$0xff]
    %v4222 = vld [vmem:[#allocation8 + $0x1590] sm:$0xff]
    %v4223 = vld [vmem:[#allocation8 + $0x1598] sm:$0xff]
    %v4224 = vld [vmem:[#allocation8 + $0x15a0] sm:$0xff]
    %v4225 = vld [vmem:[#allocation8 + $0x15a8] sm:$0xff]
    %v4226 = vld [vmem:[#allocation8 + $0x15b0] sm:$0xff]
    %v4227 = vld [vmem:[#allocation8 + $0x15b8] sm:$0xff]
    %v4228 = vld [vmem:[#allocation8 + $0x15c0] sm:$0xff]
    %v4229 = vld [vmem:[#allocation8 + $0x15c8] sm:$0xff]
    %v4230 = vld [vmem:[#allocation8 + $0x15d0] sm:$0xff]
    %v4231 = vld [vmem:[#allocation8 + $0x15d8] sm:$0xff]
    %v4232 = vld [vmem:[#allocation8 + $0x15e0] sm:$0xff]
    %v4233 = vld [vmem:[#allocation8 + $0x15e8] sm:$0xff]
    %v4234 = vld [vmem:[#allocation8 + $0x15f0] sm:$0xff]
    %v4235 = vld [vmem:[#allocation8 + $0x15f8] sm:$0xff]
    %v4236 = vld [vmem:[#allocation8 + $0x1600] sm:$0xff]
    %v4237 = vld [vmem:[#allocation8 + $0x1608] sm:$0xff]
    %v4238 = vld [vmem:[#allocation8 + $0x1610] sm:$0xff]
    %v4239 = vld [vmem:[#allocation8 + $0x1618] sm:$0xff]
    %v4240 = vld [vmem:[#allocation8 + $0x1620] sm:$0xff]
    %v4241 = vld [vmem:[#allocation8 + $0x1628] sm:$0xff]
    %v4242 = vld [vmem:[#allocation8 + $0x1630] sm:$0xff]
    %v4243 = vld [vmem:[#allocation8 + $0x1638] sm:$0xff]
    %v4244 = vld [vmem:[#allocation8 + $0x1640] sm:$0xff]
    %v4245 = vld [vmem:[#allocation8 + $0x1648] sm:$0xff]
    %v4246 = vld [vmem:[#allocation8 + $0x1650] sm:$0xff]
    %v4247 = vld [vmem:[#allocation8 + $0x1658] sm:$0xff]
    %v4248 = vld [vmem:[#allocation8 + $0x1660] sm:$0xff]
    %v4249 = vld [vmem:[#allocation8 + $0x1668] sm:$0xff]
    %v4250 = vld [vmem:[#allocation8 + $0x1670] sm:$0xff]
    %v4251 = vld [vmem:[#allocation8 + $0x1678] sm:$0xff]
    %v4252 = vld [vmem:[#allocation8 + $0x1680] sm:$0xff]
    %v4253 = vld [vmem:[#allocation8 + $0x1688] sm:$0xff]
    %v4254 = vld [vmem:[#allocation8 + $0x1690] sm:$0xff]
    %v4255 = vld [vmem:[#allocation8 + $0x1698] sm:$0xff]
    %v4256 = vld [vmem:[#allocation8 + $0x16a0] sm:$0xff]
    %v4257 = vld [vmem:[#allocation8 + $0x16a8] sm:$0xff]
    %v4258 = vld [vmem:[#allocation8 + $0x16b0] sm:$0xff]
    %v4259 = vld [vmem:[#allocation8 + $0x16b8] sm:$0xff]
    %v4260 = vld [vmem:[#allocation8 + $0x16c0] sm:$0xff]
    %v4261 = vld [vmem:[#allocation8 + $0x16c8] sm:$0xff]
    %v4262 = vld [vmem:[#allocation8 + $0x16d0] sm:$0xff]
    %v4263 = vld [vmem:[#allocation8 + $0x16d8] sm:$0xff]
    %v4264 = vld [vmem:[#allocation8 + $0x16e0] sm:$0xff]
    %v4265 = vld [vmem:[#allocation8 + $0x16e8] sm:$0xff]
    %v4266 = vld [vmem:[#allocation8 + $0x16f0] sm:$0xff]
    %v4267 = vld [vmem:[#allocation8 + $0x16f8] sm:$0xff]
    %v4268 = vld [vmem:[#allocation8 + $0x1700] sm:$0xff]
    %v4269 = vld [vmem:[#allocation8 + $0x1708] sm:$0xff]
    %v4270 = vld [vmem:[#allocation8 + $0x1710] sm:$0xff]
    %v4271 = vld [vmem:[#allocation8 + $0x1718] sm:$0xff]
    %v4272 = vld [vmem:[#allocation8 + $0x1720] sm:$0xff]
    %v4273 = vld [vmem:[#allocation8 + $0x1728] sm:$0xff]
    %v4274 = vld [vmem:[#allocation8 + $0x1730] sm:$0xff]
    %v4275 = vld [vmem:[#allocation8 + $0x1738] sm:$0xff]
    %v4276 = vld [vmem:[#allocation8 + $0x1740] sm:$0xff]
    %v4277 = vld [vmem:[#allocation8 + $0x1748] sm:$0xff]
    %v4278 = vld [vmem:[#allocation8 + $0x1750] sm:$0xff]
    %v4279 = vld [vmem:[#allocation8 + $0x1758] sm:$0xff]
    %v4280 = vld [vmem:[#allocation8 + $0x1760] sm:$0xff]
    %v4281 = vld [vmem:[#allocation8 + $0x1768] sm:$0xff]
    %v4282 = vld [vmem:[#allocation8 + $0x1770] sm:$0xff]
    %v4283 = vld [vmem:[#allocation8 + $0x1778] sm:$0xff]
    %v4284 = vld [vmem:[#allocation8 + $0x1780] sm:$0xff]
    %v4285 = vld [vmem:[#allocation8 + $0x1788] sm:$0xff]
    %v4286 = vld [vmem:[#allocation8 + $0x1790] sm:$0xff]
    %v4287 = vld [vmem:[#allocation8 + $0x1798] sm:$0xff]
    %v4288 = vld [vmem:[#allocation8 + $0x17a0] sm:$0xff]
    %v4289 = vld [vmem:[#allocation8 + $0x17a8] sm:$0xff]
    %v4290 = vld [vmem:[#allocation8 + $0x17b0] sm:$0xff]
    %v4291 = vld [vmem:[#allocation8 + $0x17b8] sm:$0xff]
    %v4292 = vld [vmem:[#allocation8 + $0x17c0] sm:$0xff]
    %v4293 = vld [vmem:[#allocation8 + $0x17c8] sm:$0xff]
    %v4294 = vld [vmem:[#allocation8 + $0x17d0] sm:$0xff]
    %v4295 = vld [vmem:[#allocation8 + $0x17d8] sm:$0xff]
    %v4296 = vld [vmem:[#allocation8 + $0x17e0] sm:$0xff]
    %v4297 = vld [vmem:[#allocation8 + $0x17e8] sm:$0xff]
    %v4298 = vld [vmem:[#allocation8 + $0x17f0] sm:$0xff]
    %v4299 = vld [vmem:[#allocation8 + $0x17f8] sm:$0xff]
    %v4300 = vld [vmem:[#allocation8 + $0x1800] sm:$0xff]
    %v4301 = vld [vmem:[#allocation8 + $0x1808] sm:$0xff]
    %v4302 = vld [vmem:[#allocation8 + $0x1810] sm:$0xff]
    %v4303 = vld [vmem:[#allocation8 + $0x1818] sm:$0xff]
    %v4304 = vld [vmem:[#allocation8 + $0x1820] sm:$0xff]
    %v4305 = vld [vmem:[#allocation8 + $0x1828] sm:$0xff]
    %v4306 = vld [vmem:[#allocation8 + $0x1830] sm:$0xff]
    %v4307 = vld [vmem:[#allocation8 + $0x1838] sm:$0xff]
    %v4308 = vld [vmem:[#allocation8 + $0x1840] sm:$0xff]
    %v4309 = vld [vmem:[#allocation8 + $0x1848] sm:$0xff]
    %v4310 = vld [vmem:[#allocation8 + $0x1850] sm:$0xff]
    %v4311 = vld [vmem:[#allocation8 + $0x1858] sm:$0xff]
    %v4312 = vld [vmem:[#allocation8 + $0x1860] sm:$0xff]
    %v4313 = vld [vmem:[#allocation8 + $0x1868] sm:$0xff]
    %v4314 = vld [vmem:[#allocation8 + $0x1870] sm:$0xff]
    %v4315 = vld [vmem:[#allocation8 + $0x1878] sm:$0xff]
    %v4316 = vld [vmem:[#allocation8 + $0x1880] sm:$0xff]
    %v4317 = vld [vmem:[#allocation8 + $0x1888] sm:$0xff]
    %v4318 = vld [vmem:[#allocation8 + $0x1890] sm:$0xff]
    %v4319 = vld [vmem:[#allocation8 + $0x1898] sm:$0xff]
    %v4320 = vld [vmem:[#allocation8 + $0x18a0] sm:$0xff]
    %v4321 = vld [vmem:[#allocation8 + $0x18a8] sm:$0xff]
    %v4322 = vld [vmem:[#allocation8 + $0x18b0] sm:$0xff]
    %v4323 = vld [vmem:[#allocation8 + $0x18b8] sm:$0xff]
    %v4324 = vld [vmem:[#allocation8 + $0x18c0] sm:$0xff]
    %v4325 = vld [vmem:[#allocation8 + $0x18c8] sm:$0xff]
    %v4326 = vld [vmem:[#allocation8 + $0x18d0] sm:$0xff]
    %v4327 = vld [vmem:[#allocation8 + $0x18d8] sm:$0xff]
    %v4328 = vld [vmem:[#allocation8 + $0x18e0] sm:$0xff]
    %v4329 = vld [vmem:[#allocation8 + $0x18e8] sm:$0xff]
    %v4330 = vld [vmem:[#allocation8 + $0x18f0] sm:$0xff]
    %v4331 = vld [vmem:[#allocation8 + $0x18f8] sm:$0xff]
    %v4332 = vld [vmem:[#allocation8 + $0x1900] sm:$0xff]
    %v4333 = vld [vmem:[#allocation8 + $0x1908] sm:$0xff]
    %v4334 = vld [vmem:[#allocation8 + $0x1910] sm:$0xff]
    %v4335 = vld [vmem:[#allocation8 + $0x1918] sm:$0xff]
    %v4336 = vld [vmem:[#allocation8 + $0x1920] sm:$0xff]
    %v4337 = vld [vmem:[#allocation8 + $0x1928] sm:$0xff]
    %v4338 = vld [vmem:[#allocation8 + $0x1930] sm:$0xff]
    %v4339 = vld [vmem:[#allocation8 + $0x1938] sm:$0xff]
    %v4340 = vld [vmem:[#allocation8 + $0x1940] sm:$0xff]
    %v4341 = vld [vmem:[#allocation8 + $0x1948] sm:$0xff]
    %v4342 = vld [vmem:[#allocation8 + $0x1950] sm:$0xff]
    %v4343 = vld [vmem:[#allocation8 + $0x1958] sm:$0xff]
    %v4344 = vld [vmem:[#allocation8 + $0x1960] sm:$0xff]
    %v4345 = vld [vmem:[#allocation8 + $0x1968] sm:$0xff]
    %v4346 = vld [vmem:[#allocation8 + $0x1970] sm:$0xff]
    %v4347 = vld [vmem:[#allocation8 + $0x1978] sm:$0xff]
    %v4348 = vld [vmem:[#allocation8 + $0x1980] sm:$0xff]
    %v4349 = vld [vmem:[#allocation8 + $0x1988] sm:$0xff]
    %v4350 = vld [vmem:[#allocation8 + $0x1990] sm:$0xff]
    %v4351 = vld [vmem:[#allocation8 + $0x1998] sm:$0xff]
    %v4352 = vld [vmem:[#allocation8 + $0x19a0] sm:$0xff]
    %v4353 = vld [vmem:[#allocation8 + $0x19a8] sm:$0xff]
    %v4354 = vld [vmem:[#allocation8 + $0x19b0] sm:$0xff]
    %v4355 = vld [vmem:[#allocation8 + $0x19b8] sm:$0xff]
    %v4356 = vld [vmem:[#allocation8 + $0x19c0] sm:$0xff]
    %v4357 = vld [vmem:[#allocation8 + $0x19c8] sm:$0xff]
    %v4358 = vld [vmem:[#allocation8 + $0x19d0] sm:$0xff]
    %v4359 = vld [vmem:[#allocation8 + $0x19d8] sm:$0xff]
    %v4360 = vld [vmem:[#allocation8 + $0x19e0] sm:$0xff]
    %v4361 = vld [vmem:[#allocation8 + $0x19e8] sm:$0xff]
    %v4362 = vld [vmem:[#allocation8 + $0x19f0] sm:$0xff]
    %v4363 = vld [vmem:[#allocation8 + $0x19f8] sm:$0xff]
    %v4364 = vld [vmem:[#allocation8 + $0x1a00] sm:$0xff]
    %v4365 = vld [vmem:[#allocation8 + $0x1a08] sm:$0xff]
    %v4366 = vld [vmem:[#allocation8 + $0x1a10] sm:$0xff]
    %v4367 = vld [vmem:[#allocation8 + $0x1a18] sm:$0xff]
    %v4368 = vld [vmem:[#allocation8 + $0x1a20] sm:$0xff]
    %v4369 = vld [vmem:[#allocation8 + $0x1a28] sm:$0xff]
    %v4370 = vld [vmem:[#allocation8 + $0x1a30] sm:$0xff]
    %v4371 = vld [vmem:[#allocation8 + $0x1a38] sm:$0xff]
    %v4372 = vld [vmem:[#allocation8 + $0x1a40] sm:$0xff]
    %v4373 = vld [vmem:[#allocation8 + $0x1a48] sm:$0xff]
    %v4374 = vld [vmem:[#allocation8 + $0x1a50] sm:$0xff]
    %v4375 = vld [vmem:[#allocation8 + $0x1a58] sm:$0xff]
    %v4376 = vld [vmem:[#allocation8 + $0x1a60] sm:$0xff]
    %v4377 = vld [vmem:[#allocation8 + $0x1a68] sm:$0xff]
    %v4378 = vld [vmem:[#allocation8 + $0x1a70] sm:$0xff]
    %v4379 = vld [vmem:[#allocation8 + $0x1a78] sm:$0xff]
    %v4380 = vld [vmem:[#allocation8 + $0x1a80] sm:$0xff]
    %v4381 = vld [vmem:[#allocation8 + $0x1a88] sm:$0xff]
    %v4382 = vld [vmem:[#allocation8 + $0x1a90] sm:$0xff]
    %v4383 = vld [vmem:[#allocation8 + $0x1a98] sm:$0xff]
    %v4384 = vld [vmem:[#allocation8 + $0x1aa0] sm:$0xff]
    %v4385 = vld [vmem:[#allocation8 + $0x1aa8] sm:$0xff]
    %v4386 = vld [vmem:[#allocation8 + $0x1ab0] sm:$0xff]
    %v4387 = vld [vmem:[#allocation8 + $0x1ab8] sm:$0xff]
    %v4388 = vld [vmem:[#allocation8 + $0x1ac0] sm:$0xff]
    %v4389 = vld [vmem:[#allocation8 + $0x1ac8] sm:$0xff]
    %v4390 = vld [vmem:[#allocation8 + $0x1ad0] sm:$0xff]
    %v4391 = vld [vmem:[#allocation8 + $0x1ad8] sm:$0xff]
    %v4392 = vld [vmem:[#allocation8 + $0x1ae0] sm:$0xff]
    %v4393 = vld [vmem:[#allocation8 + $0x1ae8] sm:$0xff]
    %v4394 = vld [vmem:[#allocation8 + $0x1af0] sm:$0xff]
    %v4395 = vld [vmem:[#allocation8 + $0x1af8] sm:$0xff]
    %v4396 = vld [vmem:[#allocation8 + $0x1b00] sm:$0xff]
    %v4397 = vld [vmem:[#allocation8 + $0x1b08] sm:$0xff]
    %v4398 = vld [vmem:[#allocation8 + $0x1b10] sm:$0xff]
    %v4399 = vld [vmem:[#allocation8 + $0x1b18] sm:$0xff]
    %v4400 = vld [vmem:[#allocation8 + $0x1b20] sm:$0xff]
    %v4401 = vld [vmem:[#allocation8 + $0x1b28] sm:$0xff]
    %v4402 = vld [vmem:[#allocation8 + $0x1b30] sm:$0xff]
    %v4403 = vld [vmem:[#allocation8 + $0x1b38] sm:$0xff]
    %v4404 = vld [vmem:[#allocation8 + $0x1b40] sm:$0xff]
    %v4405 = vld [vmem:[#allocation8 + $0x1b48] sm:$0xff]
    %v4406 = vld [vmem:[#allocation8 + $0x1b50] sm:$0xff]
    %v4407 = vld [vmem:[#allocation8 + $0x1b58] sm:$0xff]
    %v4408 = vld [vmem:[#allocation8 + $0x1b60] sm:$0xff]
    %v4409 = vld [vmem:[#allocation8 + $0x1b68] sm:$0xff]
    %v4410 = vld [vmem:[#allocation8 + $0x1b70] sm:$0xff]
    %v4411 = vld [vmem:[#allocation8 + $0x1b78] sm:$0xff]
    %v4412 = vld [vmem:[#allocation8 + $0x1b80] sm:$0xff]
    %v4413 = vld [vmem:[#allocation8 + $0x1b88] sm:$0xff]
    %v4414 = vld [vmem:[#allocation8 + $0x1b90] sm:$0xff]
    %v4415 = vld [vmem:[#allocation8 + $0x1b98] sm:$0xff]
    %v4416 = vld [vmem:[#allocation8 + $0x1ba0] sm:$0xff]
    %v4417 = vld [vmem:[#allocation8 + $0x1ba8] sm:$0xff]
    %v4418 = vld [vmem:[#allocation8 + $0x1bb0] sm:$0xff]
    %v4419 = vld [vmem:[#allocation8 + $0x1bb8] sm:$0xff]
    %v4420 = vld [vmem:[#allocation8 + $0x1bc0] sm:$0xff]
    %v4421 = vld [vmem:[#allocation8 + $0x1bc8] sm:$0xff]
    %v4422 = vld [vmem:[#allocation8 + $0x1bd0] sm:$0xff]
    %v4423 = vld [vmem:[#allocation8 + $0x1bd8] sm:$0xff]
    %v4424 = vld [vmem:[#allocation8 + $0x1be0] sm:$0xff]
    %v4425 = vld [vmem:[#allocation8 + $0x1be8] sm:$0xff]
    %v4426 = vld [vmem:[#allocation8 + $0x1bf0] sm:$0xff]
    %v4427 = vld [vmem:[#allocation8 + $0x1bf8] sm:$0xff]
    %v4428 = vld [vmem:[#allocation8 + $0x1c00] sm:$0xff]
    %v4429 = vld [vmem:[#allocation8 + $0x1c08] sm:$0xff]
    %v4430 = vld [vmem:[#allocation8 + $0x1c10] sm:$0xff]
    %v4431 = vld [vmem:[#allocation8 + $0x1c18] sm:$0xff]
    %v4432 = vld [vmem:[#allocation8 + $0x1c20] sm:$0xff]
    %v4433 = vld [vmem:[#allocation8 + $0x1c28] sm:$0xff]
    %v4434 = vld [vmem:[#allocation8 + $0x1c30] sm:$0xff]
    %v4435 = vld [vmem:[#allocation8 + $0x1c38] sm:$0xff]
    %v4436 = vld [vmem:[#allocation8 + $0x1c40] sm:$0xff]
    %v4437 = vld [vmem:[#allocation8 + $0x1c48] sm:$0xff]
    %v4438 = vld [vmem:[#allocation8 + $0x1c50] sm:$0xff]
    %v4439 = vld [vmem:[#allocation8 + $0x1c58] sm:$0xff]
    %v4440 = vld [vmem:[#allocation8 + $0x1c60] sm:$0xff]
    %v4441 = vld [vmem:[#allocation8 + $0x1c68] sm:$0xff]
    %v4442 = vld [vmem:[#allocation8 + $0x1c70] sm:$0xff]
    %v4443 = vld [vmem:[#allocation8 + $0x1c78] sm:$0xff]
    %v4444 = vld [vmem:[#allocation8 + $0x1c80] sm:$0xff]
    %v4445 = vld [vmem:[#allocation8 + $0x1c88] sm:$0xff]
    %v4446 = vld [vmem:[#allocation8 + $0x1c90] sm:$0xff]
    %v4447 = vld [vmem:[#allocation8 + $0x1c98] sm:$0xff]
    %v4448 = vld [vmem:[#allocation8 + $0x1ca0] sm:$0xff]
    %v4449 = vld [vmem:[#allocation8 + $0x1ca8] sm:$0xff]
    %v4450 = vld [vmem:[#allocation8 + $0x1cb0] sm:$0xff]
    %v4451 = vld [vmem:[#allocation8 + $0x1cb8] sm:$0xff]
    %v4452 = vld [vmem:[#allocation8 + $0x1cc0] sm:$0xff]
    %v4453 = vld [vmem:[#allocation8 + $0x1cc8] sm:$0xff]
    %v4454 = vld [vmem:[#allocation8 + $0x1cd0] sm:$0xff]
    %v4455 = vld [vmem:[#allocation8 + $0x1cd8] sm:$0xff]
    %v4456 = vld [vmem:[#allocation8 + $0x1ce0] sm:$0xff]
    %v4457 = vld [vmem:[#allocation8 + $0x1ce8] sm:$0xff]
    %v4458 = vld [vmem:[#allocation8 + $0x1cf0] sm:$0xff]
    %v4459 = vld [vmem:[#allocation8 + $0x1cf8] sm:$0xff]
    %v4460 = vld [vmem:[#allocation8 + $0x1d00] sm:$0xff]
    %v4461 = vld [vmem:[#allocation8 + $0x1d08] sm:$0xff]
    %v4462 = vld [vmem:[#allocation8 + $0x1d10] sm:$0xff]
    %v4463 = vld [vmem:[#allocation8 + $0x1d18] sm:$0xff]
    %v4464 = vld [vmem:[#allocation8 + $0x1d20] sm:$0xff]
    %v4465 = vld [vmem:[#allocation8 + $0x1d28] sm:$0xff]
    %v4466 = vld [vmem:[#allocation8 + $0x1d30] sm:$0xff]
    %v4467 = vld [vmem:[#allocation8 + $0x1d38] sm:$0xff]
    %v4468 = vld [vmem:[#allocation8 + $0x1d40] sm:$0xff]
    %v4469 = vld [vmem:[#allocation8 + $0x1d48] sm:$0xff]
    %v4470 = vld [vmem:[#allocation8 + $0x1d50] sm:$0xff]
    %v4471 = vld [vmem:[#allocation8 + $0x1d58] sm:$0xff]
    %v4472 = vld [vmem:[#allocation8 + $0x1d60] sm:$0xff]
    %v4473 = vld [vmem:[#allocation8 + $0x1d68] sm:$0xff]
    %v4474 = vld [vmem:[#allocation8 + $0x1d70] sm:$0xff]
    %v4475 = vld [vmem:[#allocation8 + $0x1d78] sm:$0xff]
    %v4476 = vld [vmem:[#allocation8 + $0x1d80] sm:$0xff]
    %v4477 = vld [vmem:[#allocation8 + $0x1d88] sm:$0xff]
    %v4478 = vld [vmem:[#allocation8 + $0x1d90] sm:$0xff]
    %v4479 = vld [vmem:[#allocation8 + $0x1d98] sm:$0xff]
    %v4480 = vld [vmem:[#allocation8 + $0x1da0] sm:$0xff]
    %v4481 = vld [vmem:[#allocation8 + $0x1da8] sm:$0xff]
    %v4482 = vld [vmem:[#allocation8 + $0x1db0] sm:$0xff]
    %v4483 = vld [vmem:[#allocation8 + $0x1db8] sm:$0xff]
    %v4484 = vld [vmem:[#allocation8 + $0x1dc0] sm:$0xff]
    %v4485 = vld [vmem:[#allocation8 + $0x1dc8] sm:$0xff]
    %v4486 = vld [vmem:[#allocation8 + $0x1dd0] sm:$0xff]
    %v4487 = vld [vmem:[#allocation8 + $0x1dd8] sm:$0xff]
    %v4488 = vld [vmem:[#allocation8 + $0x1de0] sm:$0xff]
    %v4489 = vld [vmem:[#allocation8 + $0x1de8] sm:$0xff]
    %v4490 = vld [vmem:[#allocation8 + $0x1df0] sm:$0xff]
    %v4491 = vld [vmem:[#allocation8 + $0x1df8] sm:$0xff]
    %v4492 = vld [vmem:[#allocation8 + $0x1e00] sm:$0xff]
    %v4493 = vld [vmem:[#allocation8 + $0x1e08] sm:$0xff]
    %v4494 = vld [vmem:[#allocation8 + $0x1e10] sm:$0xff]
    %v4495 = vld [vmem:[#allocation8 + $0x1e18] sm:$0xff]
    %v4496 = vld [vmem:[#allocation8 + $0x1e20] sm:$0xff]
    %v4497 = vld [vmem:[#allocation8 + $0x1e28] sm:$0xff]
    %v4498 = vld [vmem:[#allocation8 + $0x1e30] sm:$0xff]
    %v4499 = vld [vmem:[#allocation8 + $0x1e38] sm:$0xff]
    %v4500 = vld [vmem:[#allocation8 + $0x1e40] sm:$0xff]
    %v4501 = vld [vmem:[#allocation8 + $0x1e48] sm:$0xff]
    %v4502 = vld [vmem:[#allocation8 + $0x1e50] sm:$0xff]
    %v4503 = vld [vmem:[#allocation8 + $0x1e58] sm:$0xff]
    %v4504 = vld [vmem:[#allocation8 + $0x1e60] sm:$0xff]
    %v4505 = vld [vmem:[#allocation8 + $0x1e68] sm:$0xff]
    %v4506 = vld [vmem:[#allocation8 + $0x1e70] sm:$0xff]
    %v4507 = vld [vmem:[#allocation8 + $0x1e78] sm:$0xff]
    %v4508 = vld [vmem:[#allocation8 + $0x1e80] sm:$0xff]
    %v4509 = vld [vmem:[#allocation8 + $0x1e88] sm:$0xff]
    %v4510 = vld [vmem:[#allocation8 + $0x1e90] sm:$0xff]
    %v4511 = vld [vmem:[#allocation8 + $0x1e98] sm:$0xff]
    %v4512 = vld [vmem:[#allocation8 + $0x1ea0] sm:$0xff]
    %v4513 = vld [vmem:[#allocation8 + $0x1ea8] sm:$0xff]
    %v4514 = vld [vmem:[#allocation8 + $0x1eb0] sm:$0xff]
    %v4515 = vld [vmem:[#allocation8 + $0x1eb8] sm:$0xff]
    %v4516 = vld [vmem:[#allocation8 + $0x1ec0] sm:$0xff]
    %v4517 = vld [vmem:[#allocation8 + $0x1ec8] sm:$0xff]
    %v4518 = vld [vmem:[#allocation8 + $0x1ed0] sm:$0xff]
    %v4519 = vld [vmem:[#allocation8 + $0x1ed8] sm:$0xff]
    %v4520 = vld [vmem:[#allocation8 + $0x1ee0] sm:$0xff]
    %v4521 = vld [vmem:[#allocation8 + $0x1ee8] sm:$0xff]
    %v4522 = vld [vmem:[#allocation8 + $0x1ef0] sm:$0xff]
    %v4523 = vld [vmem:[#allocation8 + $0x1ef8] sm:$0xff]
    %v4524 = vld [vmem:[#allocation8 + $0x1f00] sm:$0xff]
    %v4525 = vld [vmem:[#allocation8 + $0x1f08] sm:$0xff]
    %v4526 = vld [vmem:[#allocation8 + $0x1f10] sm:$0xff]
    %v4527 = vld [vmem:[#allocation8 + $0x1f18] sm:$0xff]
    %v4528 = vld [vmem:[#allocation8 + $0x1f20] sm:$0xff]
    %v4529 = vld [vmem:[#allocation8 + $0x1f28] sm:$0xff]
    %v4530 = vld [vmem:[#allocation8 + $0x1f30] sm:$0xff]
    %v4531 = vld [vmem:[#allocation8 + $0x1f38] sm:$0xff]
    %v4532 = vld [vmem:[#allocation8 + $0x1f40] sm:$0xff]
    %v4533 = vld [vmem:[#allocation8 + $0x1f48] sm:$0xff]
    %v4534 = vld [vmem:[#allocation8 + $0x1f50] sm:$0xff]
    %v4535 = vld [vmem:[#allocation8 + $0x1f58] sm:$0xff]
    %v4536 = vld [vmem:[#allocation8 + $0x1f60] sm:$0xff]
    %v4537 = vld [vmem:[#allocation8 + $0x1f68] sm:$0xff]
    %v4538 = vld [vmem:[#allocation8 + $0x1f70] sm:$0xff]
    %v4539 = vld [vmem:[#allocation8 + $0x1f78] sm:$0xff]
    %v4540 = vld [vmem:[#allocation8 + $0x1f80] sm:$0xff]
    %v4541 = vld [vmem:[#allocation8 + $0x1f88] sm:$0xff]
    %v4542 = vld [vmem:[#allocation8 + $0x1f90] sm:$0xff]
    %v4543 = vld [vmem:[#allocation8 + $0x1f98] sm:$0xff]
    %v4544 = vld [vmem:[#allocation8 + $0x1fa0] sm:$0xff]
    %v4545 = vld [vmem:[#allocation8 + $0x1fa8] sm:$0xff]
    %v4546 = vld [vmem:[#allocation8 + $0x1fb0] sm:$0xff]
    %v4547 = vld [vmem:[#allocation8 + $0x1fb8] sm:$0xff]
    %v4548 = vld [vmem:[#allocation8 + $0x1fc0] sm:$0xff]
    %v4549 = vld [vmem:[#allocation8 + $0x1fc8] sm:$0xff]
    %v4550 = vld [vmem:[#allocation8 + $0x1fd0] sm:$0xff]
    %v4551 = vld [vmem:[#allocation8 + $0x1fd8] sm:$0xff]
    %v4552 = vld [vmem:[#allocation8 + $0x1fe0] sm:$0xff]
    %v4553 = vld [vmem:[#allocation8 + $0x1fe8] sm:$0xff]
    %v4554 = vld [vmem:[#allocation8 + $0x1ff0] sm:$0xff]
    %v4555 = vld [vmem:[#allocation8 + $0x1ff8] sm:$0xff]
    %v4556 = vld [vmem:[#allocation8 + $0x2000] sm:$0xff]
    %v4557 = vld [vmem:[#allocation8 + $0x2008] sm:$0xff]
    %v4558 = vld [vmem:[#allocation8 + $0x2010] sm:$0xff]
    %v4559 = vld [vmem:[#allocation8 + $0x2018] sm:$0xff]
    %v4560 = vld [vmem:[#allocation8 + $0x2020] sm:$0xff]
    %v4561 = vld [vmem:[#allocation8 + $0x2028] sm:$0xff]
    %v4562 = vld [vmem:[#allocation8 + $0x2030] sm:$0xff]
    %v4563 = vld [vmem:[#allocation8 + $0x2038] sm:$0xff]
    %v4564 = vld [vmem:[#allocation8 + $0x2040] sm:$0xff]
    %v4565 = vld [vmem:[#allocation8 + $0x2048] sm:$0xff]
    %v4566 = vld [vmem:[#allocation8 + $0x2050] sm:$0xff]
    %v4567 = vld [vmem:[#allocation8 + $0x2058] sm:$0xff]
    %v4568 = vld [vmem:[#allocation8 + $0x2060] sm:$0xff]
    %v4569 = vld [vmem:[#allocation8 + $0x2068] sm:$0xff]
    %v4570 = vld [vmem:[#allocation8 + $0x2070] sm:$0xff]
    %v4571 = vld [vmem:[#allocation8 + $0x2078] sm:$0xff]
    %v4572 = vld [vmem:[#allocation8 + $0x2080] sm:$0xff]
    %v4573 = vld [vmem:[#allocation8 + $0x2088] sm:$0xff]
    %v4574 = vld [vmem:[#allocation8 + $0x2090] sm:$0xff]
    %v4575 = vld [vmem:[#allocation8 + $0x2098] sm:$0xff]
    %v4576 = vld [vmem:[#allocation8 + $0x20a0] sm:$0xff]
    %v4577 = vld [vmem:[#allocation8 + $0x20a8] sm:$0xff]
    %v4578 = vld [vmem:[#allocation8 + $0x20b0] sm:$0xff]
    %v4579 = vld [vmem:[#allocation8 + $0x20b8] sm:$0xff]
    %v4580 = vld [vmem:[#allocation8 + $0x20c0] sm:$0xff]
    %v4581 = vld [vmem:[#allocation8 + $0x20c8] sm:$0xff]
    %v4582 = vld [vmem:[#allocation8 + $0x20d0] sm:$0xff]
    %v4583 = vld [vmem:[#allocation8 + $0x20d8] sm:$0xff]
    %v4584 = vld [vmem:[#allocation8 + $0x20e0] sm:$0xff]
    %v4585 = vld [vmem:[#allocation8 + $0x20e8] sm:$0xff]
    %v4586 = vld [vmem:[#allocation8 + $0x20f0] sm:$0xff]
    %v4587 = vld [vmem:[#allocation8 + $0x20f8] sm:$0xff]
    %v4588 = vld [vmem:[#allocation8 + $0x2100] sm:$0xff]
    %v4589 = vld [vmem:[#allocation8 + $0x2108] sm:$0xff]
    %v4590 = vld [vmem:[#allocation8 + $0x2110] sm:$0xff]
    %v4591 = vld [vmem:[#allocation8 + $0x2118] sm:$0xff]
    %v4592 = vld [vmem:[#allocation8 + $0x2120] sm:$0xff]
    %v4593 = vld [vmem:[#allocation8 + $0x2128] sm:$0xff]
    %v4594 = vld [vmem:[#allocation8 + $0x2130] sm:$0xff]
    %v4595 = vld [vmem:[#allocation8 + $0x2138] sm:$0xff]
    %v4596 = vld [vmem:[#allocation8 + $0x2140] sm:$0xff]
    %v4597 = vld [vmem:[#allocation8 + $0x2148] sm:$0xff]
    %v4598 = vld [vmem:[#allocation8 + $0x2150] sm:$0xff]
    %v4599 = vld [vmem:[#allocation8 + $0x2158] sm:$0xff]
    %v4600 = vld [vmem:[#allocation8 + $0x2160] sm:$0xff]
    %v4601 = vld [vmem:[#allocation8 + $0x2168] sm:$0xff]
    %v4602 = vld [vmem:[#allocation8 + $0x2170] sm:$0xff]
    %v4603 = vld [vmem:[#allocation8 + $0x2178] sm:$0xff]
    %v4604 = vld [vmem:[#allocation8 + $0x2180] sm:$0xff]
    %v4605 = vld [vmem:[#allocation8 + $0x2188] sm:$0xff]
    %v4606 = vld [vmem:[#allocation8 + $0x2190] sm:$0xff]
    %v4607 = vld [vmem:[#allocation8 + $0x2198] sm:$0xff]
    %v4608 = vld [vmem:[#allocation8 + $0x21a0] sm:$0xff]
    %v4609 = vld [vmem:[#allocation8 + $0x21a8] sm:$0xff]
    %v4610 = vld [vmem:[#allocation8 + $0x21b0] sm:$0xff]
    %v4611 = vld [vmem:[#allocation8 + $0x21b8] sm:$0xff]
    %v4612 = vld [vmem:[#allocation8 + $0x21c0] sm:$0xff]
    %v4613 = vld [vmem:[#allocation8 + $0x21c8] sm:$0xff]
    %v4614 = vld [vmem:[#allocation8 + $0x21d0] sm:$0xff]
    %v4615 = vld [vmem:[#allocation8 + $0x21d8] sm:$0xff]
    %v4616 = vld [vmem:[#allocation8 + $0x21e0] sm:$0xff]
    %v4617 = vld [vmem:[#allocation8 + $0x21e8] sm:$0xff]
    %v4618 = vld [vmem:[#allocation8 + $0x21f0] sm:$0xff]
    %v4619 = vld [vmem:[#allocation8 + $0x21f8] sm:$0xff]
    %v4620 = vld [vmem:[#allocation8 + $0x2200] sm:$0xff]
    %v4621 = vld [vmem:[#allocation8 + $0x2208] sm:$0xff]
    %v4622 = vld [vmem:[#allocation8 + $0x2210] sm:$0xff]
    %v4623 = vld [vmem:[#allocation8 + $0x2218] sm:$0xff]
    %v4624 = vld [vmem:[#allocation8 + $0x2220] sm:$0xff]
    %v4625 = vld [vmem:[#allocation8 + $0x2228] sm:$0xff]
    %v4626 = vld [vmem:[#allocation8 + $0x2230] sm:$0xff]
    %v4627 = vld [vmem:[#allocation8 + $0x2238] sm:$0xff]
    %v4628 = vld [vmem:[#allocation8 + $0x2240] sm:$0xff]
    %v4629 = vld [vmem:[#allocation8 + $0x2248] sm:$0xff]
    %v4630 = vld [vmem:[#allocation8 + $0x2250] sm:$0xff]
    %v4631 = vld [vmem:[#allocation8 + $0x2258] sm:$0xff]
    %v4632 = vld [vmem:[#allocation8 + $0x2260] sm:$0xff]
    %v4633 = vld [vmem:[#allocation8 + $0x2268] sm:$0xff]
    %v4634 = vld [vmem:[#allocation8 + $0x2270] sm:$0xff]
    %v4635 = vld [vmem:[#allocation8 + $0x2278] sm:$0xff]
    %v4636 = vld [vmem:[#allocation8 + $0x2280] sm:$0xff]
    %v4637 = vld [vmem:[#allocation8 + $0x2288] sm:$0xff]
    %v4638 = vld [vmem:[#allocation8 + $0x2290] sm:$0xff]
    %v4639 = vld [vmem:[#allocation8 + $0x2298] sm:$0xff]
    %v4640 = vld [vmem:[#allocation8 + $0x22a0] sm:$0xff]
    %v4641 = vld [vmem:[#allocation8 + $0x22a8] sm:$0xff]
    %v4642 = vld [vmem:[#allocation8 + $0x22b0] sm:$0xff]
    %v4643 = vld [vmem:[#allocation8 + $0x22b8] sm:$0xff]
    %v4644 = vld [vmem:[#allocation8 + $0x22c0] sm:$0xff]
    %v4645 = vld [vmem:[#allocation8 + $0x22c8] sm:$0xff]
    %v4646 = vld [vmem:[#allocation8 + $0x22d0] sm:$0xff]
    %v4647 = vld [vmem:[#allocation8 + $0x22d8] sm:$0xff]
    %v4648 = vld [vmem:[#allocation8 + $0x22e0] sm:$0xff]
    %v4649 = vld [vmem:[#allocation8 + $0x22e8] sm:$0xff]
    %v4650 = vld [vmem:[#allocation8 + $0x22f0] sm:$0xff]
    %v4651 = vld [vmem:[#allocation8 + $0x22f8] sm:$0xff]
    %v4652 = vld [vmem:[#allocation8 + $0x2300] sm:$0xff]
    %v4653 = vld [vmem:[#allocation8 + $0x2308] sm:$0xff]
    %v4654 = vld [vmem:[#allocation8 + $0x2310] sm:$0xff]
    %v4655 = vld [vmem:[#allocation8 + $0x2318] sm:$0xff]
    %v4656 = vld [vmem:[#allocation8 + $0x2320] sm:$0xff]
    %v4657 = vld [vmem:[#allocation8 + $0x2328] sm:$0xff]
    %v4658 = vld [vmem:[#allocation8 + $0x2330] sm:$0xff]
    %v4659 = vld [vmem:[#allocation8 + $0x2338] sm:$0xff]
    %v4660 = vld [vmem:[#allocation8 + $0x2340] sm:$0xff]
    %v4661 = vld [vmem:[#allocation8 + $0x2348] sm:$0xff]
    %v4662 = vld [vmem:[#allocation8 + $0x2350] sm:$0xff]
    %v4663 = vld [vmem:[#allocation8 + $0x2358] sm:$0xff]
    %v4664 = vld [vmem:[#allocation8 + $0x2360] sm:$0xff]
    %v4665 = vld [vmem:[#allocation8 + $0x2368] sm:$0xff]
    %v4666 = vld [vmem:[#allocation8 + $0x2370] sm:$0xff]
    %v4667 = vld [vmem:[#allocation8 + $0x2378] sm:$0xff]
    %v4668 = vld [vmem:[#allocation8 + $0x2380] sm:$0xff]
    %v4669 = vld [vmem:[#allocation8 + $0x2388] sm:$0xff]
    %v4670 = vld [vmem:[#allocation8 + $0x2390] sm:$0xff]
    %v4671 = vld [vmem:[#allocation8 + $0x2398] sm:$0xff]
    %v4672 = vld [vmem:[#allocation8 + $0x23a0] sm:$0xff]
    %v4673 = vld [vmem:[#allocation8 + $0x23a8] sm:$0xff]
    %v4674 = vld [vmem:[#allocation8 + $0x23b0] sm:$0xff]
    %v4675 = vld [vmem:[#allocation8 + $0x23b8] sm:$0xff]
    %v4676 = vld [vmem:[#allocation8 + $0x23c0] sm:$0xff]
    %v4677 = vld [vmem:[#allocation8 + $0x23c8] sm:$0xff]
    %v4678 = vld [vmem:[#allocation8 + $0x23d0] sm:$0xff]
    %v4679 = vld [vmem:[#allocation8 + $0x23d8] sm:$0xff]
    %v4680 = vld [vmem:[#allocation8 + $0x23e0] sm:$0xff]
    %v4681 = vld [vmem:[#allocation8 + $0x23e8] sm:$0xff]
    %v4682 = vld [vmem:[#allocation8 + $0x23f0] sm:$0xff]
    %v4683 = vld [vmem:[#allocation8 + $0x23f8] sm:$0xff]
    %v4684 = vld [vmem:[#allocation8 + $0x2400] sm:$0xff]
    %v4685 = vld [vmem:[#allocation8 + $0x2408] sm:$0xff]
    %v4686 = vld [vmem:[#allocation8 + $0x2410] sm:$0xff]
    %v4687 = vld [vmem:[#allocation8 + $0x2418] sm:$0xff]
    %v4688 = vld [vmem:[#allocation8 + $0x2420] sm:$0xff]
    %v4689 = vld [vmem:[#allocation8 + $0x2428] sm:$0xff]
    %v4690 = vld [vmem:[#allocation8 + $0x2430] sm:$0xff]
    %v4691 = vld [vmem:[#allocation8 + $0x2438] sm:$0xff]
    %v4692 = vld [vmem:[#allocation8 + $0x2440] sm:$0xff]
    %v4693 = vld [vmem:[#allocation8 + $0x2448] sm:$0xff]
    %v4694 = vld [vmem:[#allocation8 + $0x2450] sm:$0xff]
    %v4695 = vld [vmem:[#allocation8 + $0x2458] sm:$0xff]
    %v4696 = vld [vmem:[#allocation8 + $0x2460] sm:$0xff]
    %v4697 = vld [vmem:[#allocation8 + $0x2468] sm:$0xff]
    %v4698 = vld [vmem:[#allocation8 + $0x2470] sm:$0xff]
    %v4699 = vld [vmem:[#allocation8 + $0x2478] sm:$0xff]
    %v4700 = vld [vmem:[#allocation8 + $0x2480] sm:$0xff]
    %v4701 = vld [vmem:[#allocation8 + $0x2488] sm:$0xff]
    %v4702 = vld [vmem:[#allocation8 + $0x2490] sm:$0xff]
    %v4703 = vld [vmem:[#allocation8 + $0x2498] sm:$0xff]
    %v4704 = vld [vmem:[#allocation8 + $0x24a0] sm:$0xff]
    %v4705 = vld [vmem:[#allocation8 + $0x24a8] sm:$0xff]
    %v4706 = vld [vmem:[#allocation8 + $0x24b0] sm:$0xff]
    %v4707 = vld [vmem:[#allocation8 + $0x24b8] sm:$0xff]
    %v4708 = vld [vmem:[#allocation8 + $0x24c0] sm:$0xff]
    %v4709 = vld [vmem:[#allocation8 + $0x24c8] sm:$0xff]
    %v4710 = vld [vmem:[#allocation8 + $0x24d0] sm:$0xff]
    %v4711 = vld [vmem:[#allocation8 + $0x24d8] sm:$0xff]
    %v4712 = vld [vmem:[#allocation8 + $0x24e0] sm:$0xff]
    %v4713 = vld [vmem:[#allocation8 + $0x24e8] sm:$0xff]
    %v4714 = vld [vmem:[#allocation8 + $0x24f0] sm:$0xff]
    %v4715 = vld [vmem:[#allocation8 + $0x24f8] sm:$0xff]
    %v4716 = vld [vmem:[#allocation8 + $0x2500] sm:$0xff]
    %v4717 = vld [vmem:[#allocation8 + $0x2508] sm:$0xff]
    %v4718 = vld [vmem:[#allocation8 + $0x2510] sm:$0xff]
    %v4719 = vld [vmem:[#allocation8 + $0x2518] sm:$0xff]
    %v4720 = vld [vmem:[#allocation8 + $0x2520] sm:$0xff]
    %v4721 = vld [vmem:[#allocation8 + $0x2528] sm:$0xff]
    %v4722 = vld [vmem:[#allocation8 + $0x2530] sm:$0xff]
    %v4723 = vld [vmem:[#allocation8 + $0x2538] sm:$0xff]
    %v4724 = vld [vmem:[#allocation8 + $0x2540] sm:$0xff]
    %v4725 = vld [vmem:[#allocation8 + $0x2548] sm:$0xff]
    %v4726 = vld [vmem:[#allocation8 + $0x2550] sm:$0xff]
    %v4727 = vld [vmem:[#allocation8 + $0x2558] sm:$0xff]
    %v4728 = vld [vmem:[#allocation8 + $0x2560] sm:$0xff]
    %v4729 = vld [vmem:[#allocation8 + $0x2568] sm:$0xff]
    %v4730 = vld [vmem:[#allocation8 + $0x2570] sm:$0xff]
    %v4731 = vld [vmem:[#allocation8 + $0x2578] sm:$0xff]
    %v4732 = vld [vmem:[#allocation8 + $0x2580] sm:$0xff]
    %v4733 = vld [vmem:[#allocation8 + $0x2588] sm:$0xff]
    %v4734 = vld [vmem:[#allocation8 + $0x2590] sm:$0xff]
    %v4735 = vld [vmem:[#allocation8 + $0x2598] sm:$0xff]
    %v4736 = vld [vmem:[#allocation8 + $0x25a0] sm:$0xff]
    %v4737 = vld [vmem:[#allocation8 + $0x25a8] sm:$0xff]
    %v4738 = vld [vmem:[#allocation8 + $0x25b0] sm:$0xff]
    %v4739 = vld [vmem:[#allocation8 + $0x25b8] sm:$0xff]
    %v4740 = vld [vmem:[#allocation8 + $0x25c0] sm:$0xff]
    %v4741 = vld [vmem:[#allocation8 + $0x25c8] sm:$0xff]
    %v4742 = vld [vmem:[#allocation8 + $0x25d0] sm:$0xff]
    %v4743 = vld [vmem:[#allocation8 + $0x25d8] sm:$0xff]
    %v4744 = vld [vmem:[#allocation8 + $0x25e0] sm:$0xff]
    %v4745 = vld [vmem:[#allocation8 + $0x25e8] sm:$0xff]
    %v4746 = vld [vmem:[#allocation8 + $0x25f0] sm:$0xff]
    %v4747 = vld [vmem:[#allocation8 + $0x25f8] sm:$0xff]
    %v4748 = vld [vmem:[#allocation8 + $0x2600] sm:$0xff]
    %v4749 = vld [vmem:[#allocation8 + $0x2608] sm:$0xff]
    %v4750 = vld [vmem:[#allocation8 + $0x2610] sm:$0xff]
    %v4751 = vld [vmem:[#allocation8 + $0x2618] sm:$0xff]
    %v4752 = vld [vmem:[#allocation8 + $0x2620] sm:$0xff]
    %v4753 = vld [vmem:[#allocation8 + $0x2628] sm:$0xff]
    %v4754 = vld [vmem:[#allocation8 + $0x2630] sm:$0xff]
    %v4755 = vld [vmem:[#allocation8 + $0x2638] sm:$0xff]
    %v4756 = vld [vmem:[#allocation8 + $0x2640] sm:$0xff]
    %v4757 = vld [vmem:[#allocation8 + $0x2648] sm:$0xff]
    %v4758 = vld [vmem:[#allocation8 + $0x2650] sm:$0xff]
    %v4759 = vld [vmem:[#allocation8 + $0x2658] sm:$0xff]
    %v4760 = vld [vmem:[#allocation8 + $0x2660] sm:$0xff]
    %v4761 = vld [vmem:[#allocation8 + $0x2668] sm:$0xff]
    %v4762 = vld [vmem:[#allocation8 + $0x2670] sm:$0xff]
    %v4763 = vld [vmem:[#allocation8 + $0x2678] sm:$0xff]
    %v4764 = vld [vmem:[#allocation8 + $0x2680] sm:$0xff]
    %v4765 = vld [vmem:[#allocation8 + $0x2688] sm:$0xff]
    %v4766 = vld [vmem:[#allocation8 + $0x2690] sm:$0xff]
    %v4767 = vld [vmem:[#allocation8 + $0x2698] sm:$0xff]
    %v4768 = vld [vmem:[#allocation8 + $0x26a0] sm:$0xff]
    %v4769 = vld [vmem:[#allocation8 + $0x26a8] sm:$0xff]
    %v4770 = vld [vmem:[#allocation8 + $0x26b0] sm:$0xff]
    %v4771 = vld [vmem:[#allocation8 + $0x26b8] sm:$0xff]
    %v4772 = vld [vmem:[#allocation8 + $0x26c0] sm:$0xff]
    %v4773 = vld [vmem:[#allocation8 + $0x26c8] sm:$0xff]
    %v4774 = vld [vmem:[#allocation8 + $0x26d0] sm:$0xff]
    %v4775 = vld [vmem:[#allocation8 + $0x26d8] sm:$0xff]
    %v4776 = vld [vmem:[#allocation8 + $0x26e0] sm:$0xff]
    %v4777 = vld [vmem:[#allocation8 + $0x26e8] sm:$0xff]
    %v4778 = vld [vmem:[#allocation8 + $0x26f0] sm:$0xff]
    %v4779 = vld [vmem:[#allocation8 + $0x26f8] sm:$0xff]
    %v4780 = vld [vmem:[#allocation8 + $0x2700] sm:$0xff]
    %v4781 = vld [vmem:[#allocation8 + $0x2708] sm:$0xff]
    %v4782 = vld [vmem:[#allocation8 + $0x2710] sm:$0xff]
    %v4783 = vld [vmem:[#allocation8 + $0x2718] sm:$0xff]
    %v4784 = vld [vmem:[#allocation8 + $0x2720] sm:$0xff]
    %v4785 = vld [vmem:[#allocation8 + $0x2728] sm:$0xff]
    %v4786 = vld [vmem:[#allocation8 + $0x2730] sm:$0xff]
    %v4787 = vld [vmem:[#allocation8 + $0x2738] sm:$0xff]
    %v4788 = vld [vmem:[#allocation8 + $0x2740] sm:$0xff]
    %v4789 = vld [vmem:[#allocation8 + $0x2748] sm:$0xff]
    %v4790 = vld [vmem:[#allocation8 + $0x2750] sm:$0xff]
    %v4791 = vld [vmem:[#allocation8 + $0x2758] sm:$0xff]
    %v4792 = vld [vmem:[#allocation8 + $0x2760] sm:$0xff]
    %v4793 = vld [vmem:[#allocation8 + $0x2768] sm:$0xff]
    %v4794 = vld [vmem:[#allocation8 + $0x2770] sm:$0xff]
    %v4795 = vld [vmem:[#allocation8 + $0x2778] sm:$0xff]
    %v4796 = vld [vmem:[#allocation8 + $0x2780] sm:$0xff]
    %v4797 = vld [vmem:[#allocation8 + $0x2788] sm:$0xff]
    %v4798 = vld [vmem:[#allocation8 + $0x2790] sm:$0xff]
    %v4799 = vld [vmem:[#allocation8 + $0x2798] sm:$0xff]
    %v4800 = vld [vmem:[#allocation8 + $0x27a0] sm:$0xff]
    %v4801 = vld [vmem:[#allocation8 + $0x27a8] sm:$0xff]
    %v4802 = vld [vmem:[#allocation8 + $0x27b0] sm:$0xff]
    %v4803 = vld [vmem:[#allocation8 + $0x27b8] sm:$0xff]
    %v4804 = vld [vmem:[#allocation8 + $0x27c0] sm:$0xff]
    %v4805 = vld [vmem:[#allocation8 + $0x27c8] sm:$0xff]
    %v4806 = vld [vmem:[#allocation8 + $0x27d0] sm:$0xff]
    %v4807 = vld [vmem:[#allocation8 + $0x27d8] sm:$0xff]
    %v4808 = vld [vmem:[#allocation8 + $0x27e0] sm:$0xff]
    %v4809 = vld [vmem:[#allocation8 + $0x27e8] sm:$0xff]
    %v4810 = vld [vmem:[#allocation8 + $0x27f0] sm:$0xff]
    %v4811 = vld [vmem:[#allocation8 + $0x27f8] sm:$0xff]
    %v4812 = vld [vmem:[#allocation8 + $0x2800] sm:$0xff]
    %v4813 = vld [vmem:[#allocation8 + $0x2808] sm:$0xff]
    %v4814 = vld [vmem:[#allocation8 + $0x2810] sm:$0xff]
    %v4815 = vld [vmem:[#allocation8 + $0x2818] sm:$0xff]
    %v4816 = vld [vmem:[#allocation8 + $0x2820] sm:$0xff]
    %v4817 = vld [vmem:[#allocation8 + $0x2828] sm:$0xff]
    %v4818 = vld [vmem:[#allocation8 + $0x2830] sm:$0xff]
    %v4819 = vld [vmem:[#allocation8 + $0x2838] sm:$0xff]
    %v4820 = vld [vmem:[#allocation8 + $0x2840] sm:$0xff]
    %v4821 = vld [vmem:[#allocation8 + $0x2848] sm:$0xff]
    %v4822 = vld [vmem:[#allocation8 + $0x2850] sm:$0xff]
    %v4823 = vld [vmem:[#allocation8 + $0x2858] sm:$0xff]
    %v4824 = vld [vmem:[#allocation8 + $0x2860] sm:$0xff]
    %v4825 = vld [vmem:[#allocation8 + $0x2868] sm:$0xff]
    %v4826 = vld [vmem:[#allocation8 + $0x2870] sm:$0xff]
    %v4827 = vld [vmem:[#allocation8 + $0x2878] sm:$0xff]
    %v4828 = vld [vmem:[#allocation8 + $0x2880] sm:$0xff]
    %v4829 = vld [vmem:[#allocation8 + $0x2888] sm:$0xff]
    %v4830 = vld [vmem:[#allocation8 + $0x2890] sm:$0xff]
    %v4831 = vld [vmem:[#allocation8 + $0x2898] sm:$0xff]
    %v4832 = vld [vmem:[#allocation8 + $0x28a0] sm:$0xff]
    %v4833 = vld [vmem:[#allocation8 + $0x28a8] sm:$0xff]
    %v4834 = vld [vmem:[#allocation8 + $0x28b0] sm:$0xff]
    %v4835 = vld [vmem:[#allocation8 + $0x28b8] sm:$0xff]
    %v4836 = vld [vmem:[#allocation8 + $0x28c0] sm:$0xff]
    %v4837 = vld [vmem:[#allocation8 + $0x28c8] sm:$0xff]
    %v4838 = vld [vmem:[#allocation8 + $0x28d0] sm:$0xff]
    %v4839 = vld [vmem:[#allocation8 + $0x28d8] sm:$0xff]
    %v4840 = vld [vmem:[#allocation8 + $0x28e0] sm:$0xff]
    %v4841 = vld [vmem:[#allocation8 + $0x28e8] sm:$0xff]
    %v4842 = vld [vmem:[#allocation8 + $0x28f0] sm:$0xff]
    %v4843 = vld [vmem:[#allocation8 + $0x28f8] sm:$0xff]
    %v4844 = vld [vmem:[#allocation8 + $0x2900] sm:$0xff]
    %v4845 = vld [vmem:[#allocation8 + $0x2908] sm:$0xff]
    %v4846 = vld [vmem:[#allocation8 + $0x2910] sm:$0xff]
    %v4847 = vld [vmem:[#allocation8 + $0x2918] sm:$0xff]
    %v4848 = vld [vmem:[#allocation8 + $0x2920] sm:$0xff]
    %v4849 = vld [vmem:[#allocation8 + $0x2928] sm:$0xff]
    %v4850 = vld [vmem:[#allocation8 + $0x2930] sm:$0xff]
    %v4851 = vld [vmem:[#allocation8 + $0x2938] sm:$0xff]
    %v4852 = vld [vmem:[#allocation8 + $0x2940] sm:$0xff]
    %v4853 = vld [vmem:[#allocation8 + $0x2948] sm:$0xff]
    %v4854 = vld [vmem:[#allocation8 + $0x2950] sm:$0xff]
    %v4855 = vld [vmem:[#allocation8 + $0x2958] sm:$0xff]
    %v4856 = vld [vmem:[#allocation8 + $0x2960] sm:$0xff]
    %v4857 = vld [vmem:[#allocation8 + $0x2968] sm:$0xff]
    %v4858 = vld [vmem:[#allocation8 + $0x2970] sm:$0xff]
    %v4859 = vld [vmem:[#allocation8 + $0x2978] sm:$0xff]
    %v4860 = vld [vmem:[#allocation8 + $0x2980] sm:$0xff]
    %v4861 = vld [vmem:[#allocation8 + $0x2988] sm:$0xff]
    %v4862 = vld [vmem:[#allocation8 + $0x2990] sm:$0xff]
    %v4863 = vld [vmem:[#allocation8 + $0x2998] sm:$0xff]
    %v4864 = vld [vmem:[#allocation8 + $0x29a0] sm:$0xff]
    %v4865 = vld [vmem:[#allocation8 + $0x29a8] sm:$0xff]
    %v4866 = vld [vmem:[#allocation8 + $0x29b0] sm:$0xff]
    %v4867 = vld [vmem:[#allocation8 + $0x29b8] sm:$0xff]
    %v4868 = vld [vmem:[#allocation8 + $0x29c0] sm:$0xff]
    %v4869 = vld [vmem:[#allocation8 + $0x29c8] sm:$0xff]
    %v4870 = vld [vmem:[#allocation8 + $0x29d0] sm:$0xff]
    %v4871 = vld [vmem:[#allocation8 + $0x29d8] sm:$0xff]
    %v4872 = vld [vmem:[#allocation8 + $0x29e0] sm:$0xff]
    %v4873 = vld [vmem:[#allocation8 + $0x29e8] sm:$0xff]
    %v4874 = vld [vmem:[#allocation8 + $0x29f0] sm:$0xff]
    %v4875 = vld [vmem:[#allocation8 + $0x29f8] sm:$0xff]
    %v4876 = vld [vmem:[#allocation8 + $0x2a00] sm:$0xff]
    %v4877 = vld [vmem:[#allocation8 + $0x2a08] sm:$0xff]
    %v4878 = vld [vmem:[#allocation8 + $0x2a10] sm:$0xff]
    %v4879 = vld [vmem:[#allocation8 + $0x2a18] sm:$0xff]
    %v4880 = vld [vmem:[#allocation8 + $0x2a20] sm:$0xff]
    %v4881 = vld [vmem:[#allocation8 + $0x2a28] sm:$0xff]
    %v4882 = vld [vmem:[#allocation8 + $0x2a30] sm:$0xff]
    %v4883 = vld [vmem:[#allocation8 + $0x2a38] sm:$0xff]
    %v4884 = vld [vmem:[#allocation8 + $0x2a40] sm:$0xff]
    %v4885 = vld [vmem:[#allocation8 + $0x2a48] sm:$0xff]
    %v4886 = vld [vmem:[#allocation8 + $0x2a50] sm:$0xff]
    %v4887 = vld [vmem:[#allocation8 + $0x2a58] sm:$0xff]
    %v4888 = vld [vmem:[#allocation8 + $0x2a60] sm:$0xff]
    %v4889 = vld [vmem:[#allocation8 + $0x2a68] sm:$0xff]
    %v4890 = vld [vmem:[#allocation8 + $0x2a70] sm:$0xff]
    %v4891 = vld [vmem:[#allocation8 + $0x2a78] sm:$0xff]
    %v4892 = vld [vmem:[#allocation8 + $0x2a80] sm:$0xff]
    %v4893 = vld [vmem:[#allocation8 + $0x2a88] sm:$0xff]
    %v4894 = vld [vmem:[#allocation8 + $0x2a90] sm:$0xff]
    %v4895 = vld [vmem:[#allocation8 + $0x2a98] sm:$0xff]
    %v4896 = vld [vmem:[#allocation8 + $0x2aa0] sm:$0xff]
    %v4897 = vld [vmem:[#allocation8 + $0x2aa8] sm:$0xff]
    %v4898 = vld [vmem:[#allocation8 + $0x2ab0] sm:$0xff]
    %v4899 = vld [vmem:[#allocation8 + $0x2ab8] sm:$0xff]
    %v4900 = vld [vmem:[#allocation8 + $0x2ac0] sm:$0xff]
    %v4901 = vld [vmem:[#allocation8 + $0x2ac8] sm:$0xff]
    %v4902 = vld [vmem:[#allocation8 + $0x2ad0] sm:$0xff]
    %v4903 = vld [vmem:[#allocation8 + $0x2ad8] sm:$0xff]
    %v4904 = vld [vmem:[#allocation8 + $0x2ae0] sm:$0xff]
    %v4905 = vld [vmem:[#allocation8 + $0x2ae8] sm:$0xff]
    %v4906 = vld [vmem:[#allocation8 + $0x2af0] sm:$0xff]
    %v4907 = vld [vmem:[#allocation8 + $0x2af8] sm:$0xff]
    %v4908 = vld [vmem:[#allocation8 + $0x2b00] sm:$0xff]
    %v4909 = vld [vmem:[#allocation8 + $0x2b08] sm:$0xff]
    %v4910 = vld [vmem:[#allocation8 + $0x2b10] sm:$0xff]
    %v4911 = vld [vmem:[#allocation8 + $0x2b18] sm:$0xff]
    %v4912 = vld [vmem:[#allocation8 + $0x2b20] sm:$0xff]
    %v4913 = vld [vmem:[#allocation8 + $0x2b28] sm:$0xff]
    %v4914 = vld [vmem:[#allocation8 + $0x2b30] sm:$0xff]
    %v4915 = vld [vmem:[#allocation8 + $0x2b38] sm:$0xff]
    %v4916 = vld [vmem:[#allocation8 + $0x2b40] sm:$0xff]
    %v4917 = vld [vmem:[#allocation8 + $0x2b48] sm:$0xff]
    %v4918 = vld [vmem:[#allocation8 + $0x2b50] sm:$0xff]
    %v4919 = vld [vmem:[#allocation8 + $0x2b58] sm:$0xff]
    %v4920 = vld [vmem:[#allocation8 + $0x2b60] sm:$0xff]
    %v4921 = vld [vmem:[#allocation8 + $0x2b68] sm:$0xff]
    %v4922 = vld [vmem:[#allocation8 + $0x2b70] sm:$0xff]
    %v4923 = vld [vmem:[#allocation8 + $0x2b78] sm:$0xff]
    %v4924 = vld [vmem:[#allocation8 + $0x2b80] sm:$0xff]
    %v4925 = vld [vmem:[#allocation8 + $0x2b88] sm:$0xff]
    %v4926 = vld [vmem:[#allocation8 + $0x2b90] sm:$0xff]
    %v4927 = vld [vmem:[#allocation8 + $0x2b98] sm:$0xff]
    %v4928 = vld [vmem:[#allocation8 + $0x2ba0] sm:$0xff]
    %v4929 = vld [vmem:[#allocation8 + $0x2ba8] sm:$0xff]
    %v4930 = vld [vmem:[#allocation8 + $0x2bb0] sm:$0xff]
    %v4931 = vld [vmem:[#allocation8 + $0x2bb8] sm:$0xff]
    %v4932 = vld [vmem:[#allocation8 + $0x2bc0] sm:$0xff]
    %v4933 = vld [vmem:[#allocation8 + $0x2bc8] sm:$0xff]
    %v4934 = vld [vmem:[#allocation8 + $0x2bd0] sm:$0xff]
    %v4935 = vld [vmem:[#allocation8 + $0x2bd8] sm:$0xff]
    %v4936 = vld [vmem:[#allocation8 + $0x2be0] sm:$0xff]
    %v4937 = vld [vmem:[#allocation8 + $0x2be8] sm:$0xff]
    %v4938 = vld [vmem:[#allocation8 + $0x2bf0] sm:$0xff]
    %v4939 = vld [vmem:[#allocation8 + $0x2bf8] sm:$0xff]
    %v4940 = vld [vmem:[#allocation8 + $0x2c00] sm:$0xff]
    %v4941 = vld [vmem:[#allocation8 + $0x2c08] sm:$0xff]
    %v4942 = vld [vmem:[#allocation8 + $0x2c10] sm:$0xff]
    %v4943 = vld [vmem:[#allocation8 + $0x2c18] sm:$0xff]
    %v4944 = vld [vmem:[#allocation8 + $0x2c20] sm:$0xff]
    %v4945 = vld [vmem:[#allocation8 + $0x2c28] sm:$0xff]
    %v4946 = vld [vmem:[#allocation8 + $0x2c30] sm:$0xff]
    %v4947 = vld [vmem:[#allocation8 + $0x2c38] sm:$0xff]
    %v4948 = vld [vmem:[#allocation8 + $0x2c40] sm:$0xff]
    %v4949 = vld [vmem:[#allocation8 + $0x2c48] sm:$0xff]
    %v4950 = vld [vmem:[#allocation8 + $0x2c50] sm:$0xff]
    %v4951 = vld [vmem:[#allocation8 + $0x2c58] sm:$0xff]
    %v4952 = vld [vmem:[#allocation8 + $0x2c60] sm:$0xff]
    %v4953 = vld [vmem:[#allocation8 + $0x2c68] sm:$0xff]
    %v4954 = vld [vmem:[#allocation8 + $0x2c70] sm:$0xff]
    %v4955 = vld [vmem:[#allocation8 + $0x2c78] sm:$0xff]
    %v4956 = vld [vmem:[#allocation8 + $0x2c80] sm:$0xff]
    %v4957 = vld [vmem:[#allocation8 + $0x2c88] sm:$0xff]
    %v4958 = vld [vmem:[#allocation8 + $0x2c90] sm:$0xff]
    %v4959 = vld [vmem:[#allocation8 + $0x2c98] sm:$0xff]
    %v4960 = vld [vmem:[#allocation8 + $0x2ca0] sm:$0xff]
    %v4961 = vld [vmem:[#allocation8 + $0x2ca8] sm:$0xff]
    %v4962 = vld [vmem:[#allocation8 + $0x2cb0] sm:$0xff]
    %v4963 = vld [vmem:[#allocation8 + $0x2cb8] sm:$0xff]
    %v4964 = vld [vmem:[#allocation8 + $0x2cc0] sm:$0xff]
    %v4965 = vld [vmem:[#allocation8 + $0x2cc8] sm:$0xff]
    %v4966 = vld [vmem:[#allocation8 + $0x2cd0] sm:$0xff]
    %v4967 = vld [vmem:[#allocation8 + $0x2cd8] sm:$0xff]
    %v4968 = vld [vmem:[#allocation8 + $0x2ce0] sm:$0xff]
    %v4969 = vld [vmem:[#allocation8 + $0x2ce8] sm:$0xff]
    %v4970 = vld [vmem:[#allocation8 + $0x2cf0] sm:$0xff]
    %v4971 = vld [vmem:[#allocation8 + $0x2cf8] sm:$0xff]
    %v4972 = vld [vmem:[#allocation8 + $0x2d00] sm:$0xff]
    %v4973 = vld [vmem:[#allocation8 + $0x2d08] sm:$0xff]
    %v4974 = vld [vmem:[#allocation8 + $0x2d10] sm:$0xff]
    %v4975 = vld [vmem:[#allocation8 + $0x2d18] sm:$0xff]
    %v4976 = vld [vmem:[#allocation8 + $0x2d20] sm:$0xff]
    %v4977 = vld [vmem:[#allocation8 + $0x2d28] sm:$0xff]
    %v4978 = vld [vmem:[#allocation8 + $0x2d30] sm:$0xff]
    %v4979 = vld [vmem:[#allocation8 + $0x2d38] sm:$0xff]
    %v4980 = vld [vmem:[#allocation8 + $0x2d40] sm:$0xff]
    %v4981 = vld [vmem:[#allocation8 + $0x2d48] sm:$0xff]
    %v4982 = vld [vmem:[#allocation8 + $0x2d50] sm:$0xff]
    %v4983 = vld [vmem:[#allocation8 + $0x2d58] sm:$0xff]
    %v4984 = vld [vmem:[#allocation8 + $0x2d60] sm:$0xff]
    %v4985 = vld [vmem:[#allocation8 + $0x2d68] sm:$0xff]
    %v4986 = vld [vmem:[#allocation8 + $0x2d70] sm:$0xff]
    %v4987 = vld [vmem:[#allocation8 + $0x2d78] sm:$0xff]
    %v4988 = vld [vmem:[#allocation8 + $0x2d80] sm:$0xff]
    %v4989 = vld [vmem:[#allocation8 + $0x2d88] sm:$0xff]
    %v4990 = vld [vmem:[#allocation8 + $0x2d90] sm:$0xff]
    %v4991 = vld [vmem:[#allocation8 + $0x2d98] sm:$0xff]
    %v4992 = vld [vmem:[#allocation8 + $0x2da0] sm:$0xff]
    %v4993 = vld [vmem:[#allocation8 + $0x2da8] sm:$0xff]
    %v4994 = vld [vmem:[#allocation8 + $0x2db0] sm:$0xff]
    %v4995 = vld [vmem:[#allocation8 + $0x2db8] sm:$0xff]
    %v4996 = vld [vmem:[#allocation8 + $0x2dc0] sm:$0xff]
    %v4997 = vld [vmem:[#allocation8 + $0x2dc8] sm:$0xff]
    %v4998 = vld [vmem:[#allocation8 + $0x2dd0] sm:$0xff]
    %v4999 = vld [vmem:[#allocation8 + $0x2dd8] sm:$0xff]
    %v5000 = vld [vmem:[#allocation8 + $0x2de0] sm:$0xff]
    %v5001 = vld [vmem:[#allocation8 + $0x2de8] sm:$0xff]
    %v5002 = vld [vmem:[#allocation8 + $0x2df0] sm:$0xff]
    %v5003 = vld [vmem:[#allocation8 + $0x2df8] sm:$0xff]
    %v5004 = vld [vmem:[#allocation8 + $0x2e00] sm:$0xff]
    %v5005 = vld [vmem:[#allocation8 + $0x2e08] sm:$0xff]
    %v5006 = vld [vmem:[#allocation8 + $0x2e10] sm:$0xff]
    %v5007 = vld [vmem:[#allocation8 + $0x2e18] sm:$0xff]
    %v5008 = vld [vmem:[#allocation8 + $0x2e20] sm:$0xff]
    %v5009 = vld [vmem:[#allocation8 + $0x2e28] sm:$0xff]
    %v5010 = vld [vmem:[#allocation8 + $0x2e30] sm:$0xff]
    %v5011 = vld [vmem:[#allocation8 + $0x2e38] sm:$0xff]
    %v5012 = vld [vmem:[#allocation8 + $0x2e40] sm:$0xff]
    %v5013 = vld [vmem:[#allocation8 + $0x2e48] sm:$0xff]
    %v5014 = vld [vmem:[#allocation8 + $0x2e50] sm:$0xff]
    %v5015 = vld [vmem:[#allocation8 + $0x2e58] sm:$0xff]
    %v5016 = vld [vmem:[#allocation8 + $0x2e60] sm:$0xff]
    %v5017 = vld [vmem:[#allocation8 + $0x2e68] sm:$0xff]
    %v5018 = vld [vmem:[#allocation8 + $0x2e70] sm:$0xff]
    %v5019 = vld [vmem:[#allocation8 + $0x2e78] sm:$0xff]
    %v5020 = vld [vmem:[#allocation8 + $0x2e80] sm:$0xff]
    %v5021 = vld [vmem:[#allocation8 + $0x2e88] sm:$0xff]
    %v5022 = vld [vmem:[#allocation8 + $0x2e90] sm:$0xff]
    %v5023 = vld [vmem:[#allocation8 + $0x2e98] sm:$0xff]
    %v5024 = vld [vmem:[#allocation8 + $0x2ea0] sm:$0xff]
    %v5025 = vld [vmem:[#allocation8 + $0x2ea8] sm:$0xff]
    %v5026 = vld [vmem:[#allocation8 + $0x2eb0] sm:$0xff]
    %v5027 = vld [vmem:[#allocation8 + $0x2eb8] sm:$0xff]
    %v5028 = vld [vmem:[#allocation8 + $0x2ec0] sm:$0xff]
    %v5029 = vld [vmem:[#allocation8 + $0x2ec8] sm:$0xff]
    %v5030 = vld [vmem:[#allocation8 + $0x2ed0] sm:$0xff]
    %v5031 = vld [vmem:[#allocation8 + $0x2ed8] sm:$0xff]
    %v5032 = vld [vmem:[#allocation8 + $0x2ee0] sm:$0xff]
    %v5033 = vld [vmem:[#allocation8 + $0x2ee8] sm:$0xff]
    %v5034 = vld [vmem:[#allocation8 + $0x2ef0] sm:$0xff]
    %v5035 = vld [vmem:[#allocation8 + $0x2ef8] sm:$0xff]
    %v5036 = vld [vmem:[#allocation8 + $0x2f00] sm:$0xff]
    %v5037 = vld [vmem:[#allocation8 + $0x2f08] sm:$0xff]
    %v5038 = vld [vmem:[#allocation8 + $0x2f10] sm:$0xff]
    %v5039 = vld [vmem:[#allocation8 + $0x2f18] sm:$0xff]
    %v5040 = vld [vmem:[#allocation8 + $0x2f20] sm:$0xff]
    %v5041 = vld [vmem:[#allocation8 + $0x2f28] sm:$0xff]
    %v5042 = vld [vmem:[#allocation8 + $0x2f30] sm:$0xff]
    %v5043 = vld [vmem:[#allocation8 + $0x2f38] sm:$0xff]
    %v5044 = vld [vmem:[#allocation8 + $0x2f40] sm:$0xff]
    %v5045 = vld [vmem:[#allocation8 + $0x2f48] sm:$0xff]
    %v5046 = vld [vmem:[#allocation8 + $0x2f50] sm:$0xff]
    %v5047 = vld [vmem:[#allocation8 + $0x2f58] sm:$0xff]
    %v5048 = vld [vmem:[#allocation8 + $0x2f60] sm:$0xff]
    %v5049 = vld [vmem:[#allocation8 + $0x2f68] sm:$0xff]
    %v5050 = vld [vmem:[#allocation8 + $0x2f70] sm:$0xff]
    %v5051 = vld [vmem:[#allocation8 + $0x2f78] sm:$0xff]
    %v5052 = vld [vmem:[#allocation8 + $0x2f80] sm:$0xff]
    %v5053 = vld [vmem:[#allocation8 + $0x2f88] sm:$0xff]
    %v5054 = vld [vmem:[#allocation8 + $0x2f90] sm:$0xff]
    %v5055 = vld [vmem:[#allocation8 + $0x2f98] sm:$0xff]
    %v5056 = vld [vmem:[#allocation8 + $0x2fa0] sm:$0xff]
    %v5057 = vld [vmem:[#allocation8 + $0x2fa8] sm:$0xff]
    %v5058 = vld [vmem:[#allocation8 + $0x2fb0] sm:$0xff]
    %v5059 = vld [vmem:[#allocation8 + $0x2fb8] sm:$0xff]
    %v5060 = vld [vmem:[#allocation8 + $0x2fc0] sm:$0xff]
    %v5061 = vld [vmem:[#allocation8 + $0x2fc8] sm:$0xff]
    %v5062 = vld [vmem:[#allocation8 + $0x2fd0] sm:$0xff]
    %v5063 = vld [vmem:[#allocation8 + $0x2fd8] sm:$0xff]
    %v5064 = vld [vmem:[#allocation8 + $0x2fe0] sm:$0xff]
    %v5065 = vld [vmem:[#allocation8 + $0x2fe8] sm:$0xff]
    %v5066 = vld [vmem:[#allocation8 + $0x2ff0] sm:$0xff]
    %v5067 = vld [vmem:[#allocation8 + $0x2ff8] sm:$0xff]
    %v5068 = vld [vmem:[#allocation8 + $0x3000] sm:$0xff]
    %v5069 = vld [vmem:[#allocation8 + $0x3008] sm:$0xff]
    %v5070 = vld [vmem:[#allocation8 + $0x3010] sm:$0xff]
    %v5071 = vld [vmem:[#allocation8 + $0x3018] sm:$0xff]
    %v5072 = vld [vmem:[#allocation8 + $0x3020] sm:$0xff]
    %v5073 = vld [vmem:[#allocation8 + $0x3028] sm:$0xff]
    %v5074 = vld [vmem:[#allocation8 + $0x3030] sm:$0xff]
    %v5075 = vld [vmem:[#allocation8 + $0x3038] sm:$0xff]
    %v5076 = vld [vmem:[#allocation8 + $0x3040] sm:$0xff]
    %v5077 = vld [vmem:[#allocation8 + $0x3048] sm:$0xff]
    %v5078 = vld [vmem:[#allocation8 + $0x3050] sm:$0xff]
    %v5079 = vld [vmem:[#allocation8 + $0x3058] sm:$0xff]
    %v5080 = vld [vmem:[#allocation8 + $0x3060] sm:$0xff]
    %v5081 = vld [vmem:[#allocation8 + $0x3068] sm:$0xff]
    %v5082 = vld [vmem:[#allocation8 + $0x3070] sm:$0xff]
    %v5083 = vld [vmem:[#allocation8 + $0x3078] sm:$0xff]
    %v5084 = vld [vmem:[#allocation8 + $0x3080] sm:$0xff]
    %v5085 = vld [vmem:[#allocation8 + $0x3088] sm:$0xff]
    %v5086 = vld [vmem:[#allocation8 + $0x3090] sm:$0xff]
    %v5087 = vld [vmem:[#allocation8 + $0x3098] sm:$0xff]
    %v5088 = vld [vmem:[#allocation8 + $0x30a0] sm:$0xff]
    %v5089 = vld [vmem:[#allocation8 + $0x30a8] sm:$0xff]
    %v5090 = vld [vmem:[#allocation8 + $0x30b0] sm:$0xff]
    %v5091 = vld [vmem:[#allocation8 + $0x30b8] sm:$0xff]
    %v5092 = vld [vmem:[#allocation8 + $0x30c0] sm:$0xff]
    %v5093 = vld [vmem:[#allocation8 + $0x30c8] sm:$0xff]
    %v5094 = vld [vmem:[#allocation8 + $0x30d0] sm:$0xff]
    %v5095 = vld [vmem:[#allocation8 + $0x30d8] sm:$0xff]
    %v5096 = vld [vmem:[#allocation8 + $0x30e0] sm:$0xff]
    %v5097 = vld [vmem:[#allocation8 + $0x30e8] sm:$0xff]
    %v5098 = vld [vmem:[#allocation8 + $0x30f0] sm:$0xff]
    %v5099 = vld [vmem:[#allocation8 + $0x30f8] sm:$0xff]
    %v5100 = vld [vmem:[#allocation8 + $0x3100] sm:$0xff]
    %v5101 = vld [vmem:[#allocation8 + $0x3108] sm:$0xff]
    %v5102 = vld [vmem:[#allocation8 + $0x3110] sm:$0xff]
    %v5103 = vld [vmem:[#allocation8 + $0x3118] sm:$0xff]
    %v5104 = vld [vmem:[#allocation8 + $0x3120] sm:$0xff]
    %v5105 = vld [vmem:[#allocation8 + $0x3128] sm:$0xff]
    %v5106 = vld [vmem:[#allocation8 + $0x3130] sm:$0xff]
    %v5107 = vld [vmem:[#allocation8 + $0x3138] sm:$0xff]
    %v5108 = vld [vmem:[#allocation8 + $0x3140] sm:$0xff]
    %v5109 = vld [vmem:[#allocation8 + $0x3148] sm:$0xff]
    %v5110 = vld [vmem:[#allocation8 + $0x3150] sm:$0xff]
    %v5111 = vld [vmem:[#allocation8 + $0x3158] sm:$0xff]
    %v5112 = vld [vmem:[#allocation8 + $0x3160] sm:$0xff]
    %v5113 = vld [vmem:[#allocation8 + $0x3168] sm:$0xff]
    %v5114 = vld [vmem:[#allocation8 + $0x3170] sm:$0xff]
    %v5115 = vld [vmem:[#allocation8 + $0x3178] sm:$0xff]
    %v5116 = vld [vmem:[#allocation8 + $0x3180] sm:$0xff]
    %v5117 = vld [vmem:[#allocation8 + $0x3188] sm:$0xff]
    %v5118 = vld [vmem:[#allocation8 + $0x3190] sm:$0xff]
    %v5119 = vld [vmem:[#allocation8 + $0x3198] sm:$0xff]
    %v5120 = vld [vmem:[#allocation8 + $0x31a0] sm:$0xff]
    %v5121 = vld [vmem:[#allocation8 + $0x31a8] sm:$0xff]
    %v5122 = vld [vmem:[#allocation8 + $0x31b0] sm:$0xff]
    %v5123 = vld [vmem:[#allocation8 + $0x31b8] sm:$0xff]
    %v5124 = vld [vmem:[#allocation8 + $0x31c0] sm:$0xff]
    %v5125 = vld [vmem:[#allocation8 + $0x31c8] sm:$0xff]
    %v5126 = vld [vmem:[#allocation8 + $0x31d0] sm:$0xff]
    %v5127 = vld [vmem:[#allocation8 + $0x31d8] sm:$0xff]
    %v5128 = vld [vmem:[#allocation8 + $0x31e0] sm:$0xff]
    %v5129 = vld [vmem:[#allocation8 + $0x31e8] sm:$0xff]
    %v5130 = vld [vmem:[#allocation8 + $0x31f0] sm:$0xff]
    %v5131 = vld [vmem:[#allocation8 + $0x31f8] sm:$0xff]
    %v5132 = vld [vmem:[#allocation10] sm:$0xff]
    %v5133 = vld [vmem:[#allocation10 + $0x8] sm:$0x3]
    %v5136 = vlaneseq
    %v5137 = vshrl.u32 %v5136, 7
    %v5138 = vsub.s32 0, %v5137
    %v5139 = vrot.slane %v5132, %v5138
    %v5140 = vlaneseq
    %v5141 = vshrl.u32 %v5140, 7
    %v5142 = vsub.s32 1, %v5141
    %v5143 = vrot.slane %v5132, %v5142
    %v5144 = vlaneseq
    %v5145 = vshrl.u32 %v5144, 7
    %v5146 = vsub.s32 2, %v5145
    %v5147 = vrot.slane %v5132, %v5146
    %v5148 = vlaneseq
    %v5149 = vshrl.u32 %v5148, 7
    %v5150 = vsub.s32 3, %v5149
    %v5151 = vrot.slane %v5132, %v5150
    %v5152 = vlaneseq
    %v5153 = vshrl.u32 %v5152, 7
    %v5154 = vsub.s32 4, %v5153
    %v5155 = vrot.slane %v5132, %v5154
    %v5156 = vlaneseq
    %v5157 = vshrl.u32 %v5156, 7
    %v5158 = vsub.s32 5, %v5157
    %v5159 = vrot.slane %v5132, %v5158
    %v5160 = vlaneseq
    %v5161 = vshrl.u32 %v5160, 7
    %v5162 = vsub.s32 6, %v5161
    %v5163 = vrot.slane %v5132, %v5162
    %v5164 = vlaneseq
    %v5165 = vshrl.u32 %v5164, 7
    %v5166 = vsub.s32 7, %v5165
    %v5167 = vrot.slane %v5132, %v5166
    %v5168 = vlaneseq
    %v5169 = vshrl.u32 %v5168, 7
    %v5170 = vsub.s32 0, %v5169
    %v5171 = vrot.slane %v5133, %v5170
    %v5172 = vlaneseq
    %v5173 = vshrl.u32 %v5172, 7
    %v5174 = vsub.s32 1, %v5173
    %v5175 = vrot.slane %v5133, %v5174
    %5186 = vmatprep.subr.mxu0 %v3533
    %5187 = vmatpush1.msra.mxu0 %v3532
    %5188 = vmatprep.subr.mxu0 %v3543
    %5189 = vmatpush1.msra.mxu0 %v3542
    %5190 = vmatprep.subr.mxu0 %v3553
    %5191 = vmatpush1.msra.mxu0 %v3552
    %5192 = vmatprep.subr.mxu0 %v3563
    %5193 = vmatpush1.msra.mxu0 %v3562
    %5194 = vmatprep.subr.mxu0 %v3573
    %5195 = vmatpush1.msra.mxu0 %v3572
    %5196 = vmatprep.subr.mxu0 %v3583
    %5197 = vmatpush1.msra.mxu0 %v3582
    %5198 = vmatprep.subr.mxu0 %v3593
    %5199 = vmatpush1.msra.mxu0 %v3592
    %5200 = vmatprep.subr.mxu0 %v3603
    %5201 = vmatpush1.msra.mxu0 %v3602
    %5202 = vmatprep.subr.mxu0 %v3613
    %5203 = vmatpush1.msra.mxu0 %v3612
    %5204 = vmatprep.subr.mxu0 %v3623
    %5205 = vmatpush1.msra.mxu0 %v3622
    %5206 = vmatprep.subr.mxu0 %v3633
    %5207 = vmatpush1.msra.mxu0 %v3632
    %5208 = vmatprep.subr.mxu0 %v3643
    %5209 = vmatpush1.msra.mxu0 %v3642
    %5210 = vmatprep.subr.mxu0 %v3653
    %5211 = vmatpush1.msra.mxu0 %v3652
    %5212 = vmatprep.subr.mxu0 %v3663
    %5213 = vmatpush1.msra.mxu0 %v3662
    %5214 = vmatprep.subr.mxu0 %v3673
    %5215 = vmatpush1.msra.mxu0 %v3672
    %5216 = vmatprep.subr.mxu0 %v3683
    %5217 = vmatpush1.msra.mxu0 %v3682
    %5218 = vmatprep.subr.mxu0 %v3693
    %5219 = vmatpush1.msra.mxu0 %v3692
    %5220 = vmatprep.subr.mxu0 %v3703
    %5221 = vmatpush1.msra.mxu0 %v3702
    %5222 = vmatprep.subr.mxu0 %v3713
    %5223 = vmatpush1.msra.mxu0 %v3712
    %5224 = vmatprep.subr.mxu0 %v3723
    %5225 = vmatpush1.msra.mxu0 %v3722
    %5226 = vmatprep.subr.mxu0 %v3733
    %5227 = vmatpush1.msra.mxu0 %v3732
    %5228 = vmatprep.subr.mxu0 %v3743
    %5229 = vmatpush1.msra.mxu0 %v3742
    %5230 = vmatprep.subr.mxu0 %v3753
    %5231 = vmatpush1.msra.mxu0 %v3752
    %5232 = vmatprep.subr.mxu0 %v3763
    %5233 = vmatpush1.msra.mxu0 %v3762
    %5234 = vmatprep.subr.mxu0 %v3773
    %5235 = vmatpush1.msra.mxu0 %v3772
    %5236 = vmatprep.subr.mxu0 %v3783
    %5237 = vmatpush1.msra.mxu0 %v3782
    %5238 = vmatprep.subr.mxu0 %v3793
    %5239 = vmatpush1.msra.mxu0 %v3792
    %5240 = vmatprep.subr.mxu0 %v3803
    %5241 = vmatpush1.msra.mxu0 %v3802
    %5242 = vmatprep.subr.mxu0 %v3813
    %5243 = vmatpush1.msra.mxu0 %v3812
    %5244 = vmatprep.subr.mxu0 %v3823
    %5245 = vmatpush1.msra.mxu0 %v3822
    %5246 = vmatprep.subr.mxu0 %v3833
    %5247 = vmatpush1.msra.mxu0 %v3832
    %5248 = vmatprep.subr.mxu0 %v3843
    %5249 = vmatpush1.msra.mxu0 %v3842
    %5250 = vmatprep.mubr.f32.mxu0 %v3523
    %5251 = vmatmul.mubr.f32.gmra.mrb[0].mxu0 %v3522
    %v5252 = vpop.f32.mrb[0].mxu0
    %v5253 = vadd.f32 %v5139, %v5252
    %v5254 = vpop.f32.mrb[0].mxu0
    %v5255 = vadd.f32 %v5143, %v5254
    %5256 = vdwg.mxu0
    %5257 = vmatprep.subr.mxu0 %v3853
    %5258 = vmatpush1.msra.mxu0 %v3852
    %5259 = vmatprep.subr.mxu0 %v3863
    %5260 = vmatpush1.msra.mxu0 %v3862
    %5261 = vmatprep.subr.mxu0 %v3873
    %5262 = vmatpush1.msra.mxu0 %v3872
    %5263 = vmatprep.subr.mxu0 %v3883
    %5264 = vmatpush1.msra.mxu0 %v3882
    %5265 = vmatprep.subr.mxu0 %v3893
    %5266 = vmatpush1.msra.mxu0 %v3892
    %5267 = vmatprep.subr.mxu0 %v3903
    %5268 = vmatpush1.msra.mxu0 %v3902
    %5269 = vmatprep.subr.mxu0 %v3913
    %5270 = vmatpush1.msra.mxu0 %v3912
    %5271 = vmatprep.subr.mxu0 %v3923
    %5272 = vmatpush1.msra.mxu0 %v3922
    %5273 = vmatprep.subr.mxu0 %v3933
    %5274 = vmatpush1.msra.mxu0 %v3932
    %5275 = vmatprep.subr.mxu0 %v3943
    %5276 = vmatpush1.msra.mxu0 %v3942
    %5277 = vmatprep.subr.mxu0 %v3953
    %5278 = vmatpush1.msra.mxu0 %v3952
    %5279 = vmatprep.subr.mxu0 %v3963
    %5280 = vmatpush1.msra.mxu0 %v3962
    %5281 = vmatprep.subr.mxu0 %v3973
    %5282 = vmatpush1.msra.mxu0 %v3972
    %5283 = vmatprep.subr.mxu0 %v3983
    %5284 = vmatpush1.msra.mxu0 %v3982
    %5285 = vmatprep.subr.mxu0 %v3993
    %5286 = vmatpush1.msra.mxu0 %v3992
    %5287 = vmatprep.subr.mxu0 %v4003
    %5288 = vmatpush1.msra.mxu0 %v4002
    %5289 = vmatprep.subr.mxu0 %v4013
    %5290 = vmatpush1.msra.mxu0 %v4012
    %5291 = vmatprep.subr.mxu0 %v4023
    %5292 = vmatpush1.msra.mxu0 %v4022
    %5293 = vmatprep.subr.mxu0 %v4033
    %5294 = vmatpush1.msra.mxu0 %v4032
    %5295 = vmatprep.subr.mxu0 %v4043
    %5296 = vmatpush1.msra.mxu0 %v4042
    %5297 = vmatprep.subr.mxu0 %v4053
    %5298 = vmatpush1.msra.mxu0 %v4052
    %5299 = vmatprep.subr.mxu0 %v4063
    %5300 = vmatpush1.msra.mxu0 %v4062
    %5301 = vmatprep.subr.mxu0 %v4073
    %5302 = vmatpush1.msra.mxu0 %v4072
    %5303 = vmatprep.subr.mxu0 %v4083
    %5304 = vmatpush1.msra.mxu0 %v4082
    %5305 = vmatprep.subr.mxu0 %v4093
    %5306 = vmatpush1.msra.mxu0 %v4092
    %5307 = vmatprep.subr.mxu0 %v4103
    %5308 = vmatpush1.msra.mxu0 %v4102
    %5309 = vmatprep.subr.mxu0 %v4113
    %5310 = vmatpush1.msra.mxu0 %v4112
    %5311 = vmatprep.subr.mxu0 %v4123
    %5312 = vmatpush1.msra.mxu0 %v4122
    %5313 = vmatprep.subr.mxu0 %v4133
    %5314 = vmatpush1.msra.mxu0 %v4132
    %5315 = vmatprep.subr.mxu0 %v4143
    %5316 = vmatpush1.msra.mxu0 %v4142
    %5317 = vmatprep.subr.mxu0 %v4153
    %5318 = vmatpush1.msra.mxu0 %v4152
    %5319 = vmatprep.subr.mxu0 %v4163
    %5320 = vmatpush1.msra.mxu0 %v4162
    %5321 = vmatprep.mubr.f32.mxu0 %v3525
    %5322 = vmatmul.mubr.f32.gmra.mrb[0].mxu0 %v3524
    %v5323 = vpop.f32.mrb[0].mxu0
    %v5324 = vadd.f32 %v5253, %v5323
    %v5325 = vpop.f32.mrb[0].mxu0
    %v5326 = vadd.f32 %v5255, %v5325
    %5327 = vdwg.mxu0
    %5328 = vmatprep.subr.mxu0 %v4173
    %5329 = vmatpush1.msra.mxu0 %v4172
    %5330 = vmatprep.subr.mxu0 %v4183
    %5331 = vmatpush1.msra.mxu0 %v4182
    %5332 = vmatprep.subr.mxu0 %v4193
    %5333 = vmatpush1.msra.mxu0 %v4192
    %5334 = vmatprep.subr.mxu0 %v4203
    %5335 = vmatpush1.msra.mxu0 %v4202
    %5336 = vmatprep.subr.mxu0 %v4213
    %5337 = vmatpush1.msra.mxu0 %v4212
    %5338 = vmatprep.subr.mxu0 %v4223
    %5339 = vmatpush1.msra.mxu0 %v4222
    %5340 = vmatprep.subr.mxu0 %v4233
    %5341 = vmatpush1.msra.mxu0 %v4232
    %5342 = vmatprep.subr.mxu0 %v4243
    %5343 = vmatpush1.msra.mxu0 %v4242
    %5344 = vmatprep.subr.mxu0 %v4253
    %5345 = vmatpush1.msra.mxu0 %v4252
    %5346 = vmatprep.subr.mxu0 %v4263
    %5347 = vmatpush1.msra.mxu0 %v4262
    %5348 = vmatprep.subr.mxu0 %v4273
    %5349 = vmatpush1.msra.mxu0 %v4272
    %5350 = vmatprep.subr.mxu0 %v4283
    %5351 = vmatpush1.msra.mxu0 %v4282
    %5352 = vmatprep.subr.mxu0 %v4293
    %5353 = vmatpush1.msra.mxu0 %v4292
    %5354 = vmatprep.subr.mxu0 %v4303
    %5355 = vmatpush1.msra.mxu0 %v4302
    %5356 = vmatprep.subr.mxu0 %v4313
    %5357 = vmatpush1.msra.mxu0 %v4312
    %5358 = vmatprep.subr.mxu0 %v4323
    %5359 = vmatpush1.msra.mxu0 %v4322
    %5360 = vmatprep.subr.mxu0 %v4333
    %5361 = vmatpush1.msra.mxu0 %v4332
    %5362 = vmatprep.subr.mxu0 %v4343
    %5363 = vmatpush1.msra.mxu0 %v4342
    %5364 = vmatprep.subr.mxu0 %v4353
    %5365 = vmatpush1.msra.mxu0 %v4352
    %5366 = vmatprep.subr.mxu0 %v4363
    %5367 = vmatpush1.msra.mxu0 %v4362
    %5368 = vmatprep.subr.mxu0 %v4373
    %5369 = vmatpush1.msra.mxu0 %v4372
    %5370 = vmatprep.subr.mxu0 %v4383
    %5371 = vmatpush1.msra.mxu0 %v4382
    %5372 = vmatprep.subr.mxu0 %v4393
    %5373 = vmatpush1.msra.mxu0 %v4392
    %5374 = vmatprep.subr.mxu0 %v4403
    %5375 = vmatpush1.msra.mxu0 %v4402
    %5376 = vmatprep.subr.mxu0 %v4413
    %5377 = vmatpush1.msra.mxu0 %v4412
    %5378 = vmatprep.subr.mxu0 %v4423
    %5379 = vmatpush1.msra.mxu0 %v4422
    %5380 = vmatprep.subr.mxu0 %v4433
    %5381 = vmatpush1.msra.mxu0 %v4432
    %5382 = vmatprep.subr.mxu0 %v4443
    %5383 = vmatpush1.msra.mxu0 %v4442
    %5384 = vmatprep.subr.mxu0 %v4453
    %5385 = vmatpush1.msra.mxu0 %v4452
    %5386 = vmatprep.subr.mxu0 %v4463
    %5387 = vmatpush1.msra.mxu0 %v4462
    %5388 = vmatprep.subr.mxu0 %v4473
    %5389 = vmatpush1.msra.mxu0 %v4472
    %5390 = vmatprep.subr.mxu0 %v4483
    %5391 = vmatpush1.msra.mxu0 %v4482
    %5392 = vmatprep.mubr.f32.mxu0 %v3527
    %5393 = vmatmul.mubr.f32.gmra.mrb[0].mxu0 %v3526
    %v5394 = vpop.f32.mrb[0].mxu0
    %v5395 = vadd.f32 %v5324, %v5394
    %v5396 = vpop.f32.mrb[0].mxu0
    %v5397 = vadd.f32 %v5326, %v5396
    %5398 = vdwg.mxu0
    %5399 = vmatprep.subr.mxu0 %v4493
    %5400 = vmatpush1.msra.mxu0 %v4492
    %5401 = vmatprep.subr.mxu0 %v4503
    %5402 = vmatpush1.msra.mxu0 %v4502
    %5403 = vmatprep.subr.mxu0 %v4513
    %5404 = vmatpush1.msra.mxu0 %v4512
    %5405 = vmatprep.subr.mxu0 %v4523
    %5406 = vmatpush1.msra.mxu0 %v4522
    %5407 = vmatprep.subr.mxu0 %v4533
    %5408 = vmatpush1.msra.mxu0 %v4532
    %5409 = vmatprep.subr.mxu0 %v4543
    %5410 = vmatpush1.msra.mxu0 %v4542
    %5411 = vmatprep.subr.mxu0 %v4553
    %5412 = vmatpush1.msra.mxu0 %v4552
    %5413 = vmatprep.subr.mxu0 %v4563
    %5414 = vmatpush1.msra.mxu0 %v4562
    %5415 = vmatprep.subr.mxu0 %v4573
    %5416 = vmatpush1.msra.mxu0 %v4572
    %5417 = vmatprep.subr.mxu0 %v4583
    %5418 = vmatpush1.msra.mxu0 %v4582
    %5419 = vmatprep.subr.mxu0 %v4593
    %5420 = vmatpush1.msra.mxu0 %v4592
    %5421 = vmatprep.subr.mxu0 %v4603
    %5422 = vmatpush1.msra.mxu0 %v4602
    %5423 = vmatprep.subr.mxu0 %v4613
    %5424 = vmatpush1.msra.mxu0 %v4612
    %5425 = vmatprep.subr.mxu0 %v4623
    %5426 = vmatpush1.msra.mxu0 %v4622
    %5427 = vmatprep.subr.mxu0 %v4633
    %5428 = vmatpush1.msra.mxu0 %v4632
    %5429 = vmatprep.subr.mxu0 %v4643
    %5430 = vmatpush1.msra.mxu0 %v4642
    %5431 = vmatprep.subr.mxu0 %v4653
    %5432 = vmatpush1.msra.mxu0 %v4652
    %5433 = vmatprep.subr.mxu0 %v4663
    %5434 = vmatpush1.msra.mxu0 %v4662
    %5435 = vmatprep.subr.mxu0 %v4673
    %5436 = vmatpush1.msra.mxu0 %v4672
    %5437 = vmatprep.subr.mxu0 %v4683
    %5438 = vmatpush1.msra.mxu0 %v4682
    %5439 = vmatprep.subr.mxu0 %v4693
    %5440 = vmatpush1.msra.mxu0 %v4692
    %5441 = vmatprep.subr.mxu0 %v4703
    %5442 = vmatpush1.msra.mxu0 %v4702
    %5443 = vmatprep.subr.mxu0 %v4713
    %5444 = vmatpush1.msra.mxu0 %v4712
    %5445 = vmatprep.subr.mxu0 %v4723
    %5446 = vmatpush1.msra.mxu0 %v4722
    %5447 = vmatprep.subr.mxu0 %v4733
    %5448 = vmatpush1.msra.mxu0 %v4732
    %5449 = vmatprep.subr.mxu0 %v4743
    %5450 = vmatpush1.msra.mxu0 %v4742
    %5451 = vmatprep.subr.mxu0 %v4753
    %5452 = vmatpush1.msra.mxu0 %v4752
    %5453 = vmatprep.subr.mxu0 %v4763
    %5454 = vmatpush1.msra.mxu0 %v4762
    %5455 = vmatprep.subr.mxu0 %v4773
    %5456 = vmatpush1.msra.mxu0 %v4772
    %5457 = vmatprep.subr.mxu0 %v4783
    %5458 = vmatpush1.msra.mxu0 %v4782
    %5459 = vmatprep.subr.mxu0 %v4793
    %5460 = vmatpush1.msra.mxu0 %v4792
    %5461 = vmatprep.subr.mxu0 %v4803
    %5462 = vmatpush1.msra.mxu0 %v4802
    %5463 = vmatprep.mubr.f32.mxu0 %v3529
    %5464 = vmatmul.mubr.f32.gmra.mrb[0].mxu0 %v3528
    %v5465 = vpop.f32.mrb[0].mxu0
    %v5466 = vadd.f32 %v5395, %v5465
    %v5467 = vpop.f32.mrb[0].mxu0
    %v5468 = vadd.f32 %v5397, %v5467
    %5469 = vdwg.mxu0
    %5470 = vmatprep.subr.mxu0 %v4813
    %5471 = vmatpush1.msra.mxu0 %v4812
    %5472 = vmatprep.subr.mxu0 %v4823
    %5473 = vmatpush1.msra.mxu0 %v4822
    %5474 = vmatprep.subr.mxu0 %v4833
    %5475 = vmatpush1.msra.mxu0 %v4832
    %5476 = vmatprep.subr.mxu0 %v4843
    %5477 = vmatpush1.msra.mxu0 %v4842
    %5478 = vmatprep.subr.mxu0 %v4853
    %5479 = vmatpush1.msra.mxu0 %v4852
    %5480 = vmatprep.subr.mxu0 %v4863
    %5481 = vmatpush1.msra.mxu0 %v4862
    %5482 = vmatprep.subr.mxu0 %v4873
    %5483 = vmatpush1.msra.mxu0 %v4872
    %5484 = vmatprep.subr.mxu0 %v4883
    %5485 = vmatpush1.msra.mxu0 %v4882
    %5486 = vmatprep.subr.mxu0 %v4893
    %5487 = vmatpush1.msra.mxu0 %v4892
    %5488 = vmatprep.subr.mxu0 %v4903
    %5489 = vmatpush1.msra.mxu0 %v4902
    %5490 = vmatprep.subr.mxu0 %v4913
    %5491 = vmatpush1.msra.mxu0 %v4912
    %5492 = vmatprep.subr.mxu0 %v4923
    %5493 = vmatpush1.msra.mxu0 %v4922
    %5494 = vmatprep.subr.mxu0 %v4933
    %5495 = vmatpush1.msra.mxu0 %v4932
    %5496 = vmatprep.subr.mxu0 %v4943
    %5497 = vmatpush1.msra.mxu0 %v4942
    %5498 = vmatprep.subr.mxu0 %v4953
    %5499 = vmatpush1.msra.mxu0 %v4952
    %5500 = vmatprep.subr.mxu0 %v4963
    %5501 = vmatpush1.msra.mxu0 %v4962
    %5502 = vmatprep.subr.mxu0 %v4973
    %5503 = vmatpush1.msra.mxu0 %v4972
    %5504 = vmatprep.subr.mxu0 %v4983
    %5505 = vmatpush1.msra.mxu0 %v4982
    %5506 = vmatprep.subr.mxu0 %v4993
    %5507 = vmatpush1.msra.mxu0 %v4992
    %5508 = vmatprep.subr.mxu0 %v5003
    %5509 = vmatpush1.msra.mxu0 %v5002
    %5510 = vmatprep.subr.mxu0 %v5013
    %5511 = vmatpush1.msra.mxu0 %v5012
    %5512 = vmatprep.subr.mxu0 %v5023
    %5513 = vmatpush1.msra.mxu0 %v5022
    %5514 = vmatprep.subr.mxu0 %v5033
    %5515 = vmatpush1.msra.mxu0 %v5032
    %5516 = vmatprep.subr.mxu0 %v5043
    %5517 = vmatpush1.msra.mxu0 %v5042
    %5518 = vmatprep.subr.mxu0 %v5053
    %5519 = vmatpush1.msra.mxu0 %v5052
    %5520 = vmatprep.subr.mxu0 %v5063
    %5521 = vmatpush1.msra.mxu0 %v5062
    %5522 = vmatprep.subr.mxu0 %v5073
    %5523 = vmatpush1.msra.mxu0 %v5072
    %5524 = vmatprep.subr.mxu0 %v5083
    %5525 = vmatpush1.msra.mxu0 %v5082
    %5526 = vmatprep.subr.mxu0 %v5093
    %5527 = vmatpush1.msra.mxu0 %v5092
    %5528 = vmatprep.subr.mxu0 %v5103
    %5529 = vmatpush1.msra.mxu0 %v5102
    %5530 = vmatprep.subr.mxu0 %v5113
    %5531 = vmatpush1.msra.mxu0 %v5112
    %5532 = vmatprep.subr.mxu0 %v5123
    %5533 = vmatpush1.msra.mxu0 %v5122
    %5534 = vmatprep.mubr.f32.mxu0 %v3531
    %5535 = vmatmul.mubr.f32.gmra.mrb[0].mxu0 %v3530
    %v5536 = vpop.f32.mrb[0].mxu0
    %v5537 = vadd.f32 %v5466, %v5536
    %v5538 = vpop.f32.mrb[0].mxu0
    %v5539 = vadd.f32 %v5468, %v5538
    %5540 = vdwg.mxu0
    %5541 = vmatprep.subr.mxu0 %v3535
    %5542 = vmatpush1.msra.mxu0 %v3534
    %5543 = vmatprep.subr.mxu0 %v3545
    %5544 = vmatpush1.msra.mxu0 %v3544
    %5545 = vmatprep.subr.mxu0 %v3555
    %5546 = vmatpush1.msra.mxu0 %v3554
    %5547 = vmatprep.subr.mxu0 %v3565
    %5548 = vmatpush1.msra.mxu0 %v3564
    %5549 = vmatprep.subr.mxu0 %v3575
    %5550 = vmatpush1.msra.mxu0 %v3574
    %5551 = vmatprep.subr.mxu0 %v3585
    %5552 = vmatpush1.msra.mxu0 %v3584
    %5553 = vmatprep.subr.mxu0 %v3595
    %5554 = vmatpush1.msra.mxu0 %v3594
    %5555 = vmatprep.subr.mxu0 %v3605
    %5556 = vmatpush1.msra.mxu0 %v3604
    %5557 = vmatprep.subr.mxu0 %v3615
    %5558 = vmatpush1.msra.mxu0 %v3614
    %5559 = vmatprep.subr.mxu0 %v3625
    %5560 = vmatpush1.msra.mxu0 %v3624
    %5561 = vmatprep.subr.mxu0 %v3635
    %5562 = vmatpush1.msra.mxu0 %v3634
    %5563 = vmatprep.subr.mxu0 %v3645
    %5564 = vmatpush1.msra.mxu0 %v3644
    %5565 = vmatprep.subr.mxu0 %v3655
    %5566 = vmatpush1.msra.mxu0 %v3654
    %5567 = vmatprep.subr.mxu0 %v3665
    %5568 = vmatpush1.msra.mxu0 %v3664
    %5569 = vmatprep.subr.mxu0 %v3675
    %5570 = vmatpush1.msra.mxu0 %v3674
    %5571 = vmatprep.subr.mxu0 %v3685
    %5572 = vmatpush1.msra.mxu0 %v3684
    %5573 = vmatprep.subr.mxu0 %v3695
    %5574 = vmatpush1.msra.mxu0 %v3694
    %5575 = vmatprep.subr.mxu0 %v3705
    %5576 = vmatpush1.msra.mxu0 %v3704
    %5577 = vmatprep.subr.mxu0 %v3715
    %5578 = vmatpush1.msra.mxu0 %v3714
    %5579 = vmatprep.subr.mxu0 %v3725
    %5580 = vmatpush1.msra.mxu0 %v3724
    %5581 = vmatprep.subr.mxu0 %v3735
    %5582 = vmatpush1.msra.mxu0 %v3734
    %5583 = vmatprep.subr.mxu0 %v3745
    %5584 = vmatpush1.msra.mxu0 %v3744
    %5585 = vmatprep.subr.mxu0 %v3755
    %5586 = vmatpush1.msra.mxu0 %v3754
    %5587 = vmatprep.subr.mxu0 %v3765
    %5588 = vmatpush1.msra.mxu0 %v3764
    %5589 = vmatprep.subr.mxu0 %v3775
    %5590 = vmatpush1.msra.mxu0 %v3774
    %5591 = vmatprep.subr.mxu0 %v3785
    %5592 = vmatpush1.msra.mxu0 %v3784
    %5593 = vmatprep.subr.mxu0 %v3795
    %5594 = vmatpush1.msra.mxu0 %v3794
    %5595 = vmatprep.subr.mxu0 %v3805
    %5596 = vmatpush1.msra.mxu0 %v3804
    %5597 = vmatprep.subr.mxu0 %v3815
    %5598 = vmatpush1.msra.mxu0 %v3814
    %5599 = vmatprep.subr.mxu0 %v3825
    %5600 = vmatpush1.msra.mxu0 %v3824
    %5601 = vmatprep.subr.mxu0 %v3835
    %5602 = vmatpush1.msra.mxu0 %v3834
    %5603 = vmatprep.subr.mxu0 %v3845
    %5604 = vmatpush1.msra.mxu0 %v3844
    %5605 = vmatprep.mubr.f32.mxu0 %v3523
    %5606 = vmatmul.mubr.f32.gmra.mrb[0].mxu0 %v3522
    %v5607 = vpop.f32.mrb[0].mxu0
    %v5608 = vadd.f32 %v5147, %v5607
    %v5609 = vpop.f32.mrb[0].mxu0
    %v5610 = vadd.f32 %v5151, %v5609
    %5611 = vdwg.mxu0
    %5612 = vmatprep.subr.mxu0 %v3855
    %5613 = vmatpush1.msra.mxu0 %v3854
    %5614 = vmatprep.subr.mxu0 %v3865
    %5615 = vmatpush1.msra.mxu0 %v3864
    %5616 = vmatprep.subr.mxu0 %v3875
    %5617 = vmatpush1.msra.mxu0 %v3874
    %5618 = vmatprep.subr.mxu0 %v3885
    %5619 = vmatpush1.msra.mxu0 %v3884
    %5620 = vmatprep.subr.mxu0 %v3895
    %5621 = vmatpush1.msra.mxu0 %v3894
    %5622 = vmatprep.subr.mxu0 %v3905
    %5623 = vmatpush1.msra.mxu0 %v3904
    %5624 = vmatprep.subr.mxu0 %v3915
    %5625 = vmatpush1.msra.mxu0 %v3914
    %5626 = vmatprep.subr.mxu0 %v3925
    %5627 = vmatpush1.msra.mxu0 %v3924
    %5628 = vmatprep.subr.mxu0 %v3935
    %5629 = vmatpush1.msra.mxu0 %v3934
    %5630 = vmatprep.subr.mxu0 %v3945
    %5631 = vmatpush1.msra.mxu0 %v3944
    %5632 = vmatprep.subr.mxu0 %v3955
    %5633 = vmatpush1.msra.mxu0 %v3954
    %5634 = vmatprep.subr.mxu0 %v3965
    %5635 = vmatpush1.msra.mxu0 %v3964
    %5636 = vmatprep.subr.mxu0 %v3975
    %5637 = vmatpush1.msra.mxu0 %v3974
    %5638 = vmatprep.subr.mxu0 %v3985
    %5639 = vmatpush1.msra.mxu0 %v3984
    %5640 = vmatprep.subr.mxu0 %v3995
    %5641 = vmatpush1.msra.mxu0 %v3994
    %5642 = vmatprep.subr.mxu0 %v4005
    %5643 = vmatpush1.msra.mxu0 %v4004
    %5644 = vmatprep.subr.mxu0 %v4015
    %5645 = vmatpush1.msra.mxu0 %v4014
    %5646 = vmatprep.subr.mxu0 %v4025
    %5647 = vmatpush1.msra.mxu0 %v4024
    %5648 = vmatprep.subr.mxu0 %v4035
    %5649 = vmatpush1.msra.mxu0 %v4034
    %5650 = vmatprep.subr.mxu0 %v4045
    %5651 = vmatpush1.msra.mxu0 %v4044
    %5652 = vmatprep.subr.mxu0 %v4055
    %5653 = vmatpush1.msra.mxu0 %v4054
    %5654 = vmatprep.subr.mxu0 %v4065
    %5655 = vmatpush1.msra.mxu0 %v4064
    %5656 = vmatprep.subr.mxu0 %v4075
    %5657 = vmatpush1.msra.mxu0 %v4074
    %5658 = vmatprep.subr.mxu0 %v4085
    %5659 = vmatpush1.msra.mxu0 %v4084
    %5660 = vmatprep.subr.mxu0 %v4095
    %5661 = vmatpush1.msra.mxu0 %v4094
    %5662 = vmatprep.subr.mxu0 %v4105
    %5663 = vmatpush1.msra.mxu0 %v4104
    %5664 = vmatprep.subr.mxu0 %v4115
    %5665 = vmatpush1.msra.mxu0 %v4114
    %5666 = vmatprep.subr.mxu0 %v4125
    %5667 = vmatpush1.msra.mxu0 %v4124
    %5668 = vmatprep.subr.mxu0 %v4135
    %5669 = vmatpush1.msra.mxu0 %v4134
    %5670 = vmatprep.subr.mxu0 %v4145
    %5671 = vmatpush1.msra.mxu0 %v4144
    %5672 = vmatprep.subr.mxu0 %v4155
    %5673 = vmatpush1.msra.mxu0 %v4154
    %5674 = vmatprep.subr.mxu0 %v4165
    %5675 = vmatpush1.msra.mxu0 %v4164
    %5676 = vmatprep.mubr.f32.mxu0 %v3525
    %5677 = vmatmul.mubr.f32.gmra.mrb[0].mxu0 %v3524
    %v5678 = vpop.f32.mrb[0].mxu0
    %v5679 = vadd.f32 %v5608, %v5678
    %v5680 = vpop.f32.mrb[0].mxu0
    %v5681 = vadd.f32 %v5610, %v5680
    %5682 = vdwg.mxu0
    %5683 = vmatprep.subr.mxu0 %v4175
    %5684 = vmatpush1.msra.mxu0 %v4174
    %5685 = vmatprep.subr.mxu0 %v4185
    %5686 = vmatpush1.msra.mxu0 %v4184
    %5687 = vmatprep.subr.mxu0 %v4195
    %5688 = vmatpush1.msra.mxu0 %v4194
    %5689 = vmatprep.subr.mxu0 %v4205
    %5690 = vmatpush1.msra.mxu0 %v4204
    %5691 = vmatprep.subr.mxu0 %v4215
    %5692 = vmatpush1.msra.mxu0 %v4214
    %5693 = vmatprep.subr.mxu0 %v4225
    %5694 = vmatpush1.msra.mxu0 %v4224
    %5695 = vmatprep.subr.mxu0 %v4235
    %5696 = vmatpush1.msra.mxu0 %v4234
    %5697 = vmatprep.subr.mxu0 %v4245
    %5698 = vmatpush1.msra.mxu0 %v4244
    %5699 = vmatprep.subr.mxu0 %v4255
    %5700 = vmatpush1.msra.mxu0 %v4254
    %5701 = vmatprep.subr.mxu0 %v4265
    %5702 = vmatpush1.msra.mxu0 %v4264
    %5703 = vmatprep.subr.mxu0 %v4275
    %5704 = vmatpush1.msra.mxu0 %v4274
    %5705 = vmatprep.subr.mxu0 %v4285
    %5706 = vmatpush1.msra.mxu0 %v4284
    %5707 = vmatprep.subr.mxu0 %v4295
    %5708 = vmatpush1.msra.mxu0 %v4294
    %5709 = vmatprep.subr.mxu0 %v4305
    %5710 = vmatpush1.msra.mxu0 %v4304
    %5711 = vmatprep.subr.mxu0 %v4315
    %5712 = vmatpush1.msra.mxu0 %v4314
    %5713 = vmatprep.subr.mxu0 %v4325
    %5714 = vmatpush1.msra.mxu0 %v4324
    %5715 = vmatprep.subr.mxu0 %v4335
    %5716 = vmatpush1.msra.mxu0 %v4334
    %5717 = vmatprep.subr.mxu0 %v4345
    %5718 = vmatpush1.msra.mxu0 %v4344
    %5719 = vmatprep.subr.mxu0 %v4355
    %5720 = vmatpush1.msra.mxu0 %v4354
    %5721 = vmatprep.subr.mxu0 %v4365
    %5722 = vmatpush1.msra.mxu0 %v4364
    %5723 = vmatprep.subr.mxu0 %v4375
    %5724 = vmatpush1.msra.mxu0 %v4374
    %5725 = vmatprep.subr.mxu0 %v4385
    %5726 = vmatpush1.msra.mxu0 %v4384
    %5727 = vmatprep.subr.mxu0 %v4395
    %5728 = vmatpush1.msra.mxu0 %v4394
    %5729 = vmatprep.subr.mxu0 %v4405
    %5730 = vmatpush1.msra.mxu0 %v4404
    %5731 = vmatprep.subr.mxu0 %v4415
    %5732 = vmatpush1.msra.mxu0 %v4414
    %5733 = vmatprep.subr.mxu0 %v4425
    %5734 = vmatpush1.msra.mxu0 %v4424
    %5735 = vmatprep.subr.mxu0 %v4435
    %5736 = vmatpush1.msra.mxu0 %v4434
    %5737 = vmatprep.subr.mxu0 %v4445
    %5738 = vmatpush1.msra.mxu0 %v4444
    %5739 = vmatprep.subr.mxu0 %v4455
    %5740 = vmatpush1.msra.mxu0 %v4454
    %5741 = vmatprep.subr.mxu0 %v4465
    %5742 = vmatpush1.msra.mxu0 %v4464
    %5743 = vmatprep.subr.mxu0 %v4475
    %5744 = vmatpush1.msra.mxu0 %v4474
    %5745 = vmatprep.subr.mxu0 %v4485
    %5746 = vmatpush1.msra.mxu0 %v4484
    %5747 = vmatprep.mubr.f32.mxu0 %v3527
    %5748 = vmatmul.mubr.f32.gmra.mrb[0].mxu0 %v3526
    %v5749 = vpop.f32.mrb[0].mxu0
    %v5750 = vadd.f32 %v5679, %v5749
    %v5751 = vpop.f32.mrb[0].mxu0
    %v5752 = vadd.f32 %v5681, %v5751
    %5753 = vdwg.mxu0
    %5754 = vmatprep.subr.mxu0 %v4495
    %5755 = vmatpush1.msra.mxu0 %v4494
    %5756 = vmatprep.subr.mxu0 %v4505
    %5757 = vmatpush1.msra.mxu0 %v4504
    %5758 = vmatprep.subr.mxu0 %v4515
    %5759 = vmatpush1.msra.mxu0 %v4514
    %5760 = vmatprep.subr.mxu0 %v4525
    %5761 = vmatpush1.msra.mxu0 %v4524
    %5762 = vmatprep.subr.mxu0 %v4535
    %5763 = vmatpush1.msra.mxu0 %v4534
    %5764 = vmatprep.subr.mxu0 %v4545
    %5765 = vmatpush1.msra.mxu0 %v4544
    %5766 = vmatprep.subr.mxu0 %v4555
    %5767 = vmatpush1.msra.mxu0 %v4554
    %5768 = vmatprep.subr.mxu0 %v4565
    %5769 = vmatpush1.msra.mxu0 %v4564
    %5770 = vmatprep.subr.mxu0 %v4575
    %5771 = vmatpush1.msra.mxu0 %v4574
    %5772 = vmatprep.subr.mxu0 %v4585
    %5773 = vmatpush1.msra.mxu0 %v4584
    %5774 = vmatprep.subr.mxu0 %v4595
    %5775 = vmatpush1.msra.mxu0 %v4594
    %5776 = vmatprep.subr.mxu0 %v4605
    %5777 = vmatpush1.msra.mxu0 %v4604
    %5778 = vmatprep.subr.mxu0 %v4615
    %5779 = vmatpush1.msra.mxu0 %v4614
    %5780 = vmatprep.subr.mxu0 %v4625
    %5781 = vmatpush1.msra.mxu0 %v4624
    %5782 = vmatprep.subr.mxu0 %v4635
    %5783 = vmatpush1.msra.mxu0 %v4634
    %5784 = vmatprep.subr.mxu0 %v4645
    %5785 = vmatpush1.msra.mxu0 %v4644
    %5786 = vmatprep.subr.mxu0 %v4655
    %5787 = vmatpush1.msra.mxu0 %v4654
    %5788 = vmatprep.subr.mxu0 %v4665
    %5789 = vmatpush1.msra.mxu0 %v4664
    %5790 = vmatprep.subr.mxu0 %v4675
    %5791 = vmatpush1.msra.mxu0 %v4674
    %5792 = vmatprep.subr.mxu0 %v4685
    %5793 = vmatpush1.msra.mxu0 %v4684
    %5794 = vmatprep.subr.mxu0 %v4695
    %5795 = vmatpush1.msra.mxu0 %v4694
    %5796 = vmatprep.subr.mxu0 %v4705
    %5797 = vmatpush1.msra.mxu0 %v4704
    %5798 = vmatprep.subr.mxu0 %v4715
    %5799 = vmatpush1.msra.mxu0 %v4714
    %5800 = vmatprep.subr.mxu0 %v4725
    %5801 = vmatpush1.msra.mxu0 %v4724
    %5802 = vmatprep.subr.mxu0 %v4735
    %5803 = vmatpush1.msra.mxu0 %v4734
    %5804 = vmatprep.subr.mxu0 %v4745
    %5805 = vmatpush1.msra.mxu0 %v4744
    %5806 = vmatprep.subr.mxu0 %v4755
    %5807 = vmatpush1.msra.mxu0 %v4754
    %5808 = vmatprep.subr.mxu0 %v4765
    %5809 = vmatpush1.msra.mxu0 %v4764
    %5810 = vmatprep.subr.mxu0 %v4775
    %5811 = vmatpush1.msra.mxu0 %v4774
    %5812 = vmatprep.subr.mxu0 %v4785
    %5813 = vmatpush1.msra.mxu0 %v4784
    %5814 = vmatprep.subr.mxu0 %v4795
    %5815 = vmatpush1.msra.mxu0 %v4794
    %5816 = vmatprep.subr.mxu0 %v4805
    %5817 = vmatpush1.msra.mxu0 %v4804
    %5818 = vmatprep.mubr.f32.mxu0 %v3529
    %5819 = vmatmul.mubr.f32.gmra.mrb[0].mxu0 %v3528
    %v5820 = vpop.f32.mrb[0].mxu0
    %v5821 = vadd.f32 %v5750, %v5820
    %v5822 = vpop.f32.mrb[0].mxu0
    %v5823 = vadd.f32 %v5752, %v5822
    %5824 = vdwg.mxu0
    %5825 = vmatprep.subr.mxu0 %v4815
    %5826 = vmatpush1.msra.mxu0 %v4814
    %5827 = vmatprep.subr.mxu0 %v4825
    %5828 = vmatpush1.msra.mxu0 %v4824
    %5829 = vmatprep.subr.mxu0 %v4835
    %5830 = vmatpush1.msra.mxu0 %v4834
    %5831 = vmatprep.subr.mxu0 %v4845
    %5832 = vmatpush1.msra.mxu0 %v4844
    %5833 = vmatprep.subr.mxu0 %v4855
    %5834 = vmatpush1.msra.mxu0 %v4854
    %5835 = vmatprep.subr.mxu0 %v4865
    %5836 = vmatpush1.msra.mxu0 %v4864
    %5837 = vmatprep.subr.mxu0 %v4875
    %5838 = vmatpush1.msra.mxu0 %v4874
    %5839 = vmatprep.subr.mxu0 %v4885
    %5840 = vmatpush1.msra.mxu0 %v4884
    %5841 = vmatprep.subr.mxu0 %v4895
    %5842 = vmatpush1.msra.mxu0 %v4894
    %5843 = vmatprep.subr.mxu0 %v4905
    %5844 = vmatpush1.msra.mxu0 %v4904
    %5845 = vmatprep.subr.mxu0 %v4915
    %5846 = vmatpush1.msra.mxu0 %v4914
    %5847 = vmatprep.subr.mxu0 %v4925
    %5848 = vmatpush1.msra.mxu0 %v4924
    %5849 = vmatprep.subr.mxu0 %v4935
    %5850 = vmatpush1.msra.mxu0 %v4934
    %5851 = vmatprep.subr.mxu0 %v4945
    %5852 = vmatpush1.msra.mxu0 %v4944
    %5853 = vmatprep.subr.mxu0 %v4955
    %5854 = vmatpush1.msra.mxu0 %v4954
    %5855 = vmatprep.subr.mxu0 %v4965
    %5856 = vmatpush1.msra.mxu0 %v4964
    %5857 = vmatprep.subr.mxu0 %v4975
    %5858 = vmatpush1.msra.mxu0 %v4974
    %5859 = vmatprep.subr.mxu0 %v4985
    %5860 = vmatpush1.msra.mxu0 %v4984
    %5861 = vmatprep.subr.mxu0 %v4995
    %5862 = vmatpush1.msra.mxu0 %v4994
    %5863 = vmatprep.subr.mxu0 %v5005
    %5864 = vmatpush1.msra.mxu0 %v5004
    %5865 = vmatprep.subr.mxu0 %v5015
    %5866 = vmatpush1.msra.mxu0 %v5014
    %5867 = vmatprep.subr.mxu0 %v5025
    %5868 = vmatpush1.msra.mxu0 %v5024
    %5869 = vmatprep.subr.mxu0 %v5035
    %5870 = vmatpush1.msra.mxu0 %v5034
    %5871 = vmatprep.subr.mxu0 %v5045
    %5872 = vmatpush1.msra.mxu0 %v5044
    %5873 = vmatprep.subr.mxu0 %v5055
    %5874 = vmatpush1.msra.mxu0 %v5054
    %5875 = vmatprep.subr.mxu0 %v5065
    %5876 = vmatpush1.msra.mxu0 %v5064
    %5877 = vmatprep.subr.mxu0 %v5075
    %5878 = vmatpush1.msra.mxu0 %v5074
    %5879 = vmatprep.subr.mxu0 %v5085
    %5880 = vmatpush1.msra.mxu0 %v5084
    %5881 = vmatprep.subr.mxu0 %v5095
    %5882 = vmatpush1.msra.mxu0 %v5094
    %5883 = vmatprep.subr.mxu0 %v5105
    %5884 = vmatpush1.msra.mxu0 %v5104
    %5885 = vmatprep.subr.mxu0 %v5115
    %5886 = vmatpush1.msra.mxu0 %v5114
    %5887 = vmatprep.subr.mxu0 %v5125
    %5888 = vmatpush1.msra.mxu0 %v5124
    %5889 = vmatprep.mubr.f32.mxu0 %v3531
    %5890 = vmatmul.mubr.f32.gmra.mrb[0].mxu0 %v3530
    %v5891 = vpop.f32.mrb[0].mxu0
    %v5892 = vadd.f32 %v5821, %v5891
    %v5893 = vpop.f32.mrb[0].mxu0
    %v5894 = vadd.f32 %v5823, %v5893
    %5895 = vdwg.mxu0
    %5896 = vmatprep.subr.mxu0 %v3537
    %5897 = vmatpush1.msra.mxu0 %v3536
    %5898 = vmatprep.subr.mxu0 %v3547
    %5899 = vmatpush1.msra.mxu0 %v3546
    %5900 = vmatprep.subr.mxu0 %v3557
    %5901 = vmatpush1.msra.mxu0 %v3556
    %5902 = vmatprep.subr.mxu0 %v3567
    %5903 = vmatpush1.msra.mxu0 %v3566
    %5904 = vmatprep.subr.mxu0 %v3577
    %5905 = vmatpush1.msra.mxu0 %v3576
    %5906 = vmatprep.subr.mxu0 %v3587
    %5907 = vmatpush1.msra.mxu0 %v3586
    %5908 = vmatprep.subr.mxu0 %v3597
    %5909 = vmatpush1.msra.mxu0 %v3596
    %5910 = vmatprep.subr.mxu0 %v3607
    %5911 = vmatpush1.msra.mxu0 %v3606
    %5912 = vmatprep.subr.mxu0 %v3617
    %5913 = vmatpush1.msra.mxu0 %v3616
    %5914 = vmatprep.subr.mxu0 %v3627
    %5915 = vmatpush1.msra.mxu0 %v3626
    %5916 = vmatprep.subr.mxu0 %v3637
    %5917 = vmatpush1.msra.mxu0 %v3636
    %5918 = vmatprep.subr.mxu0 %v3647
    %5919 = vmatpush1.msra.mxu0 %v3646
    %5920 = vmatprep.subr.mxu0 %v3657
    %5921 = vmatpush1.msra.mxu0 %v3656
    %5922 = vmatprep.subr.mxu0 %v3667
    %5923 = vmatpush1.msra.mxu0 %v3666
    %5924 = vmatprep.subr.mxu0 %v3677
    %5925 = vmatpush1.msra.mxu0 %v3676
    %5926 = vmatprep.subr.mxu0 %v3687
    %5927 = vmatpush1.msra.mxu0 %v3686
    %5928 = vmatprep.subr.mxu0 %v3697
    %5929 = vmatpush1.msra.mxu0 %v3696
    %5930 = vmatprep.subr.mxu0 %v3707
    %5931 = vmatpush1.msra.mxu0 %v3706
    %5932 = vmatprep.subr.mxu0 %v3717
    %5933 = vmatpush1.msra.mxu0 %v3716
    %5934 = vmatprep.subr.mxu0 %v3727
    %5935 = vmatpush1.msra.mxu0 %v3726
    %5936 = vmatprep.subr.mxu0 %v3737
    %5937 = vmatpush1.msra.mxu0 %v3736
    %5938 = vmatprep.subr.mxu0 %v3747
    %5939 = vmatpush1.msra.mxu0 %v3746
    %5940 = vmatprep.subr.mxu0 %v3757
    %5941 = vmatpush1.msra.mxu0 %v3756
    %5942 = vmatprep.subr.mxu0 %v3767
    %5943 = vmatpush1.msra.mxu0 %v3766
    %5944 = vmatprep.subr.mxu0 %v3777
    %5945 = vmatpush1.msra.mxu0 %v3776
    %5946 = vmatprep.subr.mxu0 %v3787
    %5947 = vmatpush1.msra.mxu0 %v3786
    %5948 = vmatprep.subr.mxu0 %v3797
    %5949 = vmatpush1.msra.mxu0 %v3796
    %5950 = vmatprep.subr.mxu0 %v3807
    %5951 = vmatpush1.msra.mxu0 %v3806
    %5952 = vmatprep.subr.mxu0 %v3817
    %5953 = vmatpush1.msra.mxu0 %v3816
    %5954 = vmatprep.subr.mxu0 %v3827
    %5955 = vmatpush1.msra.mxu0 %v3826
    %5956 = vmatprep.subr.mxu0 %v3837
    %5957 = vmatpush1.msra.mxu0 %v3836
    %5958 = vmatprep.subr.mxu0 %v3847
    %5959 = vmatpush1.msra.mxu0 %v3846
    %5960 = vmatprep.mubr.f32.mxu0 %v3523
    %5961 = vmatmul.mubr.f32.gmra.mrb[0].mxu0 %v3522
    %v5962 = vpop.f32.mrb[0].mxu0
    %v5963 = vadd.f32 %v5155, %v5962
    %v5964 = vpop.f32.mrb[0].mxu0
    %v5965 = vadd.f32 %v5159, %v5964
    %5966 = vdwg.mxu0
    %5967 = vmatprep.subr.mxu0 %v3857
    %5968 = vmatpush1.msra.mxu0 %v3856
    %5969 = vmatprep.subr.mxu0 %v3867
    %5970 = vmatpush1.msra.mxu0 %v3866
    %5971 = vmatprep.subr.mxu0 %v3877
    %5972 = vmatpush1.msra.mxu0 %v3876
    %5973 = vmatprep.subr.mxu0 %v3887
    %5974 = vmatpush1.msra.mxu0 %v3886
    %5975 = vmatprep.subr.mxu0 %v3897
    %5976 = vmatpush1.msra.mxu0 %v3896
    %5977 = vmatprep.subr.mxu0 %v3907
    %5978 = vmatpush1.msra.mxu0 %v3906
    %5979 = vmatprep.subr.mxu0 %v3917
    %5980 = vmatpush1.msra.mxu0 %v3916
    %5981 = vmatprep.subr.mxu0 %v3927
    %5982 = vmatpush1.msra.mxu0 %v3926
    %5983 = vmatprep.subr.mxu0 %v3937
    %5984 = vmatpush1.msra.mxu0 %v3936
    %5985 = vmatprep.subr.mxu0 %v3947
    %5986 = vmatpush1.msra.mxu0 %v3946
    %5987 = vmatprep.subr.mxu0 %v3957
    %5988 = vmatpush1.msra.mxu0 %v3956
    %5989 = vmatprep.subr.mxu0 %v3967
    %5990 = vmatpush1.msra.mxu0 %v3966
    %5991 = vmatprep.subr.mxu0 %v3977
    %5992 = vmatpush1.msra.mxu0 %v3976
    %5993 = vmatprep.subr.mxu0 %v3987
    %5994 = vmatpush1.msra.mxu0 %v3986
    %5995 = vmatprep.subr.mxu0 %v3997
    %5996 = vmatpush1.msra.mxu0 %v3996
    %5997 = vmatprep.subr.mxu0 %v4007
    %5998 = vmatpush1.msra.mxu0 %v4006
    %5999 = vmatprep.subr.mxu0 %v4017
    %6000 = vmatpush1.msra.mxu0 %v4016
    %6001 = vmatprep.subr.mxu0 %v4027
    %6002 = vmatpush1.msra.mxu0 %v4026
    %6003 = vmatprep.subr.mxu0 %v4037
    %6004 = vmatpush1.msra.mxu0 %v4036
    %6005 = vmatprep.subr.mxu0 %v4047
    %6006 = vmatpush1.msra.mxu0 %v4046
    %6007 = vmatprep.subr.mxu0 %v4057
    %6008 = vmatpush1.msra.mxu0 %v4056
    %6009 = vmatprep.subr.mxu0 %v4067
    %6010 = vmatpush1.msra.mxu0 %v4066
    %6011 = vmatprep.subr.mxu0 %v4077
    %6012 = vmatpush1.msra.mxu0 %v4076
    %6013 = vmatprep.subr.mxu0 %v4087
    %6014 = vmatpush1.msra.mxu0 %v4086
    %6015 = vmatprep.subr.mxu0 %v4097
    %6016 = vmatpush1.msra.mxu0 %v4096
    %6017 = vmatprep.subr.mxu0 %v4107
    %6018 = vmatpush1.msra.mxu0 %v4106
    %6019 = vmatprep.subr.mxu0 %v4117
    %6020 = vmatpush1.msra.mxu0 %v4116
    %6021 = vmatprep.subr.mxu0 %v4127
    %6022 = vmatpush1.msra.mxu0 %v4126
    %6023 = vmatprep.subr.mxu0 %v4137
    %6024 = vmatpush1.msra.mxu0 %v4136
    %6025 = vmatprep.subr.mxu0 %v4147
    %6026 = vmatpush1.msra.mxu0 %v4146
    %6027 = vmatprep.subr.mxu0 %v4157
    %6028 = vmatpush1.msra.mxu0 %v4156
    %6029 = vmatprep.subr.mxu0 %v4167
    %6030 = vmatpush1.msra.mxu0 %v4166
    %6031 = vmatprep.mubr.f32.mxu0 %v3525
    %6032 = vmatmul.mubr.f32.gmra.mrb[0].mxu0 %v3524
    %v6033 = vpop.f32.mrb[0].mxu0
    %v6034 = vadd.f32 %v5963, %v6033
    %v6035 = vpop.f32.mrb[0].mxu0
    %v6036 = vadd.f32 %v5965, %v6035
    %6037 = vdwg.mxu0
    %6038 = vmatprep.subr.mxu0 %v4177
    %6039 = vmatpush1.msra.mxu0 %v4176
    %6040 = vmatprep.subr.mxu0 %v4187
    %6041 = vmatpush1.msra.mxu0 %v4186
    %6042 = vmatprep.subr.mxu0 %v4197
    %6043 = vmatpush1.msra.mxu0 %v4196
    %6044 = vmatprep.subr.mxu0 %v4207
    %6045 = vmatpush1.msra.mxu0 %v4206
    %6046 = vmatprep.subr.mxu0 %v4217
    %6047 = vmatpush1.msra.mxu0 %v4216
    %6048 = vmatprep.subr.mxu0 %v4227
    %6049 = vmatpush1.msra.mxu0 %v4226
    %6050 = vmatprep.subr.mxu0 %v4237
    %6051 = vmatpush1.msra.mxu0 %v4236
    %6052 = vmatprep.subr.mxu0 %v4247
    %6053 = vmatpush1.msra.mxu0 %v4246
    %6054 = vmatprep.subr.mxu0 %v4257
    %6055 = vmatpush1.msra.mxu0 %v4256
    %6056 = vmatprep.subr.mxu0 %v4267
    %6057 = vmatpush1.msra.mxu0 %v4266
    %6058 = vmatprep.subr.mxu0 %v4277
    %6059 = vmatpush1.msra.mxu0 %v4276
    %6060 = vmatprep.subr.mxu0 %v4287
    %6061 = vmatpush1.msra.mxu0 %v4286
    %6062 = vmatprep.subr.mxu0 %v4297
    %6063 = vmatpush1.msra.mxu0 %v4296
    %6064 = vmatprep.subr.mxu0 %v4307
    %6065 = vmatpush1.msra.mxu0 %v4306
    %6066 = vmatprep.subr.mxu0 %v4317
    %6067 = vmatpush1.msra.mxu0 %v4316
    %6068 = vmatprep.subr.mxu0 %v4327
    %6069 = vmatpush1.msra.mxu0 %v4326
    %6070 = vmatprep.subr.mxu0 %v4337
    %6071 = vmatpush1.msra.mxu0 %v4336
    %6072 = vmatprep.subr.mxu0 %v4347
    %6073 = vmatpush1.msra.mxu0 %v4346
    %6074 = vmatprep.subr.mxu0 %v4357
    %6075 = vmatpush1.msra.mxu0 %v4356
    %6076 = vmatprep.subr.mxu0 %v4367
    %6077 = vmatpush1.msra.mxu0 %v4366
    %6078 = vmatprep.subr.mxu0 %v4377
    %6079 = vmatpush1.msra.mxu0 %v4376
    %6080 = vmatprep.subr.mxu0 %v4387
    %6081 = vmatpush1.msra.mxu0 %v4386
    %6082 = vmatprep.subr.mxu0 %v4397
    %6083 = vmatpush1.msra.mxu0 %v4396
    %6084 = vmatprep.subr.mxu0 %v4407
    %6085 = vmatpush1.msra.mxu0 %v4406
    %6086 = vmatprep.subr.mxu0 %v4417
    %6087 = vmatpush1.msra.mxu0 %v4416
    %6088 = vmatprep.subr.mxu0 %v4427
    %6089 = vmatpush1.msra.mxu0 %v4426
    %6090 = vmatprep.subr.mxu0 %v4437
    %6091 = vmatpush1.msra.mxu0 %v4436
    %6092 = vmatprep.subr.mxu0 %v4447
    %6093 = vmatpush1.msra.mxu0 %v4446
    %6094 = vmatprep.subr.mxu0 %v4457
    %6095 = vmatpush1.msra.mxu0 %v4456
    %6096 = vmatprep.subr.mxu0 %v4467
    %6097 = vmatpush1.msra.mxu0 %v4466
    %6098 = vmatprep.subr.mxu0 %v4477
    %6099 = vmatpush1.msra.mxu0 %v4476
    %6100 = vmatprep.subr.mxu0 %v4487
    %6101 = vmatpush1.msra.mxu0 %v4486
    %6102 = vmatprep.mubr.f32.mxu0 %v3527
    %6103 = vmatmul.mubr.f32.gmra.mrb[0].mxu0 %v3526
    %v6104 = vpop.f32.mrb[0].mxu0
    %v6105 = vadd.f32 %v6034, %v6104
    %v6106 = vpop.f32.mrb[0].mxu0
    %v6107 = vadd.f32 %v6036, %v6106
    %6108 = vdwg.mxu0
    %6109 = vmatprep.subr.mxu0 %v4497
    %6110 = vmatpush1.msra.mxu0 %v4496
    %6111 = vmatprep.subr.mxu0 %v4507
    %6112 = vmatpush1.msra.mxu0 %v4506
    %6113 = vmatprep.subr.mxu0 %v4517
    %6114 = vmatpush1.msra.mxu0 %v4516
    %6115 = vmatprep.subr.mxu0 %v4527
    %6116 = vmatpush1.msra.mxu0 %v4526
    %6117 = vmatprep.subr.mxu0 %v4537
    %6118 = vmatpush1.msra.mxu0 %v4536
    %6119 = vmatprep.subr.mxu0 %v4547
    %6120 = vmatpush1.msra.mxu0 %v4546
    %6121 = vmatprep.subr.mxu0 %v4557
    %6122 = vmatpush1.msra.mxu0 %v4556
    %6123 = vmatprep.subr.mxu0 %v4567
    %6124 = vmatpush1.msra.mxu0 %v4566
    %6125 = vmatprep.subr.mxu0 %v4577
    %6126 = vmatpush1.msra.mxu0 %v4576
    %6127 = vmatprep.subr.mxu0 %v4587
    %6128 = vmatpush1.msra.mxu0 %v4586
    %6129 = vmatprep.subr.mxu0 %v4597
    %6130 = vmatpush1.msra.mxu0 %v4596
    %6131 = vmatprep.subr.mxu0 %v4607
    %6132 = vmatpush1.msra.mxu0 %v4606
    %6133 = vmatprep.subr.mxu0 %v4617
    %6134 = vmatpush1.msra.mxu0 %v4616
    %6135 = vmatprep.subr.mxu0 %v4627
    %6136 = vmatpush1.msra.mxu0 %v4626
    %6137 = vmatprep.subr.mxu0 %v4637
    %6138 = vmatpush1.msra.mxu0 %v4636
    %6139 = vmatprep.subr.mxu0 %v4647
    %6140 = vmatpush1.msra.mxu0 %v4646
    %6141 = vmatprep.subr.mxu0 %v4657
    %6142 = vmatpush1.msra.mxu0 %v4656
    %6143 = vmatprep.subr.mxu0 %v4667
    %6144 = vmatpush1.msra.mxu0 %v4666
    %6145 = vmatprep.subr.mxu0 %v4677
    %6146 = vmatpush1.msra.mxu0 %v4676
    %6147 = vmatprep.subr.mxu0 %v4687
    %6148 = vmatpush1.msra.mxu0 %v4686
    %6149 = vmatprep.subr.mxu0 %v4697
    %6150 = vmatpush1.msra.mxu0 %v4696
    %6151 = vmatprep.subr.mxu0 %v4707
    %6152 = vmatpush1.msra.mxu0 %v4706
    %6153 = vmatprep.subr.mxu0 %v4717
    %6154 = vmatpush1.msra.mxu0 %v4716
    %6155 = vmatprep.subr.mxu0 %v4727
    %6156 = vmatpush1.msra.mxu0 %v4726
    %6157 = vmatprep.subr.mxu0 %v4737
    %6158 = vmatpush1.msra.mxu0 %v4736
    %6159 = vmatprep.subr.mxu0 %v4747
    %6160 = vmatpush1.msra.mxu0 %v4746
    %6161 = vmatprep.subr.mxu0 %v4757
    %6162 = vmatpush1.msra.mxu0 %v4756
    %6163 = vmatprep.subr.mxu0 %v4767
    %6164 = vmatpush1.msra.mxu0 %v4766
    %6165 = vmatprep.subr.mxu0 %v4777
    %6166 = vmatpush1.msra.mxu0 %v4776
    %6167 = vmatprep.subr.mxu0 %v4787
    %6168 = vmatpush1.msra.mxu0 %v4786
    %6169 = vmatprep.subr.mxu0 %v4797
    %6170 = vmatpush1.msra.mxu0 %v4796
    %6171 = vmatprep.subr.mxu0 %v4807
    %6172 = vmatpush1.msra.mxu0 %v4806
    %6173 = vmatprep.mubr.f32.mxu0 %v3529
    %6174 = vmatmul.mubr.f32.gmra.mrb[0].mxu0 %v3528
    %v6175 = vpop.f32.mrb[0].mxu0
    %v6176 = vadd.f32 %v6105, %v6175
    %v6177 = vpop.f32.mrb[0].mxu0
    %v6178 = vadd.f32 %v6107, %v6177
    %6179 = vdwg.mxu0
    %6180 = vmatprep.subr.mxu0 %v4817
    %6181 = vmatpush1.msra.mxu0 %v4816
    %6182 = vmatprep.subr.mxu0 %v4827
    %6183 = vmatpush1.msra.mxu0 %v4826
    %6184 = vmatprep.subr.mxu0 %v4837
    %6185 = vmatpush1.msra.mxu0 %v4836
    %6186 = vmatprep.subr.mxu0 %v4847
    %6187 = vmatpush1.msra.mxu0 %v4846
    %6188 = vmatprep.subr.mxu0 %v4857
    %6189 = vmatpush1.msra.mxu0 %v4856
    %6190 = vmatprep.subr.mxu0 %v4867
    %6191 = vmatpush1.msra.mxu0 %v4866
    %6192 = vmatprep.subr.mxu0 %v4877
    %6193 = vmatpush1.msra.mxu0 %v4876
    %6194 = vmatprep.subr.mxu0 %v4887
    %6195 = vmatpush1.msra.mxu0 %v4886
    %6196 = vmatprep.subr.mxu0 %v4897
    %6197 = vmatpush1.msra.mxu0 %v4896
    %6198 = vmatprep.subr.mxu0 %v4907
    %6199 = vmatpush1.msra.mxu0 %v4906
    %6200 = vmatprep.subr.mxu0 %v4917
    %6201 = vmatpush1.msra.mxu0 %v4916
    %6202 = vmatprep.subr.mxu0 %v4927
    %6203 = vmatpush1.msra.mxu0 %v4926
    %6204 = vmatprep.subr.mxu0 %v4937
    %6205 = vmatpush1.msra.mxu0 %v4936
    %6206 = vmatprep.subr.mxu0 %v4947
    %6207 = vmatpush1.msra.mxu0 %v4946
    %6208 = vmatprep.subr.mxu0 %v4957
    %6209 = vmatpush1.msra.mxu0 %v4956
    %6210 = vmatprep.subr.mxu0 %v4967
    %6211 = vmatpush1.msra.mxu0 %v4966
    %6212 = vmatprep.subr.mxu0 %v4977
    %6213 = vmatpush1.msra.mxu0 %v4976
    %6214 = vmatprep.subr.mxu0 %v4987
    %6215 = vmatpush1.msra.mxu0 %v4986
    %6216 = vmatprep.subr.mxu0 %v4997
    %6217 = vmatpush1.msra.mxu0 %v4996
    %6218 = vmatprep.subr.mxu0 %v5007
    %6219 = vmatpush1.msra.mxu0 %v5006
    %6220 = vmatprep.subr.mxu0 %v5017
    %6221 = vmatpush1.msra.mxu0 %v5016
    %6222 = vmatprep.subr.mxu0 %v5027
    %6223 = vmatpush1.msra.mxu0 %v5026
    %6224 = vmatprep.subr.mxu0 %v5037
    %6225 = vmatpush1.msra.mxu0 %v5036
    %6226 = vmatprep.subr.mxu0 %v5047
    %6227 = vmatpush1.msra.mxu0 %v5046
    %6228 = vmatprep.subr.mxu0 %v5057
    %6229 = vmatpush1.msra.mxu0 %v5056
    %6230 = vmatprep.subr.mxu0 %v5067
    %6231 = vmatpush1.msra.mxu0 %v5066
    %6232 = vmatprep.subr.mxu0 %v5077
    %6233 = vmatpush1.msra.mxu0 %v5076
    %6234 = vmatprep.subr.mxu0 %v5087
    %6235 = vmatpush1.msra.mxu0 %v5086
    %6236 = vmatprep.subr.mxu0 %v5097
    %6237 = vmatpush1.msra.mxu0 %v5096
    %6238 = vmatprep.subr.mxu0 %v5107
    %6239 = vmatpush1.msra.mxu0 %v5106
    %6240 = vmatprep.subr.mxu0 %v5117
    %6241 = vmatpush1.msra.mxu0 %v5116
    %6242 = vmatprep.subr.mxu0 %v5127
    %6243 = vmatpush1.msra.mxu0 %v5126
    %6244 = vmatprep.mubr.f32.mxu0 %v3531
    %6245 = vmatmul.mubr.f32.gmra.mrb[0].mxu0 %v3530
    %v6246 = vpop.f32.mrb[0].mxu0
    %v6247 = vadd.f32 %v6176, %v6246
    %v6248 = vpop.f32.mrb[0].mxu0
    %v6249 = vadd.f32 %v6178, %v6248
    %6250 = vdwg.mxu0
    %6251 = vmatprep.subr.mxu0 %v3539
    %6252 = vmatpush1.msra.mxu0 %v3538
    %6253 = vmatprep.subr.mxu0 %v3549
    %6254 = vmatpush1.msra.mxu0 %v3548
    %6255 = vmatprep.subr.mxu0 %v3559
    %6256 = vmatpush1.msra.mxu0 %v3558
    %6257 = vmatprep.subr.mxu0 %v3569
    %6258 = vmatpush1.msra.mxu0 %v3568
    %6259 = vmatprep.subr.mxu0 %v3579
    %6260 = vmatpush1.msra.mxu0 %v3578
    %6261 = vmatprep.subr.mxu0 %v3589
    %6262 = vmatpush1.msra.mxu0 %v3588
    %6263 = vmatprep.subr.mxu0 %v3599
    %6264 = vmatpush1.msra.mxu0 %v3598
    %6265 = vmatprep.subr.mxu0 %v3609
    %6266 = vmatpush1.msra.mxu0 %v3608
    %6267 = vmatprep.subr.mxu0 %v3619
    %6268 = vmatpush1.msra.mxu0 %v3618
    %6269 = vmatprep.subr.mxu0 %v3629
    %6270 = vmatpush1.msra.mxu0 %v3628
    %6271 = vmatprep.subr.mxu0 %v3639
    %6272 = vmatpush1.msra.mxu0 %v3638
    %6273 = vmatprep.subr.mxu0 %v3649
    %6274 = vmatpush1.msra.mxu0 %v3648
    %6275 = vmatprep.subr.mxu0 %v3659
    %6276 = vmatpush1.msra.mxu0 %v3658
    %6277 = vmatprep.subr.mxu0 %v3669
    %6278 = vmatpush1.msra.mxu0 %v3668
    %6279 = vmatprep.subr.mxu0 %v3679
    %6280 = vmatpush1.msra.mxu0 %v3678
    %6281 = vmatprep.subr.mxu0 %v3689
    %6282 = vmatpush1.msra.mxu0 %v3688
    %6283 = vmatprep.subr.mxu0 %v3699
    %6284 = vmatpush1.msra.mxu0 %v3698
    %6285 = vmatprep.subr.mxu0 %v3709
    %6286 = vmatpush1.msra.mxu0 %v3708
    %6287 = vmatprep.subr.mxu0 %v3719
    %6288 = vmatpush1.msra.mxu0 %v3718
    %6289 = vmatprep.subr.mxu0 %v3729
    %6290 = vmatpush1.msra.mxu0 %v3728
    %6291 = vmatprep.subr.mxu0 %v3739
    %6292 = vmatpush1.msra.mxu0 %v3738
    %6293 = vmatprep.subr.mxu0 %v3749
    %6294 = vmatpush1.msra.mxu0 %v3748
    %6295 = vmatprep.subr.mxu0 %v3759
    %6296 = vmatpush1.msra.mxu0 %v3758
    %6297 = vmatprep.subr.mxu0 %v3769
    %6298 = vmatpush1.msra.mxu0 %v3768
    %6299 = vmatprep.subr.mxu0 %v3779
    %6300 = vmatpush1.msra.mxu0 %v3778
    %6301 = vmatprep.subr.mxu0 %v3789
    %6302 = vmatpush1.msra.mxu0 %v3788
    %6303 = vmatprep.subr.mxu0 %v3799
    %6304 = vmatpush1.msra.mxu0 %v3798
    %6305 = vmatprep.subr.mxu0 %v3809
    %6306 = vmatpush1.msra.mxu0 %v3808
    %6307 = vmatprep.subr.mxu0 %v3819
    %6308 = vmatpush1.msra.mxu0 %v3818
    %6309 = vmatprep.subr.mxu0 %v3829
    %6310 = vmatpush1.msra.mxu0 %v3828
    %6311 = vmatprep.subr.mxu0 %v3839
    %6312 = vmatpush1.msra.mxu0 %v3838
    %6313 = vmatprep.subr.mxu0 %v3849
    %6314 = vmatpush1.msra.mxu0 %v3848
    %6315 = vmatprep.mubr.f32.mxu0 %v3523
    %6316 = vmatmul.mubr.f32.gmra.mrb[0].mxu0 %v3522
    %v6317 = vpop.f32.mrb[0].mxu0
    %v6318 = vadd.f32 %v5163, %v6317
    %v6319 = vpop.f32.mrb[0].mxu0
    %v6320 = vadd.f32 %v5167, %v6319
    %6321 = vdwg.mxu0
    %6322 = vmatprep.subr.mxu0 %v3859
    %6323 = vmatpush1.msra.mxu0 %v3858
    %6324 = vmatprep.subr.mxu0 %v3869
    %6325 = vmatpush1.msra.mxu0 %v3868
    %6326 = vmatprep.subr.mxu0 %v3879
    %6327 = vmatpush1.msra.mxu0 %v3878
    %6328 = vmatprep.subr.mxu0 %v3889
    %6329 = vmatpush1.msra.mxu0 %v3888
    %6330 = vmatprep.subr.mxu0 %v3899
    %6331 = vmatpush1.msra.mxu0 %v3898
    %6332 = vmatprep.subr.mxu0 %v3909
    %6333 = vmatpush1.msra.mxu0 %v3908
    %6334 = vmatprep.subr.mxu0 %v3919
    %6335 = vmatpush1.msra.mxu0 %v3918
    %6336 = vmatprep.subr.mxu0 %v3929
    %6337 = vmatpush1.msra.mxu0 %v3928
    %6338 = vmatprep.subr.mxu0 %v3939
    %6339 = vmatpush1.msra.mxu0 %v3938
    %6340 = vmatprep.subr.mxu0 %v3949
    %6341 = vmatpush1.msra.mxu0 %v3948
    %6342 = vmatprep.subr.mxu0 %v3959
    %6343 = vmatpush1.msra.mxu0 %v3958
    %6344 = vmatprep.subr.mxu0 %v3969
    %6345 = vmatpush1.msra.mxu0 %v3968
    %6346 = vmatprep.subr.mxu0 %v3979
    %6347 = vmatpush1.msra.mxu0 %v3978
    %6348 = vmatprep.subr.mxu0 %v3989
    %6349 = vmatpush1.msra.mxu0 %v3988
    %6350 = vmatprep.subr.mxu0 %v3999
    %6351 = vmatpush1.msra.mxu0 %v3998
    %6352 = vmatprep.subr.mxu0 %v4009
    %6353 = vmatpush1.msra.mxu0 %v4008
    %6354 = vmatprep.subr.mxu0 %v4019
    %6355 = vmatpush1.msra.mxu0 %v4018
    %6356 = vmatprep.subr.mxu0 %v4029
    %6357 = vmatpush1.msra.mxu0 %v4028
    %6358 = vmatprep.subr.mxu0 %v4039
    %6359 = vmatpush1.msra.mxu0 %v4038
    %6360 = vmatprep.subr.mxu0 %v4049
    %6361 = vmatpush1.msra.mxu0 %v4048
    %6362 = vmatprep.subr.mxu0 %v4059
    %6363 = vmatpush1.msra.mxu0 %v4058
    %6364 = vmatprep.subr.mxu0 %v4069
    %6365 = vmatpush1.msra.mxu0 %v4068
    %6366 = vmatprep.subr.mxu0 %v4079
    %6367 = vmatpush1.msra.mxu0 %v4078
    %6368 = vmatprep.subr.mxu0 %v4089
    %6369 = vmatpush1.msra.mxu0 %v4088
    %6370 = vmatprep.subr.mxu0 %v4099
    %6371 = vmatpush1.msra.mxu0 %v4098
    %6372 = vmatprep.subr.mxu0 %v4109
    %6373 = vmatpush1.msra.mxu0 %v4108
    %6374 = vmatprep.subr.mxu0 %v4119
    %6375 = vmatpush1.msra.mxu0 %v4118
    %6376 = vmatprep.subr.mxu0 %v4129
    %6377 = vmatpush1.msra.mxu0 %v4128
    %6378 = vmatprep.subr.mxu0 %v4139
    %6379 = vmatpush1.msra.mxu0 %v4138
    %6380 = vmatprep.subr.mxu0 %v4149
    %6381 = vmatpush1.msra.mxu0 %v4148
    %6382 = vmatprep.subr.mxu0 %v4159
    %6383 = vmatpush1.msra.mxu0 %v4158
    %6384 = vmatprep.subr.mxu0 %v4169
    %6385 = vmatpush1.msra.mxu0 %v4168
    %6386 = vmatprep.mubr.f32.mxu0 %v3525
    %6387 = vmatmul.mubr.f32.gmra.mrb[0].mxu0 %v3524
    %v6388 = vpop.f32.mrb[0].mxu0
    %v6389 = vadd.f32 %v6318, %v6388
    %v6390 = vpop.f32.mrb[0].mxu0
    %v6391 = vadd.f32 %v6320, %v6390
    %6392 = vdwg.mxu0
    %6393 = vmatprep.subr.mxu0 %v4179
    %6394 = vmatpush1.msra.mxu0 %v4178
    %6395 = vmatprep.subr.mxu0 %v4189
    %6396 = vmatpush1.msra.mxu0 %v4188
    %6397 = vmatprep.subr.mxu0 %v4199
    %6398 = vmatpush1.msra.mxu0 %v4198
    %6399 = vmatprep.subr.mxu0 %v4209
    %6400 = vmatpush1.msra.mxu0 %v4208
    %6401 = vmatprep.subr.mxu0 %v4219
    %6402 = vmatpush1.msra.mxu0 %v4218
    %6403 = vmatprep.subr.mxu0 %v4229
    %6404 = vmatpush1.msra.mxu0 %v4228
    %6405 = vmatprep.subr.mxu0 %v4239
    %6406 = vmatpush1.msra.mxu0 %v4238
    %6407 = vmatprep.subr.mxu0 %v4249
    %6408 = vmatpush1.msra.mxu0 %v4248
    %6409 = vmatprep.subr.mxu0 %v4259
    %6410 = vmatpush1.msra.mxu0 %v4258
    %6411 = vmatprep.subr.mxu0 %v4269
    %6412 = vmatpush1.msra.mxu0 %v4268
    %6413 = vmatprep.subr.mxu0 %v4279
    %6414 = vmatpush1.msra.mxu0 %v4278
    %6415 = vmatprep.subr.mxu0 %v4289
    %6416 = vmatpush1.msra.mxu0 %v4288
    %6417 = vmatprep.subr.mxu0 %v4299
    %6418 = vmatpush1.msra.mxu0 %v4298
    %6419 = vmatprep.subr.mxu0 %v4309
    %6420 = vmatpush1.msra.mxu0 %v4308
    %6421 = vmatprep.subr.mxu0 %v4319
    %6422 = vmatpush1.msra.mxu0 %v4318
    %6423 = vmatprep.subr.mxu0 %v4329
    %6424 = vmatpush1.msra.mxu0 %v4328
    %6425 = vmatprep.subr.mxu0 %v4339
    %6426 = vmatpush1.msra.mxu0 %v4338
    %6427 = vmatprep.subr.mxu0 %v4349
    %6428 = vmatpush1.msra.mxu0 %v4348
    %6429 = vmatprep.subr.mxu0 %v4359
    %6430 = vmatpush1.msra.mxu0 %v4358
    %6431 = vmatprep.subr.mxu0 %v4369
    %6432 = vmatpush1.msra.mxu0 %v4368
    %6433 = vmatprep.subr.mxu0 %v4379
    %6434 = vmatpush1.msra.mxu0 %v4378
    %6435 = vmatprep.subr.mxu0 %v4389
    %6436 = vmatpush1.msra.mxu0 %v4388
    %6437 = vmatprep.subr.mxu0 %v4399
    %6438 = vmatpush1.msra.mxu0 %v4398
    %6439 = vmatprep.subr.mxu0 %v4409
    %6440 = vmatpush1.msra.mxu0 %v4408
    %6441 = vmatprep.subr.mxu0 %v4419
    %6442 = vmatpush1.msra.mxu0 %v4418
    %6443 = vmatprep.subr.mxu0 %v4429
    %6444 = vmatpush1.msra.mxu0 %v4428
    %6445 = vmatprep.subr.mxu0 %v4439
    %6446 = vmatpush1.msra.mxu0 %v4438
    %6447 = vmatprep.subr.mxu0 %v4449
    %6448 = vmatpush1.msra.mxu0 %v4448
    %6449 = vmatprep.subr.mxu0 %v4459
    %6450 = vmatpush1.msra.mxu0 %v4458
    %6451 = vmatprep.subr.mxu0 %v4469
    %6452 = vmatpush1.msra.mxu0 %v4468
    %6453 = vmatprep.subr.mxu0 %v4479
    %6454 = vmatpush1.msra.mxu0 %v4478
    %6455 = vmatprep.subr.mxu0 %v4489
    %6456 = vmatpush1.msra.mxu0 %v4488
    %6457 = vmatprep.mubr.f32.mxu0 %v3527
    %6458 = vmatmul.mubr.f32.gmra.mrb[0].mxu0 %v3526
    %v6459 = vpop.f32.mrb[0].mxu0
    %v6460 = vadd.f32 %v6389, %v6459
    %v6461 = vpop.f32.mrb[0].mxu0
    %v6462 = vadd.f32 %v6391, %v6461
    %6463 = vdwg.mxu0
    %6464 = vmatprep.subr.mxu0 %v4499
    %6465 = vmatpush1.msra.mxu0 %v4498
    %6466 = vmatprep.subr.mxu0 %v4509
    %6467 = vmatpush1.msra.mxu0 %v4508
    %6468 = vmatprep.subr.mxu0 %v4519
    %6469 = vmatpush1.msra.mxu0 %v4518
    %6470 = vmatprep.subr.mxu0 %v4529
    %6471 = vmatpush1.msra.mxu0 %v4528
    %6472 = vmatprep.subr.mxu0 %v4539
    %6473 = vmatpush1.msra.mxu0 %v4538
    %6474 = vmatprep.subr.mxu0 %v4549
    %6475 = vmatpush1.msra.mxu0 %v4548
    %6476 = vmatprep.subr.mxu0 %v4559
    %6477 = vmatpush1.msra.mxu0 %v4558
    %6478 = vmatprep.subr.mxu0 %v4569
    %6479 = vmatpush1.msra.mxu0 %v4568
    %6480 = vmatprep.subr.mxu0 %v4579
    %6481 = vmatpush1.msra.mxu0 %v4578
    %6482 = vmatprep.subr.mxu0 %v4589
    %6483 = vmatpush1.msra.mxu0 %v4588
    %6484 = vmatprep.subr.mxu0 %v4599
    %6485 = vmatpush1.msra.mxu0 %v4598
    %6486 = vmatprep.subr.mxu0 %v4609
    %6487 = vmatpush1.msra.mxu0 %v4608
    %6488 = vmatprep.subr.mxu0 %v4619
    %6489 = vmatpush1.msra.mxu0 %v4618
    %6490 = vmatprep.subr.mxu0 %v4629
    %6491 = vmatpush1.msra.mxu0 %v4628
    %6492 = vmatprep.subr.mxu0 %v4639
    %6493 = vmatpush1.msra.mxu0 %v4638
    %6494 = vmatprep.subr.mxu0 %v4649
    %6495 = vmatpush1.msra.mxu0 %v4648
    %6496 = vmatprep.subr.mxu0 %v4659
    %6497 = vmatpush1.msra.mxu0 %v4658
    %6498 = vmatprep.subr.mxu0 %v4669
    %6499 = vmatpush1.msra.mxu0 %v4668
    %6500 = vmatprep.subr.mxu0 %v4679
    %6501 = vmatpush1.msra.mxu0 %v4678
    %6502 = vmatprep.subr.mxu0 %v4689
    %6503 = vmatpush1.msra.mxu0 %v4688
    %6504 = vmatprep.subr.mxu0 %v4699
    %6505 = vmatpush1.msra.mxu0 %v4698
    %6506 = vmatprep.subr.mxu0 %v4709
    %6507 = vmatpush1.msra.mxu0 %v4708
    %6508 = vmatprep.subr.mxu0 %v4719
    %6509 = vmatpush1.msra.mxu0 %v4718
    %6510 = vmatprep.subr.mxu0 %v4729
    %6511 = vmatpush1.msra.mxu0 %v4728
    %6512 = vmatprep.subr.mxu0 %v4739
    %6513 = vmatpush1.msra.mxu0 %v4738
    %6514 = vmatprep.subr.mxu0 %v4749
    %6515 = vmatpush1.msra.mxu0 %v4748
    %6516 = vmatprep.subr.mxu0 %v4759
    %6517 = vmatpush1.msra.mxu0 %v4758
    %6518 = vmatprep.subr.mxu0 %v4769
    %6519 = vmatpush1.msra.mxu0 %v4768
    %6520 = vmatprep.subr.mxu0 %v4779
    %6521 = vmatpush1.msra.mxu0 %v4778
    %6522 = vmatprep.subr.mxu0 %v4789
    %6523 = vmatpush1.msra.mxu0 %v4788
    %6524 = vmatprep.subr.mxu0 %v4799
    %6525 = vmatpush1.msra.mxu0 %v4798
    %6526 = vmatprep.subr.mxu0 %v4809
    %6527 = vmatpush1.msra.mxu0 %v4808
    %6528 = vmatprep.mubr.f32.mxu0 %v3529
    %6529 = vmatmul.mubr.f32.gmra.mrb[0].mxu0 %v3528
    %v6530 = vpop.f32.mrb[0].mxu0
    %v6531 = vadd.f32 %v6460, %v6530
    %v6532 = vpop.f32.mrb[0].mxu0
    %v6533 = vadd.f32 %v6462, %v6532
    %6534 = vdwg.mxu0
    %6535 = vmatprep.subr.mxu0 %v4819
    %6536 = vmatpush1.msra.mxu0 %v4818
    %6537 = vmatprep.subr.mxu0 %v4829
    %6538 = vmatpush1.msra.mxu0 %v4828
    %6539 = vmatprep.subr.mxu0 %v4839
    %6540 = vmatpush1.msra.mxu0 %v4838
    %6541 = vmatprep.subr.mxu0 %v4849
    %6542 = vmatpush1.msra.mxu0 %v4848
    %6543 = vmatprep.subr.mxu0 %v4859
    %6544 = vmatpush1.msra.mxu0 %v4858
    %6545 = vmatprep.subr.mxu0 %v4869
    %6546 = vmatpush1.msra.mxu0 %v4868
    %6547 = vmatprep.subr.mxu0 %v4879
    %6548 = vmatpush1.msra.mxu0 %v4878
    %6549 = vmatprep.subr.mxu0 %v4889
    %6550 = vmatpush1.msra.mxu0 %v4888
    %6551 = vmatprep.subr.mxu0 %v4899
    %6552 = vmatpush1.msra.mxu0 %v4898
    %6553 = vmatprep.subr.mxu0 %v4909
    %6554 = vmatpush1.msra.mxu0 %v4908
    %6555 = vmatprep.subr.mxu0 %v4919
    %6556 = vmatpush1.msra.mxu0 %v4918
    %6557 = vmatprep.subr.mxu0 %v4929
    %6558 = vmatpush1.msra.mxu0 %v4928
    %6559 = vmatprep.subr.mxu0 %v4939
    %6560 = vmatpush1.msra.mxu0 %v4938
    %6561 = vmatprep.subr.mxu0 %v4949
    %6562 = vmatpush1.msra.mxu0 %v4948
    %6563 = vmatprep.subr.mxu0 %v4959
    %6564 = vmatpush1.msra.mxu0 %v4958
    %6565 = vmatprep.subr.mxu0 %v4969
    %6566 = vmatpush1.msra.mxu0 %v4968
    %6567 = vmatprep.subr.mxu0 %v4979
    %6568 = vmatpush1.msra.mxu0 %v4978
    %6569 = vmatprep.subr.mxu0 %v4989
    %6570 = vmatpush1.msra.mxu0 %v4988
    %6571 = vmatprep.subr.mxu0 %v4999
    %6572 = vmatpush1.msra.mxu0 %v4998
    %6573 = vmatprep.subr.mxu0 %v5009
    %6574 = vmatpush1.msra.mxu0 %v5008
    %6575 = vmatprep.subr.mxu0 %v5019
    %6576 = vmatpush1.msra.mxu0 %v5018
    %6577 = vmatprep.subr.mxu0 %v5029
    %6578 = vmatpush1.msra.mxu0 %v5028
    %6579 = vmatprep.subr.mxu0 %v5039
    %6580 = vmatpush1.msra.mxu0 %v5038
    %6581 = vmatprep.subr.mxu0 %v5049
    %6582 = vmatpush1.msra.mxu0 %v5048
    %6583 = vmatprep.subr.mxu0 %v5059
    %6584 = vmatpush1.msra.mxu0 %v5058
    %6585 = vmatprep.subr.mxu0 %v5069
    %6586 = vmatpush1.msra.mxu0 %v5068
    %6587 = vmatprep.subr.mxu0 %v5079
    %6588 = vmatpush1.msra.mxu0 %v5078
    %6589 = vmatprep.subr.mxu0 %v5089
    %6590 = vmatpush1.msra.mxu0 %v5088
    %6591 = vmatprep.subr.mxu0 %v5099
    %6592 = vmatpush1.msra.mxu0 %v5098
    %6593 = vmatprep.subr.mxu0 %v5109
    %6594 = vmatpush1.msra.mxu0 %v5108
    %6595 = vmatprep.subr.mxu0 %v5119
    %6596 = vmatpush1.msra.mxu0 %v5118
    %6597 = vmatprep.subr.mxu0 %v5129
    %6598 = vmatpush1.msra.mxu0 %v5128
    %6599 = vmatprep.mubr.f32.mxu0 %v3531
    %6600 = vmatmul.mubr.f32.gmra.mrb[0].mxu0 %v3530
    %v6601 = vpop.f32.mrb[0].mxu0
    %v6602 = vadd.f32 %v6531, %v6601
    %v6603 = vpop.f32.mrb[0].mxu0
    %v6604 = vadd.f32 %v6533, %v6603
    %6605 = vdwg.mxu0
    %6606 = vmatprep.subr.mxu0 %v3541
    %6607 = vmatpush1.msra.mxu0 %v3540
    %6608 = vmatprep.subr.mxu0 %v3551
    %6609 = vmatpush1.msra.mxu0 %v3550
    %6610 = vmatprep.subr.mxu0 %v3561
    %6611 = vmatpush1.msra.mxu0 %v3560
    %6612 = vmatprep.subr.mxu0 %v3571
    %6613 = vmatpush1.msra.mxu0 %v3570
    %6614 = vmatprep.subr.mxu0 %v3581
    %6615 = vmatpush1.msra.mxu0 %v3580
    %6616 = vmatprep.subr.mxu0 %v3591
    %6617 = vmatpush1.msra.mxu0 %v3590
    %6618 = vmatprep.subr.mxu0 %v3601
    %6619 = vmatpush1.msra.mxu0 %v3600
    %6620 = vmatprep.subr.mxu0 %v3611
    %6621 = vmatpush1.msra.mxu0 %v3610
    %6622 = vmatprep.subr.mxu0 %v3621
    %6623 = vmatpush1.msra.mxu0 %v3620
    %6624 = vmatprep.subr.mxu0 %v3631
    %6625 = vmatpush1.msra.mxu0 %v3630
    %6626 = vmatprep.subr.mxu0 %v3641
    %6627 = vmatpush1.msra.mxu0 %v3640
    %6628 = vmatprep.subr.mxu0 %v3651
    %6629 = vmatpush1.msra.mxu0 %v3650
    %6630 = vmatprep.subr.mxu0 %v3661
    %6631 = vmatpush1.msra.mxu0 %v3660
    %6632 = vmatprep.subr.mxu0 %v3671
    %6633 = vmatpush1.msra.mxu0 %v3670
    %6634 = vmatprep.subr.mxu0 %v3681
    %6635 = vmatpush1.msra.mxu0 %v3680
    %6636 = vmatprep.subr.mxu0 %v3691
    %6637 = vmatpush1.msra.mxu0 %v3690
    %6638 = vmatprep.subr.mxu0 %v3701
    %6639 = vmatpush1.msra.mxu0 %v3700
    %6640 = vmatprep.subr.mxu0 %v3711
    %6641 = vmatpush1.msra.mxu0 %v3710
    %6642 = vmatprep.subr.mxu0 %v3721
    %6643 = vmatpush1.msra.mxu0 %v3720
    %6644 = vmatprep.subr.mxu0 %v3731
    %6645 = vmatpush1.msra.mxu0 %v3730
    %6646 = vmatprep.subr.mxu0 %v3741
    %6647 = vmatpush1.msra.mxu0 %v3740
    %6648 = vmatprep.subr.mxu0 %v3751
    %6649 = vmatpush1.msra.mxu0 %v3750
    %6650 = vmatprep.subr.mxu0 %v3761
    %6651 = vmatpush1.msra.mxu0 %v3760
    %6652 = vmatprep.subr.mxu0 %v3771
    %6653 = vmatpush1.msra.mxu0 %v3770
    %6654 = vmatprep.subr.mxu0 %v3781
    %6655 = vmatpush1.msra.mxu0 %v3780
    %6656 = vmatprep.subr.mxu0 %v3791
    %6657 = vmatpush1.msra.mxu0 %v3790
    %6658 = vmatprep.subr.mxu0 %v3801
    %6659 = vmatpush1.msra.mxu0 %v3800
    %6660 = vmatprep.subr.mxu0 %v3811
    %6661 = vmatpush1.msra.mxu0 %v3810
    %6662 = vmatprep.subr.mxu0 %v3821
    %6663 = vmatpush1.msra.mxu0 %v3820
    %6664 = vmatprep.subr.mxu0 %v3831
    %6665 = vmatpush1.msra.mxu0 %v3830
    %6666 = vmatprep.subr.mxu0 %v3841
    %6667 = vmatpush1.msra.mxu0 %v3840
    %6668 = vmatprep.subr.mxu0 %v3851
    %6669 = vmatpush1.msra.mxu0 %v3850
    %6670 = vmatprep.mubr.f32.mxu0 %v3523
    %6671 = vmatmul.mubr.f32.gmra.mrb[0].mxu0 %v3522
    %v6672 = vpop.f32.mrb[0].mxu0
    %v6673 = vadd.f32 %v5171, %v6672
    %v6674 = vpop.f32.mrb[0].mxu0
    %v6675 = vadd.f32 %v5175, %v6674
    %6676 = vdwg.mxu0
    %6677 = vmatprep.subr.mxu0 %v3861
    %6678 = vmatpush1.msra.mxu0 %v3860
    %6679 = vmatprep.subr.mxu0 %v3871
    %6680 = vmatpush1.msra.mxu0 %v3870
    %6681 = vmatprep.subr.mxu0 %v3881
    %6682 = vmatpush1.msra.mxu0 %v3880
    %6683 = vmatprep.subr.mxu0 %v3891
    %6684 = vmatpush1.msra.mxu0 %v3890
    %6685 = vmatprep.subr.mxu0 %v3901
    %6686 = vmatpush1.msra.mxu0 %v3900
    %6687 = vmatprep.subr.mxu0 %v3911
    %6688 = vmatpush1.msra.mxu0 %v3910
    %6689 = vmatprep.subr.mxu0 %v3921
    %6690 = vmatpush1.msra.mxu0 %v3920
    %6691 = vmatprep.subr.mxu0 %v3931
    %6692 = vmatpush1.msra.mxu0 %v3930
    %6693 = vmatprep.subr.mxu0 %v3941
    %6694 = vmatpush1.msra.mxu0 %v3940
    %6695 = vmatprep.subr.mxu0 %v3951
    %6696 = vmatpush1.msra.mxu0 %v3950
    %6697 = vmatprep.subr.mxu0 %v3961
    %6698 = vmatpush1.msra.mxu0 %v3960
    %6699 = vmatprep.subr.mxu0 %v3971
    %6700 = vmatpush1.msra.mxu0 %v3970
    %6701 = vmatprep.subr.mxu0 %v3981
    %6702 = vmatpush1.msra.mxu0 %v3980
    %6703 = vmatprep.subr.mxu0 %v3991
    %6704 = vmatpush1.msra.mxu0 %v3990
    %6705 = vmatprep.subr.mxu0 %v4001
    %6706 = vmatpush1.msra.mxu0 %v4000
    %6707 = vmatprep.subr.mxu0 %v4011
    %6708 = vmatpush1.msra.mxu0 %v4010
    %6709 = vmatprep.subr.mxu0 %v4021
    %6710 = vmatpush1.msra.mxu0 %v4020
    %6711 = vmatprep.subr.mxu0 %v4031
    %6712 = vmatpush1.msra.mxu0 %v4030
    %6713 = vmatprep.subr.mxu0 %v4041
    %6714 = vmatpush1.msra.mxu0 %v4040
    %6715 = vmatprep.subr.mxu0 %v4051
    %6716 = vmatpush1.msra.mxu0 %v4050
    %6717 = vmatprep.subr.mxu0 %v4061
    %6718 = vmatpush1.msra.mxu0 %v4060
    %6719 = vmatprep.subr.mxu0 %v4071
    %6720 = vmatpush1.msra.mxu0 %v4070
    %6721 = vmatprep.subr.mxu0 %v4081
    %6722 = vmatpush1.msra.mxu0 %v4080
    %6723 = vmatprep.subr.mxu0 %v4091
    %6724 = vmatpush1.msra.mxu0 %v4090
    %6725 = vmatprep.subr.mxu0 %v4101
    %6726 = vmatpush1.msra.mxu0 %v4100
    %6727 = vmatprep.subr.mxu0 %v4111
    %6728 = vmatpush1.msra.mxu0 %v4110
    %6729 = vmatprep.subr.mxu0 %v4121
    %6730 = vmatpush1.msra.mxu0 %v4120
    %6731 = vmatprep.subr.mxu0 %v4131
    %6732 = vmatpush1.msra.mxu0 %v4130
    %6733 = vmatprep.subr.mxu0 %v4141
    %6734 = vmatpush1.msra.mxu0 %v4140
    %6735 = vmatprep.subr.mxu0 %v4151
    %6736 = vmatpush1.msra.mxu0 %v4150
    %6737 = vmatprep.subr.mxu0 %v4161
    %6738 = vmatpush1.msra.mxu0 %v4160
    %6739 = vmatprep.subr.mxu0 %v4171
    %6740 = vmatpush1.msra.mxu0 %v4170
    %6741 = vmatprep.mubr.f32.mxu0 %v3525
    %6742 = vmatmul.mubr.f32.gmra.mrb[0].mxu0 %v3524
    %v6743 = vpop.f32.mrb[0].mxu0
    %v6744 = vadd.f32 %v6673, %v6743
    %v6745 = vpop.f32.mrb[0].mxu0
    %v6746 = vadd.f32 %v6675, %v6745
    %6747 = vdwg.mxu0
    %6748 = vmatprep.subr.mxu0 %v4181
    %6749 = vmatpush1.msra.mxu0 %v4180
    %6750 = vmatprep.subr.mxu0 %v4191
    %6751 = vmatpush1.msra.mxu0 %v4190
    %6752 = vmatprep.subr.mxu0 %v4201
    %6753 = vmatpush1.msra.mxu0 %v4200
    %6754 = vmatprep.subr.mxu0 %v4211
    %6755 = vmatpush1.msra.mxu0 %v4210
    %6756 = vmatprep.subr.mxu0 %v4221
    %6757 = vmatpush1.msra.mxu0 %v4220
    %6758 = vmatprep.subr.mxu0 %v4231
    %6759 = vmatpush1.msra.mxu0 %v4230
    %6760 = vmatprep.subr.mxu0 %v4241
    %6761 = vmatpush1.msra.mxu0 %v4240
    %6762 = vmatprep.subr.mxu0 %v4251
    %6763 = vmatpush1.msra.mxu0 %v4250
    %6764 = vmatprep.subr.mxu0 %v4261
    %6765 = vmatpush1.msra.mxu0 %v4260
    %6766 = vmatprep.subr.mxu0 %v4271
    %6767 = vmatpush1.msra.mxu0 %v4270
    %6768 = vmatprep.subr.mxu0 %v4281
    %6769 = vmatpush1.msra.mxu0 %v4280
    %6770 = vmatprep.subr.mxu0 %v4291
    %6771 = vmatpush1.msra.mxu0 %v4290
    %6772 = vmatprep.subr.mxu0 %v4301
    %6773 = vmatpush1.msra.mxu0 %v4300
    %6774 = vmatprep.subr.mxu0 %v4311
    %6775 = vmatpush1.msra.mxu0 %v4310
    %6776 = vmatprep.subr.mxu0 %v4321
    %6777 = vmatpush1.msra.mxu0 %v4320
    %6778 = vmatprep.subr.mxu0 %v4331
    %6779 = vmatpush1.msra.mxu0 %v4330
    %6780 = vmatprep.subr.mxu0 %v4341
    %6781 = vmatpush1.msra.mxu0 %v4340
    %6782 = vmatprep.subr.mxu0 %v4351
    %6783 = vmatpush1.msra.mxu0 %v4350
    %6784 = vmatprep.subr.mxu0 %v4361
    %6785 = vmatpush1.msra.mxu0 %v4360
    %6786 = vmatprep.subr.mxu0 %v4371
    %6787 = vmatpush1.msra.mxu0 %v4370
    %6788 = vmatprep.subr.mxu0 %v4381
    %6789 = vmatpush1.msra.mxu0 %v4380
    %6790 = vmatprep.subr.mxu0 %v4391
    %6791 = vmatpush1.msra.mxu0 %v4390
    %6792 = vmatprep.subr.mxu0 %v4401
    %6793 = vmatpush1.msra.mxu0 %v4400
    %6794 = vmatprep.subr.mxu0 %v4411
    %6795 = vmatpush1.msra.mxu0 %v4410
    %6796 = vmatprep.subr.mxu0 %v4421
    %6797 = vmatpush1.msra.mxu0 %v4420
    %6798 = vmatprep.subr.mxu0 %v4431
    %6799 = vmatpush1.msra.mxu0 %v4430
    %6800 = vmatprep.subr.mxu0 %v4441
    %6801 = vmatpush1.msra.mxu0 %v4440
    %6802 = vmatprep.subr.mxu0 %v4451
    %6803 = vmatpush1.msra.mxu0 %v4450
    %6804 = vmatprep.subr.mxu0 %v4461
    %6805 = vmatpush1.msra.mxu0 %v4460
    %6806 = vmatprep.subr.mxu0 %v4471
    %6807 = vmatpush1.msra.mxu0 %v4470
    %6808 = vmatprep.subr.mxu0 %v4481
    %6809 = vmatpush1.msra.mxu0 %v4480
    %6810 = vmatprep.subr.mxu0 %v4491
    %6811 = vmatpush1.msra.mxu0 %v4490
    %6812 = vmatprep.mubr.f32.mxu0 %v3527
    %6813 = vmatmul.mubr.f32.gmra.mrb[0].mxu0 %v3526
    %v6814 = vpop.f32.mrb[0].mxu0
    %v6815 = vadd.f32 %v6744, %v6814
    %v6816 = vpop.f32.mrb[0].mxu0
    %v6817 = vadd.f32 %v6746, %v6816
    %6818 = vdwg.mxu0
    %6819 = vmatprep.subr.mxu0 %v4501
    %6820 = vmatpush1.msra.mxu0 %v4500
    %6821 = vmatprep.subr.mxu0 %v4511
    %6822 = vmatpush1.msra.mxu0 %v4510
    %6823 = vmatprep.subr.mxu0 %v4521
    %6824 = vmatpush1.msra.mxu0 %v4520
    %6825 = vmatprep.subr.mxu0 %v4531
    %6826 = vmatpush1.msra.mxu0 %v4530
    %6827 = vmatprep.subr.mxu0 %v4541
    %6828 = vmatpush1.msra.mxu0 %v4540
    %6829 = vmatprep.subr.mxu0 %v4551
    %6830 = vmatpush1.msra.mxu0 %v4550
    %6831 = vmatprep.subr.mxu0 %v4561
    %6832 = vmatpush1.msra.mxu0 %v4560
    %6833 = vmatprep.subr.mxu0 %v4571
    %6834 = vmatpush1.msra.mxu0 %v4570
    %6835 = vmatprep.subr.mxu0 %v4581
    %6836 = vmatpush1.msra.mxu0 %v4580
    %6837 = vmatprep.subr.mxu0 %v4591
    %6838 = vmatpush1.msra.mxu0 %v4590
    %6839 = vmatprep.subr.mxu0 %v4601
    %6840 = vmatpush1.msra.mxu0 %v4600
    %6841 = vmatprep.subr.mxu0 %v4611
    %6842 = vmatpush1.msra.mxu0 %v4610
    %6843 = vmatprep.subr.mxu0 %v4621
    %6844 = vmatpush1.msra.mxu0 %v4620
    %6845 = vmatprep.subr.mxu0 %v4631
    %6846 = vmatpush1.msra.mxu0 %v4630
    %6847 = vmatprep.subr.mxu0 %v4641
    %6848 = vmatpush1.msra.mxu0 %v4640
    %6849 = vmatprep.subr.mxu0 %v4651
    %6850 = vmatpush1.msra.mxu0 %v4650
    %6851 = vmatprep.subr.mxu0 %v4661
    %6852 = vmatpush1.msra.mxu0 %v4660
    %6853 = vmatprep.subr.mxu0 %v4671
    %6854 = vmatpush1.msra.mxu0 %v4670
    %6855 = vmatprep.subr.mxu0 %v4681
    %6856 = vmatpush1.msra.mxu0 %v4680
    %6857 = vmatprep.subr.mxu0 %v4691
    %6858 = vmatpush1.msra.mxu0 %v4690
    %6859 = vmatprep.subr.mxu0 %v4701
    %6860 = vmatpush1.msra.mxu0 %v4700
    %6861 = vmatprep.subr.mxu0 %v4711
    %6862 = vmatpush1.msra.mxu0 %v4710
    %6863 = vmatprep.subr.mxu0 %v4721
    %6864 = vmatpush1.msra.mxu0 %v4720
    %6865 = vmatprep.subr.mxu0 %v4731
    %6866 = vmatpush1.msra.mxu0 %v4730
    %6867 = vmatprep.subr.mxu0 %v4741
    %6868 = vmatpush1.msra.mxu0 %v4740
    %6869 = vmatprep.subr.mxu0 %v4751
    %6870 = vmatpush1.msra.mxu0 %v4750
    %6871 = vmatprep.subr.mxu0 %v4761
    %6872 = vmatpush1.msra.mxu0 %v4760
    %6873 = vmatprep.subr.mxu0 %v4771
    %6874 = vmatpush1.msra.mxu0 %v4770
    %6875 = vmatprep.subr.mxu0 %v4781
    %6876 = vmatpush1.msra.mxu0 %v4780
    %6877 = vmatprep.subr.mxu0 %v4791
    %6878 = vmatpush1.msra.mxu0 %v4790
    %6879 = vmatprep.subr.mxu0 %v4801
    %6880 = vmatpush1.msra.mxu0 %v4800
    %6881 = vmatprep.subr.mxu0 %v4811
    %6882 = vmatpush1.msra.mxu0 %v4810
    %6883 = vmatprep.mubr.f32.mxu0 %v3529
    %6884 = vmatmul.mubr.f32.gmra.mrb[0].mxu0 %v3528
    %v6885 = vpop.f32.mrb[0].mxu0
    %v6886 = vadd.f32 %v6815, %v6885
    %v6887 = vpop.f32.mrb[0].mxu0
    %v6888 = vadd.f32 %v6817, %v6887
    %6889 = vdwg.mxu0
    %6890 = vmatprep.subr.mxu0 %v4821
    %6891 = vmatpush1.msra.mxu0 %v4820
    %6892 = vmatprep.subr.mxu0 %v4831
    %6893 = vmatpush1.msra.mxu0 %v4830
    %6894 = vmatprep.subr.mxu0 %v4841
    %6895 = vmatpush1.msra.mxu0 %v4840
    %6896 = vmatprep.subr.mxu0 %v4851
    %6897 = vmatpush1.msra.mxu0 %v4850
    %6898 = vmatprep.subr.mxu0 %v4861
    %6899 = vmatpush1.msra.mxu0 %v4860
    %6900 = vmatprep.subr.mxu0 %v4871
    %6901 = vmatpush1.msra.mxu0 %v4870
    %6902 = vmatprep.subr.mxu0 %v4881
    %6903 = vmatpush1.msra.mxu0 %v4880
    %6904 = vmatprep.subr.mxu0 %v4891
    %6905 = vmatpush1.msra.mxu0 %v4890
    %6906 = vmatprep.subr.mxu0 %v4901
    %6907 = vmatpush1.msra.mxu0 %v4900
    %6908 = vmatprep.subr.mxu0 %v4911
    %6909 = vmatpush1.msra.mxu0 %v4910
    %6910 = vmatprep.subr.mxu0 %v4921
    %6911 = vmatpush1.msra.mxu0 %v4920
    %6912 = vmatprep.subr.mxu0 %v4931
    %6913 = vmatpush1.msra.mxu0 %v4930
    %6914 = vmatprep.subr.mxu0 %v4941
    %6915 = vmatpush1.msra.mxu0 %v4940
    %6916 = vmatprep.subr.mxu0 %v4951
    %6917 = vmatpush1.msra.mxu0 %v4950
    %6918 = vmatprep.subr.mxu0 %v4961
    %6919 = vmatpush1.msra.mxu0 %v4960
    %6920 = vmatprep.subr.mxu0 %v4971
    %6921 = vmatpush1.msra.mxu0 %v4970
    %6922 = vmatprep.subr.mxu0 %v4981
    %6923 = vmatpush1.msra.mxu0 %v4980
    %6924 = vmatprep.subr.mxu0 %v4991
    %6925 = vmatpush1.msra.mxu0 %v4990
    %6926 = vmatprep.subr.mxu0 %v5001
    %6927 = vmatpush1.msra.mxu0 %v5000
    %6928 = vmatprep.subr.mxu0 %v5011
    %6929 = vmatpush1.msra.mxu0 %v5010
    %6930 = vmatprep.subr.mxu0 %v5021
    %6931 = vmatpush1.msra.mxu0 %v5020
    %6932 = vmatprep.subr.mxu0 %v5031
    %6933 = vmatpush1.msra.mxu0 %v5030
    %6934 = vmatprep.subr.mxu0 %v5041
    %6935 = vmatpush1.msra.mxu0 %v5040
    %6936 = vmatprep.subr.mxu0 %v5051
    %6937 = vmatpush1.msra.mxu0 %v5050
    %6938 = vmatprep.subr.mxu0 %v5061
    %6939 = vmatpush1.msra.mxu0 %v5060
    %6940 = vmatprep.subr.mxu0 %v5071
    %6941 = vmatpush1.msra.mxu0 %v5070
    %6942 = vmatprep.subr.mxu0 %v5081
    %6943 = vmatpush1.msra.mxu0 %v5080
    %6944 = vmatprep.subr.mxu0 %v5091
    %6945 = vmatpush1.msra.mxu0 %v5090
    %6946 = vmatprep.subr.mxu0 %v5101
    %6947 = vmatpush1.msra.mxu0 %v5100
    %6948 = vmatprep.subr.mxu0 %v5111
    %6949 = vmatpush1.msra.mxu0 %v5110
    %6950 = vmatprep.subr.mxu0 %v5121
    %6951 = vmatpush1.msra.mxu0 %v5120
    %6952 = vmatprep.subr.mxu0 %v5131
    %6953 = vmatpush1.msra.mxu0 %v5130
    %6954 = vmatprep.mubr.f32.mxu0 %v3531
    %6955 = vmatmul.mubr.f32.gmra.mrb[0].mxu0 %v3530
    %v6956 = vpop.f32.mrb[0].mxu0
    %v6957 = vadd.f32 %v6886, %v6956
    %v6958 = vpop.f32.mrb[0].mxu0
    %v6959 = vadd.f32 %v6888, %v6958
    %6960 = vdwg.mxu0
    %6961 = vst [vmem:[#allocation11] sm:$0xff] %v5537
    %6962 = vst [vmem:[#allocation11 + $0x8] sm:$0xff] %v5539
    %6963 = vst [vmem:[#allocation11 + $0x10] sm:$0xff] %v5892
    %6964 = vst [vmem:[#allocation11 + $0x18] sm:$0xff] %v5894
    %6965 = vst [vmem:[#allocation11 + $0x20] sm:$0xff] %v6247
    %6966 = vst [vmem:[#allocation11 + $0x28] sm:$0xff] %v6249
    %6967 = vst [vmem:[#allocation11 + $0x30] sm:$0xff] %v6602
    %6968 = vst [vmem:[#allocation11 + $0x38] sm:$0xff] %v6604
    %6969 = vst [vmem:[#allocation11 + $0x40] sm:$0xff] %v6957
    %6970 = vst [vmem:[#allocation11 + $0x48] sm:$0xff] %v6959
    // Predicated region
    $region42: #{tpu_custom_call.1} parent=1 // pred_check
      _
    $region43: #{tpu_custom_call.1} parent=1 // pred_check_branch
      %6972 = sbr.rel (0) target = $region45
    $region44: #{tpu_custom_call.1} parent=1 // pred_region
      %s6974 = ssub.s32 1280, 1280
      %6975 = vsyncadd [#allocation4], %s6974
      %s6977 = sshll.u32 [#allocation11], 4
      %s6978 = int_to_ptr.vmem [resolvable:$true] %s6977
      %6980 = dma.vmem_to_hbm [thread:$0]  %s6978, 1280, %s5, [#allocation4]
    $region45: #{tpu_custom_call.1} parent=1 // pred_fallthru
      _
    // Predicated region
    $region46: #{tpu_custom_call.1} parent=1 // pred_check
      _
    $region47: #{tpu_custom_call.1} parent=1 // pred_check_branch
      %6982 = sbr.rel (0) target = $region49
    $region48: #{tpu_custom_call.1} parent=1 // pred_region
      %6983 = dma.done [#allocation4], 1280
    $region49: #{tpu_custom_call.1} parent=1 // pred_fallthru
      _
    %6984 = vsyncpa [#allocation3], 1
    %6985 = vsyncpa [#allocation6], 1
    %6986 = vsyncpa [#allocation9], 1
    %6987 = vsyncpa [#allocation4], 1

</llo_original>
